<compile_context>
chip_gen: v6e
topology: v6e:2x2x1
jax: 0.10.0
libtpu: 0.0.40
codegen_flags: <defaults>
</compile_context>

<pallas_src>
import numpy as np
import jax
import jax.numpy as jnp
from jax import lax
from jax.experimental import pallas as pl
from jax.experimental.pallas import tpu as pltpu

# ----------------------------- problem sizes --------------------------------
B = 2              # batch
C_IN = 2           # c_in
C_OUT = 4          # c_out
N_NODES = 16       # num_nodes
WEEK, DAY, RECENT = 24, 24, 12
T_LEN = WEEK + DAY + RECENT   # = 60; forward hard-codes slices 0:12/12:24/24:36/36:60
K_CHEB = 3         # K  (Chebyshev order)
KT = 3             # Kt (temporal kernel; padding (0,1) keeps length for Kt=3)

BN2D_SCALE = float(1.0 / np.sqrt(1.0 + 1e-5))   # BatchNorm2d(affine=False), eval
BN1D_SCALE = float(1.0 / np.sqrt(1.0 + 1e-5))   # BatchNorm1d inside TATT_1, eval
LRELU = 0.01
LN_EPS = 1e-5

# host-built constant selector matrices -------------------------------------
_PM = np.eye(T_LEN, k=1, dtype=np.float32)    # x @ _PM -> x[:, t-1] (0 at t==0)
_NM = np.eye(T_LEN, k=-1, dtype=np.float32)   # x @ _NM -> x[:, t+1] (0 at t==T-1)


def _head_selectors():
    w1s = np.zeros((T_LEN, RECENT), np.float32); w1s[0:12, :] = np.eye(12)
    w2s = np.zeros((T_LEN, RECENT), np.float32); w2s[12:24, :] = np.eye(12)
    w3s = np.zeros((T_LEN, RECENT), np.float32); w3s[24:36, :] = np.eye(12)
    se = np.zeros((T_LEN, RECENT), np.float32)
    so = np.zeros((T_LEN, RECENT), np.float32)
    q = np.arange(RECENT)
    se[36 + 2 * q, q] = 1.0       # (1,2) stride-2 conv, even tap
    so[36 + 2 * q + 1, q] = 1.0   # (1,2) stride-2 conv, odd tap
    return w1s, w2s, w3s, se, so


_W1S, _W2S, _W3S, _SE, _SO = _head_selectors()


def _lrelu(z):
    return jnp.where(z >= 0, z, LRELU * z)


def _dot(a, b):
    return jnp.dot(a, b, preferred_element_type=jnp.float32)


# --------------------- ST_BLOCK_2 (in-kernel, MXU-mapped) ---------------------
def _st_block(x_s, lbd_ref, pm, nm, refs):
    """One ST_BLOCK_2 on a (c_in*N, T) tile; returns a (c_out*N, T) tile."""
    (wc1, bc1, wtc, btc, wg, bg, wt1k, w2bd, watt, bb, v, gamma, beta) = refs
    n, t, half = N_NODES, T_LEN, C_OUT * N_NODES

    # conv1 (1x1) residual path: kron(wc1, I_N) @ x  (one matmul).
    x_in = _dot(wc1[...], x_s) + bc1[...]                          # (c_out*N, T)

    # time_conv (1, Kt=3), padding (0,1): stack [x(t-1); x(t); x(t+1)] along
    # sublanes, one kron(wtc, I_N) matmul.  dropout (eval) = identity.
    xp = _dot(x_s, pm)
    xn = _dot(x_s, nm)
    x_t = _lrelu(_dot(wtc[...], jnp.concatenate([xp, x_s, xn], axis=0))
                 + btc[...])                                       # (c_out*N, T)

    # dynamic Chebyshev gated graph conv (T_cheby_conv_ds): stack every
    # (order k, time shift kt) feature into one (K*Kt*c_out*N, T) slab and do a
    # single (2*c_out*N, K*Kt*c_out*N)=(128,576) MXU matmul (kron(wg, I_N) is
    # host-built).  laps[0] = I, so order 0 needs no laplacian matmul.
    blocks = []
    for kk in range(K_CHEB):
        s_k = x_t if kk == 0 else _dot(lbd_ref[kk - 1], x_t)
        blocks += [_dot(s_k, pm), s_k, _dot(s_k, nm)]
    g = _dot(wg[...], jnp.concatenate(blocks, axis=0)) + bg[...]   # (2*c_out*N, T)
    x1 = jax.nn.sigmoid(g[half:]) * _lrelu(g[:half]) + x_in        # (c_out*N, T)

    # TATT_1 temporal attention (BatchNorm1d eval == constant scale).
    f1 = _dot(wt1k[...], x1).T                                     # (T, N)
    f2 = _dot(w2bd[...], x1)                                       # (c_out, T)
    logits = jax.nn.sigmoid(_dot(_dot(f1, watt[...]), f2) + bb[...])
    logits = _dot(v[...], logits) * BN1D_SCALE                     # (T, T)
    mx = jnp.max(logits, axis=-1, keepdims=True)
    e = jnp.exp(logits - mx)
    coefs = e / jnp.sum(e, axis=-1, keepdims=True)                 # exact softmax

    # einsum('cnl,lq->cnq') + residual, then LayerNorm over [c_out, N, T].
    y = _lrelu(_dot(x1, coefs.T)) + x_in
    cnt = float(C_OUT * n * t)
    mean = jnp.sum(y, keepdims=True) / cnt                         # (1, 1)
    var = jnp.sum((y - mean) ** 2, keepdims=True) / cnt
    inv = lax.rsqrt(var + LN_EPS)
    return (y - mean) * inv * gamma[...] + beta[...]


# ---------------------- fused DGCN kernel (block1+block2+head) ----------------
def _dgcn_kernel(x_ref, pm_ref, nm_ref, lbd_ref, *refs):
    b1, b2 = refs[0:13], refs[13:26]
    wh_ref, hb_ref, o_ref = refs[26], refs[27], refs[28]

    pm, nm = pm_ref[...], nm_ref[...]
    y1 = _st_block(x_ref[0], lbd_ref, pm, nm, b1)
    y2 = _st_block(y1, lbd_ref, pm, nm, b2)

    # output head: per-channel (T, 12) matrices (host-folded 1x1 window convs +
    # stride-2 (1,2) conv) -> 4 small MXU matmuls; single summed bias from SMEM.
    acc = jnp.zeros((N_NODES, RECENT), jnp.float32) + hb_ref[0]
    for c in range(C_OUT):
        acc = acc + _dot(y2[c * N_NODES:(c + 1) * N_NODES, :], wh_ref[c])
    o_ref[0] = acc


# ------------------------------- pallas_call ----------------------------------
def _full_spec(shape):
    if len(shape) == 2:
        return pl.BlockSpec(shape, lambda i: (0, 0))
    return pl.BlockSpec(shape, lambda i: (0, 0, 0))


def _block_weight_specs(c_in):
    n, t, co = N_NODES, T_LEN, C_OUT
    shapes = [
        (co * n, c_in * n), (co * n, 1),                       # conv1 kron + bias
        (co * n, KT * c_in * n), (co * n, 1),                  # time_conv kron + bias
        (2 * co * n, K_CHEB * KT * co * n), (2 * co * n, 1),   # cheby/gating kron + bias
        (n, co * n), (co, co * n), (n, co),                    # wt1 kron, wt2 kron, w_att
        (t, t), (t, t),                                        # TATT b, v
        (co * n, t), (co * n, t),                              # LayerNorm gamma, beta
    ]
    return [_full_spec(s) for s in shapes]


def _dgcn_pallas_call(b):
    n, t = N_NODES, T_LEN
    in_specs = (
        [pl.BlockSpec((1, C_IN * n, t), lambda i: (i, 0, 0)),      # x (per batch)
         _full_spec((t, t)), _full_spec((t, t)),                   # +/-1 shift matrices
         _full_spec((K_CHEB - 1, C_OUT * n, C_OUT * n))]           # Chebyshev kron ops
        + _block_weight_specs(C_IN)                                # block1 weights
        + _block_weight_specs(C_OUT)                               # block2 weights
        + [_full_spec((C_OUT, t, RECENT)),                         # head matrices
           pl.BlockSpec(memory_space=pltpu.MemorySpace.SMEM)]      # head bias (scalar)
    )
    return pl.pallas_call(
        _dgcn_kernel,
        out_shape=jax.ShapeDtypeStruct((b, n, RECENT), jnp.float32),
        grid=(b,),
        in_specs=in_specs,
        out_specs=pl.BlockSpec((1, n, RECENT), lambda i: (i, 0, 0)),
        compiler_params=pltpu.CompilerParams(
            dimension_semantics=("parallel",)),      # 2 TensorCores on v7x
    )


# ------------------------------ params & forward ------------------------------
def init_params(key):
    ks = iter(jax.random.split(key, 40))

    def u(shape, scale=0.2):
        return jax.random.uniform(next(ks), shape, jnp.float32, -scale, scale)

    def block_params(c_in, c_out):
        return dict(
            wc1=u((c_out, c_in)), bc1=u((c_out,)),
            wtc=u((c_out, c_in * KT)), btc=u((c_out,)),
            wg=u((2 * c_out, c_out * K_CHEB * KT)), bg=u((2 * c_out,)),
            wt1=u((c_out,)), wt2=u((1, N_NODES)), w_att=u((N_NODES, c_out)),
            bb=jnp.zeros((T_LEN, T_LEN), jnp.float32),          # nn.Parameter zeros
            v=u((T_LEN, T_LEN)),
            gamma=jnp.ones((c_out, N_NODES, T_LEN), jnp.float32),   # LayerNorm weight
            beta=jnp.zeros((c_out, N_NODES, T_LEN), jnp.float32),   # LayerNorm bias
        )

    return dict(
        h=jax.random.uniform(next(ks), (N_NODES, N_NODES), jnp.float32, 0.0, 1e-4),
        block1=block_params(C_IN, C_OUT),
        block2=block_params(C_OUT, C_OUT),
        head=dict(w1=u((C_OUT,)), w2=u((C_OUT,)), w3=u((C_OUT,)),
                  w4=u((C_OUT, 2)), bias=u((4,))),
    )


def _block_operands(p, c_in, eye_n):
    """Host-side kron expansion of one ST_BLOCK_2's weights (perf review #1/#2)."""
    co = C_OUT
    wc1k = jnp.kron(p["wc1"], eye_n)                                   # (co*N, c_in*N)
    bc1c = jnp.repeat(p["bc1"], N_NODES)[:, None]
    wtc_re = p["wtc"].reshape(co, c_in, KT).transpose(0, 2, 1).reshape(co, KT * c_in)
    wtck = jnp.kron(wtc_re, eye_n)                                     # (co*N, Kt*c_in*N)
    btcc = jnp.repeat(p["btc"], N_NODES)[:, None]
    wg_re = (p["wg"].reshape(2 * co, co, K_CHEB, KT)
             .transpose(0, 2, 3, 1).reshape(2 * co, K_CHEB * KT * co))
    wgk = jnp.kron(wg_re, eye_n)                                       # (2*co*N, K*Kt*co*N)
    bgc = jnp.repeat(p["bg"], N_NODES)[:, None]
    wt1k = jnp.kron(p["wt1"][None, :], eye_n)                          # (N, co*N)
    w2bd = jnp.kron(jnp.eye(co, dtype=jnp.float32), p["wt2"])          # (co, co*N)
    return [wc1k, bc1c, wtck, btcc, wgk, bgc, wt1k, w2bd, p["w_att"],
            p["bb"], p["v"],
            p["gamma"].reshape(co * N_NODES, T_LEN),
            p["beta"].reshape(co * N_NODES, T_LEN)]


@jax.jit
def dgcn_forward(params, x_w, x_d, x_r, supports):
    f32 = jnp.float32
    # eval-mode semantics: BatchNorm2d(affine=False) with running stats (0,1) is a
    # constant scale (folded here); F.dropout(0.5) is the identity.
    # TODO(synk): training-mode dropout / batch-statistic BatchNorm are stochastic;
    #             this implements the deterministic eval-mode forward.
    x = jnp.concatenate([x_w, x_d, x_r], axis=-1) * BN2D_SCALE       # (B, C_in, N, 60)
    b = x.shape[0]
    x2 = x.reshape(b, C_IN * N_NODES, T_LEN)                         # rows = [c][n]

    # adjacency normalization + Chebyshev / kron operators: tiny 16x16 math in jnp.
    a = params["h"] + supports
    a_norm = a / (jnp.sum(a, axis=-1, keepdims=True) + 1e-4)         # A = D^-1 (h+supports)
    eye_n = jnp.eye(N_NODES, dtype=f32)
    eye_c = jnp.eye(C_OUT, dtype=f32)
    lap2 = 2.0 * jnp.dot(a_norm, a_norm) - eye_n                     # Chebyshev order 2
    lbd = jnp.stack([jnp.kron(eye_c, a_norm), jnp.kron(eye_c, lap2)])  # (K-1, 64, 64)

    ph = params["head"]
    wh = (ph["w1"][:, None, None] * _W1S + ph["w2"][:, None, None] * _W2S
          + ph["w3"][:, None, None] * _W3S
          + ph["w4"][:, 0][:, None, None] * _SE
          + ph["w4"][:, 1][:, None, None] * _SO)                     # (C_OUT, T, 12)
    hb = jnp.sum(ph["bias"]).reshape(1)

    args = ([x2, jnp.asarray(_PM), jnp.asarray(_NM), lbd]
            + _block_operands(params["block1"], C_IN, eye_n)
            + _block_operands(params["block2"], C_OUT, eye_n)
            + [wh, hb])
    out = _dgcn_pallas_call(b)(*args)
    # d_adj returned by block2 is its `supports` arg (= A1 = a_norm in eval mode).
    return out, a_norm, a_norm


# ------------------- straightforward jnp reference (checking) -----------------
def _dgcn_reference(params, x_w, x_d, x_r, supports):
    f32 = jnp.float32
    x = jnp.concatenate([x_w, x_d, x_r], axis=-1) * BN2D_SCALE
    a = params["h"] + supports
    a_norm = a / (jnp.sum(a, axis=-1, keepdims=True) + 1e-4)
    eye_n = jnp.eye(N_NODES, dtype=f32)
    laps = [eye_n, a_norm, 2.0 * a_norm @ a_norm - eye_n]

    def leaky(z):
        return jnp.where(z >= 0, z, LRELU * z)

    def st_block(p, xb, c_in):
        bsz, _, n, t = xb.shape
        co = C_OUT
        x_in = jnp.einsum('oi,bint->bont', p["wc1"], xb) + p["bc1"][None, :, None, None]
        xpad = jnp.pad(xb, ((0, 0), (0, 0), (0, 0), (1, 1)))
        wtc = p["wtc"].reshape(co, c_in, KT)
        x_t = sum(jnp.einsum('oi,bint->bont', wtc[:, :, kt], xpad[..., kt:kt + t])
                  for kt in range(KT)) + p["btc"][None, :, None, None]
        x_t = leaky(x_t)
        feats = jnp.stack([jnp.einsum('qn,bcnt->bcqt', laps[k], x_t)
                           for k in range(K_CHEB)], axis=2)
        feats = feats.reshape(bsz, co * K_CHEB, n, t)
        fpad = jnp.pad(feats, ((0, 0), (0, 0), (0, 0), (1, 1)))
        wg = p["wg"].reshape(2 * co, co * K_CHEB, KT)
        g = sum(jnp.einsum('oi,bint->bont', wg[:, :, kt], fpad[..., kt:kt + t])
                for kt in range(KT)) + p["bg"][None, :, None, None]
        filt, gate = g[:, :co], g[:, co:]
        x1 = jax.nn.sigmoid(gate) * leaky(filt) + x_in
        f1 = jnp.einsum('c,bcnt->btn', p["wt1"], x1)
        f2 = jnp.einsum('n,bcnt->bct', p["wt2"][0], x1)
        logits = jax.nn.sigmoid(
            jnp.einsum('btn,nc,bcl->btl', f1, p["w_att"], f2) + p["bb"])
        logits = jnp.einsum('tu,bul->btl', p["v"], logits) * BN1D_SCALE
        coefs = jax.nn.softmax(logits, axis=-1)
        t_coef = jnp.swapaxes(coefs, -1, -2)
        y = jnp.einsum('bcnl,blq->bcnq', x1, t_coef)
        y = leaky(y) + x_in
        mean = jnp.mean(y, axis=(1, 2, 3), keepdims=True)
        var = jnp.mean((y - mean) ** 2, axis=(1, 2, 3), keepdims=True)
        return (y - mean) / jnp.sqrt(var + LN_EPS) * p["gamma"][None] + p["beta"][None]

    y1 = st_block(params["block1"], x, C_IN)
    y2 = st_block(params["block2"], y1, C_OUT)
    ph = params["head"]
    o1 = jnp.einsum('c,bcnt->bnt', ph["w1"], y2[..., 0:12])
    o2 = jnp.einsum('c,bcnt->bnt', ph["w2"], y2[..., 12:24])
    o3 = jnp.einsum('c,bcnt->bnt', ph["w3"], y2[..., 24:36])
    x4 = y2[..., 36:60]
    o4 = (jnp.einsum('c,bcnt->bnt', ph["w4"][:, 0], x4[..., 0::2])
          + jnp.einsum('c,bcnt->bnt', ph["w4"][:, 1], x4[..., 1::2]))
    out = o1 + o2 + o3 + o4 + jnp.sum(ph["bias"])
    return out, a_norm, a_norm


if __name__ == "__main__":
    key = jax.random.PRNGKey(0)
    kp, kw, kd, kr, ks = jax.random.split(key, 5)
    params = init_params(kp)
    x_w = jax.random.normal(kw, (B, C_IN, N_NODES, WEEK), jnp.float32)
    x_d = jax.random.normal(kd, (B, C_IN, N_NODES, DAY), jnp.float32)
    x_r = jax.random.normal(kr, (B, C_IN, N_NODES, RECENT), jnp.float32)
    supports = jax.random.uniform(ks, (N_NODES, N_NODES), jnp.float32, 0.0, 1.0)

    out, d_adj, a = dgcn_forward(params, x_w, x_d, x_r, supports)
    jax.block_until_ready((out, d_adj, a))
    assert out.shape == (B, N_NODES, RECENT)
    assert d_adj.shape == (N_NODES, N_NODES) and a.shape == (N_NODES, N_NODES)
    assert bool(jnp.all(jnp.isfinite(out)))

    # cross-check the fused kernel against a plain-jnp reference of the same
    # eval-mode forward (loose tolerance: default TPU matmul precision differs
    # between the two paths).
    ref_out, _, _ = jax.jit(_dgcn_reference)(params, x_w, x_d, x_r, supports)
    err = float(jnp.max(jnp.abs(out - ref_out)))
    assert err < 1e-1, f"kernel/reference mismatch: max abs err = {err}"
    print("KERNEL_OK")
</pallas_src>

<mosaic_0001>
module attributes {stable_mosaic.version = 11 : i64} {
  func.func @_dgcn_kernel(%arg0: i32, %arg1: memref<1x32x60xf32, #tpu.memory_space<vmem>>, %arg2: memref<60x60xf32, #tpu.memory_space<vmem>>, %arg3: memref<60x60xf32, #tpu.memory_space<vmem>>, %arg4: memref<2x64x64xf32, #tpu.memory_space<vmem>>, %arg5: memref<64x32xf32, #tpu.memory_space<vmem>>, %arg6: memref<64x1xf32, #tpu.memory_space<vmem>>, %arg7: memref<64x96xf32, #tpu.memory_space<vmem>>, %arg8: memref<64x1xf32, #tpu.memory_space<vmem>>, %arg9: memref<128x576xf32, #tpu.memory_space<vmem>>, %arg10: memref<128x1xf32, #tpu.memory_space<vmem>>, %arg11: memref<16x64xf32, #tpu.memory_space<vmem>>, %arg12: memref<4x64xf32, #tpu.memory_space<vmem>>, %arg13: memref<16x4xf32, #tpu.memory_space<vmem>>, %arg14: memref<60x60xf32, #tpu.memory_space<vmem>>, %arg15: memref<60x60xf32, #tpu.memory_space<vmem>>, %arg16: memref<64x60xf32, #tpu.memory_space<vmem>>, %arg17: memref<64x60xf32, #tpu.memory_space<vmem>>, %arg18: memref<64x64xf32, #tpu.memory_space<vmem>>, %arg19: memref<64x1xf32, #tpu.memory_space<vmem>>, %arg20: memref<64x192xf32, #tpu.memory_space<vmem>>, %arg21: memref<64x1xf32, #tpu.memory_space<vmem>>, %arg22: memref<128x576xf32, #tpu.memory_space<vmem>>, %arg23: memref<128x1xf32, #tpu.memory_space<vmem>>, %arg24: memref<16x64xf32, #tpu.memory_space<vmem>>, %arg25: memref<4x64xf32, #tpu.memory_space<vmem>>, %arg26: memref<16x4xf32, #tpu.memory_space<vmem>>, %arg27: memref<60x60xf32, #tpu.memory_space<vmem>>, %arg28: memref<60x60xf32, #tpu.memory_space<vmem>>, %arg29: memref<64x60xf32, #tpu.memory_space<vmem>>, %arg30: memref<64x60xf32, #tpu.memory_space<vmem>>, %arg31: memref<4x60x12xf32, #tpu.memory_space<vmem>>, %arg32: memref<1xf32, #tpu.memory_space<smem>>, %arg33: memref<1x16x12xf32, #tpu.memory_space<vmem>>) attributes {dimension_semantics = [#tpu.dimension_semantics<parallel>], iteration_bounds = array<i64: 2>, scalar_prefetch = 0 : i64, scratch_operands = 0 : i64, tpu.core_type = #tpu.core_type<tc>, window_params = [{transform_indices = @transform_0, window_bounds = array<i64: 1, 32, 60>}, {pipeline_mode = #tpu.pipeline_mode<synchronous>, transform_indices = @transform_1, window_bounds = array<i64: 60, 60>}, {pipeline_mode = #tpu.pipeline_mode<synchronous>, transform_indices = @transform_2, window_bounds = array<i64: 60, 60>}, {pipeline_mode = #tpu.pipeline_mode<synchronous>, transform_indices = @transform_3, window_bounds = array<i64: 2, 64, 64>}, {pipeline_mode = #tpu.pipeline_mode<synchronous>, transform_indices = @transform_4, window_bounds = array<i64: 64, 32>}, {pipeline_mode = #tpu.pipeline_mode<synchronous>, transform_indices = @transform_5, window_bounds = array<i64: 64, 1>}, {pipeline_mode = #tpu.pipeline_mode<synchronous>, transform_indices = @transform_6, window_bounds = array<i64: 64, 96>}, {pipeline_mode = #tpu.pipeline_mode<synchronous>, transform_indices = @transform_7, window_bounds = array<i64: 64, 1>}, {pipeline_mode = #tpu.pipeline_mode<synchronous>, transform_indices = @transform_8, window_bounds = array<i64: 128, 576>}, {pipeline_mode = #tpu.pipeline_mode<synchronous>, transform_indices = @transform_9, window_bounds = array<i64: 128, 1>}, {pipeline_mode = #tpu.pipeline_mode<synchronous>, transform_indices = @transform_10, window_bounds = array<i64: 16, 64>}, {pipeline_mode = #tpu.pipeline_mode<synchronous>, transform_indices = @transform_11, window_bounds = array<i64: 4, 64>}, {pipeline_mode = #tpu.pipeline_mode<synchronous>, transform_indices = @transform_12, window_bounds = array<i64: 16, 4>}, {pipeline_mode = #tpu.pipeline_mode<synchronous>, transform_indices = @transform_13, window_bounds = array<i64: 60, 60>}, {pipeline_mode = #tpu.pipeline_mode<synchronous>, transform_indices = @transform_14, window_bounds = array<i64: 60, 60>}, {pipeline_mode = #tpu.pipeline_mode<synchronous>, transform_indices = @transform_15, window_bounds = array<i64: 64, 60>}, {pipeline_mode = #tpu.pipeline_mode<synchronous>, transform_indices = @transform_16, window_bounds = array<i64: 64, 60>}, {pipeline_mode = #tpu.pipeline_mode<synchronous>, transform_indices = @transform_17, window_bounds = array<i64: 64, 64>}, {pipeline_mode = #tpu.pipeline_mode<synchronous>, transform_indices = @transform_18, window_bounds = array<i64: 64, 1>}, {pipeline_mode = #tpu.pipeline_mode<synchronous>, transform_indices = @transform_19, window_bounds = array<i64: 64, 192>}, {pipeline_mode = #tpu.pipeline_mode<synchronous>, transform_indices = @transform_20, window_bounds = array<i64: 64, 1>}, {pipeline_mode = #tpu.pipeline_mode<synchronous>, transform_indices = @transform_21, window_bounds = array<i64: 128, 576>}, {pipeline_mode = #tpu.pipeline_mode<synchronous>, transform_indices = @transform_22, window_bounds = array<i64: 128, 1>}, {pipeline_mode = #tpu.pipeline_mode<synchronous>, transform_indices = @transform_23, window_bounds = array<i64: 16, 64>}, {pipeline_mode = #tpu.pipeline_mode<synchronous>, transform_indices = @transform_24, window_bounds = array<i64: 4, 64>}, {pipeline_mode = #tpu.pipeline_mode<synchronous>, transform_indices = @transform_25, window_bounds = array<i64: 16, 4>}, {pipeline_mode = #tpu.pipeline_mode<synchronous>, transform_indices = @transform_26, window_bounds = array<i64: 60, 60>}, {pipeline_mode = #tpu.pipeline_mode<synchronous>, transform_indices = @transform_27, window_bounds = array<i64: 60, 60>}, {pipeline_mode = #tpu.pipeline_mode<synchronous>, transform_indices = @transform_28, window_bounds = array<i64: 64, 60>}, {pipeline_mode = #tpu.pipeline_mode<synchronous>, transform_indices = @transform_29, window_bounds = array<i64: 64, 60>}, {pipeline_mode = #tpu.pipeline_mode<synchronous>, transform_indices = @transform_30, window_bounds = array<i64: 4, 60, 12>}, {transform_indices = @transform_31, window_bounds = array<i64: 1>}, {transform_indices = @transform_32, window_bounds = array<i64: 1, 16, 12>}]} {
    %c0 = arith.constant 0 : index
    %c0_0 = arith.constant 0 : index
    %0 = vector.load %arg2[%c0, %c0_0] : memref<60x60xf32, #tpu.memory_space<vmem>>, vector<60x60xf32>
    %c0_1 = arith.constant 0 : index
    %c0_2 = arith.constant 0 : index
    %1 = vector.load %arg3[%c0_1, %c0_2] : memref<60x60xf32, #tpu.memory_space<vmem>>, vector<60x60xf32>
    %c0_3 = arith.constant 0 : index
    %c0_4 = arith.constant 0 : index
    %c0_5 = arith.constant 0 : index
    %2 = vector.load %arg1[%c0_3, %c0_4, %c0_5] : memref<1x32x60xf32, #tpu.memory_space<vmem>>, vector<1x32x60xf32>
    %3 = vector.shape_cast %2 : vector<1x32x60xf32> to vector<32x60xf32>
    %c0_6 = arith.constant 0 : index
    %c0_7 = arith.constant 0 : index
    %4 = vector.load %arg5[%c0_6, %c0_7] : memref<64x32xf32, #tpu.memory_space<vmem>>, vector<64x32xf32>
    %cst = arith.constant dense<0.000000e+00> : vector<64x60xf32>
    %5 = tpu.matmul %4, %3, %cst {dimension_numbers = #tpu.dot_dimension_numbers<[1], [0], [0], [1], [0, 0, 1, 1], [], []>} : vector<64x32xf32>, vector<32x60xf32>, vector<64x60xf32> -> vector<64x60xf32>
    %c0_8 = arith.constant 0 : index
    %c0_9 = arith.constant 0 : index
    %6 = vector.load %arg6[%c0_8, %c0_9] : memref<64x1xf32, #tpu.memory_space<vmem>>, vector<64x1xf32>
    %7 = vector.broadcast %6 : vector<64x1xf32> to vector<64x60xf32>
    %8 = arith.addf %5, %7 : vector<64x60xf32>
    %cst_10 = arith.constant dense<0.000000e+00> : vector<32x60xf32>
    %9 = tpu.matmul %3, %0, %cst_10 {dimension_numbers = #tpu.dot_dimension_numbers<[1], [0], [0], [1], [0, 0, 1, 1], [], []>} : vector<32x60xf32>, vector<60x60xf32>, vector<32x60xf32> -> vector<32x60xf32>
    %cst_11 = arith.constant dense<0.000000e+00> : vector<32x60xf32>
    %10 = tpu.matmul %3, %1, %cst_11 {dimension_numbers = #tpu.dot_dimension_numbers<[1], [0], [0], [1], [0, 0, 1, 1], [], []>} : vector<32x60xf32>, vector<60x60xf32>, vector<32x60xf32> -> vector<32x60xf32>
    %c0_12 = arith.constant 0 : index
    %c0_13 = arith.constant 0 : index
    %11 = vector.load %arg7[%c0_12, %c0_13] : memref<64x96xf32, #tpu.memory_space<vmem>>, vector<64x96xf32>
    %12 = tpu.concatenate %9, %3, %10 in 0 : vector<32x60xf32>, vector<32x60xf32>, vector<32x60xf32> -> vector<96x60xf32>
    %cst_14 = arith.constant dense<0.000000e+00> : vector<64x60xf32>
    %13 = tpu.matmul %11, %12, %cst_14 {dimension_numbers = #tpu.dot_dimension_numbers<[1], [0], [0], [1], [0, 0, 1, 1], [], []>} : vector<64x96xf32>, vector<96x60xf32>, vector<64x60xf32> -> vector<64x60xf32>
    %c0_15 = arith.constant 0 : index
    %c0_16 = arith.constant 0 : index
    %14 = vector.load %arg8[%c0_15, %c0_16] : memref<64x1xf32, #tpu.memory_space<vmem>>, vector<64x1xf32>
    %15 = vector.broadcast %14 : vector<64x1xf32> to vector<64x60xf32>
    %16 = arith.addf %13, %15 : vector<64x60xf32>
    %cst_17 = arith.constant 0.000000e+00 : f32
    %17 = vector.broadcast %cst_17 : f32 to vector<64x60xf32>
    %18 = arith.cmpf oge, %16, %17 : vector<64x60xf32>
    %cst_18 = arith.constant 0.00999999977 : f32
    %19 = vector.broadcast %cst_18 : f32 to vector<64x60xf32>
    %20 = arith.mulf %19, %16 : vector<64x60xf32>
    %21 = arith.select %18, %16, %20 : vector<64x60xi1>, vector<64x60xf32>
    %cst_19 = arith.constant dense<0.000000e+00> : vector<64x60xf32>
    %22 = tpu.matmul %21, %0, %cst_19 {dimension_numbers = #tpu.dot_dimension_numbers<[1], [0], [0], [1], [0, 0, 1, 1], [], []>} : vector<64x60xf32>, vector<60x60xf32>, vector<64x60xf32> -> vector<64x60xf32>
    %cst_20 = arith.constant dense<0.000000e+00> : vector<64x60xf32>
    %23 = tpu.matmul %21, %1, %cst_20 {dimension_numbers = #tpu.dot_dimension_numbers<[1], [0], [0], [1], [0, 0, 1, 1], [], []>} : vector<64x60xf32>, vector<60x60xf32>, vector<64x60xf32> -> vector<64x60xf32>
    %c0_21 = arith.constant 0 : index
    %c0_22 = arith.constant 0 : index
    %c0_23 = arith.constant 0 : index
    %24 = vector.load %arg4[%c0_21, %c0_22, %c0_23] : memref<2x64x64xf32, #tpu.memory_space<vmem>>, vector<1x64x64xf32>
    %25 = vector.shape_cast %24 : vector<1x64x64xf32> to vector<64x64xf32>
    %cst_24 = arith.constant dense<0.000000e+00> : vector<64x60xf32>
    %26 = tpu.matmul %25, %21, %cst_24 {dimension_numbers = #tpu.dot_dimension_numbers<[1], [0], [0], [1], [0, 0, 1, 1], [], []>} : vector<64x64xf32>, vector<64x60xf32>, vector<64x60xf32> -> vector<64x60xf32>
    %cst_25 = arith.constant dense<0.000000e+00> : vector<64x60xf32>
    %27 = tpu.matmul %26, %0, %cst_25 {dimension_numbers = #tpu.dot_dimension_numbers<[1], [0], [0], [1], [0, 0, 1, 1], [], []>} : vector<64x60xf32>, vector<60x60xf32>, vector<64x60xf32> -> vector<64x60xf32>
    %cst_26 = arith.constant dense<0.000000e+00> : vector<64x60xf32>
    %28 = tpu.matmul %26, %1, %cst_26 {dimension_numbers = #tpu.dot_dimension_numbers<[1], [0], [0], [1], [0, 0, 1, 1], [], []>} : vector<64x60xf32>, vector<60x60xf32>, vector<64x60xf32> -> vector<64x60xf32>
    %c1 = arith.constant 1 : index
    %c0_27 = arith.constant 0 : index
    %c0_28 = arith.constant 0 : index
    %29 = vector.load %arg4[%c1, %c0_27, %c0_28] : memref<2x64x64xf32, #tpu.memory_space<vmem>>, vector<1x64x64xf32>
    %30 = vector.shape_cast %29 : vector<1x64x64xf32> to vector<64x64xf32>
    %cst_29 = arith.constant dense<0.000000e+00> : vector<64x60xf32>
    %31 = tpu.matmul %30, %21, %cst_29 {dimension_numbers = #tpu.dot_dimension_numbers<[1], [0], [0], [1], [0, 0, 1, 1], [], []>} : vector<64x64xf32>, vector<64x60xf32>, vector<64x60xf32> -> vector<64x60xf32>
    %cst_30 = arith.constant dense<0.000000e+00> : vector<64x60xf32>
    %32 = tpu.matmul %31, %0, %cst_30 {dimension_numbers = #tpu.dot_dimension_numbers<[1], [0], [0], [1], [0, 0, 1, 1], [], []>} : vector<64x60xf32>, vector<60x60xf32>, vector<64x60xf32> -> vector<64x60xf32>
    %cst_31 = arith.constant dense<0.000000e+00> : vector<64x60xf32>
    %33 = tpu.matmul %31, %1, %cst_31 {dimension_numbers = #tpu.dot_dimension_numbers<[1], [0], [0], [1], [0, 0, 1, 1], [], []>} : vector<64x60xf32>, vector<60x60xf32>, vector<64x60xf32> -> vector<64x60xf32>
    %c0_32 = arith.constant 0 : index
    %c0_33 = arith.constant 0 : index
    %34 = vector.load %arg9[%c0_32, %c0_33] : memref<128x576xf32, #tpu.memory_space<vmem>>, vector<128x576xf32>
    %35 = tpu.concatenate %22, %21, %23, %27, %26, %28, %32, %31, %33 in 0 : vector<64x60xf32>, vector<64x60xf32>, vector<64x60xf32>, vector<64x60xf32>, vector<64x60xf32>, vector<64x60xf32>, vector<64x60xf32>, vector<64x60xf32>, vector<64x60xf32> -> vector<576x60xf32>
    %cst_34 = arith.constant dense<0.000000e+00> : vector<128x60xf32>
    %36 = tpu.matmul %34, %35, %cst_34 {dimension_numbers = #tpu.dot_dimension_numbers<[1], [0], [0], [1], [0, 0, 1, 1], [], []>} : vector<128x576xf32>, vector<576x60xf32>, vector<128x60xf32> -> vector<128x60xf32>
    %c0_35 = arith.constant 0 : index
    %c0_36 = arith.constant 0 : index
    %37 = vector.load %arg10[%c0_35, %c0_36] : memref<128x1xf32, #tpu.memory_space<vmem>>, vector<128x1xf32>
    %38 = vector.broadcast %37 : vector<128x1xf32> to vector<128x60xf32>
    %39 = arith.addf %36, %38 : vector<128x60xf32>
    %40 = vector.extract_strided_slice %39 {offsets = [64, 0], sizes = [64, 60], strides = [1, 1]} : vector<128x60xf32> to vector<64x60xf32>
    %41 = arith.negf %40 : vector<64x60xf32>
    %42 = math.exp %41 : vector<64x60xf32>
    %cst_37 = arith.constant 1.000000e+00 : f32
    %43 = vector.broadcast %cst_37 : f32 to vector<64x60xf32>
    %44 = arith.addf %43, %42 : vector<64x60xf32>
    %45 = arith.divf %43, %44 : vector<64x60xf32>
    %46 = vector.extract_strided_slice %39 {offsets = [0, 0], sizes = [64, 60], strides = [1, 1]} : vector<128x60xf32> to vector<64x60xf32>
    %cst_38 = arith.constant 0.000000e+00 : f32
    %47 = vector.broadcast %cst_38 : f32 to vector<64x60xf32>
    %48 = arith.cmpf oge, %46, %47 : vector<64x60xf32>
    %cst_39 = arith.constant 0.00999999977 : f32
    %49 = vector.broadcast %cst_39 : f32 to vector<64x60xf32>
    %50 = arith.mulf %49, %46 : vector<64x60xf32>
    %51 = arith.select %48, %46, %50 : vector<64x60xi1>, vector<64x60xf32>
    %52 = arith.mulf %45, %51 : vector<64x60xf32>
    %53 = arith.addf %52, %8 : vector<64x60xf32>
    %c0_40 = arith.constant 0 : index
    %c0_41 = arith.constant 0 : index
    %54 = vector.load %arg11[%c0_40, %c0_41] : memref<16x64xf32, #tpu.memory_space<vmem>>, vector<16x64xf32>
    %cst_42 = arith.constant dense<0.000000e+00> : vector<16x60xf32>
    %55 = tpu.matmul %54, %53, %cst_42 {dimension_numbers = #tpu.dot_dimension_numbers<[1], [0], [0], [1], [0, 0, 1, 1], [], []>} : vector<16x64xf32>, vector<64x60xf32>, vector<16x60xf32> -> vector<16x60xf32>
    %56 = tpu.transpose %55, [1, 0] : vector<16x60xf32> -> vector<60x16xf32>
    %c0_43 = arith.constant 0 : index
    %c0_44 = arith.constant 0 : index
    %57 = vector.load %arg12[%c0_43, %c0_44] : memref<4x64xf32, #tpu.memory_space<vmem>>, vector<4x64xf32>
    %cst_45 = arith.constant dense<0.000000e+00> : vector<4x60xf32>
    %58 = tpu.matmul %57, %53, %cst_45 {dimension_numbers = #tpu.dot_dimension_numbers<[1], [0], [0], [1], [0, 0, 1, 1], [], []>} : vector<4x64xf32>, vector<64x60xf32>, vector<4x60xf32> -> vector<4x60xf32>
    %c0_46 = arith.constant 0 : index
    %c0_47 = arith.constant 0 : index
    %59 = vector.load %arg13[%c0_46, %c0_47] : memref<16x4xf32, #tpu.memory_space<vmem>>, vector<16x4xf32>
    %cst_48 = arith.constant dense<0.000000e+00> : vector<60x4xf32>
    %60 = tpu.matmul %56, %59, %cst_48 {dimension_numbers = #tpu.dot_dimension_numbers<[1], [0], [0], [1], [0, 0, 1, 1], [], []>} : vector<60x16xf32>, vector<16x4xf32>, vector<60x4xf32> -> vector<60x4xf32>
    %cst_49 = arith.constant dense<0.000000e+00> : vector<60x60xf32>
    %61 = tpu.matmul %60, %58, %cst_49 {dimension_numbers = #tpu.dot_dimension_numbers<[1], [0], [0], [1], [0, 0, 1, 1], [], []>} : vector<60x4xf32>, vector<4x60xf32>, vector<60x60xf32> -> vector<60x60xf32>
    %c0_50 = arith.constant 0 : index
    %c0_51 = arith.constant 0 : index
    %62 = vector.load %arg14[%c0_50, %c0_51] : memref<60x60xf32, #tpu.memory_space<vmem>>, vector<60x60xf32>
    %63 = arith.addf %61, %62 : vector<60x60xf32>
    %64 = arith.negf %63 : vector<60x60xf32>
    %65 = math.exp %64 : vector<60x60xf32>
    %cst_52 = arith.constant 1.000000e+00 : f32
    %66 = vector.broadcast %cst_52 : f32 to vector<60x60xf32>
    %67 = arith.addf %66, %65 : vector<60x60xf32>
    %68 = arith.divf %66, %67 : vector<60x60xf32>
    %c0_53 = arith.constant 0 : index
    %c0_54 = arith.constant 0 : index
    %69 = vector.load %arg15[%c0_53, %c0_54] : memref<60x60xf32, #tpu.memory_space<vmem>>, vector<60x60xf32>
    %cst_55 = arith.constant dense<0.000000e+00> : vector<60x60xf32>
    %70 = tpu.matmul %69, %68, %cst_55 {dimension_numbers = #tpu.dot_dimension_numbers<[1], [0], [0], [1], [0, 0, 1, 1], [], []>} : vector<60x60xf32>, vector<60x60xf32>, vector<60x60xf32> -> vector<60x60xf32>
    %cst_56 = arith.constant 0.999994993 : f32
    %71 = vector.broadcast %cst_56 : f32 to vector<60x60xf32>
    %72 = arith.mulf %70, %71 : vector<60x60xf32>
    %cst_57 = arith.constant dense<0xFF800000> : vector<60xf32>
    %73 = vector.multi_reduction <maximumf>, %72, %cst_57 [1] : vector<60x60xf32> to vector<60xf32>
    %74 = vector.shape_cast %73 : vector<60xf32> to vector<60x1xf32>
    %75 = vector.broadcast %74 : vector<60x1xf32> to vector<60x60xf32>
    %76 = arith.subf %72, %75 : vector<60x60xf32>
    %77 = math.exp %76 : vector<60x60xf32>
    %cst_58 = arith.constant dense<0.000000e+00> : vector<60xf32>
    %78 = vector.multi_reduction <add>, %77, %cst_58 [1] : vector<60x60xf32> to vector<60xf32>
    %79 = vector.shape_cast %78 : vector<60xf32> to vector<60x1xf32>
    %80 = vector.broadcast %79 : vector<60x1xf32> to vector<60x60xf32>
    %81 = arith.divf %77, %80 : vector<60x60xf32>
    %82 = tpu.transpose %81, [1, 0] : vector<60x60xf32> -> vector<60x60xf32>
    %cst_59 = arith.constant dense<0.000000e+00> : vector<64x60xf32>
    %83 = tpu.matmul %53, %82, %cst_59 {dimension_numbers = #tpu.dot_dimension_numbers<[1], [0], [0], [1], [0, 0, 1, 1], [], []>} : vector<64x60xf32>, vector<60x60xf32>, vector<64x60xf32> -> vector<64x60xf32>
    %cst_60 = arith.constant 0.000000e+00 : f32
    %84 = vector.broadcast %cst_60 : f32 to vector<64x60xf32>
    %85 = arith.cmpf oge, %83, %84 : vector<64x60xf32>
    %cst_61 = arith.constant 0.00999999977 : f32
    %86 = vector.broadcast %cst_61 : f32 to vector<64x60xf32>
    %87 = arith.mulf %86, %83 : vector<64x60xf32>
    %88 = arith.select %85, %83, %87 : vector<64x60xi1>, vector<64x60xf32>
    %89 = arith.addf %88, %8 : vector<64x60xf32>
    %90 = vector.shape_cast %89 : vector<64x60xf32> to vector<1x64x60xf32>
    %cst_62 = arith.constant dense<0.000000e+00> : vector<1xf32>
    %91 = vector.multi_reduction <add>, %90, %cst_62 [1, 2] : vector<1x64x60xf32> to vector<1xf32>
    %92 = vector.shape_cast %91 : vector<1xf32> to vector<1x1x1xf32>
    %93 = vector.extract %92[0, 0, 0] : f32 from vector<1x1x1xf32>
    %94 = vector.broadcast %93 : f32 to vector<1x1xf32>
    %cst_63 = arith.constant 3.840000e+03 : f32
    %95 = vector.broadcast %cst_63 : f32 to vector<1x1xf32>
    %96 = arith.divf %94, %95 : vector<1x1xf32>
    %97 = vector.broadcast %96 : vector<1x1xf32> to vector<64x60xf32>
    %98 = arith.subf %89, %97 : vector<64x60xf32>
    %99 = arith.mulf %98, %98 : vector<64x60xf32>
    %100 = vector.shape_cast %99 : vector<64x60xf32> to vector<1x64x60xf32>
    %cst_64 = arith.constant dense<0.000000e+00> : vector<1xf32>
    %101 = vector.multi_reduction <add>, %100, %cst_64 [1, 2] : vector<1x64x60xf32> to vector<1xf32>
    %102 = vector.shape_cast %101 : vector<1xf32> to vector<1x1x1xf32>
    %103 = vector.extract %102[0, 0, 0] : f32 from vector<1x1x1xf32>
    %104 = vector.broadcast %103 : f32 to vector<1x1xf32>
    %cst_65 = arith.constant 3.840000e+03 : f32
    %105 = vector.broadcast %cst_65 : f32 to vector<1x1xf32>
    %106 = arith.divf %104, %105 : vector<1x1xf32>
    %cst_66 = arith.constant 9.99999974E-6 : f32
    %107 = vector.broadcast %cst_66 : f32 to vector<1x1xf32>
    %108 = arith.addf %106, %107 : vector<1x1xf32>
    %109 = math.rsqrt %108 : vector<1x1xf32>
    %110 = vector.broadcast %96 : vector<1x1xf32> to vector<64x60xf32>
    %111 = arith.subf %89, %110 : vector<64x60xf32>
    %112 = vector.broadcast %109 : vector<1x1xf32> to vector<64x60xf32>
    %113 = arith.mulf %111, %112 : vector<64x60xf32>
    %c0_67 = arith.constant 0 : index
    %c0_68 = arith.constant 0 : index
    %114 = vector.load %arg16[%c0_67, %c0_68] : memref<64x60xf32, #tpu.memory_space<vmem>>, vector<64x60xf32>
    %115 = arith.mulf %113, %114 : vector<64x60xf32>
    %c0_69 = arith.constant 0 : index
    %c0_70 = arith.constant 0 : index
    %116 = vector.load %arg17[%c0_69, %c0_70] : memref<64x60xf32, #tpu.memory_space<vmem>>, vector<64x60xf32>
    %117 = arith.addf %115, %116 : vector<64x60xf32>
    %c0_71 = arith.constant 0 : index
    %c0_72 = arith.constant 0 : index
    %118 = vector.load %arg18[%c0_71, %c0_72] : memref<64x64xf32, #tpu.memory_space<vmem>>, vector<64x64xf32>
    %cst_73 = arith.constant dense<0.000000e+00> : vector<64x60xf32>
    %119 = tpu.matmul %118, %117, %cst_73 {dimension_numbers = #tpu.dot_dimension_numbers<[1], [0], [0], [1], [0, 0, 1, 1], [], []>} : vector<64x64xf32>, vector<64x60xf32>, vector<64x60xf32> -> vector<64x60xf32>
    %c0_74 = arith.constant 0 : index
    %c0_75 = arith.constant 0 : index
    %120 = vector.load %arg19[%c0_74, %c0_75] : memref<64x1xf32, #tpu.memory_space<vmem>>, vector<64x1xf32>
    %121 = vector.broadcast %120 : vector<64x1xf32> to vector<64x60xf32>
    %122 = arith.addf %119, %121 : vector<64x60xf32>
    %cst_76 = arith.constant dense<0.000000e+00> : vector<64x60xf32>
    %123 = tpu.matmul %117, %0, %cst_76 {dimension_numbers = #tpu.dot_dimension_numbers<[1], [0], [0], [1], [0, 0, 1, 1], [], []>} : vector<64x60xf32>, vector<60x60xf32>, vector<64x60xf32> -> vector<64x60xf32>
    %cst_77 = arith.constant dense<0.000000e+00> : vector<64x60xf32>
    %124 = tpu.matmul %117, %1, %cst_77 {dimension_numbers = #tpu.dot_dimension_numbers<[1], [0], [0], [1], [0, 0, 1, 1], [], []>} : vector<64x60xf32>, vector<60x60xf32>, vector<64x60xf32> -> vector<64x60xf32>
    %c0_78 = arith.constant 0 : index
    %c0_79 = arith.constant 0 : index
    %125 = vector.load %arg20[%c0_78, %c0_79] : memref<64x192xf32, #tpu.memory_space<vmem>>, vector<64x192xf32>
    %126 = tpu.concatenate %123, %117, %124 in 0 : vector<64x60xf32>, vector<64x60xf32>, vector<64x60xf32> -> vector<192x60xf32>
    %cst_80 = arith.constant dense<0.000000e+00> : vector<64x60xf32>
    %127 = tpu.matmul %125, %126, %cst_80 {dimension_numbers = #tpu.dot_dimension_numbers<[1], [0], [0], [1], [0, 0, 1, 1], [], []>} : vector<64x192xf32>, vector<192x60xf32>, vector<64x60xf32> -> vector<64x60xf32>
    %c0_81 = arith.constant 0 : index
    %c0_82 = arith.constant 0 : index
    %128 = vector.load %arg21[%c0_81, %c0_82] : memref<64x1xf32, #tpu.memory_space<vmem>>, vector<64x1xf32>
    %129 = vector.broadcast %128 : vector<64x1xf32> to vector<64x60xf32>
    %130 = arith.addf %127, %129 : vector<64x60xf32>
    %cst_83 = arith.constant 0.000000e+00 : f32
    %131 = vector.broadcast %cst_83 : f32 to vector<64x60xf32>
    %132 = arith.cmpf oge, %130, %131 : vector<64x60xf32>
    %cst_84 = arith.constant 0.00999999977 : f32
    %133 = vector.broadcast %cst_84 : f32 to vector<64x60xf32>
    %134 = arith.mulf %133, %130 : vector<64x60xf32>
    %135 = arith.select %132, %130, %134 : vector<64x60xi1>, vector<64x60xf32>
    %cst_85 = arith.constant dense<0.000000e+00> : vector<64x60xf32>
    %136 = tpu.matmul %135, %0, %cst_85 {dimension_numbers = #tpu.dot_dimension_numbers<[1], [0], [0], [1], [0, 0, 1, 1], [], []>} : vector<64x60xf32>, vector<60x60xf32>, vector<64x60xf32> -> vector<64x60xf32>
    %cst_86 = arith.constant dense<0.000000e+00> : vector<64x60xf32>
    %137 = tpu.matmul %135, %1, %cst_86 {dimension_numbers = #tpu.dot_dimension_numbers<[1], [0], [0], [1], [0, 0, 1, 1], [], []>} : vector<64x60xf32>, vector<60x60xf32>, vector<64x60xf32> -> vector<64x60xf32>
    %c0_87 = arith.constant 0 : index
    %c0_88 = arith.constant 0 : index
    %c0_89 = arith.constant 0 : index
    %138 = vector.load %arg4[%c0_87, %c0_88, %c0_89] : memref<2x64x64xf32, #tpu.memory_space<vmem>>, vector<1x64x64xf32>
    %139 = vector.shape_cast %138 : vector<1x64x64xf32> to vector<64x64xf32>
    %cst_90 = arith.constant dense<0.000000e+00> : vector<64x60xf32>
    %140 = tpu.matmul %139, %135, %cst_90 {dimension_numbers = #tpu.dot_dimension_numbers<[1], [0], [0], [1], [0, 0, 1, 1], [], []>} : vector<64x64xf32>, vector<64x60xf32>, vector<64x60xf32> -> vector<64x60xf32>
    %cst_91 = arith.constant dense<0.000000e+00> : vector<64x60xf32>
    %141 = tpu.matmul %140, %0, %cst_91 {dimension_numbers = #tpu.dot_dimension_numbers<[1], [0], [0], [1], [0, 0, 1, 1], [], []>} : vector<64x60xf32>, vector<60x60xf32>, vector<64x60xf32> -> vector<64x60xf32>
    %cst_92 = arith.constant dense<0.000000e+00> : vector<64x60xf32>
    %142 = tpu.matmul %140, %1, %cst_92 {dimension_numbers = #tpu.dot_dimension_numbers<[1], [0], [0], [1], [0, 0, 1, 1], [], []>} : vector<64x60xf32>, vector<60x60xf32>, vector<64x60xf32> -> vector<64x60xf32>
    %c1_93 = arith.constant 1 : index
    %c0_94 = arith.constant 0 : index
    %c0_95 = arith.constant 0 : index
    %143 = vector.load %arg4[%c1_93, %c0_94, %c0_95] : memref<2x64x64xf32, #tpu.memory_space<vmem>>, vector<1x64x64xf32>
    %144 = vector.shape_cast %143 : vector<1x64x64xf32> to vector<64x64xf32>
    %cst_96 = arith.constant dense<0.000000e+00> : vector<64x60xf32>
    %145 = tpu.matmul %144, %135, %cst_96 {dimension_numbers = #tpu.dot_dimension_numbers<[1], [0], [0], [1], [0, 0, 1, 1], [], []>} : vector<64x64xf32>, vector<64x60xf32>, vector<64x60xf32> -> vector<64x60xf32>
    %cst_97 = arith.constant dense<0.000000e+00> : vector<64x60xf32>
    %146 = tpu.matmul %145, %0, %cst_97 {dimension_numbers = #tpu.dot_dimension_numbers<[1], [0], [0], [1], [0, 0, 1, 1], [], []>} : vector<64x60xf32>, vector<60x60xf32>, vector<64x60xf32> -> vector<64x60xf32>
    %cst_98 = arith.constant dense<0.000000e+00> : vector<64x60xf32>
    %147 = tpu.matmul %145, %1, %cst_98 {dimension_numbers = #tpu.dot_dimension_numbers<[1], [0], [0], [1], [0, 0, 1, 1], [], []>} : vector<64x60xf32>, vector<60x60xf32>, vector<64x60xf32> -> vector<64x60xf32>
    %c0_99 = arith.constant 0 : index
    %c0_100 = arith.constant 0 : index
    %148 = vector.load %arg22[%c0_99, %c0_100] : memref<128x576xf32, #tpu.memory_space<vmem>>, vector<128x576xf32>
    %149 = tpu.concatenate %136, %135, %137, %141, %140, %142, %146, %145, %147 in 0 : vector<64x60xf32>, vector<64x60xf32>, vector<64x60xf32>, vector<64x60xf32>, vector<64x60xf32>, vector<64x60xf32>, vector<64x60xf32>, vector<64x60xf32>, vector<64x60xf32> -> vector<576x60xf32>
    %cst_101 = arith.constant dense<0.000000e+00> : vector<128x60xf32>
    %150 = tpu.matmul %148, %149, %cst_101 {dimension_numbers = #tpu.dot_dimension_numbers<[1], [0], [0], [1], [0, 0, 1, 1], [], []>} : vector<128x576xf32>, vector<576x60xf32>, vector<128x60xf32> -> vector<128x60xf32>
    %c0_102 = arith.constant 0 : index
    %c0_103 = arith.constant 0 : index
    %151 = vector.load %arg23[%c0_102, %c0_103] : memref<128x1xf32, #tpu.memory_space<vmem>>, vector<128x1xf32>
    %152 = vector.broadcast %151 : vector<128x1xf32> to vector<128x60xf32>
    %153 = arith.addf %150, %152 : vector<128x60xf32>
    %154 = vector.extract_strided_slice %153 {offsets = [64, 0], sizes = [64, 60], strides = [1, 1]} : vector<128x60xf32> to vector<64x60xf32>
    %155 = arith.negf %154 : vector<64x60xf32>
    %156 = math.exp %155 : vector<64x60xf32>
    %cst_104 = arith.constant 1.000000e+00 : f32
    %157 = vector.broadcast %cst_104 : f32 to vector<64x60xf32>
    %158 = arith.addf %157, %156 : vector<64x60xf32>
    %159 = arith.divf %157, %158 : vector<64x60xf32>
    %160 = vector.extract_strided_slice %153 {offsets = [0, 0], sizes = [64, 60], strides = [1, 1]} : vector<128x60xf32> to vector<64x60xf32>
    %cst_105 = arith.constant 0.000000e+00 : f32
    %161 = vector.broadcast %cst_105 : f32 to vector<64x60xf32>
    %162 = arith.cmpf oge, %160, %161 : vector<64x60xf32>
    %cst_106 = arith.constant 0.00999999977 : f32
    %163 = vector.broadcast %cst_106 : f32 to vector<64x60xf32>
    %164 = arith.mulf %163, %160 : vector<64x60xf32>
    %165 = arith.select %162, %160, %164 : vector<64x60xi1>, vector<64x60xf32>
    %166 = arith.mulf %159, %165 : vector<64x60xf32>
    %167 = arith.addf %166, %122 : vector<64x60xf32>
    %c0_107 = arith.constant 0 : index
    %c0_108 = arith.constant 0 : index
    %168 = vector.load %arg24[%c0_107, %c0_108] : memref<16x64xf32, #tpu.memory_space<vmem>>, vector<16x64xf32>
    %cst_109 = arith.constant dense<0.000000e+00> : vector<16x60xf32>
    %169 = tpu.matmul %168, %167, %cst_109 {dimension_numbers = #tpu.dot_dimension_numbers<[1], [0], [0], [1], [0, 0, 1, 1], [], []>} : vector<16x64xf32>, vector<64x60xf32>, vector<16x60xf32> -> vector<16x60xf32>
    %170 = tpu.transpose %169, [1, 0] : vector<16x60xf32> -> vector<60x16xf32>
    %c0_110 = arith.constant 0 : index
    %c0_111 = arith.constant 0 : index
    %171 = vector.load %arg25[%c0_110, %c0_111] : memref<4x64xf32, #tpu.memory_space<vmem>>, vector<4x64xf32>
    %cst_112 = arith.constant dense<0.000000e+00> : vector<4x60xf32>
    %172 = tpu.matmul %171, %167, %cst_112 {dimension_numbers = #tpu.dot_dimension_numbers<[1], [0], [0], [1], [0, 0, 1, 1], [], []>} : vector<4x64xf32>, vector<64x60xf32>, vector<4x60xf32> -> vector<4x60xf32>
    %c0_113 = arith.constant 0 : index
    %c0_114 = arith.constant 0 : index
    %173 = vector.load %arg26[%c0_113, %c0_114] : memref<16x4xf32, #tpu.memory_space<vmem>>, vector<16x4xf32>
    %cst_115 = arith.constant dense<0.000000e+00> : vector<60x4xf32>
    %174 = tpu.matmul %170, %173, %cst_115 {dimension_numbers = #tpu.dot_dimension_numbers<[1], [0], [0], [1], [0, 0, 1, 1], [], []>} : vector<60x16xf32>, vector<16x4xf32>, vector<60x4xf32> -> vector<60x4xf32>
    %cst_116 = arith.constant dense<0.000000e+00> : vector<60x60xf32>
    %175 = tpu.matmul %174, %172, %cst_116 {dimension_numbers = #tpu.dot_dimension_numbers<[1], [0], [0], [1], [0, 0, 1, 1], [], []>} : vector<60x4xf32>, vector<4x60xf32>, vector<60x60xf32> -> vector<60x60xf32>
    %c0_117 = arith.constant 0 : index
    %c0_118 = arith.constant 0 : index
    %176 = vector.load %arg27[%c0_117, %c0_118] : memref<60x60xf32, #tpu.memory_space<vmem>>, vector<60x60xf32>
    %177 = arith.addf %175, %176 : vector<60x60xf32>
    %178 = arith.negf %177 : vector<60x60xf32>
    %179 = math.exp %178 : vector<60x60xf32>
    %cst_119 = arith.constant 1.000000e+00 : f32
    %180 = vector.broadcast %cst_119 : f32 to vector<60x60xf32>
    %181 = arith.addf %180, %179 : vector<60x60xf32>
    %182 = arith.divf %180, %181 : vector<60x60xf32>
    %c0_120 = arith.constant 0 : index
    %c0_121 = arith.constant 0 : index
    %183 = vector.load %arg28[%c0_120, %c0_121] : memref<60x60xf32, #tpu.memory_space<vmem>>, vector<60x60xf32>
    %cst_122 = arith.constant dense<0.000000e+00> : vector<60x60xf32>
    %184 = tpu.matmul %183, %182, %cst_122 {dimension_numbers = #tpu.dot_dimension_numbers<[1], [0], [0], [1], [0, 0, 1, 1], [], []>} : vector<60x60xf32>, vector<60x60xf32>, vector<60x60xf32> -> vector<60x60xf32>
    %cst_123 = arith.constant 0.999994993 : f32
    %185 = vector.broadcast %cst_123 : f32 to vector<60x60xf32>
    %186 = arith.mulf %184, %185 : vector<60x60xf32>
    %cst_124 = arith.constant dense<0xFF800000> : vector<60xf32>
    %187 = vector.multi_reduction <maximumf>, %186, %cst_124 [1] : vector<60x60xf32> to vector<60xf32>
    %188 = vector.shape_cast %187 : vector<60xf32> to vector<60x1xf32>
    %189 = vector.broadcast %188 : vector<60x1xf32> to vector<60x60xf32>
    %190 = arith.subf %186, %189 : vector<60x60xf32>
    %191 = math.exp %190 : vector<60x60xf32>
    %cst_125 = arith.constant dense<0.000000e+00> : vector<60xf32>
    %192 = vector.multi_reduction <add>, %191, %cst_125 [1] : vector<60x60xf32> to vector<60xf32>
    %193 = vector.shape_cast %192 : vector<60xf32> to vector<60x1xf32>
    %194 = vector.broadcast %193 : vector<60x1xf32> to vector<60x60xf32>
    %195 = arith.divf %191, %194 : vector<60x60xf32>
    %196 = tpu.transpose %195, [1, 0] : vector<60x60xf32> -> vector<60x60xf32>
    %cst_126 = arith.constant dense<0.000000e+00> : vector<64x60xf32>
    %197 = tpu.matmul %167, %196, %cst_126 {dimension_numbers = #tpu.dot_dimension_numbers<[1], [0], [0], [1], [0, 0, 1, 1], [], []>} : vector<64x60xf32>, vector<60x60xf32>, vector<64x60xf32> -> vector<64x60xf32>
    %cst_127 = arith.constant 0.000000e+00 : f32
    %198 = vector.broadcast %cst_127 : f32 to vector<64x60xf32>
    %199 = arith.cmpf oge, %197, %198 : vector<64x60xf32>
    %cst_128 = arith.constant 0.00999999977 : f32
    %200 = vector.broadcast %cst_128 : f32 to vector<64x60xf32>
    %201 = arith.mulf %200, %197 : vector<64x60xf32>
    %202 = arith.select %199, %197, %201 : vector<64x60xi1>, vector<64x60xf32>
    %203 = arith.addf %202, %122 : vector<64x60xf32>
    %204 = vector.shape_cast %203 : vector<64x60xf32> to vector<1x64x60xf32>
    %cst_129 = arith.constant dense<0.000000e+00> : vector<1xf32>
    %205 = vector.multi_reduction <add>, %204, %cst_129 [1, 2] : vector<1x64x60xf32> to vector<1xf32>
    %206 = vector.shape_cast %205 : vector<1xf32> to vector<1x1x1xf32>
    %207 = vector.extract %206[0, 0, 0] : f32 from vector<1x1x1xf32>
    %208 = vector.broadcast %207 : f32 to vector<1x1xf32>
    %cst_130 = arith.constant 3.840000e+03 : f32
    %209 = vector.broadcast %cst_130 : f32 to vector<1x1xf32>
    %210 = arith.divf %208, %209 : vector<1x1xf32>
    %211 = vector.broadcast %210 : vector<1x1xf32> to vector<64x60xf32>
    %212 = arith.subf %203, %211 : vector<64x60xf32>
    %213 = arith.mulf %212, %212 : vector<64x60xf32>
    %214 = vector.shape_cast %213 : vector<64x60xf32> to vector<1x64x60xf32>
    %cst_131 = arith.constant dense<0.000000e+00> : vector<1xf32>
    %215 = vector.multi_reduction <add>, %214, %cst_131 [1, 2] : vector<1x64x60xf32> to vector<1xf32>
    %216 = vector.shape_cast %215 : vector<1xf32> to vector<1x1x1xf32>
    %217 = vector.extract %216[0, 0, 0] : f32 from vector<1x1x1xf32>
    %218 = vector.broadcast %217 : f32 to vector<1x1xf32>
    %cst_132 = arith.constant 3.840000e+03 : f32
    %219 = vector.broadcast %cst_132 : f32 to vector<1x1xf32>
    %220 = arith.divf %218, %219 : vector<1x1xf32>
    %cst_133 = arith.constant 9.99999974E-6 : f32
    %221 = vector.broadcast %cst_133 : f32 to vector<1x1xf32>
    %222 = arith.addf %220, %221 : vector<1x1xf32>
    %223 = math.rsqrt %222 : vector<1x1xf32>
    %224 = vector.broadcast %210 : vector<1x1xf32> to vector<64x60xf32>
    %225 = arith.subf %203, %224 : vector<64x60xf32>
    %226 = vector.broadcast %223 : vector<1x1xf32> to vector<64x60xf32>
    %227 = arith.mulf %225, %226 : vector<64x60xf32>
    %c0_134 = arith.constant 0 : index
    %c0_135 = arith.constant 0 : index
    %228 = vector.load %arg29[%c0_134, %c0_135] : memref<64x60xf32, #tpu.memory_space<vmem>>, vector<64x60xf32>
    %229 = arith.mulf %227, %228 : vector<64x60xf32>
    %c0_136 = arith.constant 0 : index
    %c0_137 = arith.constant 0 : index
    %230 = vector.load %arg30[%c0_136, %c0_137] : memref<64x60xf32, #tpu.memory_space<vmem>>, vector<64x60xf32>
    %231 = arith.addf %229, %230 : vector<64x60xf32>
    %cst_138 = arith.constant 0.000000e+00 : f32
    %232 = vector.broadcast %cst_138 : f32 to vector<16x12xf32>
    %c0_139 = arith.constant 0 : index
    %233 = memref.load %arg32[%c0_139] : memref<1xf32, #tpu.memory_space<smem>>
    %234 = vector.broadcast %233 : f32 to vector<16x12xf32>
    %235 = arith.addf %232, %234 : vector<16x12xf32>
    %236 = vector.extract_strided_slice %231 {offsets = [0, 0], sizes = [16, 60], strides = [1, 1]} : vector<64x60xf32> to vector<16x60xf32>
    %c0_140 = arith.constant 0 : index
    %c0_141 = arith.constant 0 : index
    %c0_142 = arith.constant 0 : index
    %237 = vector.load %arg31[%c0_140, %c0_141, %c0_142] : memref<4x60x12xf32, #tpu.memory_space<vmem>>, vector<1x60x12xf32>
    %238 = vector.shape_cast %237 : vector<1x60x12xf32> to vector<60x12xf32>
    %cst_143 = arith.constant dense<0.000000e+00> : vector<16x12xf32>
    %239 = tpu.matmul %236, %238, %cst_143 {dimension_numbers = #tpu.dot_dimension_numbers<[1], [0], [0], [1], [0, 0, 1, 1], [], []>} : vector<16x60xf32>, vector<60x12xf32>, vector<16x12xf32> -> vector<16x12xf32>
    %240 = arith.addf %235, %239 : vector<16x12xf32>
    %241 = vector.extract_strided_slice %231 {offsets = [16, 0], sizes = [16, 60], strides = [1, 1]} : vector<64x60xf32> to vector<16x60xf32>
    %c1_144 = arith.constant 1 : index
    %c0_145 = arith.constant 0 : index
    %c0_146 = arith.constant 0 : index
    %242 = vector.load %arg31[%c1_144, %c0_145, %c0_146] : memref<4x60x12xf32, #tpu.memory_space<vmem>>, vector<1x60x12xf32>
    %243 = vector.shape_cast %242 : vector<1x60x12xf32> to vector<60x12xf32>
    %cst_147 = arith.constant dense<0.000000e+00> : vector<16x12xf32>
    %244 = tpu.matmul %241, %243, %cst_147 {dimension_numbers = #tpu.dot_dimension_numbers<[1], [0], [0], [1], [0, 0, 1, 1], [], []>} : vector<16x60xf32>, vector<60x12xf32>, vector<16x12xf32> -> vector<16x12xf32>
    %245 = arith.addf %240, %244 : vector<16x12xf32>
    %246 = vector.extract_strided_slice %231 {offsets = [32, 0], sizes = [16, 60], strides = [1, 1]} : vector<64x60xf32> to vector<16x60xf32>
    %c2 = arith.constant 2 : index
    %c0_148 = arith.constant 0 : index
    %c0_149 = arith.constant 0 : index
    %247 = vector.load %arg31[%c2, %c0_148, %c0_149] : memref<4x60x12xf32, #tpu.memory_space<vmem>>, vector<1x60x12xf32>
    %248 = vector.shape_cast %247 : vector<1x60x12xf32> to vector<60x12xf32>
    %cst_150 = arith.constant dense<0.000000e+00> : vector<16x12xf32>
    %249 = tpu.matmul %246, %248, %cst_150 {dimension_numbers = #tpu.dot_dimension_numbers<[1], [0], [0], [1], [0, 0, 1, 1], [], []>} : vector<16x60xf32>, vector<60x12xf32>, vector<16x12xf32> -> vector<16x12xf32>
    %250 = arith.addf %245, %249 : vector<16x12xf32>
    %251 = vector.extract_strided_slice %231 {offsets = [48, 0], sizes = [16, 60], strides = [1, 1]} : vector<64x60xf32> to vector<16x60xf32>
    %c3 = arith.constant 3 : index
    %c0_151 = arith.constant 0 : index
    %c0_152 = arith.constant 0 : index
    %252 = vector.load %arg31[%c3, %c0_151, %c0_152] : memref<4x60x12xf32, #tpu.memory_space<vmem>>, vector<1x60x12xf32>
    %253 = vector.shape_cast %252 : vector<1x60x12xf32> to vector<60x12xf32>
    %cst_153 = arith.constant dense<0.000000e+00> : vector<16x12xf32>
    %254 = tpu.matmul %251, %253, %cst_153 {dimension_numbers = #tpu.dot_dimension_numbers<[1], [0], [0], [1], [0, 0, 1, 1], [], []>} : vector<16x60xf32>, vector<60x12xf32>, vector<16x12xf32> -> vector<16x12xf32>
    %255 = arith.addf %250, %254 : vector<16x12xf32>
    %c0_154 = arith.constant 0 : index
    %c0_155 = arith.constant 0 : index
    %c0_156 = arith.constant 0 : index
    %256 = vector.load %arg33[%c0_154, %c0_155, %c0_156] : memref<1x16x12xf32, #tpu.memory_space<vmem>>, vector<1x16x12xf32>
    %257 = vector.shape_cast %256 : vector<1x16x12xf32> to vector<16x12xf32>
    %258 = vector.shape_cast %255 : vector<16x12xf32> to vector<1x16x12xf32>
    tpu.vector_store %arg33[%c0_154, %c0_155, %c0_156], %258 {strides = array<i32>} : memref<1x16x12xf32, #tpu.memory_space<vmem>>, vector<1x16x12xf32>,
    return
  }
  func.func @transform_0(%arg0: i32) -> (i32, i32, i32) {
    %c0_i32 = arith.constant 0 : i32
    %c0_i32_0 = arith.constant 0 : i32
    %c0_i32_1 = arith.constant 0 : i32
    return %arg0, %c0_i32, %c0_i32_0 : i32, i32, i32
  }
  func.func @transform_1(%arg0: i32) -> (i32, i32) {
    %c0_i32 = arith.constant 0 : i32
    %c0_i32_0 = arith.constant 0 : i32
    %c0_i32_1 = arith.constant 0 : i32
    return %c0_i32, %c0_i32_0 : i32, i32
  }
  func.func @transform_2(%arg0: i32) -> (i32, i32) {
    %c0_i32 = arith.constant 0 : i32
    %c0_i32_0 = arith.constant 0 : i32
    %c0_i32_1 = arith.constant 0 : i32
    return %c0_i32, %c0_i32_0 : i32, i32
  }
  func.func @transform_3(%arg0: i32) -> (i32, i32, i32) {
    %c0_i32 = arith.constant 0 : i32
    %c0_i32_0 = arith.constant 0 : i32
    %c0_i32_1 = arith.constant 0 : i32
    %c0_i32_2 = arith.constant 0 : i32
    return %c0_i32, %c0_i32_0, %c0_i32_1 : i32, i32, i32
  }
  func.func @transform_4(%arg0: i32) -> (i32, i32) {
    %c0_i32 = arith.constant 0 : i32
    %c0_i32_0 = arith.constant 0 : i32
    %c0_i32_1 = arith.constant 0 : i32
    return %c0_i32, %c0_i32_0 : i32, i32
  }
  func.func @transform_5(%arg0: i32) -> (i32, i32) {
    %c0_i32 = arith.constant 0 : i32
    %c0_i32_0 = arith.constant 0 : i32
    %c0_i32_1 = arith.constant 0 : i32
    return %c0_i32, %c0_i32_0 : i32, i32
  }
  func.func @transform_6(%arg0: i32) -> (i32, i32) {
    %c0_i32 = arith.constant 0 : i32
    %c0_i32_0 = arith.constant 0 : i32
    %c0_i32_1 = arith.constant 0 : i32
    return %c0_i32, %c0_i32_0 : i32, i32
  }
  func.func @transform_7(%arg0: i32) -> (i32, i32) {
    %c0_i32 = arith.constant 0 : i32
    %c0_i32_0 = arith.constant 0 : i32
    %c0_i32_1 = arith.constant 0 : i32
    return %c0_i32, %c0_i32_0 : i32, i32
  }
  func.func @transform_8(%arg0: i32) -> (i32, i32) {
    %c0_i32 = arith.constant 0 : i32
    %c0_i32_0 = arith.constant 0 : i32
    %c0_i32_1 = arith.constant 0 : i32
    return %c0_i32, %c0_i32_0 : i32, i32
  }
  func.func @transform_9(%arg0: i32) -> (i32, i32) {
    %c0_i32 = arith.constant 0 : i32
    %c0_i32_0 = arith.constant 0 : i32
    %c0_i32_1 = arith.constant 0 : i32
    return %c0_i32, %c0_i32_0 : i32, i32
  }
  func.func @transform_10(%arg0: i32) -> (i32, i32) {
    %c0_i32 = arith.constant 0 : i32
    %c0_i32_0 = arith.constant 0 : i32
    %c0_i32_1 = arith.constant 0 : i32
    return %c0_i32, %c0_i32_0 : i32, i32
  }
  func.func @transform_11(%arg0: i32) -> (i32, i32) {
    %c0_i32 = arith.constant 0 : i32
    %c0_i32_0 = arith.constant 0 : i32
    %c0_i32_1 = arith.constant 0 : i32
    return %c0_i32, %c0_i32_0 : i32, i32
  }
  func.func @transform_12(%arg0: i32) -> (i32, i32) {
    %c0_i32 = arith.constant 0 : i32
    %c0_i32_0 = arith.constant 0 : i32
    %c0_i32_1 = arith.constant 0 : i32
    return %c0_i32, %c0_i32_0 : i32, i32
  }
  func.func @transform_13(%arg0: i32) -> (i32, i32) {
    %c0_i32 = arith.constant 0 : i32
    %c0_i32_0 = arith.constant 0 : i32
    %c0_i32_1 = arith.constant 0 : i32
    return %c0_i32, %c0_i32_0 : i32, i32
  }
  func.func @transform_14(%arg0: i32) -> (i32, i32) {
    %c0_i32 = arith.constant 0 : i32
    %c0_i32_0 = arith.constant 0 : i32
    %c0_i32_1 = arith.constant 0 : i32
    return %c0_i32, %c0_i32_0 : i32, i32
  }
  func.func @transform_15(%arg0: i32) -> (i32, i32) {
    %c0_i32 = arith.constant 0 : i32
    %c0_i32_0 = arith.constant 0 : i32
    %c0_i32_1 = arith.constant 0 : i32
    return %c0_i32, %c0_i32_0 : i32, i32
  }
  func.func @transform_16(%arg0: i32) -> (i32, i32) {
    %c0_i32 = arith.constant 0 : i32
    %c0_i32_0 = arith.constant 0 : i32
    %c0_i32_1 = arith.constant 0 : i32
    return %c0_i32, %c0_i32_0 : i32, i32
  }
  func.func @transform_17(%arg0: i32) -> (i32, i32) {
    %c0_i32 = arith.constant 0 : i32
    %c0_i32_0 = arith.constant 0 : i32
    %c0_i32_1 = arith.constant 0 : i32
    return %c0_i32, %c0_i32_0 : i32, i32
  }
  func.func @transform_18(%arg0: i32) -> (i32, i32) {
    %c0_i32 = arith.constant 0 : i32
    %c0_i32_0 = arith.constant 0 : i32
    %c0_i32_1 = arith.constant 0 : i32
    return %c0_i32, %c0_i32_0 : i32, i32
  }
  func.func @transform_19(%arg0: i32) -> (i32, i32) {
    %c0_i32 = arith.constant 0 : i32
    %c0_i32_0 = arith.constant 0 : i32
    %c0_i32_1 = arith.constant 0 : i32
    return %c0_i32, %c0_i32_0 : i32, i32
  }
  func.func @transform_20(%arg0: i32) -> (i32, i32) {
    %c0_i32 = arith.constant 0 : i32
    %c0_i32_0 = arith.constant 0 : i32
    %c0_i32_1 = arith.constant 0 : i32
    return %c0_i32, %c0_i32_0 : i32, i32
  }
  func.func @transform_21(%arg0: i32) -> (i32, i32) {
    %c0_i32 = arith.constant 0 : i32
    %c0_i32_0 = arith.constant 0 : i32
    %c0_i32_1 = arith.constant 0 : i32
    return %c0_i32, %c0_i32_0 : i32, i32
  }
  func.func @transform_22(%arg0: i32) -> (i32, i32) {
    %c0_i32 = arith.constant 0 : i32
    %c0_i32_0 = arith.constant 0 : i32
    %c0_i32_1 = arith.constant 0 : i32
    return %c0_i32, %c0_i32_0 : i32, i32
  }
  func.func @transform_23(%arg0: i32) -> (i32, i32) {
    %c0_i32 = arith.constant 0 : i32
    %c0_i32_0 = arith.constant 0 : i32
    %c0_i32_1 = arith.constant 0 : i32
    return %c0_i32, %c0_i32_0 : i32, i32
  }
  func.func @transform_24(%arg0: i32) -> (i32, i32) {
    %c0_i32 = arith.constant 0 : i32
    %c0_i32_0 = arith.constant 0 : i32
    %c0_i32_1 = arith.constant 0 : i32
    return %c0_i32, %c0_i32_0 : i32, i32
  }
  func.func @transform_25(%arg0: i32) -> (i32, i32) {
    %c0_i32 = arith.constant 0 : i32
    %c0_i32_0 = arith.constant 0 : i32
    %c0_i32_1 = arith.constant 0 : i32
    return %c0_i32, %c0_i32_0 : i32, i32
  }
  func.func @transform_26(%arg0: i32) -> (i32, i32) {
    %c0_i32 = arith.constant 0 : i32
    %c0_i32_0 = arith.constant 0 : i32
    %c0_i32_1 = arith.constant 0 : i32
    return %c0_i32, %c0_i32_0 : i32, i32
  }
  func.func @transform_27(%arg0: i32) -> (i32, i32) {
    %c0_i32 = arith.constant 0 : i32
    %c0_i32_0 = arith.constant 0 : i32
    %c0_i32_1 = arith.constant 0 : i32
    return %c0_i32, %c0_i32_0 : i32, i32
  }
  func.func @transform_28(%arg0: i32) -> (i32, i32) {
    %c0_i32 = arith.constant 0 : i32
    %c0_i32_0 = arith.constant 0 : i32
    %c0_i32_1 = arith.constant 0 : i32
    return %c0_i32, %c0_i32_0 : i32, i32
  }
  func.func @transform_29(%arg0: i32) -> (i32, i32) {
    %c0_i32 = arith.constant 0 : i32
    %c0_i32_0 = arith.constant 0 : i32
    %c0_i32_1 = arith.constant 0 : i32
    return %c0_i32, %c0_i32_0 : i32, i32
  }
  func.func @transform_30(%arg0: i32) -> (i32, i32, i32) {
    %c0_i32 = arith.constant 0 : i32
    %c0_i32_0 = arith.constant 0 : i32
    %c0_i32_1 = arith.constant 0 : i32
    %c0_i32_2 = arith.constant 0 : i32
    return %c0_i32, %c0_i32_0, %c0_i32_1 : i32, i32, i32
  }
  func.func @transform_31(%arg0: i32) -> i32 {
    %c0_i32 = arith.constant 0 : i32
    %c0_i32_0 = arith.constant 0 : i32
    return %c0_i32 : i32
  }
  func.func @transform_32(%arg0: i32) -> (i32, i32, i32) {
    %c0_i32 = arith.constant 0 : i32
    %c0_i32_0 = arith.constant 0 : i32
    %c0_i32_1 = arith.constant 0 : i32
    return %arg0, %c0_i32, %c0_i32_0 : i32, i32, i32
  }
}

</mosaic_0001>

<llo_original>
// kernel: mul.36
$region0: #{mul.36}
  %s0 = inlined_call_operand.vmem [shape: f32[8,3,3,4], index: 0, kind: input, shape index: {}]
  %s1 = inlined_call_operand.vmem [shape: f32[8,36], index: 1, kind: output, shape index: {}]
  $region1: #{mul.36} parent=0
    #allocation0 [shape = 'u8[36864]{0}', space=vmem, size = 0x9000, scoped, tag = 'scoped mem for input reshape']
    %s3 = sshll.u32 1, 4
    %s4 = ssub.s32 %s3, 1
    %s5 = smul.addr 4, 8
    %s6 = scalar_lea.vmem %s0, %s5
    %v7 = vld [vmem:[%s6] sm:%s4]
    %s8 = scalar_lea.vmem [#allocation0], 64
    %9 = vst [vmem:[%s8] sm:%s4] %v7
    %s10 = smul.addr 4, 7
    %s11 = scalar_lea.vmem %s0, %s10
    %v12 = vld [vmem:[%s11] sm:%s4]
    %s13 = scalar_lea.vmem [#allocation0], 56
    %14 = vst [vmem:[%s13] sm:%s4] %v12
    %s15 = smul.addr 4, 6
    %s16 = scalar_lea.vmem %s0, %s15
    %v17 = vld [vmem:[%s16] sm:%s4]
    %s18 = scalar_lea.vmem [#allocation0], 48
    %19 = vst [vmem:[%s18] sm:%s4] %v17
    %s20 = smul.addr 4, 5
    %s21 = scalar_lea.vmem %s0, %s20
    %v22 = vld [vmem:[%s21] sm:%s4]
    %s23 = scalar_lea.vmem [#allocation0], 40
    %24 = vst [vmem:[%s23] sm:%s4] %v22
    %s25 = smul.addr 4, 4
    %s26 = scalar_lea.vmem %s0, %s25
    %v27 = vld [vmem:[%s26] sm:%s4]
    %s28 = scalar_lea.vmem [#allocation0], 32
    %29 = vst [vmem:[%s28] sm:%s4] %v27
    %s30 = smul.addr 4, 3
    %s31 = scalar_lea.vmem %s0, %s30
    %v32 = vld [vmem:[%s31] sm:%s4]
    %s33 = scalar_lea.vmem [#allocation0], 24
    %34 = vst [vmem:[%s33] sm:%s4] %v32
    %s35 = smul.addr 4, 2
    %s36 = scalar_lea.vmem %s0, %s35
    %v37 = vld [vmem:[%s36] sm:%s4]
    %s38 = scalar_lea.vmem [#allocation0], 16
    %39 = vst [vmem:[%s38] sm:%s4] %v37
    %s40 = scalar_lea.vmem %s0, 4
    %v41 = vld [vmem:[%s40] sm:%s4]
    %s42 = scalar_lea.vmem [#allocation0], 8
    %43 = vst [vmem:[%s42] sm:%s4] %v41
    %v44 = vld [vmem:[%s0] sm:%s4]
    %45 = vst [vmem:[#allocation0] sm:%s4] %v44
    %v46 = vld [vmem:[#allocation0] sm:$0xf]
    %vm47 = vcmask 64512
    %48 = vst.msk [vmem:[%s1] sm:$0xf] %vm47, %v46
    %s49 = scalar_lea.vmem [#allocation0], 8
    %v50 = vld [vmem:[%s49] sm:$0xf]
    %vm51 = vcmask 64512
    %s52 = scalar_lea.vmem %s1, 4
    %53 = vst.msk [vmem:[%s52] sm:$0xf] %vm51, %v50
    %s54 = scalar_lea.vmem [#allocation0], 16
    %v55 = vld [vmem:[%s54] sm:$0xf]
    %vm56 = vcmask 64512
    %s57 = scalar_lea.vmem %s1, 8
    %58 = vst.msk [vmem:[%s57] sm:$0xf] %vm56, %v55
    %s59 = scalar_lea.vmem [#allocation0], 24
    %v60 = vld [vmem:[%s59] sm:$0xf]
    %vm61 = vcmask 64512
    %s62 = scalar_lea.vmem %s1, 12
    %63 = vst.msk [vmem:[%s62] sm:$0xf] %vm61, %v60
    %s64 = scalar_lea.vmem [#allocation0], 32
    %v65 = vld [vmem:[%s64] sm:$0xf]
    %vm66 = vcmask 64512
    %s67 = scalar_lea.vmem %s1, 16
    %68 = vst.msk [vmem:[%s67] sm:$0xf] %vm66, %v65
    %s69 = scalar_lea.vmem [#allocation0], 40
    %v70 = vld [vmem:[%s69] sm:$0xf]
    %vm71 = vcmask 64512
    %s72 = scalar_lea.vmem %s1, 20
    %73 = vst.msk [vmem:[%s72] sm:$0xf] %vm71, %v70
    %s74 = scalar_lea.vmem [#allocation0], 48
    %v75 = vld [vmem:[%s74] sm:$0xf]
    %vm76 = vcmask 64512
    %s77 = scalar_lea.vmem %s1, 24
    %78 = vst.msk [vmem:[%s77] sm:$0xf] %vm76, %v75
    %s79 = scalar_lea.vmem [#allocation0], 56
    %v80 = vld [vmem:[%s79] sm:$0xf]
    %vm81 = vcmask 64512
    %s82 = scalar_lea.vmem %s1, 28
    %83 = vst.msk [vmem:[%s82] sm:$0xf] %vm81, %v80
    %s84 = scalar_lea.vmem [#allocation0], 64
    %v85 = vld [vmem:[%s84] sm:$0xf]
    %vm86 = vcmask 64512
    %s87 = scalar_lea.vmem %s1, 32
    %88 = vst.msk [vmem:[%s87] sm:$0xf] %vm86, %v85

// kernel: mul.29
$region0: #{mul.29}
  %s0 = inlined_call_operand.vmem [shape: f32[4,3,2], index: 0, kind: input, shape index: {}]
  %s1 = inlined_call_operand.vmem [shape: f32[4,6], index: 1, kind: output, shape index: {}]
  $region1: #{mul.29} parent=0
    #allocation0 [shape = 'u8[12288]{0}', space=vmem, size = 0x3000, scoped, tag = 'scoped mem for input reshape']
    %s3 = sshll.u32 1, 2
    %s4 = ssub.s32 %s3, 1
    %s5 = smul.addr 2, 2
    %s6 = scalar_lea.vmem %s0, %s5
    %v7 = vld [vmem:[%s6] sm:%s4]
    %s8 = scalar_lea.vmem [#allocation0], 16
    %9 = vst [vmem:[%s8] sm:%s4] %v7
    %s10 = scalar_lea.vmem %s0, 2
    %v11 = vld [vmem:[%s10] sm:%s4]
    %s12 = scalar_lea.vmem [#allocation0], 8
    %13 = vst [vmem:[%s12] sm:%s4] %v11
    %v14 = vld [vmem:[%s0] sm:%s4]
    %15 = vst [vmem:[#allocation0] sm:%s4] %v14
    %v16 = vld [vmem:[#allocation0] sm:$0x3]
    %vm17 = vcmask 31744
    %18 = vst.msk [vmem:[%s1] sm:$0x3] %vm17, %v16
    %s19 = scalar_lea.vmem [#allocation0], 8
    %v20 = vld [vmem:[%s19] sm:$0x3]
    %vm21 = vcmask 31744
    %s22 = scalar_lea.vmem %s1, 2
    %23 = vst.msk [vmem:[%s22] sm:$0x3] %vm21, %v20
    %s24 = scalar_lea.vmem [#allocation0], 16
    %v25 = vld [vmem:[%s24] sm:$0x3]
    %vm26 = vcmask 31744
    %s27 = scalar_lea.vmem %s1, 4
    %28 = vst.msk [vmem:[%s27] sm:$0x3] %vm26, %v25

// kernel: dgcn_forward.1
$region0: #{dgcn_forward.1}
  #allocation0 [shape = 'u32[]', space=smem, size = 0x4, offset = 0x4, fixed_abs, tag = 'smem constant byte address 0x4 - core index']
  #allocation1 [shape = 'u32[144,128]{1,0:T(1,128)}', space=vmem, size = 0x12000, scoped, tag = 'internal scratch']
  #allocation2 [shape = 'f32[1]{0:T(128)S(6)}', space=smem, size = 0x200, scoped, tag = 'scoped memory for dgcn_forward.1']
  %s0 = inlined_call_operand.smem [shape: u32[33], index: -1, kind: input, shape index: {}]
  %s1 = sld [smem:[%s0]]
  %s2 = scalar_lea.smem %s0, 1
  %s3 = sld [smem:[%s2]]
  %s4 = scalar_lea.smem %s0, 2
  %s5 = sld [smem:[%s4]]
  %s6 = scalar_lea.smem %s0, 3
  %s7 = sld [smem:[%s6]]
  %s8 = scalar_lea.smem %s0, 4
  %s9 = sld [smem:[%s8]]
  %s10 = scalar_lea.smem %s0, 5
  %s11 = sld [smem:[%s10]]
  %s12 = scalar_lea.smem %s0, 6
  %s13 = sld [smem:[%s12]]
  %s14 = scalar_lea.smem %s0, 7
  %s15 = sld [smem:[%s14]]
  %s16 = scalar_lea.smem %s0, 8
  %s17 = sld [smem:[%s16]]
  %s18 = scalar_lea.smem %s0, 9
  %s19 = sld [smem:[%s18]]
  %s20 = scalar_lea.smem %s0, 10
  %s21 = sld [smem:[%s20]]
  %s22 = scalar_lea.smem %s0, 11
  %s23 = sld [smem:[%s22]]
  %s24 = scalar_lea.smem %s0, 12
  %s25 = sld [smem:[%s24]]
  %s26 = scalar_lea.smem %s0, 13
  %s27 = sld [smem:[%s26]]
  %s28 = scalar_lea.smem %s0, 14
  %s29 = sld [smem:[%s28]]
  %s30 = scalar_lea.smem %s0, 15
  %s31 = sld [smem:[%s30]]
  %s32 = scalar_lea.smem %s0, 16
  %s33 = sld [smem:[%s32]]
  %s34 = scalar_lea.smem %s0, 17
  %s35 = sld [smem:[%s34]]
  %s36 = scalar_lea.smem %s0, 18
  %s37 = sld [smem:[%s36]]
  %s38 = scalar_lea.smem %s0, 19
  %s39 = sld [smem:[%s38]]
  %s40 = scalar_lea.smem %s0, 20
  %s41 = sld [smem:[%s40]]
  %s42 = scalar_lea.smem %s0, 21
  %s43 = sld [smem:[%s42]]
  %s44 = scalar_lea.smem %s0, 22
  %s45 = sld [smem:[%s44]]
  %s46 = scalar_lea.smem %s0, 23
  %s47 = sld [smem:[%s46]]
  %s48 = scalar_lea.smem %s0, 24
  %s49 = sld [smem:[%s48]]
  %s50 = scalar_lea.smem %s0, 25
  %s51 = sld [smem:[%s50]]
  %s52 = scalar_lea.smem %s0, 26
  %s53 = sld [smem:[%s52]]
  %s54 = scalar_lea.smem %s0, 27
  %s55 = sld [smem:[%s54]]
  %s56 = scalar_lea.smem %s0, 28
  %s57 = sld [smem:[%s56]]
  %s58 = scalar_lea.smem %s0, 29
  %s59 = sld [smem:[%s58]]
  %s60 = scalar_lea.smem %s0, 30
  %s61 = sld [smem:[%s60]]
  %s62 = scalar_lea.smem %s0, 31
  %s63 = sld [smem:[%s62]]
  %s64 = scalar_lea.smem %s0, 32
  %s65 = sld [smem:[%s64]]
  %s66 = sld [smem:[#allocation0]]
  $region161: #{dgcn_forward.1} parent=0
    _
  %s68 = ssub.s32 1, %s66
  %s69 = scalar_select 0, %s68, %s66
  %70 = sst [smem:[#allocation2]] %s63
  loop: start=0, step=1, limit=4
  $region2: #{dgcn_forward.1} parent=0 // loop_pre_header
    _
  $region3: #{dgcn_forward.1} parent=0 // loop_header
    %s72 = sphi 0, %s76
    %p73 = scmp.ge.s32.totalorder %s72, 4
    %s82 = sphi 0, %s84
    %s85 = sphi 0, %s82
    %s86 = sphi 0, %s85
    %s102 = sphi 0, %s86
    %s106 = sphi 0, %s106
    %s108 = sphi 0, %s106
    %s109 = sphi 0, %s108
    %s123 = sphi 0, %s109
    %s127 = sphi 0, %s127
    %s129 = sphi 0, %s127
    %s130 = sphi 0, %s129
    %s144 = sphi 0, %s130
    %s148 = sphi 0, %s148
    %s150 = sphi 0, %s148
    %s151 = sphi 0, %s150
    %s165 = sphi 0, %s151
    %s169 = sphi 0, %s169
    %s171 = sphi 0, %s169
    %s172 = sphi 0, %s171
    %s186 = sphi 0, %s172
    %s190 = sphi 0, %s190
    %s192 = sphi 0, %s190
    %s193 = sphi 0, %s192
    %s207 = sphi 0, %s193
    %s211 = sphi 0, %s211
    %s213 = sphi 0, %s211
    %s214 = sphi 0, %s213
    %s228 = sphi 0, %s214
    %s232 = sphi 0, %s232
    %s234 = sphi 0, %s232
    %s235 = sphi 0, %s234
    %s249 = sphi 0, %s235
    %s253 = sphi 0, %s253
    %s255 = sphi 0, %s253
    %s256 = sphi 0, %s255
    %s270 = sphi 0, %s256
    %s274 = sphi 0, %s274
    %s276 = sphi 0, %s274
    %s277 = sphi 0, %s276
    %s291 = sphi 0, %s277
    %s295 = sphi 0, %s295
    %s297 = sphi 0, %s295
    %s298 = sphi 0, %s297
    %s312 = sphi 0, %s298
    %s316 = sphi 0, %s316
    %s318 = sphi 0, %s316
    %s319 = sphi 0, %s318
    %s333 = sphi 0, %s319
    %s337 = sphi 0, %s337
    %s339 = sphi 0, %s337
    %s340 = sphi 0, %s339
    %s354 = sphi 0, %s340
    %s358 = sphi 0, %s358
    %s360 = sphi 0, %s358
    %s361 = sphi 0, %s360
    %s375 = sphi 0, %s361
    %s379 = sphi 0, %s379
    %s381 = sphi 0, %s379
    %s382 = sphi 0, %s381
    %s396 = sphi 0, %s382
    %s400 = sphi 0, %s400
    %s402 = sphi 0, %s400
    %s403 = sphi 0, %s402
    %s417 = sphi 0, %s403
    %s421 = sphi 0, %s421
    %s423 = sphi 0, %s421
    %s424 = sphi 0, %s423
    %s438 = sphi 0, %s424
    %s442 = sphi 0, %s442
    %s444 = sphi 0, %s442
    %s445 = sphi 0, %s444
    %s459 = sphi 0, %s445
    %s463 = sphi 0, %s463
    %s465 = sphi 0, %s463
    %s466 = sphi 0, %s465
    %s480 = sphi 0, %s466
    %s484 = sphi 0, %s484
    %s486 = sphi 0, %s484
    %s487 = sphi 0, %s486
    %s501 = sphi 0, %s487
    %s505 = sphi 0, %s505
    %s507 = sphi 0, %s505
    %s508 = sphi 0, %s507
    %s522 = sphi 0, %s508
    %s526 = sphi 0, %s526
    %s528 = sphi 0, %s526
    %s529 = sphi 0, %s528
    %s543 = sphi 0, %s529
    %s547 = sphi 0, %s547
    %s549 = sphi 0, %s547
    %s550 = sphi 0, %s549
    %s564 = sphi 0, %s550
    %s568 = sphi 0, %s568
    %s570 = sphi 0, %s568
    %s571 = sphi 0, %s570
    %s585 = sphi 0, %s571
    %s589 = sphi 0, %s589
    %s591 = sphi 0, %s589
    %s592 = sphi 0, %s591
    %s606 = sphi 0, %s592
    %s610 = sphi 0, %s610
    %s612 = sphi 0, %s610
    %s613 = sphi 0, %s612
    %s627 = sphi 0, %s613
    %s631 = sphi 0, %s631
    %s633 = sphi 0, %s631
    %s634 = sphi 0, %s633
    %s648 = sphi 0, %s634
    %s652 = sphi 0, %s652
    %s654 = sphi 0, %s652
    %s655 = sphi 0, %s654
    %s669 = sphi 0, %s655
    %s673 = sphi 0, %s673
    %s675 = sphi 0, %s673
    %s676 = sphi 0, %s675
    %s690 = sphi 0, %s676
    %s694 = sphi 0, %s694
    %s696 = sphi 0, %s694
    %s697 = sphi 0, %s696
    %s711 = sphi 0, %s697
    %s715 = sphi 0, %s715
    %s717 = sphi 0, %s715
    %s718 = sphi 0, %s717
    %s732 = sphi 0, %s718
    %s736 = sphi 0, %s736
    %s738 = sphi 0, %s736
    %s739 = sphi 0, %s738
    %s753 = sphi 0, %s739
    %s759 = sphi 0, %s761
    %s762 = sphi 0, %s759
    %s763 = sphi 0, %s762
    %s779 = sphi 0, %s763
  $region4: #{dgcn_forward.1} parent=0 // loop_header_branch
    %75 = sbr.rel (%p73) target = $region8
  $region5: #{dgcn_forward.1} parent=0 // loop_body
    %s77 = ssub.s32 %s72, 1
    %s78 = ssub.s32 %s72, 2
    %s79 = sadd.s32 %s72, 1
    %s80 = ssub.s32 %s72, %s79
    %p81 = scmp.eq.s32.totalorder %s80, 0
    %s83 = sadd.s32 %s82, 1
    %s84 = scalar_select %p81, %s82, %s83
    %p87 = pneg %p81
    %p88 = scmp.eq.s32.totalorder %s72, 1
    %p89 = por %p87, %p88
    %p90 = scmp.ne.s32.totalorder %s82, %s85
    %p91 = scmp.eq.s32.totalorder %s72, 0
    %p92 = por %p90, %p91
    %p93 = scmp.ne.s32.totalorder %s82, %s85
    %p94 = scmp.eq.s32.totalorder %s77, 1
    %p95 = por %p93, %p94
    %p96 = scmp.ne.s32.totalorder %s85, %s86
    %p97 = scmp.eq.s32.totalorder %s77, 0
    %p98 = por %p96, %p97
    %p99 = scmp.ne.s32.totalorder %s85, %s86
    %p100 = scmp.eq.s32.totalorder %s78, 1
    %p101 = por %p99, %p100
    %p103 = scmp.ne.s32.totalorder %s86, %s102
    %p104 = scmp.eq.s32.totalorder %s78, 0
    %p105 = por %p103, %p104
    %s107 = sadd.s32 %s106, 1
    %p110 = scmp.eq.s32.totalorder %s72, 1
    %p111 = scmp.ne.s32.totalorder %s106, %s108
    %p112 = scmp.eq.s32.totalorder %s72, 0
    %p113 = por %p111, %p112
    %p114 = scmp.ne.s32.totalorder %s106, %s108
    %p115 = scmp.eq.s32.totalorder %s77, 1
    %p116 = por %p114, %p115
    %p117 = scmp.ne.s32.totalorder %s108, %s109
    %p118 = scmp.eq.s32.totalorder %s77, 0
    %p119 = por %p117, %p118
    %p120 = scmp.ne.s32.totalorder %s108, %s109
    %p121 = scmp.eq.s32.totalorder %s78, 1
    %p122 = por %p120, %p121
    %p124 = scmp.ne.s32.totalorder %s109, %s123
    %p125 = scmp.eq.s32.totalorder %s78, 0
    %p126 = por %p124, %p125
    %s128 = sadd.s32 %s127, 1
    %p131 = scmp.eq.s32.totalorder %s72, 1
    %p132 = scmp.ne.s32.totalorder %s127, %s129
    %p133 = scmp.eq.s32.totalorder %s72, 0
    %p134 = por %p132, %p133
    %p135 = scmp.ne.s32.totalorder %s127, %s129
    %p136 = scmp.eq.s32.totalorder %s77, 1
    %p137 = por %p135, %p136
    %p138 = scmp.ne.s32.totalorder %s129, %s130
    %p139 = scmp.eq.s32.totalorder %s77, 0
    %p140 = por %p138, %p139
    %p141 = scmp.ne.s32.totalorder %s129, %s130
    %p142 = scmp.eq.s32.totalorder %s78, 1
    %p143 = por %p141, %p142
    %p145 = scmp.ne.s32.totalorder %s130, %s144
    %p146 = scmp.eq.s32.totalorder %s78, 0
    %p147 = por %p145, %p146
    %s149 = sadd.s32 %s148, 1
    %p152 = scmp.eq.s32.totalorder %s72, 1
    %p153 = scmp.ne.s32.totalorder %s148, %s150
    %p154 = scmp.eq.s32.totalorder %s72, 0
    %p155 = por %p153, %p154
    %p156 = scmp.ne.s32.totalorder %s148, %s150
    %p157 = scmp.eq.s32.totalorder %s77, 1
    %p158 = por %p156, %p157
    %p159 = scmp.ne.s32.totalorder %s150, %s151
    %p160 = scmp.eq.s32.totalorder %s77, 0
    %p161 = por %p159, %p160
    %p162 = scmp.ne.s32.totalorder %s150, %s151
    %p163 = scmp.eq.s32.totalorder %s78, 1
    %p164 = por %p162, %p163
    %p166 = scmp.ne.s32.totalorder %s151, %s165
    %p167 = scmp.eq.s32.totalorder %s78, 0
    %p168 = por %p166, %p167
    %s170 = sadd.s32 %s169, 1
    %p173 = scmp.eq.s32.totalorder %s72, 1
    %p174 = scmp.ne.s32.totalorder %s169, %s171
    %p175 = scmp.eq.s32.totalorder %s72, 0
    %p176 = por %p174, %p175
    %p177 = scmp.ne.s32.totalorder %s169, %s171
    %p178 = scmp.eq.s32.totalorder %s77, 1
    %p179 = por %p177, %p178
    %p180 = scmp.ne.s32.totalorder %s171, %s172
    %p181 = scmp.eq.s32.totalorder %s77, 0
    %p182 = por %p180, %p181
    %p183 = scmp.ne.s32.totalorder %s171, %s172
    %p184 = scmp.eq.s32.totalorder %s78, 1
    %p185 = por %p183, %p184
    %p187 = scmp.ne.s32.totalorder %s172, %s186
    %p188 = scmp.eq.s32.totalorder %s78, 0
    %p189 = por %p187, %p188
    %s191 = sadd.s32 %s190, 1
    %p194 = scmp.eq.s32.totalorder %s72, 1
    %p195 = scmp.ne.s32.totalorder %s190, %s192
    %p196 = scmp.eq.s32.totalorder %s72, 0
    %p197 = por %p195, %p196
    %p198 = scmp.ne.s32.totalorder %s190, %s192
    %p199 = scmp.eq.s32.totalorder %s77, 1
    %p200 = por %p198, %p199
    %p201 = scmp.ne.s32.totalorder %s192, %s193
    %p202 = scmp.eq.s32.totalorder %s77, 0
    %p203 = por %p201, %p202
    %p204 = scmp.ne.s32.totalorder %s192, %s193
    %p205 = scmp.eq.s32.totalorder %s78, 1
    %p206 = por %p204, %p205
    %p208 = scmp.ne.s32.totalorder %s193, %s207
    %p209 = scmp.eq.s32.totalorder %s78, 0
    %p210 = por %p208, %p209
    %s212 = sadd.s32 %s211, 1
    %p215 = scmp.eq.s32.totalorder %s72, 1
    %p216 = scmp.ne.s32.totalorder %s211, %s213
    %p217 = scmp.eq.s32.totalorder %s72, 0
    %p218 = por %p216, %p217
    %p219 = scmp.ne.s32.totalorder %s211, %s213
    %p220 = scmp.eq.s32.totalorder %s77, 1
    %p221 = por %p219, %p220
    %p222 = scmp.ne.s32.totalorder %s213, %s214
    %p223 = scmp.eq.s32.totalorder %s77, 0
    %p224 = por %p222, %p223
    %p225 = scmp.ne.s32.totalorder %s213, %s214
    %p226 = scmp.eq.s32.totalorder %s78, 1
    %p227 = por %p225, %p226
    %p229 = scmp.ne.s32.totalorder %s214, %s228
    %p230 = scmp.eq.s32.totalorder %s78, 0
    %p231 = por %p229, %p230
    %s233 = sadd.s32 %s232, 1
    %p236 = scmp.eq.s32.totalorder %s72, 1
    %p237 = scmp.ne.s32.totalorder %s232, %s234
    %p238 = scmp.eq.s32.totalorder %s72, 0
    %p239 = por %p237, %p238
    %p240 = scmp.ne.s32.totalorder %s232, %s234
    %p241 = scmp.eq.s32.totalorder %s77, 1
    %p242 = por %p240, %p241
    %p243 = scmp.ne.s32.totalorder %s234, %s235
    %p244 = scmp.eq.s32.totalorder %s77, 0
    %p245 = por %p243, %p244
    %p246 = scmp.ne.s32.totalorder %s234, %s235
    %p247 = scmp.eq.s32.totalorder %s78, 1
    %p248 = por %p246, %p247
    %p250 = scmp.ne.s32.totalorder %s235, %s249
    %p251 = scmp.eq.s32.totalorder %s78, 0
    %p252 = por %p250, %p251
    %s254 = sadd.s32 %s253, 1
    %p257 = scmp.eq.s32.totalorder %s72, 1
    %p258 = scmp.ne.s32.totalorder %s253, %s255
    %p259 = scmp.eq.s32.totalorder %s72, 0
    %p260 = por %p258, %p259
    %p261 = scmp.ne.s32.totalorder %s253, %s255
    %p262 = scmp.eq.s32.totalorder %s77, 1
    %p263 = por %p261, %p262
    %p264 = scmp.ne.s32.totalorder %s255, %s256
    %p265 = scmp.eq.s32.totalorder %s77, 0
    %p266 = por %p264, %p265
    %p267 = scmp.ne.s32.totalorder %s255, %s256
    %p268 = scmp.eq.s32.totalorder %s78, 1
    %p269 = por %p267, %p268
    %p271 = scmp.ne.s32.totalorder %s256, %s270
    %p272 = scmp.eq.s32.totalorder %s78, 0
    %p273 = por %p271, %p272
    %s275 = sadd.s32 %s274, 1
    %p278 = scmp.eq.s32.totalorder %s72, 1
    %p279 = scmp.ne.s32.totalorder %s274, %s276
    %p280 = scmp.eq.s32.totalorder %s72, 0
    %p281 = por %p279, %p280
    %p282 = scmp.ne.s32.totalorder %s274, %s276
    %p283 = scmp.eq.s32.totalorder %s77, 1
    %p284 = por %p282, %p283
    %p285 = scmp.ne.s32.totalorder %s276, %s277
    %p286 = scmp.eq.s32.totalorder %s77, 0
    %p287 = por %p285, %p286
    %p288 = scmp.ne.s32.totalorder %s276, %s277
    %p289 = scmp.eq.s32.totalorder %s78, 1
    %p290 = por %p288, %p289
    %p292 = scmp.ne.s32.totalorder %s277, %s291
    %p293 = scmp.eq.s32.totalorder %s78, 0
    %p294 = por %p292, %p293
    %s296 = sadd.s32 %s295, 1
    %p299 = scmp.eq.s32.totalorder %s72, 1
    %p300 = scmp.ne.s32.totalorder %s295, %s297
    %p301 = scmp.eq.s32.totalorder %s72, 0
    %p302 = por %p300, %p301
    %p303 = scmp.ne.s32.totalorder %s295, %s297
    %p304 = scmp.eq.s32.totalorder %s77, 1
    %p305 = por %p303, %p304
    %p306 = scmp.ne.s32.totalorder %s297, %s298
    %p307 = scmp.eq.s32.totalorder %s77, 0
    %p308 = por %p306, %p307
    %p309 = scmp.ne.s32.totalorder %s297, %s298
    %p310 = scmp.eq.s32.totalorder %s78, 1
    %p311 = por %p309, %p310
    %p313 = scmp.ne.s32.totalorder %s298, %s312
    %p314 = scmp.eq.s32.totalorder %s78, 0
    %p315 = por %p313, %p314
    %s317 = sadd.s32 %s316, 1
    %p320 = scmp.eq.s32.totalorder %s72, 1
    %p321 = scmp.ne.s32.totalorder %s316, %s318
    %p322 = scmp.eq.s32.totalorder %s72, 0
    %p323 = por %p321, %p322
    %p324 = scmp.ne.s32.totalorder %s316, %s318
    %p325 = scmp.eq.s32.totalorder %s77, 1
    %p326 = por %p324, %p325
    %p327 = scmp.ne.s32.totalorder %s318, %s319
    %p328 = scmp.eq.s32.totalorder %s77, 0
    %p329 = por %p327, %p328
    %p330 = scmp.ne.s32.totalorder %s318, %s319
    %p331 = scmp.eq.s32.totalorder %s78, 1
    %p332 = por %p330, %p331
    %p334 = scmp.ne.s32.totalorder %s319, %s333
    %p335 = scmp.eq.s32.totalorder %s78, 0
    %p336 = por %p334, %p335
    %s338 = sadd.s32 %s337, 1
    %p341 = scmp.eq.s32.totalorder %s72, 1
    %p342 = scmp.ne.s32.totalorder %s337, %s339
    %p343 = scmp.eq.s32.totalorder %s72, 0
    %p344 = por %p342, %p343
    %p345 = scmp.ne.s32.totalorder %s337, %s339
    %p346 = scmp.eq.s32.totalorder %s77, 1
    %p347 = por %p345, %p346
    %p348 = scmp.ne.s32.totalorder %s339, %s340
    %p349 = scmp.eq.s32.totalorder %s77, 0
    %p350 = por %p348, %p349
    %p351 = scmp.ne.s32.totalorder %s339, %s340
    %p352 = scmp.eq.s32.totalorder %s78, 1
    %p353 = por %p351, %p352
    %p355 = scmp.ne.s32.totalorder %s340, %s354
    %p356 = scmp.eq.s32.totalorder %s78, 0
    %p357 = por %p355, %p356
    %s359 = sadd.s32 %s358, 1
    %p362 = scmp.eq.s32.totalorder %s72, 1
    %p363 = scmp.ne.s32.totalorder %s358, %s360
    %p364 = scmp.eq.s32.totalorder %s72, 0
    %p365 = por %p363, %p364
    %p366 = scmp.ne.s32.totalorder %s358, %s360
    %p367 = scmp.eq.s32.totalorder %s77, 1
    %p368 = por %p366, %p367
    %p369 = scmp.ne.s32.totalorder %s360, %s361
    %p370 = scmp.eq.s32.totalorder %s77, 0
    %p371 = por %p369, %p370
    %p372 = scmp.ne.s32.totalorder %s360, %s361
    %p373 = scmp.eq.s32.totalorder %s78, 1
    %p374 = por %p372, %p373
    %p376 = scmp.ne.s32.totalorder %s361, %s375
    %p377 = scmp.eq.s32.totalorder %s78, 0
    %p378 = por %p376, %p377
    %s380 = sadd.s32 %s379, 1
    %p383 = scmp.eq.s32.totalorder %s72, 1
    %p384 = scmp.ne.s32.totalorder %s379, %s381
    %p385 = scmp.eq.s32.totalorder %s72, 0
    %p386 = por %p384, %p385
    %p387 = scmp.ne.s32.totalorder %s379, %s381
    %p388 = scmp.eq.s32.totalorder %s77, 1
    %p389 = por %p387, %p388
    %p390 = scmp.ne.s32.totalorder %s381, %s382
    %p391 = scmp.eq.s32.totalorder %s77, 0
    %p392 = por %p390, %p391
    %p393 = scmp.ne.s32.totalorder %s381, %s382
    %p394 = scmp.eq.s32.totalorder %s78, 1
    %p395 = por %p393, %p394
    %p397 = scmp.ne.s32.totalorder %s382, %s396
    %p398 = scmp.eq.s32.totalorder %s78, 0
    %p399 = por %p397, %p398
    %s401 = sadd.s32 %s400, 1
    %p404 = scmp.eq.s32.totalorder %s72, 1
    %p405 = scmp.ne.s32.totalorder %s400, %s402
    %p406 = scmp.eq.s32.totalorder %s72, 0
    %p407 = por %p405, %p406
    %p408 = scmp.ne.s32.totalorder %s400, %s402
    %p409 = scmp.eq.s32.totalorder %s77, 1
    %p410 = por %p408, %p409
    %p411 = scmp.ne.s32.totalorder %s402, %s403
    %p412 = scmp.eq.s32.totalorder %s77, 0
    %p413 = por %p411, %p412
    %p414 = scmp.ne.s32.totalorder %s402, %s403
    %p415 = scmp.eq.s32.totalorder %s78, 1
    %p416 = por %p414, %p415
    %p418 = scmp.ne.s32.totalorder %s403, %s417
    %p419 = scmp.eq.s32.totalorder %s78, 0
    %p420 = por %p418, %p419
    %s422 = sadd.s32 %s421, 1
    %p425 = scmp.eq.s32.totalorder %s72, 1
    %p426 = scmp.ne.s32.totalorder %s421, %s423
    %p427 = scmp.eq.s32.totalorder %s72, 0
    %p428 = por %p426, %p427
    %p429 = scmp.ne.s32.totalorder %s421, %s423
    %p430 = scmp.eq.s32.totalorder %s77, 1
    %p431 = por %p429, %p430
    %p432 = scmp.ne.s32.totalorder %s423, %s424
    %p433 = scmp.eq.s32.totalorder %s77, 0
    %p434 = por %p432, %p433
    %p435 = scmp.ne.s32.totalorder %s423, %s424
    %p436 = scmp.eq.s32.totalorder %s78, 1
    %p437 = por %p435, %p436
    %p439 = scmp.ne.s32.totalorder %s424, %s438
    %p440 = scmp.eq.s32.totalorder %s78, 0
    %p441 = por %p439, %p440
    %s443 = sadd.s32 %s442, 1
    %p446 = scmp.eq.s32.totalorder %s72, 1
    %p447 = scmp.ne.s32.totalorder %s442, %s444
    %p448 = scmp.eq.s32.totalorder %s72, 0
    %p449 = por %p447, %p448
    %p450 = scmp.ne.s32.totalorder %s442, %s444
    %p451 = scmp.eq.s32.totalorder %s77, 1
    %p452 = por %p450, %p451
    %p453 = scmp.ne.s32.totalorder %s444, %s445
    %p454 = scmp.eq.s32.totalorder %s77, 0
    %p455 = por %p453, %p454
    %p456 = scmp.ne.s32.totalorder %s444, %s445
    %p457 = scmp.eq.s32.totalorder %s78, 1
    %p458 = por %p456, %p457
    %p460 = scmp.ne.s32.totalorder %s445, %s459
    %p461 = scmp.eq.s32.totalorder %s78, 0
    %p462 = por %p460, %p461
    %s464 = sadd.s32 %s463, 1
    %p467 = scmp.eq.s32.totalorder %s72, 1
    %p468 = scmp.ne.s32.totalorder %s463, %s465
    %p469 = scmp.eq.s32.totalorder %s72, 0
    %p470 = por %p468, %p469
    %p471 = scmp.ne.s32.totalorder %s463, %s465
    %p472 = scmp.eq.s32.totalorder %s77, 1
    %p473 = por %p471, %p472
    %p474 = scmp.ne.s32.totalorder %s465, %s466
    %p475 = scmp.eq.s32.totalorder %s77, 0
    %p476 = por %p474, %p475
    %p477 = scmp.ne.s32.totalorder %s465, %s466
    %p478 = scmp.eq.s32.totalorder %s78, 1
    %p479 = por %p477, %p478
    %p481 = scmp.ne.s32.totalorder %s466, %s480
    %p482 = scmp.eq.s32.totalorder %s78, 0
    %p483 = por %p481, %p482
    %s485 = sadd.s32 %s484, 1
    %p488 = scmp.eq.s32.totalorder %s72, 1
    %p489 = scmp.ne.s32.totalorder %s484, %s486
    %p490 = scmp.eq.s32.totalorder %s72, 0
    %p491 = por %p489, %p490
    %p492 = scmp.ne.s32.totalorder %s484, %s486
    %p493 = scmp.eq.s32.totalorder %s77, 1
    %p494 = por %p492, %p493
    %p495 = scmp.ne.s32.totalorder %s486, %s487
    %p496 = scmp.eq.s32.totalorder %s77, 0
    %p497 = por %p495, %p496
    %p498 = scmp.ne.s32.totalorder %s486, %s487
    %p499 = scmp.eq.s32.totalorder %s78, 1
    %p500 = por %p498, %p499
    %p502 = scmp.ne.s32.totalorder %s487, %s501
    %p503 = scmp.eq.s32.totalorder %s78, 0
    %p504 = por %p502, %p503
    %s506 = sadd.s32 %s505, 1
    %p509 = scmp.eq.s32.totalorder %s72, 1
    %p510 = scmp.ne.s32.totalorder %s505, %s507
    %p511 = scmp.eq.s32.totalorder %s72, 0
    %p512 = por %p510, %p511
    %p513 = scmp.ne.s32.totalorder %s505, %s507
    %p514 = scmp.eq.s32.totalorder %s77, 1
    %p515 = por %p513, %p514
    %p516 = scmp.ne.s32.totalorder %s507, %s508
    %p517 = scmp.eq.s32.totalorder %s77, 0
    %p518 = por %p516, %p517
    %p519 = scmp.ne.s32.totalorder %s507, %s508
    %p520 = scmp.eq.s32.totalorder %s78, 1
    %p521 = por %p519, %p520
    %p523 = scmp.ne.s32.totalorder %s508, %s522
    %p524 = scmp.eq.s32.totalorder %s78, 0
    %p525 = por %p523, %p524
    %s527 = sadd.s32 %s526, 1
    %p530 = scmp.eq.s32.totalorder %s72, 1
    %p531 = scmp.ne.s32.totalorder %s526, %s528
    %p532 = scmp.eq.s32.totalorder %s72, 0
    %p533 = por %p531, %p532
    %p534 = scmp.ne.s32.totalorder %s526, %s528
    %p535 = scmp.eq.s32.totalorder %s77, 1
    %p536 = por %p534, %p535
    %p537 = scmp.ne.s32.totalorder %s528, %s529
    %p538 = scmp.eq.s32.totalorder %s77, 0
    %p539 = por %p537, %p538
    %p540 = scmp.ne.s32.totalorder %s528, %s529
    %p541 = scmp.eq.s32.totalorder %s78, 1
    %p542 = por %p540, %p541
    %p544 = scmp.ne.s32.totalorder %s529, %s543
    %p545 = scmp.eq.s32.totalorder %s78, 0
    %p546 = por %p544, %p545
    %s548 = sadd.s32 %s547, 1
    %p551 = scmp.eq.s32.totalorder %s72, 1
    %p552 = scmp.ne.s32.totalorder %s547, %s549
    %p553 = scmp.eq.s32.totalorder %s72, 0
    %p554 = por %p552, %p553
    %p555 = scmp.ne.s32.totalorder %s547, %s549
    %p556 = scmp.eq.s32.totalorder %s77, 1
    %p557 = por %p555, %p556
    %p558 = scmp.ne.s32.totalorder %s549, %s550
    %p559 = scmp.eq.s32.totalorder %s77, 0
    %p560 = por %p558, %p559
    %p561 = scmp.ne.s32.totalorder %s549, %s550
    %p562 = scmp.eq.s32.totalorder %s78, 1
    %p563 = por %p561, %p562
    %p565 = scmp.ne.s32.totalorder %s550, %s564
    %p566 = scmp.eq.s32.totalorder %s78, 0
    %p567 = por %p565, %p566
    %s569 = sadd.s32 %s568, 1
    %p572 = scmp.eq.s32.totalorder %s72, 1
    %p573 = scmp.ne.s32.totalorder %s568, %s570
    %p574 = scmp.eq.s32.totalorder %s72, 0
    %p575 = por %p573, %p574
    %p576 = scmp.ne.s32.totalorder %s568, %s570
    %p577 = scmp.eq.s32.totalorder %s77, 1
    %p578 = por %p576, %p577
    %p579 = scmp.ne.s32.totalorder %s570, %s571
    %p580 = scmp.eq.s32.totalorder %s77, 0
    %p581 = por %p579, %p580
    %p582 = scmp.ne.s32.totalorder %s570, %s571
    %p583 = scmp.eq.s32.totalorder %s78, 1
    %p584 = por %p582, %p583
    %p586 = scmp.ne.s32.totalorder %s571, %s585
    %p587 = scmp.eq.s32.totalorder %s78, 0
    %p588 = por %p586, %p587
    %s590 = sadd.s32 %s589, 1
    %p593 = scmp.eq.s32.totalorder %s72, 1
    %p594 = scmp.ne.s32.totalorder %s589, %s591
    %p595 = scmp.eq.s32.totalorder %s72, 0
    %p596 = por %p594, %p595
    %p597 = scmp.ne.s32.totalorder %s589, %s591
    %p598 = scmp.eq.s32.totalorder %s77, 1
    %p599 = por %p597, %p598
    %p600 = scmp.ne.s32.totalorder %s591, %s592
    %p601 = scmp.eq.s32.totalorder %s77, 0
    %p602 = por %p600, %p601
    %p603 = scmp.ne.s32.totalorder %s591, %s592
    %p604 = scmp.eq.s32.totalorder %s78, 1
    %p605 = por %p603, %p604
    %p607 = scmp.ne.s32.totalorder %s592, %s606
    %p608 = scmp.eq.s32.totalorder %s78, 0
    %p609 = por %p607, %p608
    %s611 = sadd.s32 %s610, 1
    %p614 = scmp.eq.s32.totalorder %s72, 1
    %p615 = scmp.ne.s32.totalorder %s610, %s612
    %p616 = scmp.eq.s32.totalorder %s72, 0
    %p617 = por %p615, %p616
    %p618 = scmp.ne.s32.totalorder %s610, %s612
    %p619 = scmp.eq.s32.totalorder %s77, 1
    %p620 = por %p618, %p619
    %p621 = scmp.ne.s32.totalorder %s612, %s613
    %p622 = scmp.eq.s32.totalorder %s77, 0
    %p623 = por %p621, %p622
    %p624 = scmp.ne.s32.totalorder %s612, %s613
    %p625 = scmp.eq.s32.totalorder %s78, 1
    %p626 = por %p624, %p625
    %p628 = scmp.ne.s32.totalorder %s613, %s627
    %p629 = scmp.eq.s32.totalorder %s78, 0
    %p630 = por %p628, %p629
    %s632 = sadd.s32 %s631, 1
    %p635 = scmp.eq.s32.totalorder %s72, 1
    %p636 = scmp.ne.s32.totalorder %s631, %s633
    %p637 = scmp.eq.s32.totalorder %s72, 0
    %p638 = por %p636, %p637
    %p639 = scmp.ne.s32.totalorder %s631, %s633
    %p640 = scmp.eq.s32.totalorder %s77, 1
    %p641 = por %p639, %p640
    %p642 = scmp.ne.s32.totalorder %s633, %s634
    %p643 = scmp.eq.s32.totalorder %s77, 0
    %p644 = por %p642, %p643
    %p645 = scmp.ne.s32.totalorder %s633, %s634
    %p646 = scmp.eq.s32.totalorder %s78, 1
    %p647 = por %p645, %p646
    %p649 = scmp.ne.s32.totalorder %s634, %s648
    %p650 = scmp.eq.s32.totalorder %s78, 0
    %p651 = por %p649, %p650
    %s653 = sadd.s32 %s652, 1
    %p656 = scmp.eq.s32.totalorder %s72, 1
    %p657 = scmp.ne.s32.totalorder %s652, %s654
    %p658 = scmp.eq.s32.totalorder %s72, 0
    %p659 = por %p657, %p658
    %p660 = scmp.ne.s32.totalorder %s652, %s654
    %p661 = scmp.eq.s32.totalorder %s77, 1
    %p662 = por %p660, %p661
    %p663 = scmp.ne.s32.totalorder %s654, %s655
    %p664 = scmp.eq.s32.totalorder %s77, 0
    %p665 = por %p663, %p664
    %p666 = scmp.ne.s32.totalorder %s654, %s655
    %p667 = scmp.eq.s32.totalorder %s78, 1
    %p668 = por %p666, %p667
    %p670 = scmp.ne.s32.totalorder %s655, %s669
    %p671 = scmp.eq.s32.totalorder %s78, 0
    %p672 = por %p670, %p671
    %s674 = sadd.s32 %s673, 1
    %p677 = scmp.eq.s32.totalorder %s72, 1
    %p678 = scmp.ne.s32.totalorder %s673, %s675
    %p679 = scmp.eq.s32.totalorder %s72, 0
    %p680 = por %p678, %p679
    %p681 = scmp.ne.s32.totalorder %s673, %s675
    %p682 = scmp.eq.s32.totalorder %s77, 1
    %p683 = por %p681, %p682
    %p684 = scmp.ne.s32.totalorder %s675, %s676
    %p685 = scmp.eq.s32.totalorder %s77, 0
    %p686 = por %p684, %p685
    %p687 = scmp.ne.s32.totalorder %s675, %s676
    %p688 = scmp.eq.s32.totalorder %s78, 1
    %p689 = por %p687, %p688
    %p691 = scmp.ne.s32.totalorder %s676, %s690
    %p692 = scmp.eq.s32.totalorder %s78, 0
    %p693 = por %p691, %p692
    %s695 = sadd.s32 %s694, 1
    %p698 = scmp.eq.s32.totalorder %s72, 1
    %p699 = scmp.ne.s32.totalorder %s694, %s696
    %p700 = scmp.eq.s32.totalorder %s72, 0
    %p701 = por %p699, %p700
    %p702 = scmp.ne.s32.totalorder %s694, %s696
    %p703 = scmp.eq.s32.totalorder %s77, 1
    %p704 = por %p702, %p703
    %p705 = scmp.ne.s32.totalorder %s696, %s697
    %p706 = scmp.eq.s32.totalorder %s77, 0
    %p707 = por %p705, %p706
    %p708 = scmp.ne.s32.totalorder %s696, %s697
    %p709 = scmp.eq.s32.totalorder %s78, 1
    %p710 = por %p708, %p709
    %p712 = scmp.ne.s32.totalorder %s697, %s711
    %p713 = scmp.eq.s32.totalorder %s78, 0
    %p714 = por %p712, %p713
    %s716 = sadd.s32 %s715, 1
    %p719 = scmp.eq.s32.totalorder %s72, 1
    %p720 = scmp.ne.s32.totalorder %s715, %s717
    %p721 = scmp.eq.s32.totalorder %s72, 0
    %p722 = por %p720, %p721
    %p723 = scmp.ne.s32.totalorder %s715, %s717
    %p724 = scmp.eq.s32.totalorder %s77, 1
    %p725 = por %p723, %p724
    %p726 = scmp.ne.s32.totalorder %s717, %s718
    %p727 = scmp.eq.s32.totalorder %s77, 0
    %p728 = por %p726, %p727
    %p729 = scmp.ne.s32.totalorder %s717, %s718
    %p730 = scmp.eq.s32.totalorder %s78, 1
    %p731 = por %p729, %p730
    %p733 = scmp.ne.s32.totalorder %s718, %s732
    %p734 = scmp.eq.s32.totalorder %s78, 0
    %p735 = por %p733, %p734
    %s737 = sadd.s32 %s736, 1
    %p740 = scmp.eq.s32.totalorder %s72, 1
    %p741 = scmp.ne.s32.totalorder %s736, %s738
    %p742 = scmp.eq.s32.totalorder %s72, 0
    %p743 = por %p741, %p742
    %p744 = scmp.ne.s32.totalorder %s736, %s738
    %p745 = scmp.eq.s32.totalorder %s77, 1
    %p746 = por %p744, %p745
    %p747 = scmp.ne.s32.totalorder %s738, %s739
    %p748 = scmp.eq.s32.totalorder %s77, 0
    %p749 = por %p747, %p748
    %p750 = scmp.ne.s32.totalorder %s738, %s739
    %p751 = scmp.eq.s32.totalorder %s78, 1
    %p752 = por %p750, %p751
    %p754 = scmp.ne.s32.totalorder %s739, %s753
    %p755 = scmp.eq.s32.totalorder %s78, 0
    %p756 = por %p754, %p755
    %s757 = ssub.s32 %s72, %s79
    %p758 = scmp.eq.s32.totalorder %s757, 0
    %s760 = sadd.s32 %s759, 1
    %s761 = scalar_select %p758, %s759, %s760
    %p764 = pneg %p758
    %p765 = scmp.eq.s32.totalorder %s72, 1
    %p766 = por %p764, %p765
    %p767 = scmp.ne.s32.totalorder %s759, %s762
    %p768 = scmp.eq.s32.totalorder %s72, 0
    %p769 = por %p767, %p768
    %p770 = scmp.ne.s32.totalorder %s759, %s762
    %p771 = scmp.eq.s32.totalorder %s77, 1
    %p772 = por %p770, %p771
    %p773 = scmp.ne.s32.totalorder %s762, %s763
    %p774 = scmp.eq.s32.totalorder %s77, 0
    %p775 = por %p773, %p774
    %p776 = scmp.ne.s32.totalorder %s762, %s763
    %p777 = scmp.eq.s32.totalorder %s78, 1
    %p778 = por %p776, %p777
    %p780 = scmp.ne.s32.totalorder %s763, %s779
    %p781 = scmp.eq.s32.totalorder %s78, 0
    %p782 = por %p780, %p781
    %p783 = scmp.le.s32.totalorder 1, %s72
    %p784 = scmp.lt.s32.totalorder %s72, 3
    %p785 = pnand %p783, %p784
    %p786 = pneg %p785
    // Predicated region
    $region9: #{dgcn_forward.1} parent=5 // pred_check
      _
    $region10: #{dgcn_forward.1} parent=5 // pred_check_branch
      %788 = sbr.rel (%p785) target = $region12
    $region11: #{dgcn_forward.1} parent=5 // pred_region
      %s789 = ssub.s32 %s72, 1
      // Predicated region
      $region13: #{dgcn_forward.1} parent=11 // pred_check
        %p790 = pneg %p119
      $region14: #{dgcn_forward.1} parent=11 // pred_check_branch
        %792 = sbr.rel (%p790) target = $region16
      $region15: #{dgcn_forward.1} parent=11 // pred_region
        _
      $region16: #{dgcn_forward.1} parent=11 // pred_fallthru
        _
      // Predicated region
      $region17: #{dgcn_forward.1} parent=11 // pred_check
        %p793 = pneg %p140
      $region18: #{dgcn_forward.1} parent=11 // pred_check_branch
        %795 = sbr.rel (%p793) target = $region20
      $region19: #{dgcn_forward.1} parent=11 // pred_region
        _
      $region20: #{dgcn_forward.1} parent=11 // pred_fallthru
        _
      // Predicated region
      $region21: #{dgcn_forward.1} parent=11 // pred_check
        %p796 = pneg %p161
      $region22: #{dgcn_forward.1} parent=11 // pred_check_branch
        %798 = sbr.rel (%p796) target = $region24
      $region23: #{dgcn_forward.1} parent=11 // pred_region
        _
      $region24: #{dgcn_forward.1} parent=11 // pred_fallthru
        _
      // Predicated region
      $region25: #{dgcn_forward.1} parent=11 // pred_check
        %p799 = pneg %p182
      $region26: #{dgcn_forward.1} parent=11 // pred_check_branch
        %801 = sbr.rel (%p799) target = $region28
      $region27: #{dgcn_forward.1} parent=11 // pred_region
        _
      $region28: #{dgcn_forward.1} parent=11 // pred_fallthru
        _
      // Predicated region
      $region29: #{dgcn_forward.1} parent=11 // pred_check
        %p802 = pneg %p203
      $region30: #{dgcn_forward.1} parent=11 // pred_check_branch
        %804 = sbr.rel (%p802) target = $region32
      $region31: #{dgcn_forward.1} parent=11 // pred_region
        _
      $region32: #{dgcn_forward.1} parent=11 // pred_fallthru
        _
      // Predicated region
      $region33: #{dgcn_forward.1} parent=11 // pred_check
        %p805 = pneg %p224
      $region34: #{dgcn_forward.1} parent=11 // pred_check_branch
        %807 = sbr.rel (%p805) target = $region36
      $region35: #{dgcn_forward.1} parent=11 // pred_region
        _
      $region36: #{dgcn_forward.1} parent=11 // pred_fallthru
        _
      // Predicated region
      $region37: #{dgcn_forward.1} parent=11 // pred_check
        %p808 = pneg %p245
      $region38: #{dgcn_forward.1} parent=11 // pred_check_branch
        %810 = sbr.rel (%p808) target = $region40
      $region39: #{dgcn_forward.1} parent=11 // pred_region
        _
      $region40: #{dgcn_forward.1} parent=11 // pred_fallthru
        _
      // Predicated region
      $region41: #{dgcn_forward.1} parent=11 // pred_check
        %p811 = pneg %p266
      $region42: #{dgcn_forward.1} parent=11 // pred_check_branch
        %813 = sbr.rel (%p811) target = $region44
      $region43: #{dgcn_forward.1} parent=11 // pred_region
        _
      $region44: #{dgcn_forward.1} parent=11 // pred_fallthru
        _
      // Predicated region
      $region45: #{dgcn_forward.1} parent=11 // pred_check
        %p814 = pneg %p287
      $region46: #{dgcn_forward.1} parent=11 // pred_check_branch
        %816 = sbr.rel (%p814) target = $region48
      $region47: #{dgcn_forward.1} parent=11 // pred_region
        _
      $region48: #{dgcn_forward.1} parent=11 // pred_fallthru
        _
      // Predicated region
      $region49: #{dgcn_forward.1} parent=11 // pred_check
        %p817 = pneg %p308
      $region50: #{dgcn_forward.1} parent=11 // pred_check_branch
        %819 = sbr.rel (%p817) target = $region52
      $region51: #{dgcn_forward.1} parent=11 // pred_region
        _
      $region52: #{dgcn_forward.1} parent=11 // pred_fallthru
        _
      // Predicated region
      $region53: #{dgcn_forward.1} parent=11 // pred_check
        %p820 = pneg %p329
      $region54: #{dgcn_forward.1} parent=11 // pred_check_branch
        %822 = sbr.rel (%p820) target = $region56
      $region55: #{dgcn_forward.1} parent=11 // pred_region
        _
      $region56: #{dgcn_forward.1} parent=11 // pred_fallthru
        _
      // Predicated region
      $region57: #{dgcn_forward.1} parent=11 // pred_check
        %p823 = pneg %p350
      $region58: #{dgcn_forward.1} parent=11 // pred_check_branch
        %825 = sbr.rel (%p823) target = $region60
      $region59: #{dgcn_forward.1} parent=11 // pred_region
        _
      $region60: #{dgcn_forward.1} parent=11 // pred_fallthru
        _
      // Predicated region
      $region61: #{dgcn_forward.1} parent=11 // pred_check
        %p826 = pneg %p371
      $region62: #{dgcn_forward.1} parent=11 // pred_check_branch
        %828 = sbr.rel (%p826) target = $region64
      $region63: #{dgcn_forward.1} parent=11 // pred_region
        _
      $region64: #{dgcn_forward.1} parent=11 // pred_fallthru
        _
      // Predicated region
      $region65: #{dgcn_forward.1} parent=11 // pred_check
        %p829 = pneg %p392
      $region66: #{dgcn_forward.1} parent=11 // pred_check_branch
        %831 = sbr.rel (%p829) target = $region68
      $region67: #{dgcn_forward.1} parent=11 // pred_region
        _
      $region68: #{dgcn_forward.1} parent=11 // pred_fallthru
        _
      // Predicated region
      $region69: #{dgcn_forward.1} parent=11 // pred_check
        %p832 = pneg %p413
      $region70: #{dgcn_forward.1} parent=11 // pred_check_branch
        %834 = sbr.rel (%p832) target = $region72
      $region71: #{dgcn_forward.1} parent=11 // pred_region
        _
      $region72: #{dgcn_forward.1} parent=11 // pred_fallthru
        _
      // Predicated region
      $region73: #{dgcn_forward.1} parent=11 // pred_check
        %p835 = pneg %p434
      $region74: #{dgcn_forward.1} parent=11 // pred_check_branch
        %837 = sbr.rel (%p835) target = $region76
      $region75: #{dgcn_forward.1} parent=11 // pred_region
        _
      $region76: #{dgcn_forward.1} parent=11 // pred_fallthru
        _
      // Predicated region
      $region77: #{dgcn_forward.1} parent=11 // pred_check
        %p838 = pneg %p455
      $region78: #{dgcn_forward.1} parent=11 // pred_check_branch
        %840 = sbr.rel (%p838) target = $region80
      $region79: #{dgcn_forward.1} parent=11 // pred_region
        _
      $region80: #{dgcn_forward.1} parent=11 // pred_fallthru
        _
      // Predicated region
      $region81: #{dgcn_forward.1} parent=11 // pred_check
        %p841 = pneg %p476
      $region82: #{dgcn_forward.1} parent=11 // pred_check_branch
        %843 = sbr.rel (%p841) target = $region84
      $region83: #{dgcn_forward.1} parent=11 // pred_region
        _
      $region84: #{dgcn_forward.1} parent=11 // pred_fallthru
        _
      // Predicated region
      $region85: #{dgcn_forward.1} parent=11 // pred_check
        %p844 = pneg %p497
      $region86: #{dgcn_forward.1} parent=11 // pred_check_branch
        %846 = sbr.rel (%p844) target = $region88
      $region87: #{dgcn_forward.1} parent=11 // pred_region
        _
      $region88: #{dgcn_forward.1} parent=11 // pred_fallthru
        _
      // Predicated region
      $region89: #{dgcn_forward.1} parent=11 // pred_check
        %p847 = pneg %p518
      $region90: #{dgcn_forward.1} parent=11 // pred_check_branch
        %849 = sbr.rel (%p847) target = $region92
      $region91: #{dgcn_forward.1} parent=11 // pred_region
        _
      $region92: #{dgcn_forward.1} parent=11 // pred_fallthru
        _
      // Predicated region
      $region93: #{dgcn_forward.1} parent=11 // pred_check
        %p850 = pneg %p539
      $region94: #{dgcn_forward.1} parent=11 // pred_check_branch
        %852 = sbr.rel (%p850) target = $region96
      $region95: #{dgcn_forward.1} parent=11 // pred_region
        _
      $region96: #{dgcn_forward.1} parent=11 // pred_fallthru
        _
      // Predicated region
      $region97: #{dgcn_forward.1} parent=11 // pred_check
        %p853 = pneg %p560
      $region98: #{dgcn_forward.1} parent=11 // pred_check_branch
        %855 = sbr.rel (%p853) target = $region100
      $region99: #{dgcn_forward.1} parent=11 // pred_region
        _
      $region100: #{dgcn_forward.1} parent=11 // pred_fallthru
        _
      // Predicated region
      $region101: #{dgcn_forward.1} parent=11 // pred_check
        %p856 = pneg %p581
      $region102: #{dgcn_forward.1} parent=11 // pred_check_branch
        %858 = sbr.rel (%p856) target = $region104
      $region103: #{dgcn_forward.1} parent=11 // pred_region
        _
      $region104: #{dgcn_forward.1} parent=11 // pred_fallthru
        _
      // Predicated region
      $region105: #{dgcn_forward.1} parent=11 // pred_check
        %p859 = pneg %p602
      $region106: #{dgcn_forward.1} parent=11 // pred_check_branch
        %861 = sbr.rel (%p859) target = $region108
      $region107: #{dgcn_forward.1} parent=11 // pred_region
        _
      $region108: #{dgcn_forward.1} parent=11 // pred_fallthru
        _
      // Predicated region
      $region109: #{dgcn_forward.1} parent=11 // pred_check
        %p862 = pneg %p623
      $region110: #{dgcn_forward.1} parent=11 // pred_check_branch
        %864 = sbr.rel (%p862) target = $region112
      $region111: #{dgcn_forward.1} parent=11 // pred_region
        _
      $region112: #{dgcn_forward.1} parent=11 // pred_fallthru
        _
      // Predicated region
      $region113: #{dgcn_forward.1} parent=11 // pred_check
        %p865 = pneg %p644
      $region114: #{dgcn_forward.1} parent=11 // pred_check_branch
        %867 = sbr.rel (%p865) target = $region116
      $region115: #{dgcn_forward.1} parent=11 // pred_region
        _
      $region116: #{dgcn_forward.1} parent=11 // pred_fallthru
        _
      // Predicated region
      $region117: #{dgcn_forward.1} parent=11 // pred_check
        %p868 = pneg %p665
      $region118: #{dgcn_forward.1} parent=11 // pred_check_branch
        %870 = sbr.rel (%p868) target = $region120
      $region119: #{dgcn_forward.1} parent=11 // pred_region
        _
      $region120: #{dgcn_forward.1} parent=11 // pred_fallthru
        _
      // Predicated region
      $region121: #{dgcn_forward.1} parent=11 // pred_check
        %p871 = pneg %p686
      $region122: #{dgcn_forward.1} parent=11 // pred_check_branch
        %873 = sbr.rel (%p871) target = $region124
      $region123: #{dgcn_forward.1} parent=11 // pred_region
        _
      $region124: #{dgcn_forward.1} parent=11 // pred_fallthru
        _
      // Predicated region
      $region125: #{dgcn_forward.1} parent=11 // pred_check
        %p874 = pneg %p707
      $region126: #{dgcn_forward.1} parent=11 // pred_check_branch
        %876 = sbr.rel (%p874) target = $region128
      $region127: #{dgcn_forward.1} parent=11 // pred_region
        _
      $region128: #{dgcn_forward.1} parent=11 // pred_fallthru
        _
      // Predicated region
      $region129: #{dgcn_forward.1} parent=11 // pred_check
        %p877 = pneg %p728
      $region130: #{dgcn_forward.1} parent=11 // pred_check_branch
        %879 = sbr.rel (%p877) target = $region132
      $region131: #{dgcn_forward.1} parent=11 // pred_region
        _
      $region132: #{dgcn_forward.1} parent=11 // pred_fallthru
        _
      // Predicated region
      $region133: #{dgcn_forward.1} parent=11 // pred_check
        %p880 = pneg %p749
      $region134: #{dgcn_forward.1} parent=11 // pred_check_branch
        %882 = sbr.rel (%p880) target = $region136
      $region135: #{dgcn_forward.1} parent=11 // pred_region
        _
      $region136: #{dgcn_forward.1} parent=11 // pred_fallthru
        _
    $region12: #{dgcn_forward.1} parent=5 // pred_fallthru
      _
    %p883 = scmp.lt.s32.totalorder %s72, 2
    // Predicated region
    $region137: #{dgcn_forward.1} parent=5 // pred_check
      %p884 = pneg %p883
    $region138: #{dgcn_forward.1} parent=5 // pred_check_branch
      %886 = sbr.rel (%p884) target = $region140
    $region139: #{dgcn_forward.1} parent=5 // pred_region
      // Predicated region
      $region141: #{dgcn_forward.1} parent=139 // pred_check
        %p887 = pneg %p92
      $region142: #{dgcn_forward.1} parent=139 // pred_check_branch
        %889 = sbr.rel (%p887) target = $region144
      $region143: #{dgcn_forward.1} parent=139 // pred_region
        %p890 = scmp.lt.s32.totalorder %s72, 1
        %s891 = scalar_select %p890, %s72, 1
        %s892 = smul.addr %s891, 4
        %s893 = smul.addr %s892, 8
        %s894 = scalar_lea.vmem %s1, %s893
      $region144: #{dgcn_forward.1} parent=139 // pred_fallthru
        _
    $region140: #{dgcn_forward.1} parent=5 // pred_fallthru
      _
    %p895 = scmp.le.s32.totalorder 1, %s72
    %p896 = scmp.lt.s32.totalorder %s72, 3
    %p897 = pnand %p895, %p896
    %p898 = pneg %p897
    // Predicated region
    $region145: #{dgcn_forward.1} parent=5 // pred_check
      _
    $region146: #{dgcn_forward.1} parent=5 // pred_check_branch
      %900 = sbr.rel (%p897) target = $region148
    $region147: #{dgcn_forward.1} parent=5 // pred_region
      %s901 = ssub.s32 %s72, 1
      %p902 = scmp.lt.s32.totalorder %s77, 1
      %s903 = scalar_select %p902, %s77, 1
      %s904 = smul.addr %s903, 4
      %s905 = smul.addr %s904, 8
      %s906 = scalar_lea.vmem %s1, %s905
      %p907 = pneg %p98
      %p908 = pneg %p95
      %p909 = pneg %p119
      %p910 = pneg %p116
      %p911 = pneg %p140
      %p912 = pneg %p137
      %p913 = pneg %p161
      %p914 = pneg %p158
      %p915 = pneg %p182
      %p916 = pneg %p179
      %p917 = pneg %p203
      %p918 = pneg %p200
      %p919 = pneg %p224
      %p920 = pneg %p221
      %p921 = pneg %p245
      %p922 = pneg %p242
      %p923 = pneg %p266
      %p924 = pneg %p263
      %p925 = pneg %p287
      %p926 = pneg %p284
      %p927 = pneg %p308
      %p928 = pneg %p305
      %p929 = pneg %p329
      %p930 = pneg %p326
      %p931 = pneg %p350
      %p932 = pneg %p347
      %p933 = pneg %p371
      %p934 = pneg %p368
      %p935 = pneg %p392
      %p936 = pneg %p389
      %p937 = pneg %p413
      %p938 = pneg %p410
      %p939 = pneg %p434
      %p940 = pneg %p431
      %p941 = pneg %p455
      %p942 = pneg %p452
      %p943 = pneg %p476
      %p944 = pneg %p473
      %p945 = pneg %p497
      %p946 = pneg %p494
      %p947 = pneg %p518
      %p948 = pneg %p515
      %p949 = pneg %p539
      %p950 = pneg %p536
      %p951 = pneg %p560
      %p952 = pneg %p557
      %p953 = pneg %p581
      %p954 = pneg %p578
      %p955 = pneg %p602
      %p956 = pneg %p599
      %p957 = pneg %p623
      %p958 = pneg %p620
      %p959 = pneg %p644
      %p960 = pneg %p641
      %p961 = pneg %p665
      %p962 = pneg %p662
      %p963 = pneg %p686
      %p964 = pneg %p683
      %p965 = pneg %p707
      %p966 = pneg %p704
      %p967 = pneg %p728
      %p968 = pneg %p725
      %p969 = pneg %p749
      %p970 = pneg %p746
      %p971 = pneg %p775
      %p972 = pneg %p772
      %p973 = scmp.lt.s32.totalorder %s77, 1
      %s974 = scalar_select %p973, %s77, 1
      %s975 = smul.addr %s974, 2
      %s976 = smul.addr %s975, 8
      %s977 = scalar_lea.vmem %s65, %s976
      %p978 = scmp.lt.s32.totalorder %s77, 1
      %s979 = scalar_select %p978, %s77, 1
      %s980 = smul.addr %s979, 4
      %s981 = smul.addr %s980, 8
      %s982 = scalar_lea.vmem %s1, %s981
      %p983 = scmp.lt.s32.totalorder %s77, 1
      %s984 = scalar_select %p983, %s77, 1
      %s985 = smul.addr %s984, 2
      %s986 = smul.addr %s985, 8
      %s987 = scalar_lea.vmem %s65, %s986
      %v988 = vld [vmem:[%s3] sm:$0xff]
      %v989 = vld [vmem:[%s3 + $0x8] sm:$0xff]
      %v990 = vld [vmem:[%s3 + $0x10] sm:$0xff]
      %v991 = vld [vmem:[%s3 + $0x18] sm:$0xff]
      %v992 = vld [vmem:[%s3 + $0x20] sm:$0xff]
      %v993 = vld [vmem:[%s3 + $0x28] sm:$0xff]
      %v994 = vld [vmem:[%s3 + $0x30] sm:$0xff]
      %v995 = vld [vmem:[%s3 + $0x38] sm:$0xf]
      %v996 = vld [vmem:[%s5] sm:$0xff]
      %v997 = vld [vmem:[%s5 + $0x8] sm:$0xff]
      %v998 = vld [vmem:[%s5 + $0x10] sm:$0xff]
      %v999 = vld [vmem:[%s5 + $0x18] sm:$0xff]
      %v1000 = vld [vmem:[%s5 + $0x20] sm:$0xff]
      %v1001 = vld [vmem:[%s5 + $0x28] sm:$0xff]
      %v1002 = vld [vmem:[%s5 + $0x30] sm:$0xff]
      %v1003 = vld [vmem:[%s5 + $0x38] sm:$0xf]
      %v1004 = vld [vmem:[%s982] sm:$0xff]
      %v1005 = vld [vmem:[%s982 + $0x8] sm:$0xff]
      %v1006 = vld [vmem:[%s982 + $0x10] sm:$0xff]
      %v1007 = vld [vmem:[%s982 + $0x18] sm:$0xff]
      %v1008 = vld [vmem:[%s9] sm:$0xff]
      %v1009 = vld [vmem:[%s9 + $0x8] sm:$0xff]
      %v1010 = vld [vmem:[%s9 + $0x10] sm:$0xff]
      %v1011 = vld [vmem:[%s9 + $0x18] sm:$0xff]
      %v1012 = vld [vmem:[%s9 + $0x20] sm:$0xff]
      %v1013 = vld [vmem:[%s9 + $0x28] sm:$0xff]
      %v1014 = vld [vmem:[%s9 + $0x30] sm:$0xff]
      %v1015 = vld [vmem:[%s9 + $0x38] sm:$0xff]
      %v1016 = vld [vmem:[%s11] sm:$0xff]
      %v1017 = vld [vmem:[%s11 + $0x8] sm:$0xff]
      %v1018 = vld [vmem:[%s11 + $0x10] sm:$0xff]
      %v1019 = vld [vmem:[%s11 + $0x18] sm:$0xff]
      %v1020 = vld [vmem:[%s11 + $0x20] sm:$0xff]
      %v1021 = vld [vmem:[%s11 + $0x28] sm:$0xff]
      %v1022 = vld [vmem:[%s11 + $0x30] sm:$0xff]
      %v1023 = vld [vmem:[%s11 + $0x38] sm:$0xff]
      %1025 = vset.pattern.permute.xlu0 0
      %1026 = vperm.xlu0 %1025, %v1016
      %v1027 = vpop.permute.xlu0 %1026
      %1030 = vset.pattern.permute.xlu0 0
      %1031 = vperm.xlu0 %1030, %v1017
      %v1032 = vpop.permute.xlu0 %1031
      %1035 = vset.pattern.permute.xlu0 0
      %1036 = vperm.xlu0 %1035, %v1018
      %v1037 = vpop.permute.xlu0 %1036
      %1040 = vset.pattern.permute.xlu0 0
      %1041 = vperm.xlu0 %1040, %v1019
      %v1042 = vpop.permute.xlu0 %1041
      %1045 = vset.pattern.permute.xlu0 0
      %1046 = vperm.xlu0 %1045, %v1020
      %v1047 = vpop.permute.xlu0 %1046
      %1050 = vset.pattern.permute.xlu0 0
      %1051 = vperm.xlu0 %1050, %v1021
      %v1052 = vpop.permute.xlu0 %1051
      %1055 = vset.pattern.permute.xlu0 0
      %1056 = vperm.xlu0 %1055, %v1022
      %v1057 = vpop.permute.xlu0 %1056
      %1060 = vset.pattern.permute.xlu0 0
      %1061 = vperm.xlu0 %1060, %v1023
      %v1062 = vpop.permute.xlu0 %1061
      %vm1064 = vcmask 261120
      %v1066 = vsel %vm1064, %v1008, 0
      %v1069 = vsel %vm1064, %v1009, 0
      %v1072 = vsel %vm1064, %v1010, 0
      %v1075 = vsel %vm1064, %v1011, 0
      %v1078 = vsel %vm1064, %v1012, 0
      %v1081 = vsel %vm1064, %v1013, 0
      %v1084 = vsel %vm1064, %v1014, 0
      %v1087 = vsel %vm1064, %v1015, 0
      %1089 = vmatprep.subr.mxu0 0.0
      %1090 = vmatpush1.msra.mxu0 0.0
      %1091 = vmatprep.subr.mxu0 0.0
      %1092 = vmatpush1.msra.mxu0 0.0
      %1093 = vmatprep.subr.mxu0 0.0
      %1094 = vmatpush1.msra.mxu0 0.0
      %1095 = vmatprep.subr.mxu0 0.0
      %1096 = vmatpush1.msra.mxu0 0.0
      %1097 = vmatprep.subr.mxu0 0.0
      %1098 = vmatpush1.msra.mxu0 0.0
      %1099 = vmatprep.subr.mxu0 0.0
      %1100 = vmatpush1.msra.mxu0 0.0
      %1101 = vmatprep.subr.mxu0 0.0
      %1102 = vmatpush1.msra.mxu0 0.0
      %1103 = vmatprep.subr.mxu0 0.0
      %1104 = vmatpush1.msra.mxu0 0.0
      %1105 = vmatprep.subr.mxu0 0.0
      %1106 = vmatpush1.msra.mxu0 0.0
      %1107 = vmatprep.subr.mxu0 0.0
      %1108 = vmatpush1.msra.mxu0 0.0
      %1109 = vmatprep.subr.mxu0 0.0
      %1110 = vmatpush1.msra.mxu0 0.0
      %1111 = vmatprep.subr.mxu0 0.0
      %1112 = vmatpush1.msra.mxu0 0.0
      %1113 = vmatprep.subr.mxu0 0.0
      %1114 = vmatpush1.msra.mxu0 %v1007
      %1115 = vmatprep.subr.mxu0 0.0
      %1116 = vmatpush1.msra.mxu0 %v1006
      %1117 = vmatprep.subr.mxu0 0.0
      %1118 = vmatpush1.msra.mxu0 %v1005
      %1119 = vmatprep.subr.mxu0 0.0
      %1120 = vmatpush1.msra.mxu0 %v1004
      %1121 = vmatprep.subr.mxu0 0.0
      %1122 = vmatpush2.msra.mxu0 0.0
      %1123 = vmatprep.subr.mxu0 0.0
      %1124 = vmatpush2.msra.mxu0 0.0
      %1125 = vmatprep.subr.mxu0 0.0
      %1126 = vmatpush2.msra.mxu0 0.0
      %1127 = vmatprep.subr.mxu0 0.0
      %1128 = vmatpush2.msra.mxu0 0.0
      %1129 = vmatprep.subr.mxu0 0.0
      %1130 = vmatpush2.msra.mxu0 0.0
      %1131 = vmatprep.subr.mxu0 0.0
      %1132 = vmatpush2.msra.mxu0 0.0
      %1133 = vmatprep.subr.mxu0 0.0
      %1134 = vmatpush2.msra.mxu0 0.0
      %1135 = vmatprep.subr.mxu0 0.0
      %1136 = vmatpush2.msra.mxu0 0.0
      %1137 = vmatprep.subr.mxu0 0.0
      %1138 = vmatpush2.msra.mxu0 0.0
      %1139 = vmatprep.subr.mxu0 0.0
      %1140 = vmatpush2.msra.mxu0 0.0
      %1141 = vmatprep.subr.mxu0 0.0
      %1142 = vmatpush2.msra.mxu0 0.0
      %1143 = vmatprep.subr.mxu0 0.0
      %1144 = vmatpush2.msra.mxu0 0.0
      %1145 = vmatprep.subr.mxu0 0.0
      %1146 = vmatpush2.msra.mxu0 0.0
      %1147 = vmatprep.subr.mxu0 0.0
      %1148 = vmatpush2.msra.mxu0 0.0
      %1149 = vmatprep.subr.mxu0 0.0
      %1150 = vmatpush2.msra.mxu0 0.0
      %1151 = vmatprep.subr.mxu0 0.0
      %1152 = vmatpush2.msra.mxu0 0.0
      %1153 = vmatprep.mubr.f32.mxu0 0.0
      %1154 = vmatmul.mubr.f32.gmra.mxu0 %v1066
      %v1155 = vpop.f32.mrf.mxu0
      %v1156 = vadd.f32 %v1027, %v1155
      %v1157 = vpop.f32.mrf.mxu0
      %1158 = vmatprep.mubr.f32.mxu0 0.0
      %1159 = vmatmul.mubr.f32.gmra.mxu0 %v1069
      %v1160 = vpop.f32.mrf.mxu0
      %v1161 = vadd.f32 %v1032, %v1160
      %v1162 = vpop.f32.mrf.mxu0
      %1163 = vmatprep.mubr.f32.mxu0 0.0
      %1164 = vmatmul.mubr.f32.gmra.mxu0 %v1072
      %v1165 = vpop.f32.mrf.mxu0
      %v1166 = vadd.f32 %v1037, %v1165
      %v1167 = vpop.f32.mrf.mxu0
      %1168 = vmatprep.mubr.f32.mxu0 0.0
      %1169 = vmatmul.mubr.f32.gmra.mxu0 %v1075
      %v1170 = vpop.f32.mrf.mxu0
      %v1171 = vadd.f32 %v1042, %v1170
      %v1172 = vpop.f32.mrf.mxu0
      %1173 = vmatprep.mubr.f32.mxu0 0.0
      %1174 = vmatmul.mubr.f32.gmra.mxu0 %v1078
      %v1175 = vpop.f32.mrf.mxu0
      %v1176 = vadd.f32 %v1047, %v1175
      %v1177 = vpop.f32.mrf.mxu0
      %1178 = vmatprep.mubr.f32.mxu0 0.0
      %1179 = vmatmul.mubr.f32.gmra.mxu0 %v1081
      %v1180 = vpop.f32.mrf.mxu0
      %v1181 = vadd.f32 %v1052, %v1180
      %v1182 = vpop.f32.mrf.mxu0
      %1183 = vmatprep.mubr.f32.mxu0 0.0
      %1184 = vmatmul.mubr.f32.gmra.mxu0 %v1084
      %v1185 = vpop.f32.mrf.mxu0
      %v1186 = vadd.f32 %v1057, %v1185
      %v1187 = vpop.f32.mrf.mxu0
      %1188 = vmatprep.mubr.f32.mxu0 0.0
      %1189 = vmatmul.mubr.f32.gmra.mxu0 %v1087
      %v1190 = vpop.f32.mrf.mxu0
      %v1191 = vadd.f32 %v1062, %v1190
      %v1192 = vpop.f32.mrf.mxu0
      %1193 = vdwg.mxu0
      %vm1194 = vcmask 490496
      %v1196 = vsel %vm1194, %v1004, 0
      %v1199 = vsel %vm1194, %v1005, 0
      %v1202 = vsel %vm1194, %v1006, 0
      %v1205 = vsel %vm1194, %v1007, 0
      %vm1207 = vcmask 1043456
      %v1209 = vsel %vm1207, %v995, 0
      %1211 = vmatprep.subr.mxu0 0.0
      %1212 = vmatpush1.msra.mxu0 0.0
      %1213 = vmatprep.subr.mxu0 0.0
      %1214 = vmatpush1.msra.mxu0 0.0
      %1215 = vmatprep.subr.mxu0 0.0
      %1216 = vmatpush1.msra.mxu0 0.0
      %1217 = vmatprep.subr.mxu0 0.0
      %1218 = vmatpush1.msra.mxu0 0.0
      %1219 = vmatprep.subr.mxu0 0.0
      %1220 = vmatpush1.msra.mxu0 0.0
      %1221 = vmatprep.subr.mxu0 0.0
      %1222 = vmatpush1.msra.mxu0 0.0
      %1223 = vmatprep.subr.mxu0 0.0
      %1224 = vmatpush1.msra.mxu0 0.0
      %1225 = vmatprep.subr.mxu0 0.0
      %1226 = vmatpush1.msra.mxu0 0.0
      %1227 = vmatprep.subr.mxu0 0.0
      %1228 = vmatpush1.msra.mxu0 %v1209
      %1229 = vmatprep.subr.mxu0 0.0
      %1230 = vmatpush1.msra.mxu0 %v994
      %1231 = vmatprep.subr.mxu0 0.0
      %1232 = vmatpush1.msra.mxu0 %v993
      %1233 = vmatprep.subr.mxu0 0.0
      %1234 = vmatpush1.msra.mxu0 %v992
      %1235 = vmatprep.subr.mxu0 0.0
      %1236 = vmatpush1.msra.mxu0 %v991
      %1237 = vmatprep.subr.mxu0 0.0
      %1238 = vmatpush1.msra.mxu0 %v990
      %1239 = vmatprep.subr.mxu0 0.0
      %1240 = vmatpush1.msra.mxu0 %v989
      %1241 = vmatprep.subr.mxu0 0.0
      %1242 = vmatpush1.msra.mxu0 %v988
      %1243 = vmatprep.subr.mxu0 0.0
      %1244 = vmatpush2.msra.mxu0 0.0
      %1245 = vmatprep.subr.mxu0 0.0
      %1246 = vmatpush2.msra.mxu0 0.0
      %1247 = vmatprep.subr.mxu0 0.0
      %1248 = vmatpush2.msra.mxu0 0.0
      %1249 = vmatprep.subr.mxu0 0.0
      %1250 = vmatpush2.msra.mxu0 0.0
      %1251 = vmatprep.subr.mxu0 0.0
      %1252 = vmatpush2.msra.mxu0 0.0
      %1253 = vmatprep.subr.mxu0 0.0
      %1254 = vmatpush2.msra.mxu0 0.0
      %1255 = vmatprep.subr.mxu0 0.0
      %1256 = vmatpush2.msra.mxu0 0.0
      %1257 = vmatprep.subr.mxu0 0.0
      %1258 = vmatpush2.msra.mxu0 0.0
      %1259 = vmatprep.subr.mxu0 0.0
      %1260 = vmatpush2.msra.mxu0 0.0
      %1261 = vmatprep.subr.mxu0 0.0
      %1262 = vmatpush2.msra.mxu0 0.0
      %1263 = vmatprep.subr.mxu0 0.0
      %1264 = vmatpush2.msra.mxu0 0.0
      %1265 = vmatprep.subr.mxu0 0.0
      %1266 = vmatpush2.msra.mxu0 0.0
      %1267 = vmatprep.subr.mxu0 0.0
      %1268 = vmatpush2.msra.mxu0 0.0
      %1269 = vmatprep.subr.mxu0 0.0
      %1270 = vmatpush2.msra.mxu0 0.0
      %1271 = vmatprep.subr.mxu0 0.0
      %1272 = vmatpush2.msra.mxu0 0.0
      %1273 = vmatprep.subr.mxu0 0.0
      %1274 = vmatpush2.msra.mxu0 0.0
      %1275 = vmatprep.mubr.f32.mxu0 0.0
      %1276 = vmatmul.mubr.f32.gmra.mxu0 %v1196
      %v1277 = vpop.f32.mrf.mxu0
      %v1278 = vadd.f32 0.0, %v1277
      %v1279 = vpop.f32.mrf.mxu0
      %1280 = vmatprep.mubr.f32.mxu0 0.0
      %1281 = vmatmul.mubr.f32.gmra.mxu0 %v1199
      %v1282 = vpop.f32.mrf.mxu0
      %v1283 = vadd.f32 0.0, %v1282
      %v1284 = vpop.f32.mrf.mxu0
      %1285 = vmatprep.mubr.f32.mxu0 0.0
      %1286 = vmatmul.mubr.f32.gmra.mxu0 %v1202
      %v1287 = vpop.f32.mrf.mxu0
      %v1288 = vadd.f32 0.0, %v1287
      %v1289 = vpop.f32.mrf.mxu0
      %1290 = vmatprep.mubr.f32.mxu0 0.0
      %1291 = vmatmul.mubr.f32.gmra.mxu0 %v1205
      %v1292 = vpop.f32.mrf.mxu0
      %v1293 = vadd.f32 0.0, %v1292
      %v1294 = vpop.f32.mrf.mxu0
      %1295 = vdwg.mxu0
      %v1297 = vsel %vm1207, %v1003, 0
      %1299 = vmatprep.subr.mxu0 0.0
      %1300 = vmatpush1.msra.mxu0 0.0
      %1301 = vmatprep.subr.mxu0 0.0
      %1302 = vmatpush1.msra.mxu0 0.0
      %1303 = vmatprep.subr.mxu0 0.0
      %1304 = vmatpush1.msra.mxu0 0.0
      %1305 = vmatprep.subr.mxu0 0.0
      %1306 = vmatpush1.msra.mxu0 0.0
      %1307 = vmatprep.subr.mxu0 0.0
      %1308 = vmatpush1.msra.mxu0 0.0
      %1309 = vmatprep.subr.mxu0 0.0
      %1310 = vmatpush1.msra.mxu0 0.0
      %1311 = vmatprep.subr.mxu0 0.0
      %1312 = vmatpush1.msra.mxu0 0.0
      %1313 = vmatprep.subr.mxu0 0.0
      %1314 = vmatpush1.msra.mxu0 0.0
      %1315 = vmatprep.subr.mxu0 0.0
      %1316 = vmatpush1.msra.mxu0 %v1297
      %1317 = vmatprep.subr.mxu0 0.0
      %1318 = vmatpush1.msra.mxu0 %v1002
      %1319 = vmatprep.subr.mxu0 0.0
      %1320 = vmatpush1.msra.mxu0 %v1001
      %1321 = vmatprep.subr.mxu0 0.0
      %1322 = vmatpush1.msra.mxu0 %v1000
      %1323 = vmatprep.subr.mxu0 0.0
      %1324 = vmatpush1.msra.mxu0 %v999
      %1325 = vmatprep.subr.mxu0 0.0
      %1326 = vmatpush1.msra.mxu0 %v998
      %1327 = vmatprep.subr.mxu0 0.0
      %1328 = vmatpush1.msra.mxu0 %v997
      %1329 = vmatprep.subr.mxu0 0.0
      %1330 = vmatpush1.msra.mxu0 %v996
      %1331 = vmatprep.subr.mxu0 0.0
      %1332 = vmatpush2.msra.mxu0 0.0
      %1333 = vmatprep.subr.mxu0 0.0
      %1334 = vmatpush2.msra.mxu0 0.0
      %1335 = vmatprep.subr.mxu0 0.0
      %1336 = vmatpush2.msra.mxu0 0.0
      %1337 = vmatprep.subr.mxu0 0.0
      %1338 = vmatpush2.msra.mxu0 0.0
      %1339 = vmatprep.subr.mxu0 0.0
      %1340 = vmatpush2.msra.mxu0 0.0
      %1341 = vmatprep.subr.mxu0 0.0
      %1342 = vmatpush2.msra.mxu0 0.0
      %1343 = vmatprep.subr.mxu0 0.0
      %1344 = vmatpush2.msra.mxu0 0.0
      %1345 = vmatprep.subr.mxu0 0.0
      %1346 = vmatpush2.msra.mxu0 0.0
      %1347 = vmatprep.subr.mxu0 0.0
      %1348 = vmatpush2.msra.mxu0 0.0
      %1349 = vmatprep.subr.mxu0 0.0
      %1350 = vmatpush2.msra.mxu0 0.0
      %1351 = vmatprep.subr.mxu0 0.0
      %1352 = vmatpush2.msra.mxu0 0.0
      %1353 = vmatprep.subr.mxu0 0.0
      %1354 = vmatpush2.msra.mxu0 0.0
      %1355 = vmatprep.subr.mxu0 0.0
      %1356 = vmatpush2.msra.mxu0 0.0
      %1357 = vmatprep.subr.mxu0 0.0
      %1358 = vmatpush2.msra.mxu0 0.0
      %1359 = vmatprep.subr.mxu0 0.0
      %1360 = vmatpush2.msra.mxu0 0.0
      %1361 = vmatprep.subr.mxu0 0.0
      %1362 = vmatpush2.msra.mxu0 0.0
      %1363 = vmatprep.mubr.f32.mxu0 0.0
      %1364 = vmatmul.mubr.f32.gmra.mxu0 %v1196
      %v1365 = vpop.f32.mrf.mxu0
      %v1366 = vadd.f32 0.0, %v1365
      %v1367 = vpop.f32.mrf.mxu0
      %1368 = vmatprep.mubr.f32.mxu0 0.0
      %1369 = vmatmul.mubr.f32.gmra.mxu0 %v1199
      %v1370 = vpop.f32.mrf.mxu0
      %v1371 = vadd.f32 0.0, %v1370
      %v1372 = vpop.f32.mrf.mxu0
      %1373 = vmatprep.mubr.f32.mxu0 0.0
      %1374 = vmatmul.mubr.f32.gmra.mxu0 %v1202
      %v1375 = vpop.f32.mrf.mxu0
      %v1376 = vadd.f32 0.0, %v1375
      %v1377 = vpop.f32.mrf.mxu0
      %1378 = vmatprep.mubr.f32.mxu0 0.0
      %1379 = vmatmul.mubr.f32.gmra.mxu0 %v1205
      %v1380 = vpop.f32.mrf.mxu0
      %v1381 = vadd.f32 0.0, %v1380
      %v1382 = vpop.f32.mrf.mxu0
      %1383 = vdwg.mxu0
      %v1384 = vld [vmem:[%s13] sm:$0xff]
      %v1385 = vld [vmem:[%s13 + $0x8] sm:$0xff]
      %v1386 = vld [vmem:[%s13 + $0x10] sm:$0xff]
      %v1387 = vld [vmem:[%s13 + $0x18] sm:$0xff]
      %v1388 = vld [vmem:[%s13 + $0x20] sm:$0xff]
      %v1389 = vld [vmem:[%s13 + $0x28] sm:$0xff]
      %v1390 = vld [vmem:[%s13 + $0x30] sm:$0xff]
      %v1391 = vld [vmem:[%s13 + $0x38] sm:$0xff]
      %v1392 = vld [vmem:[%s15] sm:$0xff]
      %v1393 = vld [vmem:[%s15 + $0x8] sm:$0xff]
      %v1394 = vld [vmem:[%s15 + $0x10] sm:$0xff]
      %v1395 = vld [vmem:[%s15 + $0x18] sm:$0xff]
      %v1396 = vld [vmem:[%s15 + $0x20] sm:$0xff]
      %v1397 = vld [vmem:[%s15 + $0x28] sm:$0xff]
      %v1398 = vld [vmem:[%s15 + $0x30] sm:$0xff]
      %v1399 = vld [vmem:[%s15 + $0x38] sm:$0xff]
      %1401 = vset.pattern.permute.xlu0 0
      %1402 = vperm.xlu0 %1401, %v1392
      %v1403 = vpop.permute.xlu0 %1402
      %1406 = vset.pattern.permute.xlu0 0
      %1407 = vperm.xlu0 %1406, %v1393
      %v1408 = vpop.permute.xlu0 %1407
      %1411 = vset.pattern.permute.xlu0 0
      %1412 = vperm.xlu0 %1411, %v1394
      %v1413 = vpop.permute.xlu0 %1412
      %1416 = vset.pattern.permute.xlu0 0
      %1417 = vperm.xlu0 %1416, %v1395
      %v1418 = vpop.permute.xlu0 %1417
      %1421 = vset.pattern.permute.xlu0 0
      %1422 = vperm.xlu0 %1421, %v1396
      %v1423 = vpop.permute.xlu0 %1422
      %1426 = vset.pattern.permute.xlu0 0
      %1427 = vperm.xlu0 %1426, %v1397
      %v1428 = vpop.permute.xlu0 %1427
      %1431 = vset.pattern.permute.xlu0 0
      %1432 = vperm.xlu0 %1431, %v1398
      %v1433 = vpop.permute.xlu0 %1432
      %1436 = vset.pattern.permute.xlu0 0
      %1437 = vperm.xlu0 %1436, %v1399
      %v1438 = vpop.permute.xlu0 %1437
      %vm1440 = vcmask 785408
      %v1442 = vsel %vm1440, %v1384, 0
      %v1445 = vsel %vm1440, %v1385, 0
      %v1448 = vsel %vm1440, %v1386, 0
      %v1451 = vsel %vm1440, %v1387, 0
      %v1454 = vsel %vm1440, %v1388, 0
      %v1457 = vsel %vm1440, %v1389, 0
      %v1460 = vsel %vm1440, %v1390, 0
      %v1463 = vsel %vm1440, %v1391, 0
      %1465 = vmatprep.subr.mxu0 0.0
      %1466 = vmatpush1.msra.mxu0 0.0
      %1467 = vmatprep.subr.mxu0 0.0
      %1468 = vmatpush1.msra.mxu0 0.0
      %1469 = vmatprep.subr.mxu0 0.0
      %1470 = vmatpush1.msra.mxu0 0.0
      %1471 = vmatprep.subr.mxu0 0.0
      %1472 = vmatpush1.msra.mxu0 0.0
      %1473 = vmatprep.subr.mxu0 0.0
      %1474 = vmatpush1.msra.mxu0 %v1381
      %1475 = vmatprep.subr.mxu0 0.0
      %1476 = vmatpush1.msra.mxu0 %v1376
      %1477 = vmatprep.subr.mxu0 0.0
      %1478 = vmatpush1.msra.mxu0 %v1371
      %1479 = vmatprep.subr.mxu0 0.0
      %1480 = vmatpush1.msra.mxu0 %v1366
      %1481 = vmatprep.subr.mxu0 0.0
      %1482 = vmatpush1.msra.mxu0 %v1007
      %1483 = vmatprep.subr.mxu0 0.0
      %1484 = vmatpush1.msra.mxu0 %v1006
      %1485 = vmatprep.subr.mxu0 0.0
      %1486 = vmatpush1.msra.mxu0 %v1005
      %1487 = vmatprep.subr.mxu0 0.0
      %1488 = vmatpush1.msra.mxu0 %v1004
      %1489 = vmatprep.subr.mxu0 0.0
      %1490 = vmatpush1.msra.mxu0 %v1293
      %1491 = vmatprep.subr.mxu0 0.0
      %1492 = vmatpush1.msra.mxu0 %v1288
      %1493 = vmatprep.subr.mxu0 0.0
      %1494 = vmatpush1.msra.mxu0 %v1283
      %1495 = vmatprep.subr.mxu0 0.0
      %1496 = vmatpush1.msra.mxu0 %v1278
      %1497 = vmatprep.subr.mxu0 0.0
      %1498 = vmatpush2.msra.mxu0 0.0
      %1499 = vmatprep.subr.mxu0 0.0
      %1500 = vmatpush2.msra.mxu0 0.0
      %1501 = vmatprep.subr.mxu0 0.0
      %1502 = vmatpush2.msra.mxu0 0.0
      %1503 = vmatprep.subr.mxu0 0.0
      %1504 = vmatpush2.msra.mxu0 0.0
      %1505 = vmatprep.subr.mxu0 0.0
      %1506 = vmatpush2.msra.mxu0 0.0
      %1507 = vmatprep.subr.mxu0 0.0
      %1508 = vmatpush2.msra.mxu0 0.0
      %1509 = vmatprep.subr.mxu0 0.0
      %1510 = vmatpush2.msra.mxu0 0.0
      %1511 = vmatprep.subr.mxu0 0.0
      %1512 = vmatpush2.msra.mxu0 0.0
      %1513 = vmatprep.subr.mxu0 0.0
      %1514 = vmatpush2.msra.mxu0 0.0
      %1515 = vmatprep.subr.mxu0 0.0
      %1516 = vmatpush2.msra.mxu0 0.0
      %1517 = vmatprep.subr.mxu0 0.0
      %1518 = vmatpush2.msra.mxu0 0.0
      %1519 = vmatprep.subr.mxu0 0.0
      %1520 = vmatpush2.msra.mxu0 0.0
      %1521 = vmatprep.subr.mxu0 0.0
      %1522 = vmatpush2.msra.mxu0 0.0
      %1523 = vmatprep.subr.mxu0 0.0
      %1524 = vmatpush2.msra.mxu0 0.0
      %1525 = vmatprep.subr.mxu0 0.0
      %1526 = vmatpush2.msra.mxu0 0.0
      %1527 = vmatprep.subr.mxu0 0.0
      %1528 = vmatpush2.msra.mxu0 0.0
      %1529 = vmatprep.mubr.f32.mxu0 0.0
      %1530 = vmatmul.mubr.f32.gmra.mxu0 %v1442
      %v1531 = vpop.f32.mrf.mxu0
      %v1532 = vadd.f32 %v1403, %v1531
      %v1533 = vpop.f32.mrf.mxu0
      %1534 = vmatprep.mubr.f32.mxu0 0.0
      %1535 = vmatmul.mubr.f32.gmra.mxu0 %v1445
      %v1536 = vpop.f32.mrf.mxu0
      %v1537 = vadd.f32 %v1408, %v1536
      %v1538 = vpop.f32.mrf.mxu0
      %1539 = vmatprep.mubr.f32.mxu0 0.0
      %1540 = vmatmul.mubr.f32.gmra.mxu0 %v1448
      %v1541 = vpop.f32.mrf.mxu0
      %v1542 = vadd.f32 %v1413, %v1541
      %v1543 = vpop.f32.mrf.mxu0
      %1544 = vmatprep.mubr.f32.mxu0 0.0
      %1545 = vmatmul.mubr.f32.gmra.mxu0 %v1451
      %v1546 = vpop.f32.mrf.mxu0
      %v1547 = vadd.f32 %v1418, %v1546
      %v1548 = vpop.f32.mrf.mxu0
      %1549 = vmatprep.mubr.f32.mxu0 0.0
      %1550 = vmatmul.mubr.f32.gmra.mxu0 %v1454
      %v1551 = vpop.f32.mrf.mxu0
      %v1552 = vadd.f32 %v1423, %v1551
      %v1553 = vpop.f32.mrf.mxu0
      %1554 = vmatprep.mubr.f32.mxu0 0.0
      %1555 = vmatmul.mubr.f32.gmra.mxu0 %v1457
      %v1556 = vpop.f32.mrf.mxu0
      %v1557 = vadd.f32 %v1428, %v1556
      %v1558 = vpop.f32.mrf.mxu0
      %1559 = vmatprep.mubr.f32.mxu0 0.0
      %1560 = vmatmul.mubr.f32.gmra.mxu0 %v1460
      %v1561 = vpop.f32.mrf.mxu0
      %v1562 = vadd.f32 %v1433, %v1561
      %v1563 = vpop.f32.mrf.mxu0
      %1564 = vmatprep.mubr.f32.mxu0 0.0
      %1565 = vmatmul.mubr.f32.gmra.mxu0 %v1463
      %v1566 = vpop.f32.mrf.mxu0
      %v1567 = vadd.f32 %v1438, %v1566
      %v1568 = vpop.f32.mrf.mxu0
      %1569 = vdwg.mxu0
      %vm1570 = vcmp.ge.f32.partialorder %v1532, 0.0
      %vm1571 = vcmp.ge.f32.partialorder %v1537, 0.0
      %vm1572 = vcmp.ge.f32.partialorder %v1542, 0.0
      %vm1573 = vcmp.ge.f32.partialorder %v1547, 0.0
      %vm1574 = vcmp.ge.f32.partialorder %v1552, 0.0
      %vm1575 = vcmp.ge.f32.partialorder %v1557, 0.0
      %vm1576 = vcmp.ge.f32.partialorder %v1562, 0.0
      %vm1577 = vcmp.ge.f32.partialorder %v1567, 0.0
      %v1578 = vmul.f32 %v1532, 0.01
      %v1579 = vmul.f32 %v1537, 0.01
      %v1580 = vmul.f32 %v1542, 0.01
      %v1581 = vmul.f32 %v1547, 0.01
      %v1582 = vmul.f32 %v1552, 0.01
      %v1583 = vmul.f32 %v1557, 0.01
      %v1584 = vmul.f32 %v1562, 0.01
      %v1585 = vmul.f32 %v1567, 0.01
      %v1586 = vsel %vm1570, %v1532, %v1578
      %v1587 = vsel %vm1571, %v1537, %v1579
      %v1588 = vsel %vm1572, %v1542, %v1580
      %v1589 = vsel %vm1573, %v1547, %v1581
      %v1590 = vsel %vm1574, %v1552, %v1582
      %v1591 = vsel %vm1575, %v1557, %v1583
      %v1592 = vsel %vm1576, %v1562, %v1584
      %v1593 = vsel %vm1577, %v1567, %v1585
      %v1595 = vsel %vm1194, %v1586, 0
      %v1598 = vsel %vm1194, %v1587, 0
      %v1601 = vsel %vm1194, %v1588, 0
      %v1604 = vsel %vm1194, %v1589, 0
      %v1607 = vsel %vm1194, %v1590, 0
      %v1610 = vsel %vm1194, %v1591, 0
      %v1613 = vsel %vm1194, %v1592, 0
      %v1616 = vsel %vm1194, %v1593, 0
      %1618 = vmatprep.subr.mxu0 0.0
      %1619 = vmatpush1.msra.mxu0 0.0
      %1620 = vmatprep.subr.mxu0 0.0
      %1621 = vmatpush1.msra.mxu0 0.0
      %1622 = vmatprep.subr.mxu0 0.0
      %1623 = vmatpush1.msra.mxu0 0.0
      %1624 = vmatprep.subr.mxu0 0.0
      %1625 = vmatpush1.msra.mxu0 0.0
      %1626 = vmatprep.subr.mxu0 0.0
      %1627 = vmatpush1.msra.mxu0 0.0
      %1628 = vmatprep.subr.mxu0 0.0
      %1629 = vmatpush1.msra.mxu0 0.0
      %1630 = vmatprep.subr.mxu0 0.0
      %1631 = vmatpush1.msra.mxu0 0.0
      %1632 = vmatprep.subr.mxu0 0.0
      %1633 = vmatpush1.msra.mxu0 0.0
      %1634 = vmatprep.subr.mxu0 0.0
      %1635 = vmatpush1.msra.mxu0 %v1209
      %1636 = vmatprep.subr.mxu0 0.0
      %1637 = vmatpush1.msra.mxu0 %v994
      %1638 = vmatprep.subr.mxu0 0.0
      %1639 = vmatpush1.msra.mxu0 %v993
      %1640 = vmatprep.subr.mxu0 0.0
      %1641 = vmatpush1.msra.mxu0 %v992
      %1642 = vmatprep.subr.mxu0 0.0
      %1643 = vmatpush1.msra.mxu0 %v991
      %1644 = vmatprep.subr.mxu0 0.0
      %1645 = vmatpush1.msra.mxu0 %v990
      %1646 = vmatprep.subr.mxu0 0.0
      %1647 = vmatpush1.msra.mxu0 %v989
      %1648 = vmatprep.subr.mxu0 0.0
      %1649 = vmatpush1.msra.mxu0 %v988
      %1650 = vmatprep.subr.mxu0 0.0
      %1651 = vmatpush2.msra.mxu0 0.0
      %1652 = vmatprep.subr.mxu0 0.0
      %1653 = vmatpush2.msra.mxu0 0.0
      %1654 = vmatprep.subr.mxu0 0.0
      %1655 = vmatpush2.msra.mxu0 0.0
      %1656 = vmatprep.subr.mxu0 0.0
      %1657 = vmatpush2.msra.mxu0 0.0
      %1658 = vmatprep.subr.mxu0 0.0
      %1659 = vmatpush2.msra.mxu0 0.0
      %1660 = vmatprep.subr.mxu0 0.0
      %1661 = vmatpush2.msra.mxu0 0.0
      %1662 = vmatprep.subr.mxu0 0.0
      %1663 = vmatpush2.msra.mxu0 0.0
      %1664 = vmatprep.subr.mxu0 0.0
      %1665 = vmatpush2.msra.mxu0 0.0
      %1666 = vmatprep.subr.mxu0 0.0
      %1667 = vmatpush2.msra.mxu0 0.0
      %1668 = vmatprep.subr.mxu0 0.0
      %1669 = vmatpush2.msra.mxu0 0.0
      %1670 = vmatprep.subr.mxu0 0.0
      %1671 = vmatpush2.msra.mxu0 0.0
      %1672 = vmatprep.subr.mxu0 0.0
      %1673 = vmatpush2.msra.mxu0 0.0
      %1674 = vmatprep.subr.mxu0 0.0
      %1675 = vmatpush2.msra.mxu0 0.0
      %1676 = vmatprep.subr.mxu0 0.0
      %1677 = vmatpush2.msra.mxu0 0.0
      %1678 = vmatprep.subr.mxu0 0.0
      %1679 = vmatpush2.msra.mxu0 0.0
      %1680 = vmatprep.subr.mxu0 0.0
      %1681 = vmatpush2.msra.mxu0 0.0
      %1682 = vmatprep.mubr.f32.mxu0 0.0
      %1683 = vmatmul.mubr.f32.gmra.mxu0 %v1595
      %v1684 = vpop.f32.mrf.mxu0
      %v1685 = vadd.f32 0.0, %v1684
      %v1686 = vpop.f32.mrf.mxu0
      %1687 = vmatprep.mubr.f32.mxu0 0.0
      %1688 = vmatmul.mubr.f32.gmra.mxu0 %v1598
      %v1689 = vpop.f32.mrf.mxu0
      %v1690 = vadd.f32 0.0, %v1689
      %v1691 = vpop.f32.mrf.mxu0
      %1692 = vmatprep.mubr.f32.mxu0 0.0
      %1693 = vmatmul.mubr.f32.gmra.mxu0 %v1601
      %v1694 = vpop.f32.mrf.mxu0
      %v1695 = vadd.f32 0.0, %v1694
      %v1696 = vpop.f32.mrf.mxu0
      %1697 = vmatprep.mubr.f32.mxu0 0.0
      %1698 = vmatmul.mubr.f32.gmra.mxu0 %v1604
      %v1699 = vpop.f32.mrf.mxu0
      %v1700 = vadd.f32 0.0, %v1699
      %v1701 = vpop.f32.mrf.mxu0
      %1702 = vmatprep.mubr.f32.mxu0 0.0
      %1703 = vmatmul.mubr.f32.gmra.mxu0 %v1607
      %v1704 = vpop.f32.mrf.mxu0
      %v1705 = vadd.f32 0.0, %v1704
      %v1706 = vpop.f32.mrf.mxu0
      %1707 = vmatprep.mubr.f32.mxu0 0.0
      %1708 = vmatmul.mubr.f32.gmra.mxu0 %v1610
      %v1709 = vpop.f32.mrf.mxu0
      %v1710 = vadd.f32 0.0, %v1709
      %v1711 = vpop.f32.mrf.mxu0
      %1712 = vmatprep.mubr.f32.mxu0 0.0
      %1713 = vmatmul.mubr.f32.gmra.mxu0 %v1613
      %v1714 = vpop.f32.mrf.mxu0
      %v1715 = vadd.f32 0.0, %v1714
      %v1716 = vpop.f32.mrf.mxu0
      %1717 = vmatprep.mubr.f32.mxu0 0.0
      %1718 = vmatmul.mubr.f32.gmra.mxu0 %v1616
      %v1719 = vpop.f32.mrf.mxu0
      %v1720 = vadd.f32 0.0, %v1719
      %v1721 = vpop.f32.mrf.mxu0
      %1722 = vdwg.mxu0
      %1723 = vmatprep.subr.mxu0 0.0
      %1724 = vmatpush1.msra.mxu0 0.0
      %1725 = vmatprep.subr.mxu0 0.0
      %1726 = vmatpush1.msra.mxu0 0.0
      %1727 = vmatprep.subr.mxu0 0.0
      %1728 = vmatpush1.msra.mxu0 0.0
      %1729 = vmatprep.subr.mxu0 0.0
      %1730 = vmatpush1.msra.mxu0 0.0
      %1731 = vmatprep.subr.mxu0 0.0
      %1732 = vmatpush1.msra.mxu0 0.0
      %1733 = vmatprep.subr.mxu0 0.0
      %1734 = vmatpush1.msra.mxu0 0.0
      %1735 = vmatprep.subr.mxu0 0.0
      %1736 = vmatpush1.msra.mxu0 0.0
      %1737 = vmatprep.subr.mxu0 0.0
      %1738 = vmatpush1.msra.mxu0 0.0
      %1739 = vmatprep.subr.mxu0 0.0
      %1740 = vmatpush1.msra.mxu0 %v1297
      %1741 = vmatprep.subr.mxu0 0.0
      %1742 = vmatpush1.msra.mxu0 %v1002
      %1743 = vmatprep.subr.mxu0 0.0
      %1744 = vmatpush1.msra.mxu0 %v1001
      %1745 = vmatprep.subr.mxu0 0.0
      %1746 = vmatpush1.msra.mxu0 %v1000
      %1747 = vmatprep.subr.mxu0 0.0
      %1748 = vmatpush1.msra.mxu0 %v999
      %1749 = vmatprep.subr.mxu0 0.0
      %1750 = vmatpush1.msra.mxu0 %v998
      %1751 = vmatprep.subr.mxu0 0.0
      %1752 = vmatpush1.msra.mxu0 %v997
      %1753 = vmatprep.subr.mxu0 0.0
      %1754 = vmatpush1.msra.mxu0 %v996
      %1755 = vmatprep.subr.mxu0 0.0
      %1756 = vmatpush2.msra.mxu0 0.0
      %1757 = vmatprep.subr.mxu0 0.0
      %1758 = vmatpush2.msra.mxu0 0.0
      %1759 = vmatprep.subr.mxu0 0.0
      %1760 = vmatpush2.msra.mxu0 0.0
      %1761 = vmatprep.subr.mxu0 0.0
      %1762 = vmatpush2.msra.mxu0 0.0
      %1763 = vmatprep.subr.mxu0 0.0
      %1764 = vmatpush2.msra.mxu0 0.0
      %1765 = vmatprep.subr.mxu0 0.0
      %1766 = vmatpush2.msra.mxu0 0.0
      %1767 = vmatprep.subr.mxu0 0.0
      %1768 = vmatpush2.msra.mxu0 0.0
      %1769 = vmatprep.subr.mxu0 0.0
      %1770 = vmatpush2.msra.mxu0 0.0
      %1771 = vmatprep.subr.mxu0 0.0
      %1772 = vmatpush2.msra.mxu0 0.0
      %1773 = vmatprep.subr.mxu0 0.0
      %1774 = vmatpush2.msra.mxu0 0.0
      %1775 = vmatprep.subr.mxu0 0.0
      %1776 = vmatpush2.msra.mxu0 0.0
      %1777 = vmatprep.subr.mxu0 0.0
      %1778 = vmatpush2.msra.mxu0 0.0
      %1779 = vmatprep.subr.mxu0 0.0
      %1780 = vmatpush2.msra.mxu0 0.0
      %1781 = vmatprep.subr.mxu0 0.0
      %1782 = vmatpush2.msra.mxu0 0.0
      %1783 = vmatprep.subr.mxu0 0.0
      %1784 = vmatpush2.msra.mxu0 0.0
      %1785 = vmatprep.subr.mxu0 0.0
      %1786 = vmatpush2.msra.mxu0 0.0
      %1787 = vmatprep.mubr.f32.mxu0 0.0
      %1788 = vmatmul.mubr.f32.gmra.mxu0 %v1595
      %v1789 = vpop.f32.mrf.mxu0
      %v1790 = vadd.f32 0.0, %v1789
      %v1791 = vpop.f32.mrf.mxu0
      %1792 = vmatprep.mubr.f32.mxu0 0.0
      %1793 = vmatmul.mubr.f32.gmra.mxu0 %v1598
      %v1794 = vpop.f32.mrf.mxu0
      %v1795 = vadd.f32 0.0, %v1794
      %v1796 = vpop.f32.mrf.mxu0
      %1797 = vmatprep.mubr.f32.mxu0 0.0
      %1798 = vmatmul.mubr.f32.gmra.mxu0 %v1601
      %v1799 = vpop.f32.mrf.mxu0
      %v1800 = vadd.f32 0.0, %v1799
      %v1801 = vpop.f32.mrf.mxu0
      %1802 = vmatprep.mubr.f32.mxu0 0.0
      %1803 = vmatmul.mubr.f32.gmra.mxu0 %v1604
      %v1804 = vpop.f32.mrf.mxu0
      %v1805 = vadd.f32 0.0, %v1804
      %v1806 = vpop.f32.mrf.mxu0
      %1807 = vmatprep.mubr.f32.mxu0 0.0
      %1808 = vmatmul.mubr.f32.gmra.mxu0 %v1607
      %v1809 = vpop.f32.mrf.mxu0
      %v1810 = vadd.f32 0.0, %v1809
      %v1811 = vpop.f32.mrf.mxu0
      %1812 = vmatprep.mubr.f32.mxu0 0.0
      %1813 = vmatmul.mubr.f32.gmra.mxu0 %v1610
      %v1814 = vpop.f32.mrf.mxu0
      %v1815 = vadd.f32 0.0, %v1814
      %v1816 = vpop.f32.mrf.mxu0
      %1817 = vmatprep.mubr.f32.mxu0 0.0
      %1818 = vmatmul.mubr.f32.gmra.mxu0 %v1613
      %v1819 = vpop.f32.mrf.mxu0
      %v1820 = vadd.f32 0.0, %v1819
      %v1821 = vpop.f32.mrf.mxu0
      %1822 = vmatprep.mubr.f32.mxu0 0.0
      %1823 = vmatmul.mubr.f32.gmra.mxu0 %v1616
      %v1824 = vpop.f32.mrf.mxu0
      %v1825 = vadd.f32 0.0, %v1824
      %v1826 = vpop.f32.mrf.mxu0
      %1827 = vdwg.mxu0
      %v1828 = vld [vmem:[%s7] sm:$0xff]
      %v1829 = vld [vmem:[%s7 + $0x8] sm:$0xff]
      %v1830 = vld [vmem:[%s7 + $0x10] sm:$0xff]
      %v1831 = vld [vmem:[%s7 + $0x18] sm:$0xff]
      %v1832 = vld [vmem:[%s7 + $0x20] sm:$0xff]
      %v1833 = vld [vmem:[%s7 + $0x28] sm:$0xff]
      %v1834 = vld [vmem:[%s7 + $0x30] sm:$0xff]
      %v1835 = vld [vmem:[%s7 + $0x38] sm:$0xff]
      %vm1836 = vcmask 523264
      %v1838 = vsel %vm1836, %v1828, 0
      %v1841 = vsel %vm1836, %v1829, 0
      %v1844 = vsel %vm1836, %v1830, 0
      %v1847 = vsel %vm1836, %v1831, 0
      %v1850 = vsel %vm1836, %v1832, 0
      %v1853 = vsel %vm1836, %v1833, 0
      %v1856 = vsel %vm1836, %v1834, 0
      %v1859 = vsel %vm1836, %v1835, 0
      %1861 = vmatprep.subr.mxu0 0.0
      %1862 = vmatpush1.msra.mxu0 0.0
      %1863 = vmatprep.subr.mxu0 0.0
      %1864 = vmatpush1.msra.mxu0 0.0
      %1865 = vmatprep.subr.mxu0 0.0
      %1866 = vmatpush1.msra.mxu0 0.0
      %1867 = vmatprep.subr.mxu0 0.0
      %1868 = vmatpush1.msra.mxu0 0.0
      %1869 = vmatprep.subr.mxu0 0.0
      %1870 = vmatpush1.msra.mxu0 0.0
      %1871 = vmatprep.subr.mxu0 0.0
      %1872 = vmatpush1.msra.mxu0 0.0
      %1873 = vmatprep.subr.mxu0 0.0
      %1874 = vmatpush1.msra.mxu0 0.0
      %1875 = vmatprep.subr.mxu0 0.0
      %1876 = vmatpush1.msra.mxu0 0.0
      %1877 = vmatprep.subr.mxu0 0.0
      %1878 = vmatpush1.msra.mxu0 %v1593
      %1879 = vmatprep.subr.mxu0 0.0
      %1880 = vmatpush1.msra.mxu0 %v1592
      %1881 = vmatprep.subr.mxu0 0.0
      %1882 = vmatpush1.msra.mxu0 %v1591
      %1883 = vmatprep.subr.mxu0 0.0
      %1884 = vmatpush1.msra.mxu0 %v1590
      %1885 = vmatprep.subr.mxu0 0.0
      %1886 = vmatpush1.msra.mxu0 %v1589
      %1887 = vmatprep.subr.mxu0 0.0
      %1888 = vmatpush1.msra.mxu0 %v1588
      %1889 = vmatprep.subr.mxu0 0.0
      %1890 = vmatpush1.msra.mxu0 %v1587
      %1891 = vmatprep.subr.mxu0 0.0
      %1892 = vmatpush1.msra.mxu0 %v1586
      %1893 = vmatprep.subr.mxu0 0.0
      %1894 = vmatpush2.msra.mxu0 0.0
      %1895 = vmatprep.subr.mxu0 0.0
      %1896 = vmatpush2.msra.mxu0 0.0
      %1897 = vmatprep.subr.mxu0 0.0
      %1898 = vmatpush2.msra.mxu0 0.0
      %1899 = vmatprep.subr.mxu0 0.0
      %1900 = vmatpush2.msra.mxu0 0.0
      %1901 = vmatprep.subr.mxu0 0.0
      %1902 = vmatpush2.msra.mxu0 0.0
      %1903 = vmatprep.subr.mxu0 0.0
      %1904 = vmatpush2.msra.mxu0 0.0
      %1905 = vmatprep.subr.mxu0 0.0
      %1906 = vmatpush2.msra.mxu0 0.0
      %1907 = vmatprep.subr.mxu0 0.0
      %1908 = vmatpush2.msra.mxu0 0.0
      %1909 = vmatprep.subr.mxu0 0.0
      %1910 = vmatpush2.msra.mxu0 0.0
      %1911 = vmatprep.subr.mxu0 0.0
      %1912 = vmatpush2.msra.mxu0 0.0
      %1913 = vmatprep.subr.mxu0 0.0
      %1914 = vmatpush2.msra.mxu0 0.0
      %1915 = vmatprep.subr.mxu0 0.0
      %1916 = vmatpush2.msra.mxu0 0.0
      %1917 = vmatprep.subr.mxu0 0.0
      %1918 = vmatpush2.msra.mxu0 0.0
      %1919 = vmatprep.subr.mxu0 0.0
      %1920 = vmatpush2.msra.mxu0 0.0
      %1921 = vmatprep.subr.mxu0 0.0
      %1922 = vmatpush2.msra.mxu0 0.0
      %1923 = vmatprep.subr.mxu0 0.0
      %1924 = vmatpush2.msra.mxu0 0.0
      %1925 = vmatprep.mubr.f32.mxu0 0.0
      %1926 = vmatmul.mubr.f32.gmra.mxu0 %v1838
      %v1927 = vpop.f32.mrf.mxu0
      %v1928 = vadd.f32 0.0, %v1927
      %v1929 = vpop.f32.mrf.mxu0
      %1930 = vmatprep.mubr.f32.mxu0 0.0
      %1931 = vmatmul.mubr.f32.gmra.mxu0 %v1841
      %v1932 = vpop.f32.mrf.mxu0
      %v1933 = vadd.f32 0.0, %v1932
      %v1934 = vpop.f32.mrf.mxu0
      %1935 = vmatprep.mubr.f32.mxu0 0.0
      %1936 = vmatmul.mubr.f32.gmra.mxu0 %v1844
      %v1937 = vpop.f32.mrf.mxu0
      %v1938 = vadd.f32 0.0, %v1937
      %v1939 = vpop.f32.mrf.mxu0
      %1940 = vmatprep.mubr.f32.mxu0 0.0
      %1941 = vmatmul.mubr.f32.gmra.mxu0 %v1847
      %v1942 = vpop.f32.mrf.mxu0
      %v1943 = vadd.f32 0.0, %v1942
      %v1944 = vpop.f32.mrf.mxu0
      %1945 = vmatprep.mubr.f32.mxu0 0.0
      %1946 = vmatmul.mubr.f32.gmra.mxu0 %v1850
      %v1947 = vpop.f32.mrf.mxu0
      %v1948 = vadd.f32 0.0, %v1947
      %v1949 = vpop.f32.mrf.mxu0
      %1950 = vmatprep.mubr.f32.mxu0 0.0
      %1951 = vmatmul.mubr.f32.gmra.mxu0 %v1853
      %v1952 = vpop.f32.mrf.mxu0
      %v1953 = vadd.f32 0.0, %v1952
      %v1954 = vpop.f32.mrf.mxu0
      %1955 = vmatprep.mubr.f32.mxu0 0.0
      %1956 = vmatmul.mubr.f32.gmra.mxu0 %v1856
      %v1957 = vpop.f32.mrf.mxu0
      %v1958 = vadd.f32 0.0, %v1957
      %v1959 = vpop.f32.mrf.mxu0
      %1960 = vmatprep.mubr.f32.mxu0 0.0
      %1961 = vmatmul.mubr.f32.gmra.mxu0 %v1859
      %v1962 = vpop.f32.mrf.mxu0
      %v1963 = vadd.f32 0.0, %v1962
      %v1964 = vpop.f32.mrf.mxu0
      %1965 = vdwg.mxu0
      %v1967 = vsel %vm1194, %v1928, 0
      %v1970 = vsel %vm1194, %v1933, 0
      %v1973 = vsel %vm1194, %v1938, 0
      %v1976 = vsel %vm1194, %v1943, 0
      %v1979 = vsel %vm1194, %v1948, 0
      %v1982 = vsel %vm1194, %v1953, 0
      %v1985 = vsel %vm1194, %v1958, 0
      %v1988 = vsel %vm1194, %v1963, 0
      %1990 = vmatprep.subr.mxu0 0.0
      %1991 = vmatpush1.msra.mxu0 0.0
      %1992 = vmatprep.subr.mxu0 0.0
      %1993 = vmatpush1.msra.mxu0 0.0
      %1994 = vmatprep.subr.mxu0 0.0
      %1995 = vmatpush1.msra.mxu0 0.0
      %1996 = vmatprep.subr.mxu0 0.0
      %1997 = vmatpush1.msra.mxu0 0.0
      %1998 = vmatprep.subr.mxu0 0.0
      %1999 = vmatpush1.msra.mxu0 0.0
      %2000 = vmatprep.subr.mxu0 0.0
      %2001 = vmatpush1.msra.mxu0 0.0
      %2002 = vmatprep.subr.mxu0 0.0
      %2003 = vmatpush1.msra.mxu0 0.0
      %2004 = vmatprep.subr.mxu0 0.0
      %2005 = vmatpush1.msra.mxu0 0.0
      %2006 = vmatprep.subr.mxu0 0.0
      %2007 = vmatpush1.msra.mxu0 %v1209
      %2008 = vmatprep.subr.mxu0 0.0
      %2009 = vmatpush1.msra.mxu0 %v994
      %2010 = vmatprep.subr.mxu0 0.0
      %2011 = vmatpush1.msra.mxu0 %v993
      %2012 = vmatprep.subr.mxu0 0.0
      %2013 = vmatpush1.msra.mxu0 %v992
      %2014 = vmatprep.subr.mxu0 0.0
      %2015 = vmatpush1.msra.mxu0 %v991
      %2016 = vmatprep.subr.mxu0 0.0
      %2017 = vmatpush1.msra.mxu0 %v990
      %2018 = vmatprep.subr.mxu0 0.0
      %2019 = vmatpush1.msra.mxu0 %v989
      %2020 = vmatprep.subr.mxu0 0.0
      %2021 = vmatpush1.msra.mxu0 %v988
      %2022 = vmatprep.subr.mxu0 0.0
      %2023 = vmatpush2.msra.mxu0 0.0
      %2024 = vmatprep.subr.mxu0 0.0
      %2025 = vmatpush2.msra.mxu0 0.0
      %2026 = vmatprep.subr.mxu0 0.0
      %2027 = vmatpush2.msra.mxu0 0.0
      %2028 = vmatprep.subr.mxu0 0.0
      %2029 = vmatpush2.msra.mxu0 0.0
      %2030 = vmatprep.subr.mxu0 0.0
      %2031 = vmatpush2.msra.mxu0 0.0
      %2032 = vmatprep.subr.mxu0 0.0
      %2033 = vmatpush2.msra.mxu0 0.0
      %2034 = vmatprep.subr.mxu0 0.0
      %2035 = vmatpush2.msra.mxu0 0.0
      %2036 = vmatprep.subr.mxu0 0.0
      %2037 = vmatpush2.msra.mxu0 0.0
      %2038 = vmatprep.subr.mxu0 0.0
      %2039 = vmatpush2.msra.mxu0 0.0
      %2040 = vmatprep.subr.mxu0 0.0
      %2041 = vmatpush2.msra.mxu0 0.0
      %2042 = vmatprep.subr.mxu0 0.0
      %2043 = vmatpush2.msra.mxu0 0.0
      %2044 = vmatprep.subr.mxu0 0.0
      %2045 = vmatpush2.msra.mxu0 0.0
      %2046 = vmatprep.subr.mxu0 0.0
      %2047 = vmatpush2.msra.mxu0 0.0
      %2048 = vmatprep.subr.mxu0 0.0
      %2049 = vmatpush2.msra.mxu0 0.0
      %2050 = vmatprep.subr.mxu0 0.0
      %2051 = vmatpush2.msra.mxu0 0.0
      %2052 = vmatprep.subr.mxu0 0.0
      %2053 = vmatpush2.msra.mxu0 0.0
      %2054 = vmatprep.mubr.f32.mxu0 0.0
      %2055 = vmatmul.mubr.f32.gmra.mxu0 %v1967
      %v2056 = vpop.f32.mrf.mxu0
      %v2057 = vadd.f32 0.0, %v2056
      %v2058 = vpop.f32.mrf.mxu0
      %2059 = vmatprep.mubr.f32.mxu0 0.0
      %2060 = vmatmul.mubr.f32.gmra.mxu0 %v1970
      %v2061 = vpop.f32.mrf.mxu0
      %v2062 = vadd.f32 0.0, %v2061
      %v2063 = vpop.f32.mrf.mxu0
      %2064 = vmatprep.mubr.f32.mxu0 0.0
      %2065 = vmatmul.mubr.f32.gmra.mxu0 %v1973
      %v2066 = vpop.f32.mrf.mxu0
      %v2067 = vadd.f32 0.0, %v2066
      %v2068 = vpop.f32.mrf.mxu0
      %2069 = vmatprep.mubr.f32.mxu0 0.0
      %2070 = vmatmul.mubr.f32.gmra.mxu0 %v1976
      %v2071 = vpop.f32.mrf.mxu0
      %v2072 = vadd.f32 0.0, %v2071
      %v2073 = vpop.f32.mrf.mxu0
      %2074 = vmatprep.mubr.f32.mxu0 0.0
      %2075 = vmatmul.mubr.f32.gmra.mxu0 %v1979
      %v2076 = vpop.f32.mrf.mxu0
      %v2077 = vadd.f32 0.0, %v2076
      %v2078 = vpop.f32.mrf.mxu0
      %2079 = vmatprep.mubr.f32.mxu0 0.0
      %2080 = vmatmul.mubr.f32.gmra.mxu0 %v1982
      %v2081 = vpop.f32.mrf.mxu0
      %v2082 = vadd.f32 0.0, %v2081
      %v2083 = vpop.f32.mrf.mxu0
      %2084 = vmatprep.mubr.f32.mxu0 0.0
      %2085 = vmatmul.mubr.f32.gmra.mxu0 %v1985
      %v2086 = vpop.f32.mrf.mxu0
      %v2087 = vadd.f32 0.0, %v2086
      %v2088 = vpop.f32.mrf.mxu0
      %2089 = vmatprep.mubr.f32.mxu0 0.0
      %2090 = vmatmul.mubr.f32.gmra.mxu0 %v1988
      %v2091 = vpop.f32.mrf.mxu0
      %v2092 = vadd.f32 0.0, %v2091
      %v2093 = vpop.f32.mrf.mxu0
      %2094 = vdwg.mxu0
      %2095 = vmatprep.subr.mxu0 0.0
      %2096 = vmatpush1.msra.mxu0 0.0
      %2097 = vmatprep.subr.mxu0 0.0
      %2098 = vmatpush1.msra.mxu0 0.0
      %2099 = vmatprep.subr.mxu0 0.0
      %2100 = vmatpush1.msra.mxu0 0.0
      %2101 = vmatprep.subr.mxu0 0.0
      %2102 = vmatpush1.msra.mxu0 0.0
      %2103 = vmatprep.subr.mxu0 0.0
      %2104 = vmatpush1.msra.mxu0 0.0
      %2105 = vmatprep.subr.mxu0 0.0
      %2106 = vmatpush1.msra.mxu0 0.0
      %2107 = vmatprep.subr.mxu0 0.0
      %2108 = vmatpush1.msra.mxu0 0.0
      %2109 = vmatprep.subr.mxu0 0.0
      %2110 = vmatpush1.msra.mxu0 0.0
      %2111 = vmatprep.subr.mxu0 0.0
      %2112 = vmatpush1.msra.mxu0 %v1297
      %2113 = vmatprep.subr.mxu0 0.0
      %2114 = vmatpush1.msra.mxu0 %v1002
      %2115 = vmatprep.subr.mxu0 0.0
      %2116 = vmatpush1.msra.mxu0 %v1001
      %2117 = vmatprep.subr.mxu0 0.0
      %2118 = vmatpush1.msra.mxu0 %v1000
      %2119 = vmatprep.subr.mxu0 0.0
      %2120 = vmatpush1.msra.mxu0 %v999
      %2121 = vmatprep.subr.mxu0 0.0
      %2122 = vmatpush1.msra.mxu0 %v998
      %2123 = vmatprep.subr.mxu0 0.0
      %2124 = vmatpush1.msra.mxu0 %v997
      %2125 = vmatprep.subr.mxu0 0.0
      %2126 = vmatpush1.msra.mxu0 %v996
      %2127 = vmatprep.subr.mxu0 0.0
      %2128 = vmatpush2.msra.mxu0 0.0
      %2129 = vmatprep.subr.mxu0 0.0
      %2130 = vmatpush2.msra.mxu0 0.0
      %2131 = vmatprep.subr.mxu0 0.0
      %2132 = vmatpush2.msra.mxu0 0.0
      %2133 = vmatprep.subr.mxu0 0.0
      %2134 = vmatpush2.msra.mxu0 0.0
      %2135 = vmatprep.subr.mxu0 0.0
      %2136 = vmatpush2.msra.mxu0 0.0
      %2137 = vmatprep.subr.mxu0 0.0
      %2138 = vmatpush2.msra.mxu0 0.0
      %2139 = vmatprep.subr.mxu0 0.0
      %2140 = vmatpush2.msra.mxu0 0.0
      %2141 = vmatprep.subr.mxu0 0.0
      %2142 = vmatpush2.msra.mxu0 0.0
      %2143 = vmatprep.subr.mxu0 0.0
      %2144 = vmatpush2.msra.mxu0 0.0
      %2145 = vmatprep.subr.mxu0 0.0
      %2146 = vmatpush2.msra.mxu0 0.0
      %2147 = vmatprep.subr.mxu0 0.0
      %2148 = vmatpush2.msra.mxu0 0.0
      %2149 = vmatprep.subr.mxu0 0.0
      %2150 = vmatpush2.msra.mxu0 0.0
      %2151 = vmatprep.subr.mxu0 0.0
      %2152 = vmatpush2.msra.mxu0 0.0
      %2153 = vmatprep.subr.mxu0 0.0
      %2154 = vmatpush2.msra.mxu0 0.0
      %2155 = vmatprep.subr.mxu0 0.0
      %2156 = vmatpush2.msra.mxu0 0.0
      %2157 = vmatprep.subr.mxu0 0.0
      %2158 = vmatpush2.msra.mxu0 0.0
      %2159 = vmatprep.mubr.f32.mxu0 0.0
      %2160 = vmatmul.mubr.f32.gmra.mxu0 %v1967
      %v2161 = vpop.f32.mrf.mxu0
      %v2162 = vadd.f32 0.0, %v2161
      %v2163 = vpop.f32.mrf.mxu0
      %2164 = vmatprep.mubr.f32.mxu0 0.0
      %2165 = vmatmul.mubr.f32.gmra.mxu0 %v1970
      %v2166 = vpop.f32.mrf.mxu0
      %v2167 = vadd.f32 0.0, %v2166
      %v2168 = vpop.f32.mrf.mxu0
      %2169 = vmatprep.mubr.f32.mxu0 0.0
      %2170 = vmatmul.mubr.f32.gmra.mxu0 %v1973
      %v2171 = vpop.f32.mrf.mxu0
      %v2172 = vadd.f32 0.0, %v2171
      %v2173 = vpop.f32.mrf.mxu0
      %2174 = vmatprep.mubr.f32.mxu0 0.0
      %2175 = vmatmul.mubr.f32.gmra.mxu0 %v1976
      %v2176 = vpop.f32.mrf.mxu0
      %v2177 = vadd.f32 0.0, %v2176
      %v2178 = vpop.f32.mrf.mxu0
      %2179 = vmatprep.mubr.f32.mxu0 0.0
      %2180 = vmatmul.mubr.f32.gmra.mxu0 %v1979
      %v2181 = vpop.f32.mrf.mxu0
      %v2182 = vadd.f32 0.0, %v2181
      %v2183 = vpop.f32.mrf.mxu0
      %2184 = vmatprep.mubr.f32.mxu0 0.0
      %2185 = vmatmul.mubr.f32.gmra.mxu0 %v1982
      %v2186 = vpop.f32.mrf.mxu0
      %v2187 = vadd.f32 0.0, %v2186
      %v2188 = vpop.f32.mrf.mxu0
      %2189 = vmatprep.mubr.f32.mxu0 0.0
      %2190 = vmatmul.mubr.f32.gmra.mxu0 %v1985
      %v2191 = vpop.f32.mrf.mxu0
      %v2192 = vadd.f32 0.0, %v2191
      %v2193 = vpop.f32.mrf.mxu0
      %2194 = vmatprep.mubr.f32.mxu0 0.0
      %2195 = vmatmul.mubr.f32.gmra.mxu0 %v1988
      %v2196 = vpop.f32.mrf.mxu0
      %v2197 = vadd.f32 0.0, %v2196
      %v2198 = vpop.f32.mrf.mxu0
      %2199 = vdwg.mxu0
      %s2200 = scalar_lea.vmem %s7, 64
      %v2201 = vld [vmem:[%s2200] sm:$0xff]
      %v2202 = vld [vmem:[%s2200 + $0x8] sm:$0xff]
      %v2203 = vld [vmem:[%s2200 + $0x10] sm:$0xff]
      %v2204 = vld [vmem:[%s2200 + $0x18] sm:$0xff]
      %v2205 = vld [vmem:[%s2200 + $0x20] sm:$0xff]
      %v2206 = vld [vmem:[%s2200 + $0x28] sm:$0xff]
      %v2207 = vld [vmem:[%s2200 + $0x30] sm:$0xff]
      %v2208 = vld [vmem:[%s2200 + $0x38] sm:$0xff]
      %v2210 = vsel %vm1836, %v2201, 0
      %v2213 = vsel %vm1836, %v2202, 0
      %v2216 = vsel %vm1836, %v2203, 0
      %v2219 = vsel %vm1836, %v2204, 0
      %v2222 = vsel %vm1836, %v2205, 0
      %v2225 = vsel %vm1836, %v2206, 0
      %v2228 = vsel %vm1836, %v2207, 0
      %v2231 = vsel %vm1836, %v2208, 0
      %2233 = vmatprep.subr.mxu0 0.0
      %2234 = vmatpush1.msra.mxu0 0.0
      %2235 = vmatprep.subr.mxu0 0.0
      %2236 = vmatpush1.msra.mxu0 0.0
      %2237 = vmatprep.subr.mxu0 0.0
      %2238 = vmatpush1.msra.mxu0 0.0
      %2239 = vmatprep.subr.mxu0 0.0
      %2240 = vmatpush1.msra.mxu0 0.0
      %2241 = vmatprep.subr.mxu0 0.0
      %2242 = vmatpush1.msra.mxu0 0.0
      %2243 = vmatprep.subr.mxu0 0.0
      %2244 = vmatpush1.msra.mxu0 0.0
      %2245 = vmatprep.subr.mxu0 0.0
      %2246 = vmatpush1.msra.mxu0 0.0
      %2247 = vmatprep.subr.mxu0 0.0
      %2248 = vmatpush1.msra.mxu0 0.0
      %2249 = vmatprep.subr.mxu0 0.0
      %2250 = vmatpush1.msra.mxu0 %v1593
      %2251 = vmatprep.subr.mxu0 0.0
      %2252 = vmatpush1.msra.mxu0 %v1592
      %2253 = vmatprep.subr.mxu0 0.0
      %2254 = vmatpush1.msra.mxu0 %v1591
      %2255 = vmatprep.subr.mxu0 0.0
      %2256 = vmatpush1.msra.mxu0 %v1590
      %2257 = vmatprep.subr.mxu0 0.0
      %2258 = vmatpush1.msra.mxu0 %v1589
      %2259 = vmatprep.subr.mxu0 0.0
      %2260 = vmatpush1.msra.mxu0 %v1588
      %2261 = vmatprep.subr.mxu0 0.0
      %2262 = vmatpush1.msra.mxu0 %v1587
      %2263 = vmatprep.subr.mxu0 0.0
      %2264 = vmatpush1.msra.mxu0 %v1586
      %2265 = vmatprep.subr.mxu0 0.0
      %2266 = vmatpush2.msra.mxu0 0.0
      %2267 = vmatprep.subr.mxu0 0.0
      %2268 = vmatpush2.msra.mxu0 0.0
      %2269 = vmatprep.subr.mxu0 0.0
      %2270 = vmatpush2.msra.mxu0 0.0
      %2271 = vmatprep.subr.mxu0 0.0
      %2272 = vmatpush2.msra.mxu0 0.0
      %2273 = vmatprep.subr.mxu0 0.0
      %2274 = vmatpush2.msra.mxu0 0.0
      %2275 = vmatprep.subr.mxu0 0.0
      %2276 = vmatpush2.msra.mxu0 0.0
      %2277 = vmatprep.subr.mxu0 0.0
      %2278 = vmatpush2.msra.mxu0 0.0
      %2279 = vmatprep.subr.mxu0 0.0
      %2280 = vmatpush2.msra.mxu0 0.0
      %2281 = vmatprep.subr.mxu0 0.0
      %2282 = vmatpush2.msra.mxu0 0.0
      %2283 = vmatprep.subr.mxu0 0.0
      %2284 = vmatpush2.msra.mxu0 0.0
      %2285 = vmatprep.subr.mxu0 0.0
      %2286 = vmatpush2.msra.mxu0 0.0
      %2287 = vmatprep.subr.mxu0 0.0
      %2288 = vmatpush2.msra.mxu0 0.0
      %2289 = vmatprep.subr.mxu0 0.0
      %2290 = vmatpush2.msra.mxu0 0.0
      %2291 = vmatprep.subr.mxu0 0.0
      %2292 = vmatpush2.msra.mxu0 0.0
      %2293 = vmatprep.subr.mxu0 0.0
      %2294 = vmatpush2.msra.mxu0 0.0
      %2295 = vmatprep.subr.mxu0 0.0
      %2296 = vmatpush2.msra.mxu0 0.0
      %2297 = vmatprep.mubr.f32.mxu0 0.0
      %2298 = vmatmul.mubr.f32.gmra.mxu0 %v2210
      %v2299 = vpop.f32.mrf.mxu0
      %v2300 = vadd.f32 0.0, %v2299
      %v2301 = vpop.f32.mrf.mxu0
      %2302 = vmatprep.mubr.f32.mxu0 0.0
      %2303 = vmatmul.mubr.f32.gmra.mxu0 %v2213
      %v2304 = vpop.f32.mrf.mxu0
      %v2305 = vadd.f32 0.0, %v2304
      %v2306 = vpop.f32.mrf.mxu0
      %2307 = vmatprep.mubr.f32.mxu0 0.0
      %2308 = vmatmul.mubr.f32.gmra.mxu0 %v2216
      %v2309 = vpop.f32.mrf.mxu0
      %v2310 = vadd.f32 0.0, %v2309
      %v2311 = vpop.f32.mrf.mxu0
      %2312 = vmatprep.mubr.f32.mxu0 0.0
      %2313 = vmatmul.mubr.f32.gmra.mxu0 %v2219
      %v2314 = vpop.f32.mrf.mxu0
      %v2315 = vadd.f32 0.0, %v2314
      %v2316 = vpop.f32.mrf.mxu0
      %2317 = vmatprep.mubr.f32.mxu0 0.0
      %2318 = vmatmul.mubr.f32.gmra.mxu0 %v2222
      %v2319 = vpop.f32.mrf.mxu0
      %v2320 = vadd.f32 0.0, %v2319
      %v2321 = vpop.f32.mrf.mxu0
      %2322 = vmatprep.mubr.f32.mxu0 0.0
      %2323 = vmatmul.mubr.f32.gmra.mxu0 %v2225
      %v2324 = vpop.f32.mrf.mxu0
      %v2325 = vadd.f32 0.0, %v2324
      %v2326 = vpop.f32.mrf.mxu0
      %2327 = vmatprep.mubr.f32.mxu0 0.0
      %2328 = vmatmul.mubr.f32.gmra.mxu0 %v2228
      %v2329 = vpop.f32.mrf.mxu0
      %v2330 = vadd.f32 0.0, %v2329
      %v2331 = vpop.f32.mrf.mxu0
      %2332 = vmatprep.mubr.f32.mxu0 0.0
      %2333 = vmatmul.mubr.f32.gmra.mxu0 %v2231
      %v2334 = vpop.f32.mrf.mxu0
      %v2335 = vadd.f32 0.0, %v2334
      %v2336 = vpop.f32.mrf.mxu0
      %2337 = vdwg.mxu0
      %v2339 = vsel %vm1194, %v2300, 0
      %v2342 = vsel %vm1194, %v2305, 0
      %v2345 = vsel %vm1194, %v2310, 0
      %v2348 = vsel %vm1194, %v2315, 0
      %v2351 = vsel %vm1194, %v2320, 0
      %v2354 = vsel %vm1194, %v2325, 0
      %v2357 = vsel %vm1194, %v2330, 0
      %v2360 = vsel %vm1194, %v2335, 0
      %2362 = vmatprep.subr.mxu0 0.0
      %2363 = vmatpush1.msra.mxu0 0.0
      %2364 = vmatprep.subr.mxu0 0.0
      %2365 = vmatpush1.msra.mxu0 0.0
      %2366 = vmatprep.subr.mxu0 0.0
      %2367 = vmatpush1.msra.mxu0 0.0
      %2368 = vmatprep.subr.mxu0 0.0
      %2369 = vmatpush1.msra.mxu0 0.0
      %2370 = vmatprep.subr.mxu0 0.0
      %2371 = vmatpush1.msra.mxu0 0.0
      %2372 = vmatprep.subr.mxu0 0.0
      %2373 = vmatpush1.msra.mxu0 0.0
      %2374 = vmatprep.subr.mxu0 0.0
      %2375 = vmatpush1.msra.mxu0 0.0
      %2376 = vmatprep.subr.mxu0 0.0
      %2377 = vmatpush1.msra.mxu0 0.0
      %2378 = vmatprep.subr.mxu0 0.0
      %2379 = vmatpush1.msra.mxu0 %v1209
      %2380 = vmatprep.subr.mxu0 0.0
      %2381 = vmatpush1.msra.mxu0 %v994
      %2382 = vmatprep.subr.mxu0 0.0
      %2383 = vmatpush1.msra.mxu0 %v993
      %2384 = vmatprep.subr.mxu0 0.0
      %2385 = vmatpush1.msra.mxu0 %v992
      %2386 = vmatprep.subr.mxu0 0.0
      %2387 = vmatpush1.msra.mxu0 %v991
      %2388 = vmatprep.subr.mxu0 0.0
      %2389 = vmatpush1.msra.mxu0 %v990
      %2390 = vmatprep.subr.mxu0 0.0
      %2391 = vmatpush1.msra.mxu0 %v989
      %2392 = vmatprep.subr.mxu0 0.0
      %2393 = vmatpush1.msra.mxu0 %v988
      %2394 = vmatprep.subr.mxu0 0.0
      %2395 = vmatpush2.msra.mxu0 0.0
      %2396 = vmatprep.subr.mxu0 0.0
      %2397 = vmatpush2.msra.mxu0 0.0
      %2398 = vmatprep.subr.mxu0 0.0
      %2399 = vmatpush2.msra.mxu0 0.0
      %2400 = vmatprep.subr.mxu0 0.0
      %2401 = vmatpush2.msra.mxu0 0.0
      %2402 = vmatprep.subr.mxu0 0.0
      %2403 = vmatpush2.msra.mxu0 0.0
      %2404 = vmatprep.subr.mxu0 0.0
      %2405 = vmatpush2.msra.mxu0 0.0
      %2406 = vmatprep.subr.mxu0 0.0
      %2407 = vmatpush2.msra.mxu0 0.0
      %2408 = vmatprep.subr.mxu0 0.0
      %2409 = vmatpush2.msra.mxu0 0.0
      %2410 = vmatprep.subr.mxu0 0.0
      %2411 = vmatpush2.msra.mxu0 0.0
      %2412 = vmatprep.subr.mxu0 0.0
      %2413 = vmatpush2.msra.mxu0 0.0
      %2414 = vmatprep.subr.mxu0 0.0
      %2415 = vmatpush2.msra.mxu0 0.0
      %2416 = vmatprep.subr.mxu0 0.0
      %2417 = vmatpush2.msra.mxu0 0.0
      %2418 = vmatprep.subr.mxu0 0.0
      %2419 = vmatpush2.msra.mxu0 0.0
      %2420 = vmatprep.subr.mxu0 0.0
      %2421 = vmatpush2.msra.mxu0 0.0
      %2422 = vmatprep.subr.mxu0 0.0
      %2423 = vmatpush2.msra.mxu0 0.0
      %2424 = vmatprep.subr.mxu0 0.0
      %2425 = vmatpush2.msra.mxu0 0.0
      %2426 = vmatprep.mubr.f32.mxu0 0.0
      %2427 = vmatmul.mubr.f32.gmra.mxu0 %v2339
      %v2428 = vpop.f32.mrf.mxu0
      %v2429 = vadd.f32 0.0, %v2428
      %v2430 = vpop.f32.mrf.mxu0
      %2431 = vmatprep.mubr.f32.mxu0 0.0
      %2432 = vmatmul.mubr.f32.gmra.mxu0 %v2342
      %v2433 = vpop.f32.mrf.mxu0
      %v2434 = vadd.f32 0.0, %v2433
      %v2435 = vpop.f32.mrf.mxu0
      %2436 = vmatprep.mubr.f32.mxu0 0.0
      %2437 = vmatmul.mubr.f32.gmra.mxu0 %v2345
      %v2438 = vpop.f32.mrf.mxu0
      %v2439 = vadd.f32 0.0, %v2438
      %v2440 = vpop.f32.mrf.mxu0
      %2441 = vmatprep.mubr.f32.mxu0 0.0
      %2442 = vmatmul.mubr.f32.gmra.mxu0 %v2348
      %v2443 = vpop.f32.mrf.mxu0
      %v2444 = vadd.f32 0.0, %v2443
      %v2445 = vpop.f32.mrf.mxu0
      %2446 = vmatprep.mubr.f32.mxu0 0.0
      %2447 = vmatmul.mubr.f32.gmra.mxu0 %v2351
      %v2448 = vpop.f32.mrf.mxu0
      %v2449 = vadd.f32 0.0, %v2448
      %v2450 = vpop.f32.mrf.mxu0
      %2451 = vmatprep.mubr.f32.mxu0 0.0
      %2452 = vmatmul.mubr.f32.gmra.mxu0 %v2354
      %v2453 = vpop.f32.mrf.mxu0
      %v2454 = vadd.f32 0.0, %v2453
      %v2455 = vpop.f32.mrf.mxu0
      %2456 = vmatprep.mubr.f32.mxu0 0.0
      %2457 = vmatmul.mubr.f32.gmra.mxu0 %v2357
      %v2458 = vpop.f32.mrf.mxu0
      %v2459 = vadd.f32 0.0, %v2458
      %v2460 = vpop.f32.mrf.mxu0
      %2461 = vmatprep.mubr.f32.mxu0 0.0
      %2462 = vmatmul.mubr.f32.gmra.mxu0 %v2360
      %v2463 = vpop.f32.mrf.mxu0
      %v2464 = vadd.f32 0.0, %v2463
      %v2465 = vpop.f32.mrf.mxu0
      %2466 = vdwg.mxu0
      %2467 = vmatprep.subr.mxu0 0.0
      %2468 = vmatpush1.msra.mxu0 0.0
      %2469 = vmatprep.subr.mxu0 0.0
      %2470 = vmatpush1.msra.mxu0 0.0
      %2471 = vmatprep.subr.mxu0 0.0
      %2472 = vmatpush1.msra.mxu0 0.0
      %2473 = vmatprep.subr.mxu0 0.0
      %2474 = vmatpush1.msra.mxu0 0.0
      %2475 = vmatprep.subr.mxu0 0.0
      %2476 = vmatpush1.msra.mxu0 0.0
      %2477 = vmatprep.subr.mxu0 0.0
      %2478 = vmatpush1.msra.mxu0 0.0
      %2479 = vmatprep.subr.mxu0 0.0
      %2480 = vmatpush1.msra.mxu0 0.0
      %2481 = vmatprep.subr.mxu0 0.0
      %2482 = vmatpush1.msra.mxu0 0.0
      %2483 = vmatprep.subr.mxu0 0.0
      %2484 = vmatpush1.msra.mxu0 %v1297
      %2485 = vmatprep.subr.mxu0 0.0
      %2486 = vmatpush1.msra.mxu0 %v1002
      %2487 = vmatprep.subr.mxu0 0.0
      %2488 = vmatpush1.msra.mxu0 %v1001
      %2489 = vmatprep.subr.mxu0 0.0
      %2490 = vmatpush1.msra.mxu0 %v1000
      %2491 = vmatprep.subr.mxu0 0.0
      %2492 = vmatpush1.msra.mxu0 %v999
      %2493 = vmatprep.subr.mxu0 0.0
      %2494 = vmatpush1.msra.mxu0 %v998
      %2495 = vmatprep.subr.mxu0 0.0
      %2496 = vmatpush1.msra.mxu0 %v997
      %2497 = vmatprep.subr.mxu0 0.0
      %2498 = vmatpush1.msra.mxu0 %v996
      %2499 = vmatprep.subr.mxu0 0.0
      %2500 = vmatpush2.msra.mxu0 0.0
      %2501 = vmatprep.subr.mxu0 0.0
      %2502 = vmatpush2.msra.mxu0 0.0
      %2503 = vmatprep.subr.mxu0 0.0
      %2504 = vmatpush2.msra.mxu0 0.0
      %2505 = vmatprep.subr.mxu0 0.0
      %2506 = vmatpush2.msra.mxu0 0.0
      %2507 = vmatprep.subr.mxu0 0.0
      %2508 = vmatpush2.msra.mxu0 0.0
      %2509 = vmatprep.subr.mxu0 0.0
      %2510 = vmatpush2.msra.mxu0 0.0
      %2511 = vmatprep.subr.mxu0 0.0
      %2512 = vmatpush2.msra.mxu0 0.0
      %2513 = vmatprep.subr.mxu0 0.0
      %2514 = vmatpush2.msra.mxu0 0.0
      %2515 = vmatprep.subr.mxu0 0.0
      %2516 = vmatpush2.msra.mxu0 0.0
      %2517 = vmatprep.subr.mxu0 0.0
      %2518 = vmatpush2.msra.mxu0 0.0
      %2519 = vmatprep.subr.mxu0 0.0
      %2520 = vmatpush2.msra.mxu0 0.0
      %2521 = vmatprep.subr.mxu0 0.0
      %2522 = vmatpush2.msra.mxu0 0.0
      %2523 = vmatprep.subr.mxu0 0.0
      %2524 = vmatpush2.msra.mxu0 0.0
      %2525 = vmatprep.subr.mxu0 0.0
      %2526 = vmatpush2.msra.mxu0 0.0
      %2527 = vmatprep.subr.mxu0 0.0
      %2528 = vmatpush2.msra.mxu0 0.0
      %2529 = vmatprep.subr.mxu0 0.0
      %2530 = vmatpush2.msra.mxu0 0.0
      %2531 = vmatprep.mubr.f32.mxu0 0.0
      %2532 = vmatmul.mubr.f32.gmra.mxu0 %v2339
      %v2533 = vpop.f32.mrf.mxu0
      %v2534 = vadd.f32 0.0, %v2533
      %v2535 = vpop.f32.mrf.mxu0
      %2536 = vmatprep.mubr.f32.mxu0 0.0
      %2537 = vmatmul.mubr.f32.gmra.mxu0 %v2342
      %v2538 = vpop.f32.mrf.mxu0
      %v2539 = vadd.f32 0.0, %v2538
      %v2540 = vpop.f32.mrf.mxu0
      %2541 = vmatprep.mubr.f32.mxu0 0.0
      %2542 = vmatmul.mubr.f32.gmra.mxu0 %v2345
      %v2543 = vpop.f32.mrf.mxu0
      %v2544 = vadd.f32 0.0, %v2543
      %v2545 = vpop.f32.mrf.mxu0
      %2546 = vmatprep.mubr.f32.mxu0 0.0
      %2547 = vmatmul.mubr.f32.gmra.mxu0 %v2348
      %v2548 = vpop.f32.mrf.mxu0
      %v2549 = vadd.f32 0.0, %v2548
      %v2550 = vpop.f32.mrf.mxu0
      %2551 = vmatprep.mubr.f32.mxu0 0.0
      %2552 = vmatmul.mubr.f32.gmra.mxu0 %v2351
      %v2553 = vpop.f32.mrf.mxu0
      %v2554 = vadd.f32 0.0, %v2553
      %v2555 = vpop.f32.mrf.mxu0
      %2556 = vmatprep.mubr.f32.mxu0 0.0
      %2557 = vmatmul.mubr.f32.gmra.mxu0 %v2354
      %v2558 = vpop.f32.mrf.mxu0
      %v2559 = vadd.f32 0.0, %v2558
      %v2560 = vpop.f32.mrf.mxu0
      %2561 = vmatprep.mubr.f32.mxu0 0.0
      %2562 = vmatmul.mubr.f32.gmra.mxu0 %v2357
      %v2563 = vpop.f32.mrf.mxu0
      %v2564 = vadd.f32 0.0, %v2563
      %v2565 = vpop.f32.mrf.mxu0
      %2566 = vmatprep.mubr.f32.mxu0 0.0
      %2567 = vmatmul.mubr.f32.gmra.mxu0 %v2360
      %v2568 = vpop.f32.mrf.mxu0
      %v2569 = vadd.f32 0.0, %v2568
      %v2570 = vpop.f32.mrf.mxu0
      %2571 = vdwg.mxu0
      %v2572 = vld [vmem:[%s17] sm:$0xff]
      %v2573 = vld [vmem:[%s17 + $0x8] sm:$0xff]
      %v2574 = vld [vmem:[%s17 + $0x10] sm:$0xff]
      %v2575 = vld [vmem:[%s17 + $0x18] sm:$0xff]
      %v2576 = vld [vmem:[%s17 + $0x20] sm:$0xff]
      %v2577 = vld [vmem:[%s17 + $0x28] sm:$0xff]
      %v2578 = vld [vmem:[%s17 + $0x30] sm:$0xff]
      %v2579 = vld [vmem:[%s17 + $0x38] sm:$0xff]
      %v2580 = vld [vmem:[%s17 + $0x40] sm:$0xff]
      %v2581 = vld [vmem:[%s17 + $0x48] sm:$0xff]
      %v2582 = vld [vmem:[%s17 + $0x50] sm:$0xff]
      %v2583 = vld [vmem:[%s17 + $0x58] sm:$0xff]
      %v2584 = vld [vmem:[%s17 + $0x60] sm:$0xff]
      %v2585 = vld [vmem:[%s17 + $0x68] sm:$0xff]
      %v2586 = vld [vmem:[%s17 + $0x70] sm:$0xff]
      %v2587 = vld [vmem:[%s17 + $0x78] sm:$0xff]
      %v2588 = vld [vmem:[%s17 + $0x80] sm:$0xff]
      %v2589 = vld [vmem:[%s17 + $0x88] sm:$0xff]
      %v2590 = vld [vmem:[%s17 + $0x90] sm:$0xff]
      %v2591 = vld [vmem:[%s17 + $0x98] sm:$0xff]
      %v2592 = vld [vmem:[%s17 + $0xa0] sm:$0xff]
      %v2593 = vld [vmem:[%s17 + $0xa8] sm:$0xff]
      %v2594 = vld [vmem:[%s17 + $0xb0] sm:$0xff]
      %v2595 = vld [vmem:[%s17 + $0xb8] sm:$0xff]
      %v2596 = vld [vmem:[%s17 + $0xc0] sm:$0xff]
      %v2597 = vld [vmem:[%s17 + $0xc8] sm:$0xff]
      %v2598 = vld [vmem:[%s17 + $0xd0] sm:$0xff]
      %v2599 = vld [vmem:[%s17 + $0xd8] sm:$0xff]
      %v2600 = vld [vmem:[%s17 + $0xe0] sm:$0xff]
      %v2601 = vld [vmem:[%s17 + $0xe8] sm:$0xff]
      %v2602 = vld [vmem:[%s17 + $0xf0] sm:$0xff]
      %v2603 = vld [vmem:[%s17 + $0xf8] sm:$0xff]
      %v2604 = vld [vmem:[%s17 + $0x100] sm:$0xff]
      %v2605 = vld [vmem:[%s17 + $0x108] sm:$0xff]
      %v2606 = vld [vmem:[%s17 + $0x110] sm:$0xff]
      %v2607 = vld [vmem:[%s17 + $0x118] sm:$0xff]
      %v2608 = vld [vmem:[%s17 + $0x120] sm:$0xff]
      %v2609 = vld [vmem:[%s17 + $0x128] sm:$0xff]
      %v2610 = vld [vmem:[%s17 + $0x130] sm:$0xff]
      %v2611 = vld [vmem:[%s17 + $0x138] sm:$0xff]
      %v2612 = vld [vmem:[%s17 + $0x140] sm:$0xff]
      %v2613 = vld [vmem:[%s17 + $0x148] sm:$0xff]
      %v2614 = vld [vmem:[%s17 + $0x150] sm:$0xff]
      %v2615 = vld [vmem:[%s17 + $0x158] sm:$0xff]
      %v2616 = vld [vmem:[%s17 + $0x160] sm:$0xff]
      %v2617 = vld [vmem:[%s17 + $0x168] sm:$0xff]
      %v2618 = vld [vmem:[%s17 + $0x170] sm:$0xff]
      %v2619 = vld [vmem:[%s17 + $0x178] sm:$0xff]
      %v2620 = vld [vmem:[%s17 + $0x180] sm:$0xff]
      %v2621 = vld [vmem:[%s17 + $0x188] sm:$0xff]
      %v2622 = vld [vmem:[%s17 + $0x190] sm:$0xff]
      %v2623 = vld [vmem:[%s17 + $0x198] sm:$0xff]
      %v2624 = vld [vmem:[%s17 + $0x1a0] sm:$0xff]
      %v2625 = vld [vmem:[%s17 + $0x1a8] sm:$0xff]
      %v2626 = vld [vmem:[%s17 + $0x1b0] sm:$0xff]
      %v2627 = vld [vmem:[%s17 + $0x1b8] sm:$0xff]
      %v2628 = vld [vmem:[%s17 + $0x1c0] sm:$0xff]
      %v2629 = vld [vmem:[%s17 + $0x1c8] sm:$0xff]
      %v2630 = vld [vmem:[%s17 + $0x1d0] sm:$0xff]
      %v2631 = vld [vmem:[%s17 + $0x1d8] sm:$0xff]
      %v2632 = vld [vmem:[%s17 + $0x1e0] sm:$0xff]
      %v2633 = vld [vmem:[%s17 + $0x1e8] sm:$0xff]
      %v2634 = vld [vmem:[%s17 + $0x1f0] sm:$0xff]
      %v2635 = vld [vmem:[%s17 + $0x1f8] sm:$0xff]
      %v2636 = vld [vmem:[%s17 + $0x200] sm:$0xff]
      %v2637 = vld [vmem:[%s17 + $0x208] sm:$0xff]
      %v2638 = vld [vmem:[%s17 + $0x210] sm:$0xff]
      %v2639 = vld [vmem:[%s17 + $0x218] sm:$0xff]
      %v2640 = vld [vmem:[%s17 + $0x220] sm:$0xff]
      %v2641 = vld [vmem:[%s17 + $0x228] sm:$0xff]
      %v2642 = vld [vmem:[%s17 + $0x230] sm:$0xff]
      %v2643 = vld [vmem:[%s17 + $0x238] sm:$0xff]
      %v2644 = vld [vmem:[%s17 + $0x240] sm:$0xff]
      %v2645 = vld [vmem:[%s17 + $0x248] sm:$0xff]
      %v2646 = vld [vmem:[%s17 + $0x250] sm:$0xff]
      %v2647 = vld [vmem:[%s17 + $0x258] sm:$0xff]
      %v2648 = vld [vmem:[%s17 + $0x260] sm:$0xff]
      %v2649 = vld [vmem:[%s17 + $0x268] sm:$0xff]
      %v2650 = vld [vmem:[%s17 + $0x270] sm:$0xff]
      %v2651 = vld [vmem:[%s17 + $0x278] sm:$0xff]
      %v2652 = vld [vmem:[%s19] sm:$0xff]
      %v2653 = vld [vmem:[%s19 + $0x8] sm:$0xff]
      %v2654 = vld [vmem:[%s19 + $0x10] sm:$0xff]
      %v2655 = vld [vmem:[%s19 + $0x18] sm:$0xff]
      %v2656 = vld [vmem:[%s19 + $0x20] sm:$0xff]
      %v2657 = vld [vmem:[%s19 + $0x28] sm:$0xff]
      %v2658 = vld [vmem:[%s19 + $0x30] sm:$0xff]
      %v2659 = vld [vmem:[%s19 + $0x38] sm:$0xff]
      %v2660 = vld [vmem:[%s19 + $0x40] sm:$0xff]
      %v2661 = vld [vmem:[%s19 + $0x48] sm:$0xff]
      %v2662 = vld [vmem:[%s19 + $0x50] sm:$0xff]
      %v2663 = vld [vmem:[%s19 + $0x58] sm:$0xff]
      %v2664 = vld [vmem:[%s19 + $0x60] sm:$0xff]
      %v2665 = vld [vmem:[%s19 + $0x68] sm:$0xff]
      %v2666 = vld [vmem:[%s19 + $0x70] sm:$0xff]
      %v2667 = vld [vmem:[%s19 + $0x78] sm:$0xff]
      %2669 = vset.pattern.permute.xlu0 0
      %2670 = vperm.xlu0 %2669, %v2652
      %v2671 = vpop.permute.xlu0 %2670
      %2674 = vset.pattern.permute.xlu0 0
      %2675 = vperm.xlu0 %2674, %v2653
      %v2676 = vpop.permute.xlu0 %2675
      %2679 = vset.pattern.permute.xlu0 0
      %2680 = vperm.xlu0 %2679, %v2654
      %v2681 = vpop.permute.xlu0 %2680
      %2684 = vset.pattern.permute.xlu0 0
      %2685 = vperm.xlu0 %2684, %v2655
      %v2686 = vpop.permute.xlu0 %2685
      %2689 = vset.pattern.permute.xlu0 0
      %2690 = vperm.xlu0 %2689, %v2656
      %v2691 = vpop.permute.xlu0 %2690
      %2694 = vset.pattern.permute.xlu0 0
      %2695 = vperm.xlu0 %2694, %v2657
      %v2696 = vpop.permute.xlu0 %2695
      %2699 = vset.pattern.permute.xlu0 0
      %2700 = vperm.xlu0 %2699, %v2658
      %v2701 = vpop.permute.xlu0 %2700
      %2704 = vset.pattern.permute.xlu0 0
      %2705 = vperm.xlu0 %2704, %v2659
      %v2706 = vpop.permute.xlu0 %2705
      %2709 = vset.pattern.permute.xlu0 0
      %2710 = vperm.xlu0 %2709, %v2660
      %v2711 = vpop.permute.xlu0 %2710
      %2714 = vset.pattern.permute.xlu0 0
      %2715 = vperm.xlu0 %2714, %v2661
      %v2716 = vpop.permute.xlu0 %2715
      %2719 = vset.pattern.permute.xlu0 0
      %2720 = vperm.xlu0 %2719, %v2662
      %v2721 = vpop.permute.xlu0 %2720
      %2724 = vset.pattern.permute.xlu0 0
      %2725 = vperm.xlu0 %2724, %v2663
      %v2726 = vpop.permute.xlu0 %2725
      %2729 = vset.pattern.permute.xlu0 0
      %2730 = vperm.xlu0 %2729, %v2664
      %v2731 = vpop.permute.xlu0 %2730
      %2734 = vset.pattern.permute.xlu0 0
      %2735 = vperm.xlu0 %2734, %v2665
      %v2736 = vpop.permute.xlu0 %2735
      %2739 = vset.pattern.permute.xlu0 0
      %2740 = vperm.xlu0 %2739, %v2666
      %v2741 = vpop.permute.xlu0 %2740
      %2744 = vset.pattern.permute.xlu0 0
      %2745 = vperm.xlu0 %2744, %v2667
      %v2746 = vpop.permute.xlu0 %2745
      %v2749 = vsel %vm1836, %v2576, 0
      %v2752 = vsel %vm1836, %v2581, 0
      %v2755 = vsel %vm1836, %v2586, 0
      %v2758 = vsel %vm1836, %v2591, 0
      %v2761 = vsel %vm1836, %v2596, 0
      %v2764 = vsel %vm1836, %v2601, 0
      %v2767 = vsel %vm1836, %v2606, 0
      %v2770 = vsel %vm1836, %v2611, 0
      %v2773 = vsel %vm1836, %v2616, 0
      %v2776 = vsel %vm1836, %v2621, 0
      %v2779 = vsel %vm1836, %v2626, 0
      %v2782 = vsel %vm1836, %v2631, 0
      %v2785 = vsel %vm1836, %v2636, 0
      %v2788 = vsel %vm1836, %v2641, 0
      %v2791 = vsel %vm1836, %v2646, 0
      %v2794 = vsel %vm1836, %v2651, 0
      %2796 = vmatprep.subr.mxu0 0.0
      %2797 = vmatpush1.msra.mxu0 %v1593
      %2798 = vmatprep.subr.mxu0 0.0
      %2799 = vmatpush1.msra.mxu0 %v1592
      %2800 = vmatprep.subr.mxu0 0.0
      %2801 = vmatpush1.msra.mxu0 %v1591
      %2802 = vmatprep.subr.mxu0 0.0
      %2803 = vmatpush1.msra.mxu0 %v1590
      %2804 = vmatprep.subr.mxu0 0.0
      %2805 = vmatpush1.msra.mxu0 %v1589
      %2806 = vmatprep.subr.mxu0 0.0
      %2807 = vmatpush1.msra.mxu0 %v1588
      %2808 = vmatprep.subr.mxu0 0.0
      %2809 = vmatpush1.msra.mxu0 %v1587
      %2810 = vmatprep.subr.mxu0 0.0
      %2811 = vmatpush1.msra.mxu0 %v1586
      %2812 = vmatprep.subr.mxu0 0.0
      %2813 = vmatpush1.msra.mxu0 %v1720
      %2814 = vmatprep.subr.mxu0 0.0
      %2815 = vmatpush1.msra.mxu0 %v1715
      %2816 = vmatprep.subr.mxu0 0.0
      %2817 = vmatpush1.msra.mxu0 %v1710
      %2818 = vmatprep.subr.mxu0 0.0
      %2819 = vmatpush1.msra.mxu0 %v1705
      %2820 = vmatprep.subr.mxu0 0.0
      %2821 = vmatpush1.msra.mxu0 %v1700
      %2822 = vmatprep.subr.mxu0 0.0
      %2823 = vmatpush1.msra.mxu0 %v1695
      %2824 = vmatprep.subr.mxu0 0.0
      %2825 = vmatpush1.msra.mxu0 %v1690
      %2826 = vmatprep.subr.mxu0 0.0
      %2827 = vmatpush1.msra.mxu0 %v1685
      %2828 = vmatprep.subr.mxu0 0.0
      %2829 = vmatpush2.msra.mxu0 %v2092
      %2830 = vmatprep.subr.mxu0 0.0
      %2831 = vmatpush2.msra.mxu0 %v2087
      %2832 = vmatprep.subr.mxu0 0.0
      %2833 = vmatpush2.msra.mxu0 %v2082
      %2834 = vmatprep.subr.mxu0 0.0
      %2835 = vmatpush2.msra.mxu0 %v2077
      %2836 = vmatprep.subr.mxu0 0.0
      %2837 = vmatpush2.msra.mxu0 %v2072
      %2838 = vmatprep.subr.mxu0 0.0
      %2839 = vmatpush2.msra.mxu0 %v2067
      %2840 = vmatprep.subr.mxu0 0.0
      %2841 = vmatpush2.msra.mxu0 %v2062
      %2842 = vmatprep.subr.mxu0 0.0
      %2843 = vmatpush2.msra.mxu0 %v2057
      %2844 = vmatprep.subr.mxu0 0.0
      %2845 = vmatpush2.msra.mxu0 %v1825
      %2846 = vmatprep.subr.mxu0 0.0
      %2847 = vmatpush2.msra.mxu0 %v1820
      %2848 = vmatprep.subr.mxu0 0.0
      %2849 = vmatpush2.msra.mxu0 %v1815
      %2850 = vmatprep.subr.mxu0 0.0
      %2851 = vmatpush2.msra.mxu0 %v1810
      %2852 = vmatprep.subr.mxu0 0.0
      %2853 = vmatpush2.msra.mxu0 %v1805
      %2854 = vmatprep.subr.mxu0 0.0
      %2855 = vmatpush2.msra.mxu0 %v1800
      %2856 = vmatprep.subr.mxu0 0.0
      %2857 = vmatpush2.msra.mxu0 %v1795
      %2858 = vmatprep.subr.mxu0 0.0
      %2859 = vmatpush2.msra.mxu0 %v1790
      %2860 = vmatprep.mubr.f32.mxu0 %v2573
      %2861 = vmatmul.mubr.f32.gmra.mxu0 %v2572
      %v2862 = vpop.f32.mrf.mxu0
      %v2863 = vadd.f32 %v2671, %v2862
      %v2864 = vpop.f32.mrf.mxu0
      %2865 = vmatprep.mubr.f32.mxu0 %v2578
      %2866 = vmatmul.mubr.f32.gmra.mxu0 %v2577
      %v2867 = vpop.f32.mrf.mxu0
      %v2868 = vadd.f32 %v2676, %v2867
      %v2869 = vpop.f32.mrf.mxu0
      %2870 = vmatprep.mubr.f32.mxu0 %v2583
      %2871 = vmatmul.mubr.f32.gmra.mxu0 %v2582
      %v2872 = vpop.f32.mrf.mxu0
      %v2873 = vadd.f32 %v2681, %v2872
      %v2874 = vpop.f32.mrf.mxu0
      %2875 = vmatprep.mubr.f32.mxu0 %v2588
      %2876 = vmatmul.mubr.f32.gmra.mxu0 %v2587
      %v2877 = vpop.f32.mrf.mxu0
      %v2878 = vadd.f32 %v2686, %v2877
      %v2879 = vpop.f32.mrf.mxu0
      %2880 = vmatprep.mubr.f32.mxu0 %v2593
      %2881 = vmatmul.mubr.f32.gmra.mxu0 %v2592
      %v2882 = vpop.f32.mrf.mxu0
      %v2883 = vadd.f32 %v2691, %v2882
      %v2884 = vpop.f32.mrf.mxu0
      %2885 = vmatprep.mubr.f32.mxu0 %v2598
      %2886 = vmatmul.mubr.f32.gmra.mxu0 %v2597
      %v2887 = vpop.f32.mrf.mxu0
      %v2888 = vadd.f32 %v2696, %v2887
      %v2889 = vpop.f32.mrf.mxu0
      %2890 = vmatprep.mubr.f32.mxu0 %v2603
      %2891 = vmatmul.mubr.f32.gmra.mxu0 %v2602
      %v2892 = vpop.f32.mrf.mxu0
      %v2893 = vadd.f32 %v2701, %v2892
      %v2894 = vpop.f32.mrf.mxu0
      %2895 = vmatprep.mubr.f32.mxu0 %v2608
      %2896 = vmatmul.mubr.f32.gmra.mxu0 %v2607
      %v2897 = vpop.f32.mrf.mxu0
      %v2898 = vadd.f32 %v2706, %v2897
      %v2899 = vpop.f32.mrf.mxu0
      %2900 = vmatprep.mubr.f32.mxu0 %v2613
      %2901 = vmatmul.mubr.f32.gmra.mxu0 %v2612
      %v2902 = vpop.f32.mrf.mxu0
      %v2903 = vadd.f32 %v2711, %v2902
      %v2904 = vpop.f32.mrf.mxu0
      %2905 = vmatprep.mubr.f32.mxu0 %v2618
      %2906 = vmatmul.mubr.f32.gmra.mxu0 %v2617
      %v2907 = vpop.f32.mrf.mxu0
      %v2908 = vadd.f32 %v2716, %v2907
      %v2909 = vpop.f32.mrf.mxu0
      %2910 = vmatprep.mubr.f32.mxu0 %v2623
      %2911 = vmatmul.mubr.f32.gmra.mxu0 %v2622
      %v2912 = vpop.f32.mrf.mxu0
      %v2913 = vadd.f32 %v2721, %v2912
      %v2914 = vpop.f32.mrf.mxu0
      %2915 = vmatprep.mubr.f32.mxu0 %v2628
      %2916 = vmatmul.mubr.f32.gmra.mxu0 %v2627
      %v2917 = vpop.f32.mrf.mxu0
      %v2918 = vadd.f32 %v2726, %v2917
      %v2919 = vpop.f32.mrf.mxu0
      %2920 = vmatprep.mubr.f32.mxu0 %v2633
      %2921 = vmatmul.mubr.f32.gmra.mxu0 %v2632
      %v2922 = vpop.f32.mrf.mxu0
      %v2923 = vadd.f32 %v2731, %v2922
      %v2924 = vpop.f32.mrf.mxu0
      %2925 = vmatprep.mubr.f32.mxu0 %v2638
      %2926 = vmatmul.mubr.f32.gmra.mxu0 %v2637
      %v2927 = vpop.f32.mrf.mxu0
      %v2928 = vadd.f32 %v2736, %v2927
      %v2929 = vpop.f32.mrf.mxu0
      %2930 = vmatprep.mubr.f32.mxu0 %v2643
      %2931 = vmatmul.mubr.f32.gmra.mxu0 %v2642
      %v2932 = vpop.f32.mrf.mxu0
      %v2933 = vadd.f32 %v2741, %v2932
      %v2934 = vpop.f32.mrf.mxu0
      %2935 = vmatprep.mubr.f32.mxu0 %v2648
      %2936 = vmatmul.mubr.f32.gmra.mxu0 %v2647
      %v2937 = vpop.f32.mrf.mxu0
      %v2938 = vadd.f32 %v2746, %v2937
      %v2939 = vpop.f32.mrf.mxu0
      %2940 = vdwg.mxu0
      %2941 = vmatprep.subr.mxu0 0.0
      %2942 = vmatpush1.msra.mxu0 %v2197
      %2943 = vmatprep.subr.mxu0 0.0
      %2944 = vmatpush1.msra.mxu0 %v2192
      %2945 = vmatprep.subr.mxu0 0.0
      %2946 = vmatpush1.msra.mxu0 %v2187
      %2947 = vmatprep.subr.mxu0 0.0
      %2948 = vmatpush1.msra.mxu0 %v2182
      %2949 = vmatprep.subr.mxu0 0.0
      %2950 = vmatpush1.msra.mxu0 %v2177
      %2951 = vmatprep.subr.mxu0 0.0
      %2952 = vmatpush1.msra.mxu0 %v2172
      %2953 = vmatprep.subr.mxu0 0.0
      %2954 = vmatpush1.msra.mxu0 %v2167
      %2955 = vmatprep.subr.mxu0 0.0
      %2956 = vmatpush1.msra.mxu0 %v2162
      %2957 = vmatprep.subr.mxu0 0.0
      %2958 = vmatpush1.msra.mxu0 %v1963
      %2959 = vmatprep.subr.mxu0 0.0
      %2960 = vmatpush1.msra.mxu0 %v1958
      %2961 = vmatprep.subr.mxu0 0.0
      %2962 = vmatpush1.msra.mxu0 %v1953
      %2963 = vmatprep.subr.mxu0 0.0
      %2964 = vmatpush1.msra.mxu0 %v1948
      %2965 = vmatprep.subr.mxu0 0.0
      %2966 = vmatpush1.msra.mxu0 %v1943
      %2967 = vmatprep.subr.mxu0 0.0
      %2968 = vmatpush1.msra.mxu0 %v1938
      %2969 = vmatprep.subr.mxu0 0.0
      %2970 = vmatpush1.msra.mxu0 %v1933
      %2971 = vmatprep.subr.mxu0 0.0
      %2972 = vmatpush1.msra.mxu0 %v1928
      %2973 = vmatprep.subr.mxu0 0.0
      %2974 = vmatpush2.msra.mxu0 %v2335
      %2975 = vmatprep.subr.mxu0 0.0
      %2976 = vmatpush2.msra.mxu0 %v2330
      %2977 = vmatprep.subr.mxu0 0.0
      %2978 = vmatpush2.msra.mxu0 %v2325
      %2979 = vmatprep.subr.mxu0 0.0
      %2980 = vmatpush2.msra.mxu0 %v2320
      %2981 = vmatprep.subr.mxu0 0.0
      %2982 = vmatpush2.msra.mxu0 %v2315
      %2983 = vmatprep.subr.mxu0 0.0
      %2984 = vmatpush2.msra.mxu0 %v2310
      %2985 = vmatprep.subr.mxu0 0.0
      %2986 = vmatpush2.msra.mxu0 %v2305
      %2987 = vmatprep.subr.mxu0 0.0
      %2988 = vmatpush2.msra.mxu0 %v2300
      %2989 = vmatprep.subr.mxu0 0.0
      %2990 = vmatpush2.msra.mxu0 %v2464
      %2991 = vmatprep.subr.mxu0 0.0
      %2992 = vmatpush2.msra.mxu0 %v2459
      %2993 = vmatprep.subr.mxu0 0.0
      %2994 = vmatpush2.msra.mxu0 %v2454
      %2995 = vmatprep.subr.mxu0 0.0
      %2996 = vmatpush2.msra.mxu0 %v2449
      %2997 = vmatprep.subr.mxu0 0.0
      %2998 = vmatpush2.msra.mxu0 %v2444
      %2999 = vmatprep.subr.mxu0 0.0
      %3000 = vmatpush2.msra.mxu0 %v2439
      %3001 = vmatprep.subr.mxu0 0.0
      %3002 = vmatpush2.msra.mxu0 %v2434
      %3003 = vmatprep.subr.mxu0 0.0
      %3004 = vmatpush2.msra.mxu0 %v2429
      %3005 = vmatprep.mubr.f32.mxu0 %v2575
      %3006 = vmatmul.mubr.f32.gmra.mxu0 %v2574
      %v3007 = vpop.f32.mrf.mxu0
      %v3008 = vadd.f32 %v2863, %v3007
      %v3009 = vpop.f32.mrf.mxu0
      %3010 = vmatprep.mubr.f32.mxu0 %v2580
      %3011 = vmatmul.mubr.f32.gmra.mxu0 %v2579
      %v3012 = vpop.f32.mrf.mxu0
      %v3013 = vadd.f32 %v2868, %v3012
      %v3014 = vpop.f32.mrf.mxu0
      %3015 = vmatprep.mubr.f32.mxu0 %v2585
      %3016 = vmatmul.mubr.f32.gmra.mxu0 %v2584
      %v3017 = vpop.f32.mrf.mxu0
      %v3018 = vadd.f32 %v2873, %v3017
      %v3019 = vpop.f32.mrf.mxu0
      %3020 = vmatprep.mubr.f32.mxu0 %v2590
      %3021 = vmatmul.mubr.f32.gmra.mxu0 %v2589
      %v3022 = vpop.f32.mrf.mxu0
      %v3023 = vadd.f32 %v2878, %v3022
      %v3024 = vpop.f32.mrf.mxu0
      %3025 = vmatprep.mubr.f32.mxu0 %v2595
      %3026 = vmatmul.mubr.f32.gmra.mxu0 %v2594
      %v3027 = vpop.f32.mrf.mxu0
      %v3028 = vadd.f32 %v2883, %v3027
      %v3029 = vpop.f32.mrf.mxu0
      %3030 = vmatprep.mubr.f32.mxu0 %v2600
      %3031 = vmatmul.mubr.f32.gmra.mxu0 %v2599
      %v3032 = vpop.f32.mrf.mxu0
      %v3033 = vadd.f32 %v2888, %v3032
      %v3034 = vpop.f32.mrf.mxu0
      %3035 = vmatprep.mubr.f32.mxu0 %v2605
      %3036 = vmatmul.mubr.f32.gmra.mxu0 %v2604
      %v3037 = vpop.f32.mrf.mxu0
      %v3038 = vadd.f32 %v2893, %v3037
      %v3039 = vpop.f32.mrf.mxu0
      %3040 = vmatprep.mubr.f32.mxu0 %v2610
      %3041 = vmatmul.mubr.f32.gmra.mxu0 %v2609
      %v3042 = vpop.f32.mrf.mxu0
      %v3043 = vadd.f32 %v2898, %v3042
      %v3044 = vpop.f32.mrf.mxu0
      %3045 = vmatprep.mubr.f32.mxu0 %v2615
      %3046 = vmatmul.mubr.f32.gmra.mxu0 %v2614
      %v3047 = vpop.f32.mrf.mxu0
      %v3048 = vadd.f32 %v2903, %v3047
      %v3049 = vpop.f32.mrf.mxu0
      %3050 = vmatprep.mubr.f32.mxu0 %v2620
      %3051 = vmatmul.mubr.f32.gmra.mxu0 %v2619
      %v3052 = vpop.f32.mrf.mxu0
      %v3053 = vadd.f32 %v2908, %v3052
      %v3054 = vpop.f32.mrf.mxu0
      %3055 = vmatprep.mubr.f32.mxu0 %v2625
      %3056 = vmatmul.mubr.f32.gmra.mxu0 %v2624
      %v3057 = vpop.f32.mrf.mxu0
      %v3058 = vadd.f32 %v2913, %v3057
      %v3059 = vpop.f32.mrf.mxu0
      %3060 = vmatprep.mubr.f32.mxu0 %v2630
      %3061 = vmatmul.mubr.f32.gmra.mxu0 %v2629
      %v3062 = vpop.f32.mrf.mxu0
      %v3063 = vadd.f32 %v2918, %v3062
      %v3064 = vpop.f32.mrf.mxu0
      %3065 = vmatprep.mubr.f32.mxu0 %v2635
      %3066 = vmatmul.mubr.f32.gmra.mxu0 %v2634
      %v3067 = vpop.f32.mrf.mxu0
      %v3068 = vadd.f32 %v2923, %v3067
      %v3069 = vpop.f32.mrf.mxu0
      %3070 = vmatprep.mubr.f32.mxu0 %v2640
      %3071 = vmatmul.mubr.f32.gmra.mxu0 %v2639
      %v3072 = vpop.f32.mrf.mxu0
      %v3073 = vadd.f32 %v2928, %v3072
      %v3074 = vpop.f32.mrf.mxu0
      %3075 = vmatprep.mubr.f32.mxu0 %v2645
      %3076 = vmatmul.mubr.f32.gmra.mxu0 %v2644
      %v3077 = vpop.f32.mrf.mxu0
      %v3078 = vadd.f32 %v2933, %v3077
      %v3079 = vpop.f32.mrf.mxu0
      %3080 = vmatprep.mubr.f32.mxu0 %v2650
      %3081 = vmatmul.mubr.f32.gmra.mxu0 %v2649
      %v3082 = vpop.f32.mrf.mxu0
      %v3083 = vadd.f32 %v2938, %v3082
      %v3084 = vpop.f32.mrf.mxu0
      %3085 = vdwg.mxu0
      %3086 = vmatprep.subr.mxu0 0.0
      %3087 = vmatpush1.msra.mxu0 0.0
      %3088 = vmatprep.subr.mxu0 0.0
      %3089 = vmatpush1.msra.mxu0 0.0
      %3090 = vmatprep.subr.mxu0 0.0
      %3091 = vmatpush1.msra.mxu0 0.0
      %3092 = vmatprep.subr.mxu0 0.0
      %3093 = vmatpush1.msra.mxu0 0.0
      %3094 = vmatprep.subr.mxu0 0.0
      %3095 = vmatpush1.msra.mxu0 0.0
      %3096 = vmatprep.subr.mxu0 0.0
      %3097 = vmatpush1.msra.mxu0 0.0
      %3098 = vmatprep.subr.mxu0 0.0
      %3099 = vmatpush1.msra.mxu0 0.0
      %3100 = vmatprep.subr.mxu0 0.0
      %3101 = vmatpush1.msra.mxu0 0.0
      %3102 = vmatprep.subr.mxu0 0.0
      %3103 = vmatpush1.msra.mxu0 %v2569
      %3104 = vmatprep.subr.mxu0 0.0
      %3105 = vmatpush1.msra.mxu0 %v2564
      %3106 = vmatprep.subr.mxu0 0.0
      %3107 = vmatpush1.msra.mxu0 %v2559
      %3108 = vmatprep.subr.mxu0 0.0
      %3109 = vmatpush1.msra.mxu0 %v2554
      %3110 = vmatprep.subr.mxu0 0.0
      %3111 = vmatpush1.msra.mxu0 %v2549
      %3112 = vmatprep.subr.mxu0 0.0
      %3113 = vmatpush1.msra.mxu0 %v2544
      %3114 = vmatprep.subr.mxu0 0.0
      %3115 = vmatpush1.msra.mxu0 %v2539
      %3116 = vmatprep.subr.mxu0 0.0
      %3117 = vmatpush1.msra.mxu0 %v2534
      %3118 = vmatprep.subr.mxu0 0.0
      %3119 = vmatpush2.msra.mxu0 0.0
      %3120 = vmatprep.subr.mxu0 0.0
      %3121 = vmatpush2.msra.mxu0 0.0
      %3122 = vmatprep.subr.mxu0 0.0
      %3123 = vmatpush2.msra.mxu0 0.0
      %3124 = vmatprep.subr.mxu0 0.0
      %3125 = vmatpush2.msra.mxu0 0.0
      %3126 = vmatprep.subr.mxu0 0.0
      %3127 = vmatpush2.msra.mxu0 0.0
      %3128 = vmatprep.subr.mxu0 0.0
      %3129 = vmatpush2.msra.mxu0 0.0
      %3130 = vmatprep.subr.mxu0 0.0
      %3131 = vmatpush2.msra.mxu0 0.0
      %3132 = vmatprep.subr.mxu0 0.0
      %3133 = vmatpush2.msra.mxu0 0.0
      %3134 = vmatprep.subr.mxu0 0.0
      %3135 = vmatpush2.msra.mxu0 0.0
      %3136 = vmatprep.subr.mxu0 0.0
      %3137 = vmatpush2.msra.mxu0 0.0
      %3138 = vmatprep.subr.mxu0 0.0
      %3139 = vmatpush2.msra.mxu0 0.0
      %3140 = vmatprep.subr.mxu0 0.0
      %3141 = vmatpush2.msra.mxu0 0.0
      %3142 = vmatprep.subr.mxu0 0.0
      %3143 = vmatpush2.msra.mxu0 0.0
      %3144 = vmatprep.subr.mxu0 0.0
      %3145 = vmatpush2.msra.mxu0 0.0
      %3146 = vmatprep.subr.mxu0 0.0
      %3147 = vmatpush2.msra.mxu0 0.0
      %3148 = vmatprep.subr.mxu0 0.0
      %3149 = vmatpush2.msra.mxu0 0.0
      %3150 = vmatprep.mubr.f32.mxu0 0.0
      %3151 = vmatmul.mubr.f32.gmra.mxu0 %v2749
      %v3152 = vpop.f32.mrf.mxu0
      %v3153 = vadd.f32 %v3008, %v3152
      %v3154 = vpop.f32.mrf.mxu0
      %3155 = vmatprep.mubr.f32.mxu0 0.0
      %3156 = vmatmul.mubr.f32.gmra.mxu0 %v2752
      %v3157 = vpop.f32.mrf.mxu0
      %v3158 = vadd.f32 %v3013, %v3157
      %v3159 = vpop.f32.mrf.mxu0
      %3160 = vmatprep.mubr.f32.mxu0 0.0
      %3161 = vmatmul.mubr.f32.gmra.mxu0 %v2755
      %v3162 = vpop.f32.mrf.mxu0
      %v3163 = vadd.f32 %v3018, %v3162
      %v3164 = vpop.f32.mrf.mxu0
      %3165 = vmatprep.mubr.f32.mxu0 0.0
      %3166 = vmatmul.mubr.f32.gmra.mxu0 %v2758
      %v3167 = vpop.f32.mrf.mxu0
      %v3168 = vadd.f32 %v3023, %v3167
      %v3169 = vpop.f32.mrf.mxu0
      %3170 = vmatprep.mubr.f32.mxu0 0.0
      %3171 = vmatmul.mubr.f32.gmra.mxu0 %v2761
      %v3172 = vpop.f32.mrf.mxu0
      %v3173 = vadd.f32 %v3028, %v3172
      %v3174 = vpop.f32.mrf.mxu0
      %3175 = vmatprep.mubr.f32.mxu0 0.0
      %3176 = vmatmul.mubr.f32.gmra.mxu0 %v2764
      %v3177 = vpop.f32.mrf.mxu0
      %v3178 = vadd.f32 %v3033, %v3177
      %v3179 = vpop.f32.mrf.mxu0
      %3180 = vmatprep.mubr.f32.mxu0 0.0
      %3181 = vmatmul.mubr.f32.gmra.mxu0 %v2767
      %v3182 = vpop.f32.mrf.mxu0
      %v3183 = vadd.f32 %v3038, %v3182
      %v3184 = vpop.f32.mrf.mxu0
      %3185 = vmatprep.mubr.f32.mxu0 0.0
      %3186 = vmatmul.mubr.f32.gmra.mxu0 %v2770
      %v3187 = vpop.f32.mrf.mxu0
      %v3188 = vadd.f32 %v3043, %v3187
      %v3189 = vpop.f32.mrf.mxu0
      %3190 = vmatprep.mubr.f32.mxu0 0.0
      %3191 = vmatmul.mubr.f32.gmra.mxu0 %v2773
      %v3192 = vpop.f32.mrf.mxu0
      %v3193 = vadd.f32 %v3048, %v3192
      %v3194 = vpop.f32.mrf.mxu0
      %3195 = vmatprep.mubr.f32.mxu0 0.0
      %3196 = vmatmul.mubr.f32.gmra.mxu0 %v2776
      %v3197 = vpop.f32.mrf.mxu0
      %v3198 = vadd.f32 %v3053, %v3197
      %v3199 = vpop.f32.mrf.mxu0
      %3200 = vmatprep.mubr.f32.mxu0 0.0
      %3201 = vmatmul.mubr.f32.gmra.mxu0 %v2779
      %v3202 = vpop.f32.mrf.mxu0
      %v3203 = vadd.f32 %v3058, %v3202
      %v3204 = vpop.f32.mrf.mxu0
      %3205 = vmatprep.mubr.f32.mxu0 0.0
      %3206 = vmatmul.mubr.f32.gmra.mxu0 %v2782
      %v3207 = vpop.f32.mrf.mxu0
      %v3208 = vadd.f32 %v3063, %v3207
      %v3209 = vpop.f32.mrf.mxu0
      %3210 = vmatprep.mubr.f32.mxu0 0.0
      %3211 = vmatmul.mubr.f32.gmra.mxu0 %v2785
      %v3212 = vpop.f32.mrf.mxu0
      %v3213 = vadd.f32 %v3068, %v3212
      %v3214 = vpop.f32.mrf.mxu0
      %3215 = vmatprep.mubr.f32.mxu0 0.0
      %3216 = vmatmul.mubr.f32.gmra.mxu0 %v2788
      %v3217 = vpop.f32.mrf.mxu0
      %v3218 = vadd.f32 %v3073, %v3217
      %v3219 = vpop.f32.mrf.mxu0
      %3220 = vmatprep.mubr.f32.mxu0 0.0
      %3221 = vmatmul.mubr.f32.gmra.mxu0 %v2791
      %v3222 = vpop.f32.mrf.mxu0
      %v3223 = vadd.f32 %v3078, %v3222
      %v3224 = vpop.f32.mrf.mxu0
      %3225 = vmatprep.mubr.f32.mxu0 0.0
      %3226 = vmatmul.mubr.f32.gmra.mxu0 %v2794
      %v3227 = vpop.f32.mrf.mxu0
      %v3228 = vadd.f32 %v3083, %v3227
      %v3229 = vpop.f32.mrf.mxu0
      %3230 = vdwg.mxu0
      %v3231 = vxor.u32 %v3193, 2147483648
      %v3232 = vxor.u32 %v3198, 2147483648
      %v3233 = vxor.u32 %v3203, 2147483648
      %v3234 = vxor.u32 %v3208, 2147483648
      %v3235 = vxor.u32 %v3213, 2147483648
      %v3236 = vxor.u32 %v3218, 2147483648
      %v3237 = vxor.u32 %v3223, 2147483648
      %v3238 = vxor.u32 %v3228, 2147483648
      %v3239 = vmul.f32 %v3231, 1.442695
      %v3240 = vpow.pop %v3239
      %v3241 = vmul.f32 %v3232, 1.442695
      %v3242 = vpow.pop %v3241
      %v3243 = vmul.f32 %v3233, 1.442695
      %v3244 = vpow.pop %v3243
      %v3245 = vmul.f32 %v3234, 1.442695
      %v3246 = vpow.pop %v3245
      %v3247 = vmul.f32 %v3235, 1.442695
      %v3248 = vpow.pop %v3247
      %v3249 = vmul.f32 %v3236, 1.442695
      %v3250 = vpow.pop %v3249
      %v3251 = vmul.f32 %v3237, 1.442695
      %v3252 = vpow.pop %v3251
      %v3253 = vmul.f32 %v3238, 1.442695
      %v3254 = vpow.pop %v3253
      %v3255 = vadd.f32 %v3240, 1.0
      %v3256 = vadd.f32 %v3242, 1.0
      %v3257 = vadd.f32 %v3244, 1.0
      %v3258 = vadd.f32 %v3246, 1.0
      %v3259 = vadd.f32 %v3248, 1.0
      %v3260 = vadd.f32 %v3250, 1.0
      %v3261 = vadd.f32 %v3252, 1.0
      %v3262 = vadd.f32 %v3254, 1.0
      %v3263 = vrcp.pop %v3255
      %v3264 = vmul.f32 1.0, %v3263
      %v3265 = vrcp.pop %v3256
      %v3266 = vmul.f32 1.0, %v3265
      %v3267 = vrcp.pop %v3257
      %v3268 = vmul.f32 1.0, %v3267
      %v3269 = vrcp.pop %v3258
      %v3270 = vmul.f32 1.0, %v3269
      %v3271 = vrcp.pop %v3259
      %v3272 = vmul.f32 1.0, %v3271
      %v3273 = vrcp.pop %v3260
      %v3274 = vmul.f32 1.0, %v3273
      %v3275 = vrcp.pop %v3261
      %v3276 = vmul.f32 1.0, %v3275
      %v3277 = vrcp.pop %v3262
      %v3278 = vmul.f32 1.0, %v3277
      %vm3279 = vcmp.ge.f32.partialorder %v3153, 0.0
      %vm3280 = vcmp.ge.f32.partialorder %v3158, 0.0
      %vm3281 = vcmp.ge.f32.partialorder %v3163, 0.0
      %vm3282 = vcmp.ge.f32.partialorder %v3168, 0.0
      %vm3283 = vcmp.ge.f32.partialorder %v3173, 0.0
      %vm3284 = vcmp.ge.f32.partialorder %v3178, 0.0
      %vm3285 = vcmp.ge.f32.partialorder %v3183, 0.0
      %vm3286 = vcmp.ge.f32.partialorder %v3188, 0.0
      %v3287 = vmul.f32 %v3153, 0.01
      %v3288 = vmul.f32 %v3158, 0.01
      %v3289 = vmul.f32 %v3163, 0.01
      %v3290 = vmul.f32 %v3168, 0.01
      %v3291 = vmul.f32 %v3173, 0.01
      %v3292 = vmul.f32 %v3178, 0.01
      %v3293 = vmul.f32 %v3183, 0.01
      %v3294 = vmul.f32 %v3188, 0.01
      %v3295 = vsel %vm3279, %v3153, %v3287
      %v3296 = vsel %vm3280, %v3158, %v3288
      %v3297 = vsel %vm3281, %v3163, %v3289
      %v3298 = vsel %vm3282, %v3168, %v3290
      %v3299 = vsel %vm3283, %v3173, %v3291
      %v3300 = vsel %vm3284, %v3178, %v3292
      %v3301 = vsel %vm3285, %v3183, %v3293
      %v3302 = vsel %vm3286, %v3188, %v3294
      %v3303 = vmul.f32 %v3264, %v3295
      %v3304 = vmul.f32 %v3266, %v3296
      %v3305 = vmul.f32 %v3268, %v3297
      %v3306 = vmul.f32 %v3270, %v3298
      %v3307 = vmul.f32 %v3272, %v3299
      %v3308 = vmul.f32 %v3274, %v3300
      %v3309 = vmul.f32 %v3276, %v3301
      %v3310 = vmul.f32 %v3278, %v3302
      %v3311 = vadd.f32 %v3303, %v1156
      %v3312 = vadd.f32 %v3304, %v1161
      %v3313 = vadd.f32 %v3305, %v1166
      %v3314 = vadd.f32 %v3306, %v1171
      %v3315 = vadd.f32 %v3307, %v1176
      %v3316 = vadd.f32 %v3308, %v1181
      %v3317 = vadd.f32 %v3309, %v1186
      %v3318 = vadd.f32 %v3310, %v1191
      %v3319 = vld [vmem:[%s21] sm:$0xff]
      %v3320 = vld [vmem:[%s21 + $0x8] sm:$0xff]
      %v3322 = vsel %vm1836, %v3319, 0
      %v3325 = vsel %vm1836, %v3320, 0
      %3327 = vmatprep.subr.mxu0 0.0
      %3328 = vmatpush1.msra.mxu0 0.0
      %3329 = vmatprep.subr.mxu0 0.0
      %3330 = vmatpush1.msra.mxu0 0.0
      %3331 = vmatprep.subr.mxu0 0.0
      %3332 = vmatpush1.msra.mxu0 0.0
      %3333 = vmatprep.subr.mxu0 0.0
      %3334 = vmatpush1.msra.mxu0 0.0
      %3335 = vmatprep.subr.mxu0 0.0
      %3336 = vmatpush1.msra.mxu0 0.0
      %3337 = vmatprep.subr.mxu0 0.0
      %3338 = vmatpush1.msra.mxu0 0.0
      %3339 = vmatprep.subr.mxu0 0.0
      %3340 = vmatpush1.msra.mxu0 0.0
      %3341 = vmatprep.subr.mxu0 0.0
      %3342 = vmatpush1.msra.mxu0 0.0
      %3343 = vmatprep.subr.mxu0 0.0
      %3344 = vmatpush1.msra.mxu0 %v3318
      %3345 = vmatprep.subr.mxu0 0.0
      %3346 = vmatpush1.msra.mxu0 %v3317
      %3347 = vmatprep.subr.mxu0 0.0
      %3348 = vmatpush1.msra.mxu0 %v3316
      %3349 = vmatprep.subr.mxu0 0.0
      %3350 = vmatpush1.msra.mxu0 %v3315
      %3351 = vmatprep.subr.mxu0 0.0
      %3352 = vmatpush1.msra.mxu0 %v3314
      %3353 = vmatprep.subr.mxu0 0.0
      %3354 = vmatpush1.msra.mxu0 %v3313
      %3355 = vmatprep.subr.mxu0 0.0
      %3356 = vmatpush1.msra.mxu0 %v3312
      %3357 = vmatprep.subr.mxu0 0.0
      %3358 = vmatpush1.msra.mxu0 %v3311
      %3359 = vmatprep.subr.mxu0 0.0
      %3360 = vmatpush2.msra.mxu0 0.0
      %3361 = vmatprep.subr.mxu0 0.0
      %3362 = vmatpush2.msra.mxu0 0.0
      %3363 = vmatprep.subr.mxu0 0.0
      %3364 = vmatpush2.msra.mxu0 0.0
      %3365 = vmatprep.subr.mxu0 0.0
      %3366 = vmatpush2.msra.mxu0 0.0
      %3367 = vmatprep.subr.mxu0 0.0
      %3368 = vmatpush2.msra.mxu0 0.0
      %3369 = vmatprep.subr.mxu0 0.0
      %3370 = vmatpush2.msra.mxu0 0.0
      %3371 = vmatprep.subr.mxu0 0.0
      %3372 = vmatpush2.msra.mxu0 0.0
      %3373 = vmatprep.subr.mxu0 0.0
      %3374 = vmatpush2.msra.mxu0 0.0
      %3375 = vmatprep.subr.mxu0 0.0
      %3376 = vmatpush2.msra.mxu0 0.0
      %3377 = vmatprep.subr.mxu0 0.0
      %3378 = vmatpush2.msra.mxu0 0.0
      %3379 = vmatprep.subr.mxu0 0.0
      %3380 = vmatpush2.msra.mxu0 0.0
      %3381 = vmatprep.subr.mxu0 0.0
      %3382 = vmatpush2.msra.mxu0 0.0
      %3383 = vmatprep.subr.mxu0 0.0
      %3384 = vmatpush2.msra.mxu0 0.0
      %3385 = vmatprep.subr.mxu0 0.0
      %3386 = vmatpush2.msra.mxu0 0.0
      %3387 = vmatprep.subr.mxu0 0.0
      %3388 = vmatpush2.msra.mxu0 0.0
      %3389 = vmatprep.subr.mxu0 0.0
      %3390 = vmatpush2.msra.mxu0 0.0
      %3391 = vmatprep.mubr.f32.mxu0 0.0
      %3392 = vmatmul.mubr.f32.gmra.mxu0 %v3322
      %v3393 = vpop.f32.mrf.mxu0
      %v3394 = vadd.f32 0.0, %v3393
      %v3395 = vpop.f32.mrf.mxu0
      %3396 = vmatprep.mubr.f32.mxu0 0.0
      %3397 = vmatmul.mubr.f32.gmra.mxu0 %v3325
      %v3398 = vpop.f32.mrf.mxu0
      %v3399 = vadd.f32 0.0, %v3398
      %v3400 = vpop.f32.mrf.mxu0
      %3401 = vdwg.mxu0
      %3402 = vxpose.xlu0.b32.start [1/16] %v3394, 128
      %3403 = vxpose.xlu0.b32.cont [2/16] %v3399, 128
      %3404 = vxpose.xlu0.b32.cont [3/16] 0.0, 128
      %3405 = vxpose.xlu0.b32.cont [4/16] 0.0, 128
      %3406 = vxpose.xlu0.b32.cont [5/16] 0.0, 128
      %3407 = vxpose.xlu0.b32.cont [6/16] 0.0, 128
      %3408 = vxpose.xlu0.b32.cont [7/16] 0.0, 128
      %3409 = vxpose.xlu0.b32.cont [8/16] 0.0, 128
      %3410 = vxpose.xlu0.b32.cont [9/16] 0.0, 128
      %3411 = vxpose.xlu0.b32.cont [10/16] 0.0, 128
      %3412 = vxpose.xlu0.b32.cont [11/16] 0.0, 128
      %3413 = vxpose.xlu0.b32.cont [12/16] 0.0, 128
      %3414 = vxpose.xlu0.b32.cont [13/16] 0.0, 128
      %3415 = vxpose.xlu0.b32.cont [14/16] 0.0, 128
      %3416 = vxpose.xlu0.b32.cont [15/16] 0.0, 128
      %3417 = vxpose.xlu0.b32.end [16/16] 0.0, 128
      %v3418 = vpop.trf.xlu0
      %v3419 = vpop.trf.xlu0
      %v3420 = vpop.trf.xlu0
      %v3421 = vpop.trf.xlu0
      %v3422 = vpop.trf.xlu0
      %v3423 = vpop.trf.xlu0
      %v3424 = vpop.trf.xlu0
      %v3425 = vpop.trf.xlu0
      %v3426 = vpop.trf.xlu0
      %v3427 = vpop.trf.xlu0
      %v3428 = vpop.trf.xlu0
      %v3429 = vpop.trf.xlu0
      %v3430 = vpop.trf.xlu0
      %v3431 = vpop.trf.xlu0
      %v3432 = vpop.trf.xlu0
      %v3433 = vpop.trf.xlu0
      %v3434 = vld [vmem:[%s23] sm:$0xf]
      %v3436 = vsel %vm1836, %v3434, 0
      %3438 = vmatprep.subr.mxu0 0.0
      %3439 = vmatpush1.msra.mxu0 0.0
      %3440 = vmatprep.subr.mxu0 0.0
      %3441 = vmatpush1.msra.mxu0 0.0
      %3442 = vmatprep.subr.mxu0 0.0
      %3443 = vmatpush1.msra.mxu0 0.0
      %3444 = vmatprep.subr.mxu0 0.0
      %3445 = vmatpush1.msra.mxu0 0.0
      %3446 = vmatprep.subr.mxu0 0.0
      %3447 = vmatpush1.msra.mxu0 0.0
      %3448 = vmatprep.subr.mxu0 0.0
      %3449 = vmatpush1.msra.mxu0 0.0
      %3450 = vmatprep.subr.mxu0 0.0
      %3451 = vmatpush1.msra.mxu0 0.0
      %3452 = vmatprep.subr.mxu0 0.0
      %3453 = vmatpush1.msra.mxu0 0.0
      %3454 = vmatprep.subr.mxu0 0.0
      %3455 = vmatpush1.msra.mxu0 %v3318
      %3456 = vmatprep.subr.mxu0 0.0
      %3457 = vmatpush1.msra.mxu0 %v3317
      %3458 = vmatprep.subr.mxu0 0.0
      %3459 = vmatpush1.msra.mxu0 %v3316
      %3460 = vmatprep.subr.mxu0 0.0
      %3461 = vmatpush1.msra.mxu0 %v3315
      %3462 = vmatprep.subr.mxu0 0.0
      %3463 = vmatpush1.msra.mxu0 %v3314
      %3464 = vmatprep.subr.mxu0 0.0
      %3465 = vmatpush1.msra.mxu0 %v3313
      %3466 = vmatprep.subr.mxu0 0.0
      %3467 = vmatpush1.msra.mxu0 %v3312
      %3468 = vmatprep.subr.mxu0 0.0
      %3469 = vmatpush1.msra.mxu0 %v3311
      %3470 = vmatprep.subr.mxu0 0.0
      %3471 = vmatpush2.msra.mxu0 0.0
      %3472 = vmatprep.subr.mxu0 0.0
      %3473 = vmatpush2.msra.mxu0 0.0
      %3474 = vmatprep.subr.mxu0 0.0
      %3475 = vmatpush2.msra.mxu0 0.0
      %3476 = vmatprep.subr.mxu0 0.0
      %3477 = vmatpush2.msra.mxu0 0.0
      %3478 = vmatprep.subr.mxu0 0.0
      %3479 = vmatpush2.msra.mxu0 0.0
      %3480 = vmatprep.subr.mxu0 0.0
      %3481 = vmatpush2.msra.mxu0 0.0
      %3482 = vmatprep.subr.mxu0 0.0
      %3483 = vmatpush2.msra.mxu0 0.0
      %3484 = vmatprep.subr.mxu0 0.0
      %3485 = vmatpush2.msra.mxu0 0.0
      %3486 = vmatprep.subr.mxu0 0.0
      %3487 = vmatpush2.msra.mxu0 0.0
      %3488 = vmatprep.subr.mxu0 0.0
      %3489 = vmatpush2.msra.mxu0 0.0
      %3490 = vmatprep.subr.mxu0 0.0
      %3491 = vmatpush2.msra.mxu0 0.0
      %3492 = vmatprep.subr.mxu0 0.0
      %3493 = vmatpush2.msra.mxu0 0.0
      %3494 = vmatprep.subr.mxu0 0.0
      %3495 = vmatpush2.msra.mxu0 0.0
      %3496 = vmatprep.subr.mxu0 0.0
      %3497 = vmatpush2.msra.mxu0 0.0
      %3498 = vmatprep.subr.mxu0 0.0
      %3499 = vmatpush2.msra.mxu0 0.0
      %3500 = vmatprep.subr.mxu0 0.0
      %3501 = vmatpush2.msra.mxu0 0.0
      %3502 = vmatprep.mubr.f32.mxu0 0.0
      %3503 = vmatmul.mubr.f32.gmra.mxu0 %v3436
      %v3504 = vpop.f32.mrf.mxu0
      %v3505 = vadd.f32 0.0, %v3504
      %v3506 = vpop.f32.mrf.mxu0
      %3507 = vdwg.mxu0
      %v3508 = vld [vmem:[%s25] sm:$0xff]
      %v3509 = vld [vmem:[%s25 + $0x8] sm:$0xff]
      %vm3510 = vcmask 130048
      %v3512 = vsel %vm3510, %v3418, 0
      %v3515 = vsel %vm3510, %v3419, 0
      %v3518 = vsel %vm3510, %v3420, 0
      %v3521 = vsel %vm3510, %v3421, 0
      %v3524 = vsel %vm3510, %v3422, 0
      %v3527 = vsel %vm3510, %v3423, 0
      %v3530 = vsel %vm3510, %v3424, 0
      %v3533 = vsel %vm3510, %v3425, 0
      %3535 = vmatprep.subr.mxu0 0.0
      %3536 = vmatpush1.msra.mxu0 0.0
      %3537 = vmatprep.subr.mxu0 0.0
      %3538 = vmatpush1.msra.mxu0 0.0
      %3539 = vmatprep.subr.mxu0 0.0
      %3540 = vmatpush1.msra.mxu0 0.0
      %3541 = vmatprep.subr.mxu0 0.0
      %3542 = vmatpush1.msra.mxu0 0.0
      %3543 = vmatprep.subr.mxu0 0.0
      %3544 = vmatpush1.msra.mxu0 0.0
      %3545 = vmatprep.subr.mxu0 0.0
      %3546 = vmatpush1.msra.mxu0 0.0
      %3547 = vmatprep.subr.mxu0 0.0
      %3548 = vmatpush1.msra.mxu0 0.0
      %3549 = vmatprep.subr.mxu0 0.0
      %3550 = vmatpush1.msra.mxu0 0.0
      %3551 = vmatprep.subr.mxu0 0.0
      %3552 = vmatpush1.msra.mxu0 0.0
      %3553 = vmatprep.subr.mxu0 0.0
      %3554 = vmatpush1.msra.mxu0 0.0
      %3555 = vmatprep.subr.mxu0 0.0
      %3556 = vmatpush1.msra.mxu0 0.0
      %3557 = vmatprep.subr.mxu0 0.0
      %3558 = vmatpush1.msra.mxu0 0.0
      %3559 = vmatprep.subr.mxu0 0.0
      %3560 = vmatpush1.msra.mxu0 0.0
      %3561 = vmatprep.subr.mxu0 0.0
      %3562 = vmatpush1.msra.mxu0 0.0
      %3563 = vmatprep.subr.mxu0 0.0
      %3564 = vmatpush1.msra.mxu0 %v3509
      %3565 = vmatprep.subr.mxu0 0.0
      %3566 = vmatpush1.msra.mxu0 %v3508
      %3567 = vmatprep.subr.mxu0 0.0
      %3568 = vmatpush2.msra.mxu0 0.0
      %3569 = vmatprep.subr.mxu0 0.0
      %3570 = vmatpush2.msra.mxu0 0.0
      %3571 = vmatprep.subr.mxu0 0.0
      %3572 = vmatpush2.msra.mxu0 0.0
      %3573 = vmatprep.subr.mxu0 0.0
      %3574 = vmatpush2.msra.mxu0 0.0
      %3575 = vmatprep.subr.mxu0 0.0
      %3576 = vmatpush2.msra.mxu0 0.0
      %3577 = vmatprep.subr.mxu0 0.0
      %3578 = vmatpush2.msra.mxu0 0.0
      %3579 = vmatprep.subr.mxu0 0.0
      %3580 = vmatpush2.msra.mxu0 0.0
      %3581 = vmatprep.subr.mxu0 0.0
      %3582 = vmatpush2.msra.mxu0 0.0
      %3583 = vmatprep.subr.mxu0 0.0
      %3584 = vmatpush2.msra.mxu0 0.0
      %3585 = vmatprep.subr.mxu0 0.0
      %3586 = vmatpush2.msra.mxu0 0.0
      %3587 = vmatprep.subr.mxu0 0.0
      %3588 = vmatpush2.msra.mxu0 0.0
      %3589 = vmatprep.subr.mxu0 0.0
      %3590 = vmatpush2.msra.mxu0 0.0
      %3591 = vmatprep.subr.mxu0 0.0
      %3592 = vmatpush2.msra.mxu0 0.0
      %3593 = vmatprep.subr.mxu0 0.0
      %3594 = vmatpush2.msra.mxu0 0.0
      %3595 = vmatprep.subr.mxu0 0.0
      %3596 = vmatpush2.msra.mxu0 0.0
      %3597 = vmatprep.subr.mxu0 0.0
      %3598 = vmatpush2.msra.mxu0 0.0
      %3599 = vmatprep.mubr.f32.mxu0 0.0
      %3600 = vmatmul.mubr.f32.gmra.mxu0 %v3512
      %v3601 = vpop.f32.mrf.mxu0
      %v3602 = vadd.f32 0.0, %v3601
      %v3603 = vpop.f32.mrf.mxu0
      %3604 = vmatprep.mubr.f32.mxu0 0.0
      %3605 = vmatmul.mubr.f32.gmra.mxu0 %v3515
      %v3606 = vpop.f32.mrf.mxu0
      %v3607 = vadd.f32 0.0, %v3606
      %v3608 = vpop.f32.mrf.mxu0
      %3609 = vmatprep.mubr.f32.mxu0 0.0
      %3610 = vmatmul.mubr.f32.gmra.mxu0 %v3518
      %v3611 = vpop.f32.mrf.mxu0
      %v3612 = vadd.f32 0.0, %v3611
      %v3613 = vpop.f32.mrf.mxu0
      %3614 = vmatprep.mubr.f32.mxu0 0.0
      %3615 = vmatmul.mubr.f32.gmra.mxu0 %v3521
      %v3616 = vpop.f32.mrf.mxu0
      %v3617 = vadd.f32 0.0, %v3616
      %v3618 = vpop.f32.mrf.mxu0
      %3619 = vmatprep.mubr.f32.mxu0 0.0
      %3620 = vmatmul.mubr.f32.gmra.mxu0 %v3524
      %v3621 = vpop.f32.mrf.mxu0
      %v3622 = vadd.f32 0.0, %v3621
      %v3623 = vpop.f32.mrf.mxu0
      %3624 = vmatprep.mubr.f32.mxu0 0.0
      %3625 = vmatmul.mubr.f32.gmra.mxu0 %v3527
      %v3626 = vpop.f32.mrf.mxu0
      %v3627 = vadd.f32 0.0, %v3626
      %v3628 = vpop.f32.mrf.mxu0
      %3629 = vmatprep.mubr.f32.mxu0 0.0
      %3630 = vmatmul.mubr.f32.gmra.mxu0 %v3530
      %v3631 = vpop.f32.mrf.mxu0
      %v3632 = vadd.f32 0.0, %v3631
      %v3633 = vpop.f32.mrf.mxu0
      %3634 = vmatprep.mubr.f32.mxu0 0.0
      %3635 = vmatmul.mubr.f32.gmra.mxu0 %v3533
      %v3636 = vpop.f32.mrf.mxu0
      %v3637 = vadd.f32 0.0, %v3636
      %v3638 = vpop.f32.mrf.mxu0
      %3639 = vdwg.mxu0
      %v3640 = vld [vmem:[%s27] sm:$0xff]
      %v3641 = vld [vmem:[%s27 + $0x8] sm:$0xff]
      %v3642 = vld [vmem:[%s27 + $0x10] sm:$0xff]
      %v3643 = vld [vmem:[%s27 + $0x18] sm:$0xff]
      %v3644 = vld [vmem:[%s27 + $0x20] sm:$0xff]
      %v3645 = vld [vmem:[%s27 + $0x28] sm:$0xff]
      %v3646 = vld [vmem:[%s27 + $0x30] sm:$0xff]
      %v3647 = vld [vmem:[%s27 + $0x38] sm:$0xf]
      %vm3648 = vcmask 31744
      %v3650 = vsel %vm3648, %v3602, 0
      %v3653 = vsel %vm3648, %v3607, 0
      %v3656 = vsel %vm3648, %v3612, 0
      %v3659 = vsel %vm3648, %v3617, 0
      %v3662 = vsel %vm3648, %v3622, 0
      %v3665 = vsel %vm3648, %v3627, 0
      %v3668 = vsel %vm3648, %v3632, 0
      %v3671 = vsel %vm3648, %v3637, 0
      %v3674 = vsel %vm1207, %v3505, 0
      %3676 = vmatprep.subr.mxu0 0.0
      %3677 = vmatpush1.msra.mxu0 0.0
      %3678 = vmatprep.subr.mxu0 0.0
      %3679 = vmatpush1.msra.mxu0 0.0
      %3680 = vmatprep.subr.mxu0 0.0
      %3681 = vmatpush1.msra.mxu0 0.0
      %3682 = vmatprep.subr.mxu0 0.0
      %3683 = vmatpush1.msra.mxu0 0.0
      %3684 = vmatprep.subr.mxu0 0.0
      %3685 = vmatpush1.msra.mxu0 0.0
      %3686 = vmatprep.subr.mxu0 0.0
      %3687 = vmatpush1.msra.mxu0 0.0
      %3688 = vmatprep.subr.mxu0 0.0
      %3689 = vmatpush1.msra.mxu0 0.0
      %3690 = vmatprep.subr.mxu0 0.0
      %3691 = vmatpush1.msra.mxu0 0.0
      %3692 = vmatprep.subr.mxu0 0.0
      %3693 = vmatpush1.msra.mxu0 0.0
      %3694 = vmatprep.subr.mxu0 0.0
      %3695 = vmatpush1.msra.mxu0 0.0
      %3696 = vmatprep.subr.mxu0 0.0
      %3697 = vmatpush1.msra.mxu0 0.0
      %3698 = vmatprep.subr.mxu0 0.0
      %3699 = vmatpush1.msra.mxu0 0.0
      %3700 = vmatprep.subr.mxu0 0.0
      %3701 = vmatpush1.msra.mxu0 0.0
      %3702 = vmatprep.subr.mxu0 0.0
      %3703 = vmatpush1.msra.mxu0 0.0
      %3704 = vmatprep.subr.mxu0 0.0
      %3705 = vmatpush1.msra.mxu0 0.0
      %3706 = vmatprep.subr.mxu0 0.0
      %3707 = vmatpush1.msra.mxu0 %v3674
      %3708 = vmatprep.subr.mxu0 0.0
      %3709 = vmatpush2.msra.mxu0 0.0
      %3710 = vmatprep.subr.mxu0 0.0
      %3711 = vmatpush2.msra.mxu0 0.0
      %3712 = vmatprep.subr.mxu0 0.0
      %3713 = vmatpush2.msra.mxu0 0.0
      %3714 = vmatprep.subr.mxu0 0.0
      %3715 = vmatpush2.msra.mxu0 0.0
      %3716 = vmatprep.subr.mxu0 0.0
      %3717 = vmatpush2.msra.mxu0 0.0
      %3718 = vmatprep.subr.mxu0 0.0
      %3719 = vmatpush2.msra.mxu0 0.0
      %3720 = vmatprep.subr.mxu0 0.0
      %3721 = vmatpush2.msra.mxu0 0.0
      %3722 = vmatprep.subr.mxu0 0.0
      %3723 = vmatpush2.msra.mxu0 0.0
      %3724 = vmatprep.subr.mxu0 0.0
      %3725 = vmatpush2.msra.mxu0 0.0
      %3726 = vmatprep.subr.mxu0 0.0
      %3727 = vmatpush2.msra.mxu0 0.0
      %3728 = vmatprep.subr.mxu0 0.0
      %3729 = vmatpush2.msra.mxu0 0.0
      %3730 = vmatprep.subr.mxu0 0.0
      %3731 = vmatpush2.msra.mxu0 0.0
      %3732 = vmatprep.subr.mxu0 0.0
      %3733 = vmatpush2.msra.mxu0 0.0
      %3734 = vmatprep.subr.mxu0 0.0
      %3735 = vmatpush2.msra.mxu0 0.0
      %3736 = vmatprep.subr.mxu0 0.0
      %3737 = vmatpush2.msra.mxu0 0.0
      %3738 = vmatprep.subr.mxu0 0.0
      %3739 = vmatpush2.msra.mxu0 0.0
      %3740 = vmatprep.mubr.f32.mxu0 0.0
      %3741 = vmatmul.mubr.f32.gmra.mxu0 %v3650
      %v3742 = vpop.f32.mrf.mxu0
      %v3743 = vadd.f32 %v3640, %v3742
      %v3744 = vpop.f32.mrf.mxu0
      %3745 = vmatprep.mubr.f32.mxu0 0.0
      %3746 = vmatmul.mubr.f32.gmra.mxu0 %v3653
      %v3747 = vpop.f32.mrf.mxu0
      %v3748 = vadd.f32 %v3641, %v3747
      %v3749 = vpop.f32.mrf.mxu0
      %3750 = vmatprep.mubr.f32.mxu0 0.0
      %3751 = vmatmul.mubr.f32.gmra.mxu0 %v3656
      %v3752 = vpop.f32.mrf.mxu0
      %v3753 = vadd.f32 %v3642, %v3752
      %v3754 = vpop.f32.mrf.mxu0
      %3755 = vmatprep.mubr.f32.mxu0 0.0
      %3756 = vmatmul.mubr.f32.gmra.mxu0 %v3659
      %v3757 = vpop.f32.mrf.mxu0
      %v3758 = vadd.f32 %v3643, %v3757
      %v3759 = vpop.f32.mrf.mxu0
      %3760 = vmatprep.mubr.f32.mxu0 0.0
      %3761 = vmatmul.mubr.f32.gmra.mxu0 %v3662
      %v3762 = vpop.f32.mrf.mxu0
      %v3763 = vadd.f32 %v3644, %v3762
      %v3764 = vpop.f32.mrf.mxu0
      %3765 = vmatprep.mubr.f32.mxu0 0.0
      %3766 = vmatmul.mubr.f32.gmra.mxu0 %v3665
      %v3767 = vpop.f32.mrf.mxu0
      %v3768 = vadd.f32 %v3645, %v3767
      %v3769 = vpop.f32.mrf.mxu0
      %3770 = vmatprep.mubr.f32.mxu0 0.0
      %3771 = vmatmul.mubr.f32.gmra.mxu0 %v3668
      %v3772 = vpop.f32.mrf.mxu0
      %v3773 = vadd.f32 %v3646, %v3772
      %v3774 = vpop.f32.mrf.mxu0
      %3775 = vmatprep.mubr.f32.mxu0 0.0
      %3776 = vmatmul.mubr.f32.gmra.mxu0 %v3671
      %v3777 = vpop.f32.mrf.mxu0
      %v3778 = vadd.f32 %v3647, %v3777
      %v3779 = vpop.f32.mrf.mxu0
      %3780 = vdwg.mxu0
      %v3781 = vxor.u32 %v3743, 2147483648
      %v3782 = vxor.u32 %v3748, 2147483648
      %v3783 = vxor.u32 %v3753, 2147483648
      %v3784 = vxor.u32 %v3758, 2147483648
      %v3785 = vxor.u32 %v3763, 2147483648
      %v3786 = vxor.u32 %v3768, 2147483648
      %v3787 = vxor.u32 %v3773, 2147483648
      %v3788 = vxor.u32 %v3778, 2147483648
      %v3789 = vmul.f32 %v3781, 1.442695
      %v3790 = vpow.pop %v3789
      %v3791 = vmul.f32 %v3782, 1.442695
      %v3792 = vpow.pop %v3791
      %v3793 = vmul.f32 %v3783, 1.442695
      %v3794 = vpow.pop %v3793
      %v3795 = vmul.f32 %v3784, 1.442695
      %v3796 = vpow.pop %v3795
      %v3797 = vmul.f32 %v3785, 1.442695
      %v3798 = vpow.pop %v3797
      %v3799 = vmul.f32 %v3786, 1.442695
      %v3800 = vpow.pop %v3799
      %v3801 = vmul.f32 %v3787, 1.442695
      %v3802 = vpow.pop %v3801
      %v3803 = vmul.f32 %v3788, 1.442695
      %v3804 = vpow.pop %v3803
      %v3805 = vadd.f32 %v3790, 1.0
      %v3806 = vadd.f32 %v3792, 1.0
      %v3807 = vadd.f32 %v3794, 1.0
      %v3808 = vadd.f32 %v3796, 1.0
      %v3809 = vadd.f32 %v3798, 1.0
      %v3810 = vadd.f32 %v3800, 1.0
      %v3811 = vadd.f32 %v3802, 1.0
      %v3812 = vadd.f32 %v3804, 1.0
      %v3813 = vrcp.pop %v3805
      %v3814 = vmul.f32 1.0, %v3813
      %v3815 = vrcp.pop %v3806
      %v3816 = vmul.f32 1.0, %v3815
      %v3817 = vrcp.pop %v3807
      %v3818 = vmul.f32 1.0, %v3817
      %v3819 = vrcp.pop %v3808
      %v3820 = vmul.f32 1.0, %v3819
      %v3821 = vrcp.pop %v3809
      %v3822 = vmul.f32 1.0, %v3821
      %v3823 = vrcp.pop %v3810
      %v3824 = vmul.f32 1.0, %v3823
      %v3825 = vrcp.pop %v3811
      %v3826 = vmul.f32 1.0, %v3825
      %v3827 = vrcp.pop %v3812
      %v3828 = vmul.f32 1.0, %v3827
      %v3829 = vld [vmem:[%s29] sm:$0xff]
      %v3830 = vld [vmem:[%s29 + $0x8] sm:$0xff]
      %v3831 = vld [vmem:[%s29 + $0x10] sm:$0xff]
      %v3832 = vld [vmem:[%s29 + $0x18] sm:$0xff]
      %v3833 = vld [vmem:[%s29 + $0x20] sm:$0xff]
      %v3834 = vld [vmem:[%s29 + $0x28] sm:$0xff]
      %v3835 = vld [vmem:[%s29 + $0x30] sm:$0xff]
      %v3836 = vld [vmem:[%s29 + $0x38] sm:$0xf]
      %v3838 = vsel %vm1194, %v3829, 0
      %v3841 = vsel %vm1194, %v3830, 0
      %v3844 = vsel %vm1194, %v3831, 0
      %v3847 = vsel %vm1194, %v3832, 0
      %v3850 = vsel %vm1194, %v3833, 0
      %v3853 = vsel %vm1194, %v3834, 0
      %v3856 = vsel %vm1194, %v3835, 0
      %v3859 = vsel %vm1194, %v3836, 0
      %v3862 = vsel %vm1207, %v3828, 0
      %3864 = vmatprep.subr.mxu0 0.0
      %3865 = vmatpush1.msra.mxu0 0.0
      %3866 = vmatprep.subr.mxu0 0.0
      %3867 = vmatpush1.msra.mxu0 0.0
      %3868 = vmatprep.subr.mxu0 0.0
      %3869 = vmatpush1.msra.mxu0 0.0
      %3870 = vmatprep.subr.mxu0 0.0
      %3871 = vmatpush1.msra.mxu0 0.0
      %3872 = vmatprep.subr.mxu0 0.0
      %3873 = vmatpush1.msra.mxu0 0.0
      %3874 = vmatprep.subr.mxu0 0.0
      %3875 = vmatpush1.msra.mxu0 0.0
      %3876 = vmatprep.subr.mxu0 0.0
      %3877 = vmatpush1.msra.mxu0 0.0
      %3878 = vmatprep.subr.mxu0 0.0
      %3879 = vmatpush1.msra.mxu0 0.0
      %3880 = vmatprep.subr.mxu0 0.0
      %3881 = vmatpush1.msra.mxu0 %v3862
      %3882 = vmatprep.subr.mxu0 0.0
      %3883 = vmatpush1.msra.mxu0 %v3826
      %3884 = vmatprep.subr.mxu0 0.0
      %3885 = vmatpush1.msra.mxu0 %v3824
      %3886 = vmatprep.subr.mxu0 0.0
      %3887 = vmatpush1.msra.mxu0 %v3822
      %3888 = vmatprep.subr.mxu0 0.0
      %3889 = vmatpush1.msra.mxu0 %v3820
      %3890 = vmatprep.subr.mxu0 0.0
      %3891 = vmatpush1.msra.mxu0 %v3818
      %3892 = vmatprep.subr.mxu0 0.0
      %3893 = vmatpush1.msra.mxu0 %v3816
      %3894 = vmatprep.subr.mxu0 0.0
      %3895 = vmatpush1.msra.mxu0 %v3814
      %3896 = vmatprep.subr.mxu0 0.0
      %3897 = vmatpush2.msra.mxu0 0.0
      %3898 = vmatprep.subr.mxu0 0.0
      %3899 = vmatpush2.msra.mxu0 0.0
      %3900 = vmatprep.subr.mxu0 0.0
      %3901 = vmatpush2.msra.mxu0 0.0
      %3902 = vmatprep.subr.mxu0 0.0
      %3903 = vmatpush2.msra.mxu0 0.0
      %3904 = vmatprep.subr.mxu0 0.0
      %3905 = vmatpush2.msra.mxu0 0.0
      %3906 = vmatprep.subr.mxu0 0.0
      %3907 = vmatpush2.msra.mxu0 0.0
      %3908 = vmatprep.subr.mxu0 0.0
      %3909 = vmatpush2.msra.mxu0 0.0
      %3910 = vmatprep.subr.mxu0 0.0
      %3911 = vmatpush2.msra.mxu0 0.0
      %3912 = vmatprep.subr.mxu0 0.0
      %3913 = vmatpush2.msra.mxu0 0.0
      %3914 = vmatprep.subr.mxu0 0.0
      %3915 = vmatpush2.msra.mxu0 0.0
      %3916 = vmatprep.subr.mxu0 0.0
      %3917 = vmatpush2.msra.mxu0 0.0
      %3918 = vmatprep.subr.mxu0 0.0
      %3919 = vmatpush2.msra.mxu0 0.0
      %3920 = vmatprep.subr.mxu0 0.0
      %3921 = vmatpush2.msra.mxu0 0.0
      %3922 = vmatprep.subr.mxu0 0.0
      %3923 = vmatpush2.msra.mxu0 0.0
      %3924 = vmatprep.subr.mxu0 0.0
      %3925 = vmatpush2.msra.mxu0 0.0
      %3926 = vmatprep.subr.mxu0 0.0
      %3927 = vmatpush2.msra.mxu0 0.0
      %3928 = vmatprep.mubr.f32.mxu0 0.0
      %3929 = vmatmul.mubr.f32.gmra.mxu0 %v3838
      %v3930 = vpop.f32.mrf.mxu0
      %v3931 = vadd.f32 0.0, %v3930
      %v3932 = vpop.f32.mrf.mxu0
      %3933 = vmatprep.mubr.f32.mxu0 0.0
      %3934 = vmatmul.mubr.f32.gmra.mxu0 %v3841
      %v3935 = vpop.f32.mrf.mxu0
      %v3936 = vadd.f32 0.0, %v3935
      %v3937 = vpop.f32.mrf.mxu0
      %3938 = vmatprep.mubr.f32.mxu0 0.0
      %3939 = vmatmul.mubr.f32.gmra.mxu0 %v3844
      %v3940 = vpop.f32.mrf.mxu0
      %v3941 = vadd.f32 0.0, %v3940
      %v3942 = vpop.f32.mrf.mxu0
      %3943 = vmatprep.mubr.f32.mxu0 0.0
      %3944 = vmatmul.mubr.f32.gmra.mxu0 %v3847
      %v3945 = vpop.f32.mrf.mxu0
      %v3946 = vadd.f32 0.0, %v3945
      %v3947 = vpop.f32.mrf.mxu0
      %3948 = vmatprep.mubr.f32.mxu0 0.0
      %3949 = vmatmul.mubr.f32.gmra.mxu0 %v3850
      %v3950 = vpop.f32.mrf.mxu0
      %v3951 = vadd.f32 0.0, %v3950
      %v3952 = vpop.f32.mrf.mxu0
      %3953 = vmatprep.mubr.f32.mxu0 0.0
      %3954 = vmatmul.mubr.f32.gmra.mxu0 %v3853
      %v3955 = vpop.f32.mrf.mxu0
      %v3956 = vadd.f32 0.0, %v3955
      %v3957 = vpop.f32.mrf.mxu0
      %3958 = vmatprep.mubr.f32.mxu0 0.0
      %3959 = vmatmul.mubr.f32.gmra.mxu0 %v3856
      %v3960 = vpop.f32.mrf.mxu0
      %v3961 = vadd.f32 0.0, %v3960
      %v3962 = vpop.f32.mrf.mxu0
      %3963 = vmatprep.mubr.f32.mxu0 0.0
      %3964 = vmatmul.mubr.f32.gmra.mxu0 %v3859
      %v3965 = vpop.f32.mrf.mxu0
      %v3966 = vadd.f32 0.0, %v3965
      %v3967 = vpop.f32.mrf.mxu0
      %3968 = vdwg.mxu0
      %v3969 = vmul.f32 %v3931, 0.999995
      %v3970 = vmul.f32 %v3936, 0.999995
      %v3971 = vmul.f32 %v3941, 0.999995
      %v3972 = vmul.f32 %v3946, 0.999995
      %v3973 = vmul.f32 %v3951, 0.999995
      %v3974 = vmul.f32 %v3956, 0.999995
      %v3975 = vmul.f32 %v3961, 0.999995
      %v3976 = vmul.f32 %v3966, 0.999995
      %v3977 = vsel %vm1194, %v3969, -inf
      %3978 = vmax.xlane.f32.xlu0 %v3977
      %v3979 = vpop.xlane.xlu0 %3978
      %v3980 = vsel %vm1194, %v3970, -inf
      %3981 = vmax.xlane.f32.xlu0 %v3980
      %v3982 = vpop.xlane.xlu0 %3981
      %v3983 = vsel %vm1194, %v3971, -inf
      %3984 = vmax.xlane.f32.xlu0 %v3983
      %v3985 = vpop.xlane.xlu0 %3984
      %v3986 = vsel %vm1194, %v3972, -inf
      %3987 = vmax.xlane.f32.xlu0 %v3986
      %v3988 = vpop.xlane.xlu0 %3987
      %v3989 = vsel %vm1194, %v3973, -inf
      %3990 = vmax.xlane.f32.xlu0 %v3989
      %v3991 = vpop.xlane.xlu0 %3990
      %v3992 = vsel %vm1194, %v3974, -inf
      %3993 = vmax.xlane.f32.xlu0 %v3992
      %v3994 = vpop.xlane.xlu0 %3993
      %v3995 = vsel %vm1194, %v3975, -inf
      %3996 = vmax.xlane.f32.xlu0 %v3995
      %v3997 = vpop.xlane.xlu0 %3996
      %vm3998 = vcmask 486400
      %v3999 = vsel %vm3998, %v3976, -inf
      %4000 = vmax.xlane.f32.xlu0 %v3999
      %v4001 = vpop.xlane.xlu0 %4000
      %v4002 = vsub.f32 %v3969, %v3979
      %v4003 = vsub.f32 %v3970, %v3982
      %v4004 = vsub.f32 %v3971, %v3985
      %v4005 = vsub.f32 %v3972, %v3988
      %v4006 = vsub.f32 %v3973, %v3991
      %v4007 = vsub.f32 %v3974, %v3994
      %v4008 = vsub.f32 %v3975, %v3997
      %v4009 = vsub.f32 %v3976, %v4001
      %v4010 = vmul.f32 %v4002, 1.442695
      %v4011 = vpow.pop %v4010
      %v4012 = vmul.f32 %v4003, 1.442695
      %v4013 = vpow.pop %v4012
      %v4014 = vmul.f32 %v4004, 1.442695
      %v4015 = vpow.pop %v4014
      %v4016 = vmul.f32 %v4005, 1.442695
      %v4017 = vpow.pop %v4016
      %v4018 = vmul.f32 %v4006, 1.442695
      %v4019 = vpow.pop %v4018
      %v4020 = vmul.f32 %v4007, 1.442695
      %v4021 = vpow.pop %v4020
      %v4022 = vmul.f32 %v4008, 1.442695
      %v4023 = vpow.pop %v4022
      %v4024 = vmul.f32 %v4009, 1.442695
      %v4025 = vpow.pop %v4024
      %v4026 = vsel %vm1194, %v4011, 0.0
      %4027 = vadd.xlane.f32.xlu0 %v4026
      %v4028 = vpop.xlane.xlu0 %4027
      %v4029 = vsel %vm1194, %v4013, 0.0
      %4030 = vadd.xlane.f32.xlu0 %v4029
      %v4031 = vpop.xlane.xlu0 %4030
      %v4032 = vsel %vm1194, %v4015, 0.0
      %4033 = vadd.xlane.f32.xlu0 %v4032
      %v4034 = vpop.xlane.xlu0 %4033
      %v4035 = vsel %vm1194, %v4017, 0.0
      %4036 = vadd.xlane.f32.xlu0 %v4035
      %v4037 = vpop.xlane.xlu0 %4036
      %v4038 = vsel %vm1194, %v4019, 0.0
      %4039 = vadd.xlane.f32.xlu0 %v4038
      %v4040 = vpop.xlane.xlu0 %4039
      %v4041 = vsel %vm1194, %v4021, 0.0
      %4042 = vadd.xlane.f32.xlu0 %v4041
      %v4043 = vpop.xlane.xlu0 %4042
      %v4044 = vsel %vm1194, %v4023, 0.0
      %4045 = vadd.xlane.f32.xlu0 %v4044
      %v4046 = vpop.xlane.xlu0 %4045
      %v4047 = vsel %vm3998, %v4025, 0.0
      %4048 = vadd.xlane.f32.xlu0 %v4047
      %v4049 = vpop.xlane.xlu0 %4048
      %v4050 = vrcp.pop %v4028
      %v4051 = vmul.f32 %v4011, %v4050
      %v4052 = vrcp.pop %v4031
      %v4053 = vmul.f32 %v4013, %v4052
      %v4054 = vrcp.pop %v4034
      %v4055 = vmul.f32 %v4015, %v4054
      %v4056 = vrcp.pop %v4037
      %v4057 = vmul.f32 %v4017, %v4056
      %v4058 = vrcp.pop %v4040
      %v4059 = vmul.f32 %v4019, %v4058
      %v4060 = vrcp.pop %v4043
      %v4061 = vmul.f32 %v4021, %v4060
      %v4062 = vrcp.pop %v4046
      %v4063 = vmul.f32 %v4023, %v4062
      %v4064 = vrcp.pop %v4049
      %v4065 = vmul.f32 %v4025, %v4064
      %v4067 = vsel %vm1194, %v3311, 0
      %v4070 = vsel %vm1194, %v3312, 0
      %v4073 = vsel %vm1194, %v3313, 0
      %v4076 = vsel %vm1194, %v3314, 0
      %v4079 = vsel %vm1194, %v3315, 0
      %v4082 = vsel %vm1194, %v3316, 0
      %v4085 = vsel %vm1194, %v3317, 0
      %v4088 = vsel %vm1194, %v3318, 0
      %v4091 = vsel %vm1194, %v4051, 0
      %v4094 = vsel %vm1194, %v4053, 0
      %v4097 = vsel %vm1194, %v4055, 0
      %v4100 = vsel %vm1194, %v4057, 0
      %v4103 = vsel %vm1194, %v4059, 0
      %v4106 = vsel %vm1194, %v4061, 0
      %v4109 = vsel %vm1194, %v4063, 0
      %v4112 = vsel %vm1194, %v4065, 0
      %4114 = vmatprep.subr.mxu0 0.0
      %4115 = vmatpush1.xpose.msra.mxu0 0.0
      %4116 = vmatprep.subr.mxu0 0.0
      %4117 = vmatpush1.xpose.msra.mxu0 0.0
      %4118 = vmatprep.subr.mxu0 0.0
      %4119 = vmatpush1.xpose.msra.mxu0 0.0
      %4120 = vmatprep.subr.mxu0 0.0
      %4121 = vmatpush1.xpose.msra.mxu0 0.0
      %4122 = vmatprep.subr.mxu0 0.0
      %4123 = vmatpush1.xpose.msra.mxu0 0.0
      %4124 = vmatprep.subr.mxu0 0.0
      %4125 = vmatpush1.xpose.msra.mxu0 0.0
      %4126 = vmatprep.subr.mxu0 0.0
      %4127 = vmatpush1.xpose.msra.mxu0 0.0
      %4128 = vmatprep.subr.mxu0 0.0
      %4129 = vmatpush1.xpose.msra.mxu0 0.0
      %4130 = vmatprep.subr.mxu0 0.0
      %4131 = vmatpush1.xpose.msra.mxu0 %v4112
      %4132 = vmatprep.subr.mxu0 0.0
      %4133 = vmatpush1.xpose.msra.mxu0 %v4109
      %4134 = vmatprep.subr.mxu0 0.0
      %4135 = vmatpush1.xpose.msra.mxu0 %v4106
      %4136 = vmatprep.subr.mxu0 0.0
      %4137 = vmatpush1.xpose.msra.mxu0 %v4103
      %4138 = vmatprep.subr.mxu0 0.0
      %4139 = vmatpush1.xpose.msra.mxu0 %v4100
      %4140 = vmatprep.subr.mxu0 0.0
      %4141 = vmatpush1.xpose.msra.mxu0 %v4097
      %4142 = vmatprep.subr.mxu0 0.0
      %4143 = vmatpush1.xpose.msra.mxu0 %v4094
      %4144 = vmatprep.subr.mxu0 0.0
      %4145 = vmatpush1.xpose.msra.mxu0 %v4091
      %4146 = vmatprep.subr.mxu0 0.0
      %4147 = vmatpush2.xpose.msra.mxu0 0.0
      %4148 = vmatprep.subr.mxu0 0.0
      %4149 = vmatpush2.xpose.msra.mxu0 0.0
      %4150 = vmatprep.subr.mxu0 0.0
      %4151 = vmatpush2.xpose.msra.mxu0 0.0
      %4152 = vmatprep.subr.mxu0 0.0
      %4153 = vmatpush2.xpose.msra.mxu0 0.0
      %4154 = vmatprep.subr.mxu0 0.0
      %4155 = vmatpush2.xpose.msra.mxu0 0.0
      %4156 = vmatprep.subr.mxu0 0.0
      %4157 = vmatpush2.xpose.msra.mxu0 0.0
      %4158 = vmatprep.subr.mxu0 0.0
      %4159 = vmatpush2.xpose.msra.mxu0 0.0
      %4160 = vmatprep.subr.mxu0 0.0
      %4161 = vmatpush2.xpose.msra.mxu0 0.0
      %4162 = vmatprep.subr.mxu0 0.0
      %4163 = vmatpush2.xpose.msra.mxu0 0.0
      %4164 = vmatprep.subr.mxu0 0.0
      %4165 = vmatpush2.xpose.msra.mxu0 0.0
      %4166 = vmatprep.subr.mxu0 0.0
      %4167 = vmatpush2.xpose.msra.mxu0 0.0
      %4168 = vmatprep.subr.mxu0 0.0
      %4169 = vmatpush2.xpose.msra.mxu0 0.0
      %4170 = vmatprep.subr.mxu0 0.0
      %4171 = vmatpush2.xpose.msra.mxu0 0.0
      %4172 = vmatprep.subr.mxu0 0.0
      %4173 = vmatpush2.xpose.msra.mxu0 0.0
      %4174 = vmatprep.subr.mxu0 0.0
      %4175 = vmatpush2.xpose.msra.mxu0 0.0
      %4176 = vmatprep.subr.mxu0 0.0
      %4177 = vmatpush2.xpose.msra.mxu0 0.0
      %4178 = vmatprep.mubr.f32.mxu0 0.0
      %4179 = vmatmul.mubr.f32.gmra.mxu0 %v4067
      %v4180 = vpop.f32.mrf.mxu0
      %v4181 = vadd.f32 0.0, %v4180
      %v4182 = vpop.f32.mrf.mxu0
      %4183 = vmatprep.mubr.f32.mxu0 0.0
      %4184 = vmatmul.mubr.f32.gmra.mxu0 %v4070
      %v4185 = vpop.f32.mrf.mxu0
      %v4186 = vadd.f32 0.0, %v4185
      %v4187 = vpop.f32.mrf.mxu0
      %4188 = vmatprep.mubr.f32.mxu0 0.0
      %4189 = vmatmul.mubr.f32.gmra.mxu0 %v4073
      %v4190 = vpop.f32.mrf.mxu0
      %v4191 = vadd.f32 0.0, %v4190
      %v4192 = vpop.f32.mrf.mxu0
      %4193 = vmatprep.mubr.f32.mxu0 0.0
      %4194 = vmatmul.mubr.f32.gmra.mxu0 %v4076
      %v4195 = vpop.f32.mrf.mxu0
      %v4196 = vadd.f32 0.0, %v4195
      %v4197 = vpop.f32.mrf.mxu0
      %4198 = vmatprep.mubr.f32.mxu0 0.0
      %4199 = vmatmul.mubr.f32.gmra.mxu0 %v4079
      %v4200 = vpop.f32.mrf.mxu0
      %v4201 = vadd.f32 0.0, %v4200
      %v4202 = vpop.f32.mrf.mxu0
      %4203 = vmatprep.mubr.f32.mxu0 0.0
      %4204 = vmatmul.mubr.f32.gmra.mxu0 %v4082
      %v4205 = vpop.f32.mrf.mxu0
      %v4206 = vadd.f32 0.0, %v4205
      %v4207 = vpop.f32.mrf.mxu0
      %4208 = vmatprep.mubr.f32.mxu0 0.0
      %4209 = vmatmul.mubr.f32.gmra.mxu0 %v4085
      %v4210 = vpop.f32.mrf.mxu0
      %v4211 = vadd.f32 0.0, %v4210
      %v4212 = vpop.f32.mrf.mxu0
      %4213 = vmatprep.mubr.f32.mxu0 0.0
      %4214 = vmatmul.mubr.f32.gmra.mxu0 %v4088
      %v4215 = vpop.f32.mrf.mxu0
      %v4216 = vadd.f32 0.0, %v4215
      %v4217 = vpop.f32.mrf.mxu0
      %4218 = vdwg.mxu0
      %vm4219 = vcmp.ge.f32.partialorder %v4181, 0.0
      %vm4220 = vcmp.ge.f32.partialorder %v4186, 0.0
      %vm4221 = vcmp.ge.f32.partialorder %v4191, 0.0
      %vm4222 = vcmp.ge.f32.partialorder %v4196, 0.0
      %vm4223 = vcmp.ge.f32.partialorder %v4201, 0.0
      %vm4224 = vcmp.ge.f32.partialorder %v4206, 0.0
      %vm4225 = vcmp.ge.f32.partialorder %v4211, 0.0
      %vm4226 = vcmp.ge.f32.partialorder %v4216, 0.0
      %v4227 = vmul.f32 %v4181, 0.01
      %v4228 = vmul.f32 %v4186, 0.01
      %v4229 = vmul.f32 %v4191, 0.01
      %v4230 = vmul.f32 %v4196, 0.01
      %v4231 = vmul.f32 %v4201, 0.01
      %v4232 = vmul.f32 %v4206, 0.01
      %v4233 = vmul.f32 %v4211, 0.01
      %v4234 = vmul.f32 %v4216, 0.01
      %v4235 = vsel %vm4219, %v4181, %v4227
      %v4236 = vsel %vm4220, %v4186, %v4228
      %v4237 = vsel %vm4221, %v4191, %v4229
      %v4238 = vsel %vm4222, %v4196, %v4230
      %v4239 = vsel %vm4223, %v4201, %v4231
      %v4240 = vsel %vm4224, %v4206, %v4232
      %v4241 = vsel %vm4225, %v4211, %v4233
      %v4242 = vsel %vm4226, %v4216, %v4234
      %v4243 = vadd.f32 %v4235, %v1156
      %v4244 = vadd.f32 %v4236, %v1161
      %v4245 = vadd.f32 %v4237, %v1166
      %v4246 = vadd.f32 %v4238, %v1171
      %v4247 = vadd.f32 %v4239, %v1176
      %v4248 = vadd.f32 %v4240, %v1181
      %v4249 = vadd.f32 %v4241, %v1186
      %v4250 = vadd.f32 %v4242, %v1191
      %v4251 = vsel %vm1194, %v4243, 0.0
      %v4252 = vsel %vm1194, %v4244, 0.0
      %v4253 = vadd.f32 %v4251, %v4252
      %v4254 = vsel %vm1194, %v4245, 0.0
      %v4255 = vadd.f32 %v4253, %v4254
      %v4256 = vsel %vm1194, %v4246, 0.0
      %v4257 = vadd.f32 %v4255, %v4256
      %v4258 = vsel %vm1194, %v4247, 0.0
      %v4259 = vadd.f32 %v4257, %v4258
      %v4260 = vsel %vm1194, %v4248, 0.0
      %v4261 = vadd.f32 %v4259, %v4260
      %v4262 = vsel %vm1194, %v4249, 0.0
      %v4263 = vadd.f32 %v4261, %v4262
      %v4264 = vsel %vm1194, %v4250, 0.0
      %v4265 = vadd.f32 %v4263, %v4264
      %4266 = vadd.xlane.f32.xlu0 %v4265
      %v4267 = vpop.xlane.xlu0 %4266
      %v4268 = vrot.slane %v4267, 4
      %v4269 = vadd.f32 %v4267, %v4268
      %v4270 = vrot.slane %v4269, 2
      %v4271 = vadd.f32 %v4269, %v4270
      %v4272 = vrot.slane %v4271, 1
      %v4273 = vadd.f32 %v4271, %v4272
      %s4274 = vtos %v4273
      %v4275 = vstv %s4274
      %v4276 = vrcp.pop 3840.0
      %v4277 = vmul.f32 %v4275, %v4276
      %v4278 = vsub.f32 %v4243, %v4277
      %v4279 = vsub.f32 %v4244, %v4277
      %v4280 = vsub.f32 %v4245, %v4277
      %v4281 = vsub.f32 %v4246, %v4277
      %v4282 = vsub.f32 %v4247, %v4277
      %v4283 = vsub.f32 %v4248, %v4277
      %v4284 = vsub.f32 %v4249, %v4277
      %v4285 = vsub.f32 %v4250, %v4277
      %v4286 = vmul.f32 %v4278, %v4278
      %v4287 = vmul.f32 %v4279, %v4279
      %v4288 = vmul.f32 %v4280, %v4280
      %v4289 = vmul.f32 %v4281, %v4281
      %v4290 = vmul.f32 %v4282, %v4282
      %v4291 = vmul.f32 %v4283, %v4283
      %v4292 = vmul.f32 %v4284, %v4284
      %v4293 = vmul.f32 %v4285, %v4285
      %v4294 = vsel %vm1194, %v4286, 0.0
      %v4295 = vsel %vm1194, %v4287, 0.0
      %v4296 = vadd.f32 %v4294, %v4295
      %v4297 = vsel %vm1194, %v4288, 0.0
      %v4298 = vadd.f32 %v4296, %v4297
      %v4299 = vsel %vm1194, %v4289, 0.0
      %v4300 = vadd.f32 %v4298, %v4299
      %v4301 = vsel %vm1194, %v4290, 0.0
      %v4302 = vadd.f32 %v4300, %v4301
      %v4303 = vsel %vm1194, %v4291, 0.0
      %v4304 = vadd.f32 %v4302, %v4303
      %v4305 = vsel %vm1194, %v4292, 0.0
      %v4306 = vadd.f32 %v4304, %v4305
      %v4307 = vsel %vm1194, %v4293, 0.0
      %v4308 = vadd.f32 %v4306, %v4307
      %4309 = vadd.xlane.f32.xlu0 %v4308
      %v4310 = vpop.xlane.xlu0 %4309
      %v4311 = vrot.slane %v4310, 4
      %v4312 = vadd.f32 %v4310, %v4311
      %v4313 = vrot.slane %v4312, 2
      %v4314 = vadd.f32 %v4312, %v4313
      %v4315 = vrot.slane %v4314, 1
      %v4316 = vadd.f32 %v4314, %v4315
      %s4317 = vtos %v4316
      %v4318 = vstv %s4317
      %v4319 = vmul.f32 %v4318, %v4276
      %v4320 = vadd.f32 %v4319, 1e-05
      %v4321 = vrsqrt.pop %v4320
      %v4322 = vmul.f32 %v4278, %v4321
      %v4323 = vmul.f32 %v4279, %v4321
      %v4324 = vmul.f32 %v4280, %v4321
      %v4325 = vmul.f32 %v4281, %v4321
      %v4326 = vmul.f32 %v4282, %v4321
      %v4327 = vmul.f32 %v4283, %v4321
      %v4328 = vmul.f32 %v4284, %v4321
      %v4329 = vmul.f32 %v4285, %v4321
      %v4330 = vld [vmem:[%s31] sm:$0xff]
      %v4331 = vld [vmem:[%s31 + $0x8] sm:$0xff]
      %v4332 = vld [vmem:[%s31 + $0x10] sm:$0xff]
      %v4333 = vld [vmem:[%s31 + $0x18] sm:$0xff]
      %v4334 = vld [vmem:[%s31 + $0x20] sm:$0xff]
      %v4335 = vld [vmem:[%s31 + $0x28] sm:$0xff]
      %v4336 = vld [vmem:[%s31 + $0x30] sm:$0xff]
      %v4337 = vld [vmem:[%s31 + $0x38] sm:$0xff]
      %v4338 = vmul.f32 %v4322, %v4330
      %v4339 = vmul.f32 %v4323, %v4331
      %v4340 = vmul.f32 %v4324, %v4332
      %v4341 = vmul.f32 %v4325, %v4333
      %v4342 = vmul.f32 %v4326, %v4334
      %v4343 = vmul.f32 %v4327, %v4335
      %v4344 = vmul.f32 %v4328, %v4336
      %v4345 = vmul.f32 %v4329, %v4337
      %v4346 = vld [vmem:[%s33] sm:$0xff]
      %v4347 = vld [vmem:[%s33 + $0x8] sm:$0xff]
      %v4348 = vld [vmem:[%s33 + $0x10] sm:$0xff]
      %v4349 = vld [vmem:[%s33 + $0x18] sm:$0xff]
      %v4350 = vld [vmem:[%s33 + $0x20] sm:$0xff]
      %v4351 = vld [vmem:[%s33 + $0x28] sm:$0xff]
      %v4352 = vld [vmem:[%s33 + $0x30] sm:$0xff]
      %v4353 = vld [vmem:[%s33 + $0x38] sm:$0xff]
      %v4354 = vadd.f32 %v4338, %v4346
      %v4355 = vadd.f32 %v4339, %v4347
      %v4356 = vadd.f32 %v4340, %v4348
      %v4357 = vadd.f32 %v4341, %v4349
      %v4358 = vadd.f32 %v4342, %v4350
      %v4359 = vadd.f32 %v4343, %v4351
      %v4360 = vadd.f32 %v4344, %v4352
      %v4361 = vadd.f32 %v4345, %v4353
      %v4362 = vld [vmem:[%s35] sm:$0xff]
      %v4363 = vld [vmem:[%s35 + $0x8] sm:$0xff]
      %v4364 = vld [vmem:[%s35 + $0x10] sm:$0xff]
      %v4365 = vld [vmem:[%s35 + $0x18] sm:$0xff]
      %v4366 = vld [vmem:[%s35 + $0x20] sm:$0xff]
      %v4367 = vld [vmem:[%s35 + $0x28] sm:$0xff]
      %v4368 = vld [vmem:[%s35 + $0x30] sm:$0xff]
      %v4369 = vld [vmem:[%s35 + $0x38] sm:$0xff]
      %v4370 = vld [vmem:[%s37] sm:$0xff]
      %v4371 = vld [vmem:[%s37 + $0x8] sm:$0xff]
      %v4372 = vld [vmem:[%s37 + $0x10] sm:$0xff]
      %v4373 = vld [vmem:[%s37 + $0x18] sm:$0xff]
      %v4374 = vld [vmem:[%s37 + $0x20] sm:$0xff]
      %v4375 = vld [vmem:[%s37 + $0x28] sm:$0xff]
      %v4376 = vld [vmem:[%s37 + $0x30] sm:$0xff]
      %v4377 = vld [vmem:[%s37 + $0x38] sm:$0xff]
      %4379 = vset.pattern.permute.xlu0 0
      %4380 = vperm.xlu0 %4379, %v4370
      %v4381 = vpop.permute.xlu0 %4380
      %4384 = vset.pattern.permute.xlu0 0
      %4385 = vperm.xlu0 %4384, %v4371
      %v4386 = vpop.permute.xlu0 %4385
      %4389 = vset.pattern.permute.xlu0 0
      %4390 = vperm.xlu0 %4389, %v4372
      %v4391 = vpop.permute.xlu0 %4390
      %4394 = vset.pattern.permute.xlu0 0
      %4395 = vperm.xlu0 %4394, %v4373
      %v4396 = vpop.permute.xlu0 %4395
      %4399 = vset.pattern.permute.xlu0 0
      %4400 = vperm.xlu0 %4399, %v4374
      %v4401 = vpop.permute.xlu0 %4400
      %4404 = vset.pattern.permute.xlu0 0
      %4405 = vperm.xlu0 %4404, %v4375
      %v4406 = vpop.permute.xlu0 %4405
      %4409 = vset.pattern.permute.xlu0 0
      %4410 = vperm.xlu0 %4409, %v4376
      %v4411 = vpop.permute.xlu0 %4410
      %4414 = vset.pattern.permute.xlu0 0
      %4415 = vperm.xlu0 %4414, %v4377
      %v4416 = vpop.permute.xlu0 %4415
      %v4419 = vsel %vm1836, %v4362, 0
      %v4422 = vsel %vm1836, %v4363, 0
      %v4425 = vsel %vm1836, %v4364, 0
      %v4428 = vsel %vm1836, %v4365, 0
      %v4431 = vsel %vm1836, %v4366, 0
      %v4434 = vsel %vm1836, %v4367, 0
      %v4437 = vsel %vm1836, %v4368, 0
      %v4440 = vsel %vm1836, %v4369, 0
      %4442 = vmatprep.subr.mxu0 0.0
      %4443 = vmatpush1.msra.mxu0 0.0
      %4444 = vmatprep.subr.mxu0 0.0
      %4445 = vmatpush1.msra.mxu0 0.0
      %4446 = vmatprep.subr.mxu0 0.0
      %4447 = vmatpush1.msra.mxu0 0.0
      %4448 = vmatprep.subr.mxu0 0.0
      %4449 = vmatpush1.msra.mxu0 0.0
      %4450 = vmatprep.subr.mxu0 0.0
      %4451 = vmatpush1.msra.mxu0 0.0
      %4452 = vmatprep.subr.mxu0 0.0
      %4453 = vmatpush1.msra.mxu0 0.0
      %4454 = vmatprep.subr.mxu0 0.0
      %4455 = vmatpush1.msra.mxu0 0.0
      %4456 = vmatprep.subr.mxu0 0.0
      %4457 = vmatpush1.msra.mxu0 0.0
      %4458 = vmatprep.subr.mxu0 0.0
      %4459 = vmatpush1.msra.mxu0 %v4361
      %4460 = vmatprep.subr.mxu0 0.0
      %4461 = vmatpush1.msra.mxu0 %v4360
      %4462 = vmatprep.subr.mxu0 0.0
      %4463 = vmatpush1.msra.mxu0 %v4359
      %4464 = vmatprep.subr.mxu0 0.0
      %4465 = vmatpush1.msra.mxu0 %v4358
      %4466 = vmatprep.subr.mxu0 0.0
      %4467 = vmatpush1.msra.mxu0 %v4357
      %4468 = vmatprep.subr.mxu0 0.0
      %4469 = vmatpush1.msra.mxu0 %v4356
      %4470 = vmatprep.subr.mxu0 0.0
      %4471 = vmatpush1.msra.mxu0 %v4355
      %4472 = vmatprep.subr.mxu0 0.0
      %4473 = vmatpush1.msra.mxu0 %v4354
      %4474 = vmatprep.subr.mxu0 0.0
      %4475 = vmatpush2.msra.mxu0 0.0
      %4476 = vmatprep.subr.mxu0 0.0
      %4477 = vmatpush2.msra.mxu0 0.0
      %4478 = vmatprep.subr.mxu0 0.0
      %4479 = vmatpush2.msra.mxu0 0.0
      %4480 = vmatprep.subr.mxu0 0.0
      %4481 = vmatpush2.msra.mxu0 0.0
      %4482 = vmatprep.subr.mxu0 0.0
      %4483 = vmatpush2.msra.mxu0 0.0
      %4484 = vmatprep.subr.mxu0 0.0
      %4485 = vmatpush2.msra.mxu0 0.0
      %4486 = vmatprep.subr.mxu0 0.0
      %4487 = vmatpush2.msra.mxu0 0.0
      %4488 = vmatprep.subr.mxu0 0.0
      %4489 = vmatpush2.msra.mxu0 0.0
      %4490 = vmatprep.subr.mxu0 0.0
      %4491 = vmatpush2.msra.mxu0 0.0
      %4492 = vmatprep.subr.mxu0 0.0
      %4493 = vmatpush2.msra.mxu0 0.0
      %4494 = vmatprep.subr.mxu0 0.0
      %4495 = vmatpush2.msra.mxu0 0.0
      %4496 = vmatprep.subr.mxu0 0.0
      %4497 = vmatpush2.msra.mxu0 0.0
      %4498 = vmatprep.subr.mxu0 0.0
      %4499 = vmatpush2.msra.mxu0 0.0
      %4500 = vmatprep.subr.mxu0 0.0
      %4501 = vmatpush2.msra.mxu0 0.0
      %4502 = vmatprep.subr.mxu0 0.0
      %4503 = vmatpush2.msra.mxu0 0.0
      %4504 = vmatprep.subr.mxu0 0.0
      %4505 = vmatpush2.msra.mxu0 0.0
      %4506 = vmatprep.mubr.f32.mxu0 0.0
      %4507 = vmatmul.mubr.f32.gmra.mxu0 %v4419
      %v4508 = vpop.f32.mrf.mxu0
      %v4509 = vadd.f32 %v4381, %v4508
      %v4510 = vpop.f32.mrf.mxu0
      %4511 = vmatprep.mubr.f32.mxu0 0.0
      %4512 = vmatmul.mubr.f32.gmra.mxu0 %v4422
      %v4513 = vpop.f32.mrf.mxu0
      %v4514 = vadd.f32 %v4386, %v4513
      %v4515 = vpop.f32.mrf.mxu0
      %4516 = vmatprep.mubr.f32.mxu0 0.0
      %4517 = vmatmul.mubr.f32.gmra.mxu0 %v4425
      %v4518 = vpop.f32.mrf.mxu0
      %v4519 = vadd.f32 %v4391, %v4518
      %v4520 = vpop.f32.mrf.mxu0
      %4521 = vmatprep.mubr.f32.mxu0 0.0
      %4522 = vmatmul.mubr.f32.gmra.mxu0 %v4428
      %v4523 = vpop.f32.mrf.mxu0
      %v4524 = vadd.f32 %v4396, %v4523
      %v4525 = vpop.f32.mrf.mxu0
      %4526 = vmatprep.mubr.f32.mxu0 0.0
      %4527 = vmatmul.mubr.f32.gmra.mxu0 %v4431
      %v4528 = vpop.f32.mrf.mxu0
      %v4529 = vadd.f32 %v4401, %v4528
      %v4530 = vpop.f32.mrf.mxu0
      %4531 = vmatprep.mubr.f32.mxu0 0.0
      %4532 = vmatmul.mubr.f32.gmra.mxu0 %v4434
      %v4533 = vpop.f32.mrf.mxu0
      %v4534 = vadd.f32 %v4406, %v4533
      %v4535 = vpop.f32.mrf.mxu0
      %4536 = vmatprep.mubr.f32.mxu0 0.0
      %4537 = vmatmul.mubr.f32.gmra.mxu0 %v4437
      %v4538 = vpop.f32.mrf.mxu0
      %v4539 = vadd.f32 %v4411, %v4538
      %v4540 = vpop.f32.mrf.mxu0
      %4541 = vmatprep.mubr.f32.mxu0 0.0
      %4542 = vmatmul.mubr.f32.gmra.mxu0 %v4440
      %v4543 = vpop.f32.mrf.mxu0
      %v4544 = vadd.f32 %v4416, %v4543
      %v4545 = vpop.f32.mrf.mxu0
      %4546 = vdwg.mxu0
      %v4548 = vsel %vm1194, %v4354, 0
      %v4551 = vsel %vm1194, %v4355, 0
      %v4554 = vsel %vm1194, %v4356, 0
      %v4557 = vsel %vm1194, %v4357, 0
      %v4560 = vsel %vm1194, %v4358, 0
      %v4563 = vsel %vm1194, %v4359, 0
      %v4566 = vsel %vm1194, %v4360, 0
      %v4569 = vsel %vm1194, %v4361, 0
      %4571 = vmatprep.subr.mxu0 0.0
      %4572 = vmatpush1.msra.mxu0 0.0
      %4573 = vmatprep.subr.mxu0 0.0
      %4574 = vmatpush1.msra.mxu0 0.0
      %4575 = vmatprep.subr.mxu0 0.0
      %4576 = vmatpush1.msra.mxu0 0.0
      %4577 = vmatprep.subr.mxu0 0.0
      %4578 = vmatpush1.msra.mxu0 0.0
      %4579 = vmatprep.subr.mxu0 0.0
      %4580 = vmatpush1.msra.mxu0 0.0
      %4581 = vmatprep.subr.mxu0 0.0
      %4582 = vmatpush1.msra.mxu0 0.0
      %4583 = vmatprep.subr.mxu0 0.0
      %4584 = vmatpush1.msra.mxu0 0.0
      %4585 = vmatprep.subr.mxu0 0.0
      %4586 = vmatpush1.msra.mxu0 0.0
      %4587 = vmatprep.subr.mxu0 0.0
      %4588 = vmatpush1.msra.mxu0 %v1209
      %4589 = vmatprep.subr.mxu0 0.0
      %4590 = vmatpush1.msra.mxu0 %v994
      %4591 = vmatprep.subr.mxu0 0.0
      %4592 = vmatpush1.msra.mxu0 %v993
      %4593 = vmatprep.subr.mxu0 0.0
      %4594 = vmatpush1.msra.mxu0 %v992
      %4595 = vmatprep.subr.mxu0 0.0
      %4596 = vmatpush1.msra.mxu0 %v991
      %4597 = vmatprep.subr.mxu0 0.0
      %4598 = vmatpush1.msra.mxu0 %v990
      %4599 = vmatprep.subr.mxu0 0.0
      %4600 = vmatpush1.msra.mxu0 %v989
      %4601 = vmatprep.subr.mxu0 0.0
      %4602 = vmatpush1.msra.mxu0 %v988
      %4603 = vmatprep.subr.mxu0 0.0
      %4604 = vmatpush2.msra.mxu0 0.0
      %4605 = vmatprep.subr.mxu0 0.0
      %4606 = vmatpush2.msra.mxu0 0.0
      %4607 = vmatprep.subr.mxu0 0.0
      %4608 = vmatpush2.msra.mxu0 0.0
      %4609 = vmatprep.subr.mxu0 0.0
      %4610 = vmatpush2.msra.mxu0 0.0
      %4611 = vmatprep.subr.mxu0 0.0
      %4612 = vmatpush2.msra.mxu0 0.0
      %4613 = vmatprep.subr.mxu0 0.0
      %4614 = vmatpush2.msra.mxu0 0.0
      %4615 = vmatprep.subr.mxu0 0.0
      %4616 = vmatpush2.msra.mxu0 0.0
      %4617 = vmatprep.subr.mxu0 0.0
      %4618 = vmatpush2.msra.mxu0 0.0
      %4619 = vmatprep.subr.mxu0 0.0
      %4620 = vmatpush2.msra.mxu0 0.0
      %4621 = vmatprep.subr.mxu0 0.0
      %4622 = vmatpush2.msra.mxu0 0.0
      %4623 = vmatprep.subr.mxu0 0.0
      %4624 = vmatpush2.msra.mxu0 0.0
      %4625 = vmatprep.subr.mxu0 0.0
      %4626 = vmatpush2.msra.mxu0 0.0
      %4627 = vmatprep.subr.mxu0 0.0
      %4628 = vmatpush2.msra.mxu0 0.0
      %4629 = vmatprep.subr.mxu0 0.0
      %4630 = vmatpush2.msra.mxu0 0.0
      %4631 = vmatprep.subr.mxu0 0.0
      %4632 = vmatpush2.msra.mxu0 0.0
      %4633 = vmatprep.subr.mxu0 0.0
      %4634 = vmatpush2.msra.mxu0 0.0
      %4635 = vmatprep.mubr.f32.mxu0 0.0
      %4636 = vmatmul.mubr.f32.gmra.mxu0 %v4548
      %v4637 = vpop.f32.mrf.mxu0
      %v4638 = vadd.f32 0.0, %v4637
      %v4639 = vpop.f32.mrf.mxu0
      %4640 = vmatprep.mubr.f32.mxu0 0.0
      %4641 = vmatmul.mubr.f32.gmra.mxu0 %v4551
      %v4642 = vpop.f32.mrf.mxu0
      %v4643 = vadd.f32 0.0, %v4642
      %v4644 = vpop.f32.mrf.mxu0
      %4645 = vmatprep.mubr.f32.mxu0 0.0
      %4646 = vmatmul.mubr.f32.gmra.mxu0 %v4554
      %v4647 = vpop.f32.mrf.mxu0
      %v4648 = vadd.f32 0.0, %v4647
      %v4649 = vpop.f32.mrf.mxu0
      %4650 = vmatprep.mubr.f32.mxu0 0.0
      %4651 = vmatmul.mubr.f32.gmra.mxu0 %v4557
      %v4652 = vpop.f32.mrf.mxu0
      %v4653 = vadd.f32 0.0, %v4652
      %v4654 = vpop.f32.mrf.mxu0
      %4655 = vmatprep.mubr.f32.mxu0 0.0
      %4656 = vmatmul.mubr.f32.gmra.mxu0 %v4560
      %v4657 = vpop.f32.mrf.mxu0
      %v4658 = vadd.f32 0.0, %v4657
      %v4659 = vpop.f32.mrf.mxu0
      %4660 = vmatprep.mubr.f32.mxu0 0.0
      %4661 = vmatmul.mubr.f32.gmra.mxu0 %v4563
      %v4662 = vpop.f32.mrf.mxu0
      %v4663 = vadd.f32 0.0, %v4662
      %v4664 = vpop.f32.mrf.mxu0
      %4665 = vmatprep.mubr.f32.mxu0 0.0
      %4666 = vmatmul.mubr.f32.gmra.mxu0 %v4566
      %v4667 = vpop.f32.mrf.mxu0
      %v4668 = vadd.f32 0.0, %v4667
      %v4669 = vpop.f32.mrf.mxu0
      %4670 = vmatprep.mubr.f32.mxu0 0.0
      %4671 = vmatmul.mubr.f32.gmra.mxu0 %v4569
      %v4672 = vpop.f32.mrf.mxu0
      %v4673 = vadd.f32 0.0, %v4672
      %v4674 = vpop.f32.mrf.mxu0
      %4675 = vdwg.mxu0
      %4676 = vmatprep.subr.mxu0 0.0
      %4677 = vmatpush1.msra.mxu0 0.0
      %4678 = vmatprep.subr.mxu0 0.0
      %4679 = vmatpush1.msra.mxu0 0.0
      %4680 = vmatprep.subr.mxu0 0.0
      %4681 = vmatpush1.msra.mxu0 0.0
      %4682 = vmatprep.subr.mxu0 0.0
      %4683 = vmatpush1.msra.mxu0 0.0
      %4684 = vmatprep.subr.mxu0 0.0
      %4685 = vmatpush1.msra.mxu0 0.0
      %4686 = vmatprep.subr.mxu0 0.0
      %4687 = vmatpush1.msra.mxu0 0.0
      %4688 = vmatprep.subr.mxu0 0.0
      %4689 = vmatpush1.msra.mxu0 0.0
      %4690 = vmatprep.subr.mxu0 0.0
      %4691 = vmatpush1.msra.mxu0 0.0
      %4692 = vmatprep.subr.mxu0 0.0
      %4693 = vmatpush1.msra.mxu0 %v1297
      %4694 = vmatprep.subr.mxu0 0.0
      %4695 = vmatpush1.msra.mxu0 %v1002
      %4696 = vmatprep.subr.mxu0 0.0
      %4697 = vmatpush1.msra.mxu0 %v1001
      %4698 = vmatprep.subr.mxu0 0.0
      %4699 = vmatpush1.msra.mxu0 %v1000
      %4700 = vmatprep.subr.mxu0 0.0
      %4701 = vmatpush1.msra.mxu0 %v999
      %4702 = vmatprep.subr.mxu0 0.0
      %4703 = vmatpush1.msra.mxu0 %v998
      %4704 = vmatprep.subr.mxu0 0.0
      %4705 = vmatpush1.msra.mxu0 %v997
      %4706 = vmatprep.subr.mxu0 0.0
      %4707 = vmatpush1.msra.mxu0 %v996
      %4708 = vmatprep.subr.mxu0 0.0
      %4709 = vmatpush2.msra.mxu0 0.0
      %4710 = vmatprep.subr.mxu0 0.0
      %4711 = vmatpush2.msra.mxu0 0.0
      %4712 = vmatprep.subr.mxu0 0.0
      %4713 = vmatpush2.msra.mxu0 0.0
      %4714 = vmatprep.subr.mxu0 0.0
      %4715 = vmatpush2.msra.mxu0 0.0
      %4716 = vmatprep.subr.mxu0 0.0
      %4717 = vmatpush2.msra.mxu0 0.0
      %4718 = vmatprep.subr.mxu0 0.0
      %4719 = vmatpush2.msra.mxu0 0.0
      %4720 = vmatprep.subr.mxu0 0.0
      %4721 = vmatpush2.msra.mxu0 0.0
      %4722 = vmatprep.subr.mxu0 0.0
      %4723 = vmatpush2.msra.mxu0 0.0
      %4724 = vmatprep.subr.mxu0 0.0
      %4725 = vmatpush2.msra.mxu0 0.0
      %4726 = vmatprep.subr.mxu0 0.0
      %4727 = vmatpush2.msra.mxu0 0.0
      %4728 = vmatprep.subr.mxu0 0.0
      %4729 = vmatpush2.msra.mxu0 0.0
      %4730 = vmatprep.subr.mxu0 0.0
      %4731 = vmatpush2.msra.mxu0 0.0
      %4732 = vmatprep.subr.mxu0 0.0
      %4733 = vmatpush2.msra.mxu0 0.0
      %4734 = vmatprep.subr.mxu0 0.0
      %4735 = vmatpush2.msra.mxu0 0.0
      %4736 = vmatprep.subr.mxu0 0.0
      %4737 = vmatpush2.msra.mxu0 0.0
      %4738 = vmatprep.subr.mxu0 0.0
      %4739 = vmatpush2.msra.mxu0 0.0
      %4740 = vmatprep.mubr.f32.mxu0 0.0
      %4741 = vmatmul.mubr.f32.gmra.mxu0 %v4548
      %v4742 = vpop.f32.mrf.mxu0
      %v4743 = vadd.f32 0.0, %v4742
      %v4744 = vpop.f32.mrf.mxu0
      %4745 = vmatprep.mubr.f32.mxu0 0.0
      %4746 = vmatmul.mubr.f32.gmra.mxu0 %v4551
      %v4747 = vpop.f32.mrf.mxu0
      %v4748 = vadd.f32 0.0, %v4747
      %v4749 = vpop.f32.mrf.mxu0
      %4750 = vmatprep.mubr.f32.mxu0 0.0
      %4751 = vmatmul.mubr.f32.gmra.mxu0 %v4554
      %v4752 = vpop.f32.mrf.mxu0
      %v4753 = vadd.f32 0.0, %v4752
      %v4754 = vpop.f32.mrf.mxu0
      %4755 = vmatprep.mubr.f32.mxu0 0.0
      %4756 = vmatmul.mubr.f32.gmra.mxu0 %v4557
      %v4757 = vpop.f32.mrf.mxu0
      %v4758 = vadd.f32 0.0, %v4757
      %v4759 = vpop.f32.mrf.mxu0
      %4760 = vmatprep.mubr.f32.mxu0 0.0
      %4761 = vmatmul.mubr.f32.gmra.mxu0 %v4560
      %v4762 = vpop.f32.mrf.mxu0
      %v4763 = vadd.f32 0.0, %v4762
      %v4764 = vpop.f32.mrf.mxu0
      %4765 = vmatprep.mubr.f32.mxu0 0.0
      %4766 = vmatmul.mubr.f32.gmra.mxu0 %v4563
      %v4767 = vpop.f32.mrf.mxu0
      %v4768 = vadd.f32 0.0, %v4767
      %v4769 = vpop.f32.mrf.mxu0
      %4770 = vmatprep.mubr.f32.mxu0 0.0
      %4771 = vmatmul.mubr.f32.gmra.mxu0 %v4566
      %v4772 = vpop.f32.mrf.mxu0
      %v4773 = vadd.f32 0.0, %v4772
      %v4774 = vpop.f32.mrf.mxu0
      %4775 = vmatprep.mubr.f32.mxu0 0.0
      %4776 = vmatmul.mubr.f32.gmra.mxu0 %v4569
      %v4777 = vpop.f32.mrf.mxu0
      %v4778 = vadd.f32 0.0, %v4777
      %v4779 = vpop.f32.mrf.mxu0
      %4780 = vdwg.mxu0
      %v4781 = vld [vmem:[%s39] sm:$0xff]
      %v4782 = vld [vmem:[%s39 + $0x8] sm:$0xff]
      %v4783 = vld [vmem:[%s39 + $0x10] sm:$0xff]
      %v4784 = vld [vmem:[%s39 + $0x18] sm:$0xff]
      %v4785 = vld [vmem:[%s39 + $0x20] sm:$0xff]
      %v4786 = vld [vmem:[%s39 + $0x28] sm:$0xff]
      %v4787 = vld [vmem:[%s39 + $0x30] sm:$0xff]
      %v4788 = vld [vmem:[%s39 + $0x38] sm:$0xff]
      %v4789 = vld [vmem:[%s39 + $0x40] sm:$0xff]
      %v4790 = vld [vmem:[%s39 + $0x48] sm:$0xff]
      %v4791 = vld [vmem:[%s39 + $0x50] sm:$0xff]
      %v4792 = vld [vmem:[%s39 + $0x58] sm:$0xff]
      %v4793 = vld [vmem:[%s39 + $0x60] sm:$0xff]
      %v4794 = vld [vmem:[%s39 + $0x68] sm:$0xff]
      %v4795 = vld [vmem:[%s39 + $0x70] sm:$0xff]
      %v4796 = vld [vmem:[%s39 + $0x78] sm:$0xff]
      %v4797 = vld [vmem:[%s41] sm:$0xff]
      %v4798 = vld [vmem:[%s41 + $0x8] sm:$0xff]
      %v4799 = vld [vmem:[%s41 + $0x10] sm:$0xff]
      %v4800 = vld [vmem:[%s41 + $0x18] sm:$0xff]
      %v4801 = vld [vmem:[%s41 + $0x20] sm:$0xff]
      %v4802 = vld [vmem:[%s41 + $0x28] sm:$0xff]
      %v4803 = vld [vmem:[%s41 + $0x30] sm:$0xff]
      %v4804 = vld [vmem:[%s41 + $0x38] sm:$0xff]
      %4806 = vset.pattern.permute.xlu0 0
      %4807 = vperm.xlu0 %4806, %v4797
      %v4808 = vpop.permute.xlu0 %4807
      %4811 = vset.pattern.permute.xlu0 0
      %4812 = vperm.xlu0 %4811, %v4798
      %v4813 = vpop.permute.xlu0 %4812
      %4816 = vset.pattern.permute.xlu0 0
      %4817 = vperm.xlu0 %4816, %v4799
      %v4818 = vpop.permute.xlu0 %4817
      %4821 = vset.pattern.permute.xlu0 0
      %4822 = vperm.xlu0 %4821, %v4800
      %v4823 = vpop.permute.xlu0 %4822
      %4826 = vset.pattern.permute.xlu0 0
      %4827 = vperm.xlu0 %4826, %v4801
      %v4828 = vpop.permute.xlu0 %4827
      %4831 = vset.pattern.permute.xlu0 0
      %4832 = vperm.xlu0 %4831, %v4802
      %v4833 = vpop.permute.xlu0 %4832
      %4836 = vset.pattern.permute.xlu0 0
      %4837 = vperm.xlu0 %4836, %v4803
      %v4838 = vpop.permute.xlu0 %4837
      %4841 = vset.pattern.permute.xlu0 0
      %4842 = vperm.xlu0 %4841, %v4804
      %v4843 = vpop.permute.xlu0 %4842
      %v4846 = vsel %vm1836, %v4782, 0
      %v4849 = vsel %vm1836, %v4784, 0
      %v4852 = vsel %vm1836, %v4786, 0
      %v4855 = vsel %vm1836, %v4788, 0
      %v4858 = vsel %vm1836, %v4790, 0
      %v4861 = vsel %vm1836, %v4792, 0
      %v4864 = vsel %vm1836, %v4794, 0
      %v4867 = vsel %vm1836, %v4796, 0
      %4869 = vmatprep.subr.mxu0 0.0
      %4870 = vmatpush1.msra.mxu0 %v4361
      %4871 = vmatprep.subr.mxu0 0.0
      %4872 = vmatpush1.msra.mxu0 %v4360
      %4873 = vmatprep.subr.mxu0 0.0
      %4874 = vmatpush1.msra.mxu0 %v4359
      %4875 = vmatprep.subr.mxu0 0.0
      %4876 = vmatpush1.msra.mxu0 %v4358
      %4877 = vmatprep.subr.mxu0 0.0
      %4878 = vmatpush1.msra.mxu0 %v4357
      %4879 = vmatprep.subr.mxu0 0.0
      %4880 = vmatpush1.msra.mxu0 %v4356
      %4881 = vmatprep.subr.mxu0 0.0
      %4882 = vmatpush1.msra.mxu0 %v4355
      %4883 = vmatprep.subr.mxu0 0.0
      %4884 = vmatpush1.msra.mxu0 %v4354
      %4885 = vmatprep.subr.mxu0 0.0
      %4886 = vmatpush1.msra.mxu0 %v4673
      %4887 = vmatprep.subr.mxu0 0.0
      %4888 = vmatpush1.msra.mxu0 %v4668
      %4889 = vmatprep.subr.mxu0 0.0
      %4890 = vmatpush1.msra.mxu0 %v4663
      %4891 = vmatprep.subr.mxu0 0.0
      %4892 = vmatpush1.msra.mxu0 %v4658
      %4893 = vmatprep.subr.mxu0 0.0
      %4894 = vmatpush1.msra.mxu0 %v4653
      %4895 = vmatprep.subr.mxu0 0.0
      %4896 = vmatpush1.msra.mxu0 %v4648
      %4897 = vmatprep.subr.mxu0 0.0
      %4898 = vmatpush1.msra.mxu0 %v4643
      %4899 = vmatprep.subr.mxu0 0.0
      %4900 = vmatpush1.msra.mxu0 %v4638
      %4901 = vmatprep.subr.mxu0 0.0
      %4902 = vmatpush2.msra.mxu0 0.0
      %4903 = vmatprep.subr.mxu0 0.0
      %4904 = vmatpush2.msra.mxu0 0.0
      %4905 = vmatprep.subr.mxu0 0.0
      %4906 = vmatpush2.msra.mxu0 0.0
      %4907 = vmatprep.subr.mxu0 0.0
      %4908 = vmatpush2.msra.mxu0 0.0
      %4909 = vmatprep.subr.mxu0 0.0
      %4910 = vmatpush2.msra.mxu0 0.0
      %4911 = vmatprep.subr.mxu0 0.0
      %4912 = vmatpush2.msra.mxu0 0.0
      %4913 = vmatprep.subr.mxu0 0.0
      %4914 = vmatpush2.msra.mxu0 0.0
      %4915 = vmatprep.subr.mxu0 0.0
      %4916 = vmatpush2.msra.mxu0 0.0
      %4917 = vmatprep.subr.mxu0 0.0
      %4918 = vmatpush2.msra.mxu0 %v4778
      %4919 = vmatprep.subr.mxu0 0.0
      %4920 = vmatpush2.msra.mxu0 %v4773
      %4921 = vmatprep.subr.mxu0 0.0
      %4922 = vmatpush2.msra.mxu0 %v4768
      %4923 = vmatprep.subr.mxu0 0.0
      %4924 = vmatpush2.msra.mxu0 %v4763
      %4925 = vmatprep.subr.mxu0 0.0
      %4926 = vmatpush2.msra.mxu0 %v4758
      %4927 = vmatprep.subr.mxu0 0.0
      %4928 = vmatpush2.msra.mxu0 %v4753
      %4929 = vmatprep.subr.mxu0 0.0
      %4930 = vmatpush2.msra.mxu0 %v4748
      %4931 = vmatprep.subr.mxu0 0.0
      %4932 = vmatpush2.msra.mxu0 %v4743
      %4933 = vmatprep.mubr.f32.mxu0 %v4846
      %4934 = vmatmul.mubr.f32.gmra.mxu0 %v4781
      %v4935 = vpop.f32.mrf.mxu0
      %v4936 = vadd.f32 %v4808, %v4935
      %v4937 = vpop.f32.mrf.mxu0
      %4938 = vmatprep.mubr.f32.mxu0 %v4849
      %4939 = vmatmul.mubr.f32.gmra.mxu0 %v4783
      %v4940 = vpop.f32.mrf.mxu0
      %v4941 = vadd.f32 %v4813, %v4940
      %v4942 = vpop.f32.mrf.mxu0
      %4943 = vmatprep.mubr.f32.mxu0 %v4852
      %4944 = vmatmul.mubr.f32.gmra.mxu0 %v4785
      %v4945 = vpop.f32.mrf.mxu0
      %v4946 = vadd.f32 %v4818, %v4945
      %v4947 = vpop.f32.mrf.mxu0
      %4948 = vmatprep.mubr.f32.mxu0 %v4855
      %4949 = vmatmul.mubr.f32.gmra.mxu0 %v4787
      %v4950 = vpop.f32.mrf.mxu0
      %v4951 = vadd.f32 %v4823, %v4950
      %v4952 = vpop.f32.mrf.mxu0
      %4953 = vmatprep.mubr.f32.mxu0 %v4858
      %4954 = vmatmul.mubr.f32.gmra.mxu0 %v4789
      %v4955 = vpop.f32.mrf.mxu0
      %v4956 = vadd.f32 %v4828, %v4955
      %v4957 = vpop.f32.mrf.mxu0
      %4958 = vmatprep.mubr.f32.mxu0 %v4861
      %4959 = vmatmul.mubr.f32.gmra.mxu0 %v4791
      %v4960 = vpop.f32.mrf.mxu0
      %v4961 = vadd.f32 %v4833, %v4960
      %v4962 = vpop.f32.mrf.mxu0
      %4963 = vmatprep.mubr.f32.mxu0 %v4864
      %4964 = vmatmul.mubr.f32.gmra.mxu0 %v4793
      %v4965 = vpop.f32.mrf.mxu0
      %v4966 = vadd.f32 %v4838, %v4965
      %v4967 = vpop.f32.mrf.mxu0
      %4968 = vmatprep.mubr.f32.mxu0 %v4867
      %4969 = vmatmul.mubr.f32.gmra.mxu0 %v4795
      %v4970 = vpop.f32.mrf.mxu0
      %v4971 = vadd.f32 %v4843, %v4970
      %v4972 = vpop.f32.mrf.mxu0
      %4973 = vdwg.mxu0
      %vm4974 = vcmp.ge.f32.partialorder %v4936, 0.0
      %vm4975 = vcmp.ge.f32.partialorder %v4941, 0.0
      %vm4976 = vcmp.ge.f32.partialorder %v4946, 0.0
      %vm4977 = vcmp.ge.f32.partialorder %v4951, 0.0
      %vm4978 = vcmp.ge.f32.partialorder %v4956, 0.0
      %vm4979 = vcmp.ge.f32.partialorder %v4961, 0.0
      %vm4980 = vcmp.ge.f32.partialorder %v4966, 0.0
      %vm4981 = vcmp.ge.f32.partialorder %v4971, 0.0
      %v4982 = vmul.f32 %v4936, 0.01
      %v4983 = vmul.f32 %v4941, 0.01
      %v4984 = vmul.f32 %v4946, 0.01
      %v4985 = vmul.f32 %v4951, 0.01
      %v4986 = vmul.f32 %v4956, 0.01
      %v4987 = vmul.f32 %v4961, 0.01
      %v4988 = vmul.f32 %v4966, 0.01
      %v4989 = vmul.f32 %v4971, 0.01
      %v4990 = vsel %vm4974, %v4936, %v4982
      %v4991 = vsel %vm4975, %v4941, %v4983
      %v4992 = vsel %vm4976, %v4946, %v4984
      %v4993 = vsel %vm4977, %v4951, %v4985
      %v4994 = vsel %vm4978, %v4956, %v4986
      %v4995 = vsel %vm4979, %v4961, %v4987
      %v4996 = vsel %vm4980, %v4966, %v4988
      %v4997 = vsel %vm4981, %v4971, %v4989
      %v4999 = vsel %vm1194, %v4990, 0
      %v5002 = vsel %vm1194, %v4991, 0
      %v5005 = vsel %vm1194, %v4992, 0
      %v5008 = vsel %vm1194, %v4993, 0
      %v5011 = vsel %vm1194, %v4994, 0
      %v5014 = vsel %vm1194, %v4995, 0
      %v5017 = vsel %vm1194, %v4996, 0
      %v5020 = vsel %vm1194, %v4997, 0
      %5022 = vmatprep.subr.mxu0 0.0
      %5023 = vmatpush1.msra.mxu0 0.0
      %5024 = vmatprep.subr.mxu0 0.0
      %5025 = vmatpush1.msra.mxu0 0.0
      %5026 = vmatprep.subr.mxu0 0.0
      %5027 = vmatpush1.msra.mxu0 0.0
      %5028 = vmatprep.subr.mxu0 0.0
      %5029 = vmatpush1.msra.mxu0 0.0
      %5030 = vmatprep.subr.mxu0 0.0
      %5031 = vmatpush1.msra.mxu0 0.0
      %5032 = vmatprep.subr.mxu0 0.0
      %5033 = vmatpush1.msra.mxu0 0.0
      %5034 = vmatprep.subr.mxu0 0.0
      %5035 = vmatpush1.msra.mxu0 0.0
      %5036 = vmatprep.subr.mxu0 0.0
      %5037 = vmatpush1.msra.mxu0 0.0
      %5038 = vmatprep.subr.mxu0 0.0
      %5039 = vmatpush1.msra.mxu0 %v1209
      %5040 = vmatprep.subr.mxu0 0.0
      %5041 = vmatpush1.msra.mxu0 %v994
      %5042 = vmatprep.subr.mxu0 0.0
      %5043 = vmatpush1.msra.mxu0 %v993
      %5044 = vmatprep.subr.mxu0 0.0
      %5045 = vmatpush1.msra.mxu0 %v992
      %5046 = vmatprep.subr.mxu0 0.0
      %5047 = vmatpush1.msra.mxu0 %v991
      %5048 = vmatprep.subr.mxu0 0.0
      %5049 = vmatpush1.msra.mxu0 %v990
      %5050 = vmatprep.subr.mxu0 0.0
      %5051 = vmatpush1.msra.mxu0 %v989
      %5052 = vmatprep.subr.mxu0 0.0
      %5053 = vmatpush1.msra.mxu0 %v988
      %5054 = vmatprep.subr.mxu0 0.0
      %5055 = vmatpush2.msra.mxu0 0.0
      %5056 = vmatprep.subr.mxu0 0.0
      %5057 = vmatpush2.msra.mxu0 0.0
      %5058 = vmatprep.subr.mxu0 0.0
      %5059 = vmatpush2.msra.mxu0 0.0
      %5060 = vmatprep.subr.mxu0 0.0
      %5061 = vmatpush2.msra.mxu0 0.0
      %5062 = vmatprep.subr.mxu0 0.0
      %5063 = vmatpush2.msra.mxu0 0.0
      %5064 = vmatprep.subr.mxu0 0.0
      %5065 = vmatpush2.msra.mxu0 0.0
      %5066 = vmatprep.subr.mxu0 0.0
      %5067 = vmatpush2.msra.mxu0 0.0
      %5068 = vmatprep.subr.mxu0 0.0
      %5069 = vmatpush2.msra.mxu0 0.0
      %5070 = vmatprep.subr.mxu0 0.0
      %5071 = vmatpush2.msra.mxu0 0.0
      %5072 = vmatprep.subr.mxu0 0.0
      %5073 = vmatpush2.msra.mxu0 0.0
      %5074 = vmatprep.subr.mxu0 0.0
      %5075 = vmatpush2.msra.mxu0 0.0
      %5076 = vmatprep.subr.mxu0 0.0
      %5077 = vmatpush2.msra.mxu0 0.0
      %5078 = vmatprep.subr.mxu0 0.0
      %5079 = vmatpush2.msra.mxu0 0.0
      %5080 = vmatprep.subr.mxu0 0.0
      %5081 = vmatpush2.msra.mxu0 0.0
      %5082 = vmatprep.subr.mxu0 0.0
      %5083 = vmatpush2.msra.mxu0 0.0
      %5084 = vmatprep.subr.mxu0 0.0
      %5085 = vmatpush2.msra.mxu0 0.0
      %5086 = vmatprep.mubr.f32.mxu0 0.0
      %5087 = vmatmul.mubr.f32.gmra.mxu0 %v4999
      %v5088 = vpop.f32.mrf.mxu0
      %v5089 = vadd.f32 0.0, %v5088
      %v5090 = vpop.f32.mrf.mxu0
      %5091 = vmatprep.mubr.f32.mxu0 0.0
      %5092 = vmatmul.mubr.f32.gmra.mxu0 %v5002
      %v5093 = vpop.f32.mrf.mxu0
      %v5094 = vadd.f32 0.0, %v5093
      %v5095 = vpop.f32.mrf.mxu0
      %5096 = vmatprep.mubr.f32.mxu0 0.0
      %5097 = vmatmul.mubr.f32.gmra.mxu0 %v5005
      %v5098 = vpop.f32.mrf.mxu0
      %v5099 = vadd.f32 0.0, %v5098
      %v5100 = vpop.f32.mrf.mxu0
      %5101 = vmatprep.mubr.f32.mxu0 0.0
      %5102 = vmatmul.mubr.f32.gmra.mxu0 %v5008
      %v5103 = vpop.f32.mrf.mxu0
      %v5104 = vadd.f32 0.0, %v5103
      %v5105 = vpop.f32.mrf.mxu0
      %5106 = vmatprep.mubr.f32.mxu0 0.0
      %5107 = vmatmul.mubr.f32.gmra.mxu0 %v5011
      %v5108 = vpop.f32.mrf.mxu0
      %v5109 = vadd.f32 0.0, %v5108
      %v5110 = vpop.f32.mrf.mxu0
      %5111 = vmatprep.mubr.f32.mxu0 0.0
      %5112 = vmatmul.mubr.f32.gmra.mxu0 %v5014
      %v5113 = vpop.f32.mrf.mxu0
      %v5114 = vadd.f32 0.0, %v5113
      %v5115 = vpop.f32.mrf.mxu0
      %5116 = vmatprep.mubr.f32.mxu0 0.0
      %5117 = vmatmul.mubr.f32.gmra.mxu0 %v5017
      %v5118 = vpop.f32.mrf.mxu0
      %v5119 = vadd.f32 0.0, %v5118
      %v5120 = vpop.f32.mrf.mxu0
      %5121 = vmatprep.mubr.f32.mxu0 0.0
      %5122 = vmatmul.mubr.f32.gmra.mxu0 %v5020
      %v5123 = vpop.f32.mrf.mxu0
      %v5124 = vadd.f32 0.0, %v5123
      %v5125 = vpop.f32.mrf.mxu0
      %5126 = vdwg.mxu0
      %5127 = vmatprep.subr.mxu0 0.0
      %5128 = vmatpush1.msra.mxu0 0.0
      %5129 = vmatprep.subr.mxu0 0.0
      %5130 = vmatpush1.msra.mxu0 0.0
      %5131 = vmatprep.subr.mxu0 0.0
      %5132 = vmatpush1.msra.mxu0 0.0
      %5133 = vmatprep.subr.mxu0 0.0
      %5134 = vmatpush1.msra.mxu0 0.0
      %5135 = vmatprep.subr.mxu0 0.0
      %5136 = vmatpush1.msra.mxu0 0.0
      %5137 = vmatprep.subr.mxu0 0.0
      %5138 = vmatpush1.msra.mxu0 0.0
      %5139 = vmatprep.subr.mxu0 0.0
      %5140 = vmatpush1.msra.mxu0 0.0
      %5141 = vmatprep.subr.mxu0 0.0
      %5142 = vmatpush1.msra.mxu0 0.0
      %5143 = vmatprep.subr.mxu0 0.0
      %5144 = vmatpush1.msra.mxu0 %v1297
      %5145 = vmatprep.subr.mxu0 0.0
      %5146 = vmatpush1.msra.mxu0 %v1002
      %5147 = vmatprep.subr.mxu0 0.0
      %5148 = vmatpush1.msra.mxu0 %v1001
      %5149 = vmatprep.subr.mxu0 0.0
      %5150 = vmatpush1.msra.mxu0 %v1000
      %5151 = vmatprep.subr.mxu0 0.0
      %5152 = vmatpush1.msra.mxu0 %v999
      %5153 = vmatprep.subr.mxu0 0.0
      %5154 = vmatpush1.msra.mxu0 %v998
      %5155 = vmatprep.subr.mxu0 0.0
      %5156 = vmatpush1.msra.mxu0 %v997
      %5157 = vmatprep.subr.mxu0 0.0
      %5158 = vmatpush1.msra.mxu0 %v996
      %5159 = vmatprep.subr.mxu0 0.0
      %5160 = vmatpush2.msra.mxu0 0.0
      %5161 = vmatprep.subr.mxu0 0.0
      %5162 = vmatpush2.msra.mxu0 0.0
      %5163 = vmatprep.subr.mxu0 0.0
      %5164 = vmatpush2.msra.mxu0 0.0
      %5165 = vmatprep.subr.mxu0 0.0
      %5166 = vmatpush2.msra.mxu0 0.0
      %5167 = vmatprep.subr.mxu0 0.0
      %5168 = vmatpush2.msra.mxu0 0.0
      %5169 = vmatprep.subr.mxu0 0.0
      %5170 = vmatpush2.msra.mxu0 0.0
      %5171 = vmatprep.subr.mxu0 0.0
      %5172 = vmatpush2.msra.mxu0 0.0
      %5173 = vmatprep.subr.mxu0 0.0
      %5174 = vmatpush2.msra.mxu0 0.0
      %5175 = vmatprep.subr.mxu0 0.0
      %5176 = vmatpush2.msra.mxu0 0.0
      %5177 = vmatprep.subr.mxu0 0.0
      %5178 = vmatpush2.msra.mxu0 0.0
      %5179 = vmatprep.subr.mxu0 0.0
      %5180 = vmatpush2.msra.mxu0 0.0
      %5181 = vmatprep.subr.mxu0 0.0
      %5182 = vmatpush2.msra.mxu0 0.0
      %5183 = vmatprep.subr.mxu0 0.0
      %5184 = vmatpush2.msra.mxu0 0.0
      %5185 = vmatprep.subr.mxu0 0.0
      %5186 = vmatpush2.msra.mxu0 0.0
      %5187 = vmatprep.subr.mxu0 0.0
      %5188 = vmatpush2.msra.mxu0 0.0
      %5189 = vmatprep.subr.mxu0 0.0
      %5190 = vmatpush2.msra.mxu0 0.0
      %5191 = vmatprep.mubr.f32.mxu0 0.0
      %5192 = vmatmul.mubr.f32.gmra.mxu0 %v4999
      %v5193 = vpop.f32.mrf.mxu0
      %v5194 = vadd.f32 0.0, %v5193
      %v5195 = vpop.f32.mrf.mxu0
      %5196 = vmatprep.mubr.f32.mxu0 0.0
      %5197 = vmatmul.mubr.f32.gmra.mxu0 %v5002
      %v5198 = vpop.f32.mrf.mxu0
      %v5199 = vadd.f32 0.0, %v5198
      %v5200 = vpop.f32.mrf.mxu0
      %5201 = vmatprep.mubr.f32.mxu0 0.0
      %5202 = vmatmul.mubr.f32.gmra.mxu0 %v5005
      %v5203 = vpop.f32.mrf.mxu0
      %v5204 = vadd.f32 0.0, %v5203
      %v5205 = vpop.f32.mrf.mxu0
      %5206 = vmatprep.mubr.f32.mxu0 0.0
      %5207 = vmatmul.mubr.f32.gmra.mxu0 %v5008
      %v5208 = vpop.f32.mrf.mxu0
      %v5209 = vadd.f32 0.0, %v5208
      %v5210 = vpop.f32.mrf.mxu0
      %5211 = vmatprep.mubr.f32.mxu0 0.0
      %5212 = vmatmul.mubr.f32.gmra.mxu0 %v5011
      %v5213 = vpop.f32.mrf.mxu0
      %v5214 = vadd.f32 0.0, %v5213
      %v5215 = vpop.f32.mrf.mxu0
      %5216 = vmatprep.mubr.f32.mxu0 0.0
      %5217 = vmatmul.mubr.f32.gmra.mxu0 %v5014
      %v5218 = vpop.f32.mrf.mxu0
      %v5219 = vadd.f32 0.0, %v5218
      %v5220 = vpop.f32.mrf.mxu0
      %5221 = vmatprep.mubr.f32.mxu0 0.0
      %5222 = vmatmul.mubr.f32.gmra.mxu0 %v5017
      %v5223 = vpop.f32.mrf.mxu0
      %v5224 = vadd.f32 0.0, %v5223
      %v5225 = vpop.f32.mrf.mxu0
      %5226 = vmatprep.mubr.f32.mxu0 0.0
      %5227 = vmatmul.mubr.f32.gmra.mxu0 %v5020
      %v5228 = vpop.f32.mrf.mxu0
      %v5229 = vadd.f32 0.0, %v5228
      %v5230 = vpop.f32.mrf.mxu0
      %5231 = vdwg.mxu0
      %5232 = vmatprep.subr.mxu0 0.0
      %5233 = vmatpush1.msra.mxu0 0.0
      %5234 = vmatprep.subr.mxu0 0.0
      %5235 = vmatpush1.msra.mxu0 0.0
      %5236 = vmatprep.subr.mxu0 0.0
      %5237 = vmatpush1.msra.mxu0 0.0
      %5238 = vmatprep.subr.mxu0 0.0
      %5239 = vmatpush1.msra.mxu0 0.0
      %5240 = vmatprep.subr.mxu0 0.0
      %5241 = vmatpush1.msra.mxu0 0.0
      %5242 = vmatprep.subr.mxu0 0.0
      %5243 = vmatpush1.msra.mxu0 0.0
      %5244 = vmatprep.subr.mxu0 0.0
      %5245 = vmatpush1.msra.mxu0 0.0
      %5246 = vmatprep.subr.mxu0 0.0
      %5247 = vmatpush1.msra.mxu0 0.0
      %5248 = vmatprep.subr.mxu0 0.0
      %5249 = vmatpush1.msra.mxu0 %v4997
      %5250 = vmatprep.subr.mxu0 0.0
      %5251 = vmatpush1.msra.mxu0 %v4996
      %5252 = vmatprep.subr.mxu0 0.0
      %5253 = vmatpush1.msra.mxu0 %v4995
      %5254 = vmatprep.subr.mxu0 0.0
      %5255 = vmatpush1.msra.mxu0 %v4994
      %5256 = vmatprep.subr.mxu0 0.0
      %5257 = vmatpush1.msra.mxu0 %v4993
      %5258 = vmatprep.subr.mxu0 0.0
      %5259 = vmatpush1.msra.mxu0 %v4992
      %5260 = vmatprep.subr.mxu0 0.0
      %5261 = vmatpush1.msra.mxu0 %v4991
      %5262 = vmatprep.subr.mxu0 0.0
      %5263 = vmatpush1.msra.mxu0 %v4990
      %5264 = vmatprep.subr.mxu0 0.0
      %5265 = vmatpush2.msra.mxu0 0.0
      %5266 = vmatprep.subr.mxu0 0.0
      %5267 = vmatpush2.msra.mxu0 0.0
      %5268 = vmatprep.subr.mxu0 0.0
      %5269 = vmatpush2.msra.mxu0 0.0
      %5270 = vmatprep.subr.mxu0 0.0
      %5271 = vmatpush2.msra.mxu0 0.0
      %5272 = vmatprep.subr.mxu0 0.0
      %5273 = vmatpush2.msra.mxu0 0.0
      %5274 = vmatprep.subr.mxu0 0.0
      %5275 = vmatpush2.msra.mxu0 0.0
      %5276 = vmatprep.subr.mxu0 0.0
      %5277 = vmatpush2.msra.mxu0 0.0
      %5278 = vmatprep.subr.mxu0 0.0
      %5279 = vmatpush2.msra.mxu0 0.0
      %5280 = vmatprep.subr.mxu0 0.0
      %5281 = vmatpush2.msra.mxu0 0.0
      %5282 = vmatprep.subr.mxu0 0.0
      %5283 = vmatpush2.msra.mxu0 0.0
      %5284 = vmatprep.subr.mxu0 0.0
      %5285 = vmatpush2.msra.mxu0 0.0
      %5286 = vmatprep.subr.mxu0 0.0
      %5287 = vmatpush2.msra.mxu0 0.0
      %5288 = vmatprep.subr.mxu0 0.0
      %5289 = vmatpush2.msra.mxu0 0.0
      %5290 = vmatprep.subr.mxu0 0.0
      %5291 = vmatpush2.msra.mxu0 0.0
      %5292 = vmatprep.subr.mxu0 0.0
      %5293 = vmatpush2.msra.mxu0 0.0
      %5294 = vmatprep.subr.mxu0 0.0
      %5295 = vmatpush2.msra.mxu0 0.0
      %5296 = vmatprep.mubr.f32.mxu0 0.0
      %5297 = vmatmul.mubr.f32.gmra.mxu0 %v1838
      %v5298 = vpop.f32.mrf.mxu0
      %v5299 = vadd.f32 0.0, %v5298
      %v5300 = vpop.f32.mrf.mxu0
      %5301 = vmatprep.mubr.f32.mxu0 0.0
      %5302 = vmatmul.mubr.f32.gmra.mxu0 %v1841
      %v5303 = vpop.f32.mrf.mxu0
      %v5304 = vadd.f32 0.0, %v5303
      %v5305 = vpop.f32.mrf.mxu0
      %5306 = vmatprep.mubr.f32.mxu0 0.0
      %5307 = vmatmul.mubr.f32.gmra.mxu0 %v1844
      %v5308 = vpop.f32.mrf.mxu0
      %v5309 = vadd.f32 0.0, %v5308
      %v5310 = vpop.f32.mrf.mxu0
      %5311 = vmatprep.mubr.f32.mxu0 0.0
      %5312 = vmatmul.mubr.f32.gmra.mxu0 %v1847
      %v5313 = vpop.f32.mrf.mxu0
      %v5314 = vadd.f32 0.0, %v5313
      %v5315 = vpop.f32.mrf.mxu0
      %5316 = vmatprep.mubr.f32.mxu0 0.0
      %5317 = vmatmul.mubr.f32.gmra.mxu0 %v1850
      %v5318 = vpop.f32.mrf.mxu0
      %v5319 = vadd.f32 0.0, %v5318
      %v5320 = vpop.f32.mrf.mxu0
      %5321 = vmatprep.mubr.f32.mxu0 0.0
      %5322 = vmatmul.mubr.f32.gmra.mxu0 %v1853
      %v5323 = vpop.f32.mrf.mxu0
      %v5324 = vadd.f32 0.0, %v5323
      %v5325 = vpop.f32.mrf.mxu0
      %5326 = vmatprep.mubr.f32.mxu0 0.0
      %5327 = vmatmul.mubr.f32.gmra.mxu0 %v1856
      %v5328 = vpop.f32.mrf.mxu0
      %v5329 = vadd.f32 0.0, %v5328
      %v5330 = vpop.f32.mrf.mxu0
      %5331 = vmatprep.mubr.f32.mxu0 0.0
      %5332 = vmatmul.mubr.f32.gmra.mxu0 %v1859
      %v5333 = vpop.f32.mrf.mxu0
      %v5334 = vadd.f32 0.0, %v5333
      %v5335 = vpop.f32.mrf.mxu0
      %5336 = vdwg.mxu0
      %v5338 = vsel %vm1194, %v5299, 0
      %v5341 = vsel %vm1194, %v5304, 0
      %v5344 = vsel %vm1194, %v5309, 0
      %v5347 = vsel %vm1194, %v5314, 0
      %v5350 = vsel %vm1194, %v5319, 0
      %v5353 = vsel %vm1194, %v5324, 0
      %v5356 = vsel %vm1194, %v5329, 0
      %v5359 = vsel %vm1194, %v5334, 0
      %5361 = vmatprep.subr.mxu0 0.0
      %5362 = vmatpush1.msra.mxu0 0.0
      %5363 = vmatprep.subr.mxu0 0.0
      %5364 = vmatpush1.msra.mxu0 0.0
      %5365 = vmatprep.subr.mxu0 0.0
      %5366 = vmatpush1.msra.mxu0 0.0
      %5367 = vmatprep.subr.mxu0 0.0
      %5368 = vmatpush1.msra.mxu0 0.0
      %5369 = vmatprep.subr.mxu0 0.0
      %5370 = vmatpush1.msra.mxu0 0.0
      %5371 = vmatprep.subr.mxu0 0.0
      %5372 = vmatpush1.msra.mxu0 0.0
      %5373 = vmatprep.subr.mxu0 0.0
      %5374 = vmatpush1.msra.mxu0 0.0
      %5375 = vmatprep.subr.mxu0 0.0
      %5376 = vmatpush1.msra.mxu0 0.0
      %5377 = vmatprep.subr.mxu0 0.0
      %5378 = vmatpush1.msra.mxu0 %v1209
      %5379 = vmatprep.subr.mxu0 0.0
      %5380 = vmatpush1.msra.mxu0 %v994
      %5381 = vmatprep.subr.mxu0 0.0
      %5382 = vmatpush1.msra.mxu0 %v993
      %5383 = vmatprep.subr.mxu0 0.0
      %5384 = vmatpush1.msra.mxu0 %v992
      %5385 = vmatprep.subr.mxu0 0.0
      %5386 = vmatpush1.msra.mxu0 %v991
      %5387 = vmatprep.subr.mxu0 0.0
      %5388 = vmatpush1.msra.mxu0 %v990
      %5389 = vmatprep.subr.mxu0 0.0
      %5390 = vmatpush1.msra.mxu0 %v989
      %5391 = vmatprep.subr.mxu0 0.0
      %5392 = vmatpush1.msra.mxu0 %v988
      %5393 = vmatprep.subr.mxu0 0.0
      %5394 = vmatpush2.msra.mxu0 0.0
      %5395 = vmatprep.subr.mxu0 0.0
      %5396 = vmatpush2.msra.mxu0 0.0
      %5397 = vmatprep.subr.mxu0 0.0
      %5398 = vmatpush2.msra.mxu0 0.0
      %5399 = vmatprep.subr.mxu0 0.0
      %5400 = vmatpush2.msra.mxu0 0.0
      %5401 = vmatprep.subr.mxu0 0.0
      %5402 = vmatpush2.msra.mxu0 0.0
      %5403 = vmatprep.subr.mxu0 0.0
      %5404 = vmatpush2.msra.mxu0 0.0
      %5405 = vmatprep.subr.mxu0 0.0
      %5406 = vmatpush2.msra.mxu0 0.0
      %5407 = vmatprep.subr.mxu0 0.0
      %5408 = vmatpush2.msra.mxu0 0.0
      %5409 = vmatprep.subr.mxu0 0.0
      %5410 = vmatpush2.msra.mxu0 0.0
      %5411 = vmatprep.subr.mxu0 0.0
      %5412 = vmatpush2.msra.mxu0 0.0
      %5413 = vmatprep.subr.mxu0 0.0
      %5414 = vmatpush2.msra.mxu0 0.0
      %5415 = vmatprep.subr.mxu0 0.0
      %5416 = vmatpush2.msra.mxu0 0.0
      %5417 = vmatprep.subr.mxu0 0.0
      %5418 = vmatpush2.msra.mxu0 0.0
      %5419 = vmatprep.subr.mxu0 0.0
      %5420 = vmatpush2.msra.mxu0 0.0
      %5421 = vmatprep.subr.mxu0 0.0
      %5422 = vmatpush2.msra.mxu0 0.0
      %5423 = vmatprep.subr.mxu0 0.0
      %5424 = vmatpush2.msra.mxu0 0.0
      %5425 = vmatprep.mubr.f32.mxu0 0.0
      %5426 = vmatmul.mubr.f32.gmra.mxu0 %v5338
      %v5427 = vpop.f32.mrf.mxu0
      %v5428 = vadd.f32 0.0, %v5427
      %v5429 = vpop.f32.mrf.mxu0
      %5430 = vmatprep.mubr.f32.mxu0 0.0
      %5431 = vmatmul.mubr.f32.gmra.mxu0 %v5341
      %v5432 = vpop.f32.mrf.mxu0
      %v5433 = vadd.f32 0.0, %v5432
      %v5434 = vpop.f32.mrf.mxu0
      %5435 = vmatprep.mubr.f32.mxu0 0.0
      %5436 = vmatmul.mubr.f32.gmra.mxu0 %v5344
      %v5437 = vpop.f32.mrf.mxu0
      %v5438 = vadd.f32 0.0, %v5437
      %v5439 = vpop.f32.mrf.mxu0
      %5440 = vmatprep.mubr.f32.mxu0 0.0
      %5441 = vmatmul.mubr.f32.gmra.mxu0 %v5347
      %v5442 = vpop.f32.mrf.mxu0
      %v5443 = vadd.f32 0.0, %v5442
      %v5444 = vpop.f32.mrf.mxu0
      %5445 = vmatprep.mubr.f32.mxu0 0.0
      %5446 = vmatmul.mubr.f32.gmra.mxu0 %v5350
      %v5447 = vpop.f32.mrf.mxu0
      %v5448 = vadd.f32 0.0, %v5447
      %v5449 = vpop.f32.mrf.mxu0
      %5450 = vmatprep.mubr.f32.mxu0 0.0
      %5451 = vmatmul.mubr.f32.gmra.mxu0 %v5353
      %v5452 = vpop.f32.mrf.mxu0
      %v5453 = vadd.f32 0.0, %v5452
      %v5454 = vpop.f32.mrf.mxu0
      %5455 = vmatprep.mubr.f32.mxu0 0.0
      %5456 = vmatmul.mubr.f32.gmra.mxu0 %v5356
      %v5457 = vpop.f32.mrf.mxu0
      %v5458 = vadd.f32 0.0, %v5457
      %v5459 = vpop.f32.mrf.mxu0
      %5460 = vmatprep.mubr.f32.mxu0 0.0
      %5461 = vmatmul.mubr.f32.gmra.mxu0 %v5359
      %v5462 = vpop.f32.mrf.mxu0
      %v5463 = vadd.f32 0.0, %v5462
      %v5464 = vpop.f32.mrf.mxu0
      %5465 = vdwg.mxu0
      %5466 = vmatprep.subr.mxu0 0.0
      %5467 = vmatpush1.msra.mxu0 0.0
      %5468 = vmatprep.subr.mxu0 0.0
      %5469 = vmatpush1.msra.mxu0 0.0
      %5470 = vmatprep.subr.mxu0 0.0
      %5471 = vmatpush1.msra.mxu0 0.0
      %5472 = vmatprep.subr.mxu0 0.0
      %5473 = vmatpush1.msra.mxu0 0.0
      %5474 = vmatprep.subr.mxu0 0.0
      %5475 = vmatpush1.msra.mxu0 0.0
      %5476 = vmatprep.subr.mxu0 0.0
      %5477 = vmatpush1.msra.mxu0 0.0
      %5478 = vmatprep.subr.mxu0 0.0
      %5479 = vmatpush1.msra.mxu0 0.0
      %5480 = vmatprep.subr.mxu0 0.0
      %5481 = vmatpush1.msra.mxu0 0.0
      %5482 = vmatprep.subr.mxu0 0.0
      %5483 = vmatpush1.msra.mxu0 %v1297
      %5484 = vmatprep.subr.mxu0 0.0
      %5485 = vmatpush1.msra.mxu0 %v1002
      %5486 = vmatprep.subr.mxu0 0.0
      %5487 = vmatpush1.msra.mxu0 %v1001
      %5488 = vmatprep.subr.mxu0 0.0
      %5489 = vmatpush1.msra.mxu0 %v1000
      %5490 = vmatprep.subr.mxu0 0.0
      %5491 = vmatpush1.msra.mxu0 %v999
      %5492 = vmatprep.subr.mxu0 0.0
      %5493 = vmatpush1.msra.mxu0 %v998
      %5494 = vmatprep.subr.mxu0 0.0
      %5495 = vmatpush1.msra.mxu0 %v997
      %5496 = vmatprep.subr.mxu0 0.0
      %5497 = vmatpush1.msra.mxu0 %v996
      %5498 = vmatprep.subr.mxu0 0.0
      %5499 = vmatpush2.msra.mxu0 0.0
      %5500 = vmatprep.subr.mxu0 0.0
      %5501 = vmatpush2.msra.mxu0 0.0
      %5502 = vmatprep.subr.mxu0 0.0
      %5503 = vmatpush2.msra.mxu0 0.0
      %5504 = vmatprep.subr.mxu0 0.0
      %5505 = vmatpush2.msra.mxu0 0.0
      %5506 = vmatprep.subr.mxu0 0.0
      %5507 = vmatpush2.msra.mxu0 0.0
      %5508 = vmatprep.subr.mxu0 0.0
      %5509 = vmatpush2.msra.mxu0 0.0
      %5510 = vmatprep.subr.mxu0 0.0
      %5511 = vmatpush2.msra.mxu0 0.0
      %5512 = vmatprep.subr.mxu0 0.0
      %5513 = vmatpush2.msra.mxu0 0.0
      %5514 = vmatprep.subr.mxu0 0.0
      %5515 = vmatpush2.msra.mxu0 0.0
      %5516 = vmatprep.subr.mxu0 0.0
      %5517 = vmatpush2.msra.mxu0 0.0
      %5518 = vmatprep.subr.mxu0 0.0
      %5519 = vmatpush2.msra.mxu0 0.0
      %5520 = vmatprep.subr.mxu0 0.0
      %5521 = vmatpush2.msra.mxu0 0.0
      %5522 = vmatprep.subr.mxu0 0.0
      %5523 = vmatpush2.msra.mxu0 0.0
      %5524 = vmatprep.subr.mxu0 0.0
      %5525 = vmatpush2.msra.mxu0 0.0
      %5526 = vmatprep.subr.mxu0 0.0
      %5527 = vmatpush2.msra.mxu0 0.0
      %5528 = vmatprep.subr.mxu0 0.0
      %5529 = vmatpush2.msra.mxu0 0.0
      %5530 = vmatprep.mubr.f32.mxu0 0.0
      %5531 = vmatmul.mubr.f32.gmra.mxu0 %v5338
      %v5532 = vpop.f32.mrf.mxu0
      %v5533 = vadd.f32 0.0, %v5532
      %v5534 = vpop.f32.mrf.mxu0
      %5535 = vmatprep.mubr.f32.mxu0 0.0
      %5536 = vmatmul.mubr.f32.gmra.mxu0 %v5341
      %v5537 = vpop.f32.mrf.mxu0
      %v5538 = vadd.f32 0.0, %v5537
      %v5539 = vpop.f32.mrf.mxu0
      %5540 = vmatprep.mubr.f32.mxu0 0.0
      %5541 = vmatmul.mubr.f32.gmra.mxu0 %v5344
      %v5542 = vpop.f32.mrf.mxu0
      %v5543 = vadd.f32 0.0, %v5542
      %v5544 = vpop.f32.mrf.mxu0
      %5545 = vmatprep.mubr.f32.mxu0 0.0
      %5546 = vmatmul.mubr.f32.gmra.mxu0 %v5347
      %v5547 = vpop.f32.mrf.mxu0
      %v5548 = vadd.f32 0.0, %v5547
      %v5549 = vpop.f32.mrf.mxu0
      %5550 = vmatprep.mubr.f32.mxu0 0.0
      %5551 = vmatmul.mubr.f32.gmra.mxu0 %v5350
      %v5552 = vpop.f32.mrf.mxu0
      %v5553 = vadd.f32 0.0, %v5552
      %v5554 = vpop.f32.mrf.mxu0
      %5555 = vmatprep.mubr.f32.mxu0 0.0
      %5556 = vmatmul.mubr.f32.gmra.mxu0 %v5353
      %v5557 = vpop.f32.mrf.mxu0
      %v5558 = vadd.f32 0.0, %v5557
      %v5559 = vpop.f32.mrf.mxu0
      %5560 = vmatprep.mubr.f32.mxu0 0.0
      %5561 = vmatmul.mubr.f32.gmra.mxu0 %v5356
      %v5562 = vpop.f32.mrf.mxu0
      %v5563 = vadd.f32 0.0, %v5562
      %v5564 = vpop.f32.mrf.mxu0
      %5565 = vmatprep.mubr.f32.mxu0 0.0
      %5566 = vmatmul.mubr.f32.gmra.mxu0 %v5359
      %v5567 = vpop.f32.mrf.mxu0
      %v5568 = vadd.f32 0.0, %v5567
      %v5569 = vpop.f32.mrf.mxu0
      %5570 = vdwg.mxu0
      %5571 = vmatprep.subr.mxu0 0.0
      %5572 = vmatpush1.msra.mxu0 0.0
      %5573 = vmatprep.subr.mxu0 0.0
      %5574 = vmatpush1.msra.mxu0 0.0
      %5575 = vmatprep.subr.mxu0 0.0
      %5576 = vmatpush1.msra.mxu0 0.0
      %5577 = vmatprep.subr.mxu0 0.0
      %5578 = vmatpush1.msra.mxu0 0.0
      %5579 = vmatprep.subr.mxu0 0.0
      %5580 = vmatpush1.msra.mxu0 0.0
      %5581 = vmatprep.subr.mxu0 0.0
      %5582 = vmatpush1.msra.mxu0 0.0
      %5583 = vmatprep.subr.mxu0 0.0
      %5584 = vmatpush1.msra.mxu0 0.0
      %5585 = vmatprep.subr.mxu0 0.0
      %5586 = vmatpush1.msra.mxu0 0.0
      %5587 = vmatprep.subr.mxu0 0.0
      %5588 = vmatpush1.msra.mxu0 %v4997
      %5589 = vmatprep.subr.mxu0 0.0
      %5590 = vmatpush1.msra.mxu0 %v4996
      %5591 = vmatprep.subr.mxu0 0.0
      %5592 = vmatpush1.msra.mxu0 %v4995
      %5593 = vmatprep.subr.mxu0 0.0
      %5594 = vmatpush1.msra.mxu0 %v4994
      %5595 = vmatprep.subr.mxu0 0.0
      %5596 = vmatpush1.msra.mxu0 %v4993
      %5597 = vmatprep.subr.mxu0 0.0
      %5598 = vmatpush1.msra.mxu0 %v4992
      %5599 = vmatprep.subr.mxu0 0.0
      %5600 = vmatpush1.msra.mxu0 %v4991
      %5601 = vmatprep.subr.mxu0 0.0
      %5602 = vmatpush1.msra.mxu0 %v4990
      %5603 = vmatprep.subr.mxu0 0.0
      %5604 = vmatpush2.msra.mxu0 0.0
      %5605 = vmatprep.subr.mxu0 0.0
      %5606 = vmatpush2.msra.mxu0 0.0
      %5607 = vmatprep.subr.mxu0 0.0
      %5608 = vmatpush2.msra.mxu0 0.0
      %5609 = vmatprep.subr.mxu0 0.0
      %5610 = vmatpush2.msra.mxu0 0.0
      %5611 = vmatprep.subr.mxu0 0.0
      %5612 = vmatpush2.msra.mxu0 0.0
      %5613 = vmatprep.subr.mxu0 0.0
      %5614 = vmatpush2.msra.mxu0 0.0
      %5615 = vmatprep.subr.mxu0 0.0
      %5616 = vmatpush2.msra.mxu0 0.0
      %5617 = vmatprep.subr.mxu0 0.0
      %5618 = vmatpush2.msra.mxu0 0.0
      %5619 = vmatprep.subr.mxu0 0.0
      %5620 = vmatpush2.msra.mxu0 0.0
      %5621 = vmatprep.subr.mxu0 0.0
      %5622 = vmatpush2.msra.mxu0 0.0
      %5623 = vmatprep.subr.mxu0 0.0
      %5624 = vmatpush2.msra.mxu0 0.0
      %5625 = vmatprep.subr.mxu0 0.0
      %5626 = vmatpush2.msra.mxu0 0.0
      %5627 = vmatprep.subr.mxu0 0.0
      %5628 = vmatpush2.msra.mxu0 0.0
      %5629 = vmatprep.subr.mxu0 0.0
      %5630 = vmatpush2.msra.mxu0 0.0
      %5631 = vmatprep.subr.mxu0 0.0
      %5632 = vmatpush2.msra.mxu0 0.0
      %5633 = vmatprep.subr.mxu0 0.0
      %5634 = vmatpush2.msra.mxu0 0.0
      %5635 = vmatprep.mubr.f32.mxu0 0.0
      %5636 = vmatmul.mubr.f32.gmra.mxu0 %v2210
      %v5637 = vpop.f32.mrf.mxu0
      %v5638 = vadd.f32 0.0, %v5637
      %v5639 = vpop.f32.mrf.mxu0
      %5640 = vmatprep.mubr.f32.mxu0 0.0
      %5641 = vmatmul.mubr.f32.gmra.mxu0 %v2213
      %v5642 = vpop.f32.mrf.mxu0
      %v5643 = vadd.f32 0.0, %v5642
      %v5644 = vpop.f32.mrf.mxu0
      %5645 = vmatprep.mubr.f32.mxu0 0.0
      %5646 = vmatmul.mubr.f32.gmra.mxu0 %v2216
      %v5647 = vpop.f32.mrf.mxu0
      %v5648 = vadd.f32 0.0, %v5647
      %v5649 = vpop.f32.mrf.mxu0
      %5650 = vmatprep.mubr.f32.mxu0 0.0
      %5651 = vmatmul.mubr.f32.gmra.mxu0 %v2219
      %v5652 = vpop.f32.mrf.mxu0
      %v5653 = vadd.f32 0.0, %v5652
      %v5654 = vpop.f32.mrf.mxu0
      %5655 = vmatprep.mubr.f32.mxu0 0.0
      %5656 = vmatmul.mubr.f32.gmra.mxu0 %v2222
      %v5657 = vpop.f32.mrf.mxu0
      %v5658 = vadd.f32 0.0, %v5657
      %v5659 = vpop.f32.mrf.mxu0
      %5660 = vmatprep.mubr.f32.mxu0 0.0
      %5661 = vmatmul.mubr.f32.gmra.mxu0 %v2225
      %v5662 = vpop.f32.mrf.mxu0
      %v5663 = vadd.f32 0.0, %v5662
      %v5664 = vpop.f32.mrf.mxu0
      %5665 = vmatprep.mubr.f32.mxu0 0.0
      %5666 = vmatmul.mubr.f32.gmra.mxu0 %v2228
      %v5667 = vpop.f32.mrf.mxu0
      %v5668 = vadd.f32 0.0, %v5667
      %v5669 = vpop.f32.mrf.mxu0
      %5670 = vmatprep.mubr.f32.mxu0 0.0
      %5671 = vmatmul.mubr.f32.gmra.mxu0 %v2231
      %v5672 = vpop.f32.mrf.mxu0
      %v5673 = vadd.f32 0.0, %v5672
      %v5674 = vpop.f32.mrf.mxu0
      %5675 = vdwg.mxu0
      %v5677 = vsel %vm1194, %v5638, 0
      %v5680 = vsel %vm1194, %v5643, 0
      %v5683 = vsel %vm1194, %v5648, 0
      %v5686 = vsel %vm1194, %v5653, 0
      %v5689 = vsel %vm1194, %v5658, 0
      %v5692 = vsel %vm1194, %v5663, 0
      %v5695 = vsel %vm1194, %v5668, 0
      %v5698 = vsel %vm1194, %v5673, 0
      %5700 = vmatprep.subr.mxu0 0.0
      %5701 = vmatpush1.msra.mxu0 0.0
      %5702 = vmatprep.subr.mxu0 0.0
      %5703 = vmatpush1.msra.mxu0 0.0
      %5704 = vmatprep.subr.mxu0 0.0
      %5705 = vmatpush1.msra.mxu0 0.0
      %5706 = vmatprep.subr.mxu0 0.0
      %5707 = vmatpush1.msra.mxu0 0.0
      %5708 = vmatprep.subr.mxu0 0.0
      %5709 = vmatpush1.msra.mxu0 0.0
      %5710 = vmatprep.subr.mxu0 0.0
      %5711 = vmatpush1.msra.mxu0 0.0
      %5712 = vmatprep.subr.mxu0 0.0
      %5713 = vmatpush1.msra.mxu0 0.0
      %5714 = vmatprep.subr.mxu0 0.0
      %5715 = vmatpush1.msra.mxu0 0.0
      %5716 = vmatprep.subr.mxu0 0.0
      %5717 = vmatpush1.msra.mxu0 %v1209
      %5718 = vmatprep.subr.mxu0 0.0
      %5719 = vmatpush1.msra.mxu0 %v994
      %5720 = vmatprep.subr.mxu0 0.0
      %5721 = vmatpush1.msra.mxu0 %v993
      %5722 = vmatprep.subr.mxu0 0.0
      %5723 = vmatpush1.msra.mxu0 %v992
      %5724 = vmatprep.subr.mxu0 0.0
      %5725 = vmatpush1.msra.mxu0 %v991
      %5726 = vmatprep.subr.mxu0 0.0
      %5727 = vmatpush1.msra.mxu0 %v990
      %5728 = vmatprep.subr.mxu0 0.0
      %5729 = vmatpush1.msra.mxu0 %v989
      %5730 = vmatprep.subr.mxu0 0.0
      %5731 = vmatpush1.msra.mxu0 %v988
      %5732 = vmatprep.subr.mxu0 0.0
      %5733 = vmatpush2.msra.mxu0 0.0
      %5734 = vmatprep.subr.mxu0 0.0
      %5735 = vmatpush2.msra.mxu0 0.0
      %5736 = vmatprep.subr.mxu0 0.0
      %5737 = vmatpush2.msra.mxu0 0.0
      %5738 = vmatprep.subr.mxu0 0.0
      %5739 = vmatpush2.msra.mxu0 0.0
      %5740 = vmatprep.subr.mxu0 0.0
      %5741 = vmatpush2.msra.mxu0 0.0
      %5742 = vmatprep.subr.mxu0 0.0
      %5743 = vmatpush2.msra.mxu0 0.0
      %5744 = vmatprep.subr.mxu0 0.0
      %5745 = vmatpush2.msra.mxu0 0.0
      %5746 = vmatprep.subr.mxu0 0.0
      %5747 = vmatpush2.msra.mxu0 0.0
      %5748 = vmatprep.subr.mxu0 0.0
      %5749 = vmatpush2.msra.mxu0 0.0
      %5750 = vmatprep.subr.mxu0 0.0
      %5751 = vmatpush2.msra.mxu0 0.0
      %5752 = vmatprep.subr.mxu0 0.0
      %5753 = vmatpush2.msra.mxu0 0.0
      %5754 = vmatprep.subr.mxu0 0.0
      %5755 = vmatpush2.msra.mxu0 0.0
      %5756 = vmatprep.subr.mxu0 0.0
      %5757 = vmatpush2.msra.mxu0 0.0
      %5758 = vmatprep.subr.mxu0 0.0
      %5759 = vmatpush2.msra.mxu0 0.0
      %5760 = vmatprep.subr.mxu0 0.0
      %5761 = vmatpush2.msra.mxu0 0.0
      %5762 = vmatprep.subr.mxu0 0.0
      %5763 = vmatpush2.msra.mxu0 0.0
      %5764 = vmatprep.mubr.f32.mxu0 0.0
      %5765 = vmatmul.mubr.f32.gmra.mxu0 %v5677
      %v5766 = vpop.f32.mrf.mxu0
      %v5767 = vadd.f32 0.0, %v5766
      %v5768 = vpop.f32.mrf.mxu0
      %5769 = vmatprep.mubr.f32.mxu0 0.0
      %5770 = vmatmul.mubr.f32.gmra.mxu0 %v5680
      %v5771 = vpop.f32.mrf.mxu0
      %v5772 = vadd.f32 0.0, %v5771
      %v5773 = vpop.f32.mrf.mxu0
      %5774 = vmatprep.mubr.f32.mxu0 0.0
      %5775 = vmatmul.mubr.f32.gmra.mxu0 %v5683
      %v5776 = vpop.f32.mrf.mxu0
      %v5777 = vadd.f32 0.0, %v5776
      %v5778 = vpop.f32.mrf.mxu0
      %5779 = vmatprep.mubr.f32.mxu0 0.0
      %5780 = vmatmul.mubr.f32.gmra.mxu0 %v5686
      %v5781 = vpop.f32.mrf.mxu0
      %v5782 = vadd.f32 0.0, %v5781
      %v5783 = vpop.f32.mrf.mxu0
      %5784 = vmatprep.mubr.f32.mxu0 0.0
      %5785 = vmatmul.mubr.f32.gmra.mxu0 %v5689
      %v5786 = vpop.f32.mrf.mxu0
      %v5787 = vadd.f32 0.0, %v5786
      %v5788 = vpop.f32.mrf.mxu0
      %5789 = vmatprep.mubr.f32.mxu0 0.0
      %5790 = vmatmul.mubr.f32.gmra.mxu0 %v5692
      %v5791 = vpop.f32.mrf.mxu0
      %v5792 = vadd.f32 0.0, %v5791
      %v5793 = vpop.f32.mrf.mxu0
      %5794 = vmatprep.mubr.f32.mxu0 0.0
      %5795 = vmatmul.mubr.f32.gmra.mxu0 %v5695
      %v5796 = vpop.f32.mrf.mxu0
      %v5797 = vadd.f32 0.0, %v5796
      %v5798 = vpop.f32.mrf.mxu0
      %5799 = vmatprep.mubr.f32.mxu0 0.0
      %5800 = vmatmul.mubr.f32.gmra.mxu0 %v5698
      %v5801 = vpop.f32.mrf.mxu0
      %v5802 = vadd.f32 0.0, %v5801
      %v5803 = vpop.f32.mrf.mxu0
      %5804 = vdwg.mxu0
      %5805 = vmatprep.subr.mxu0 0.0
      %5806 = vmatpush1.msra.mxu0 0.0
      %5807 = vmatprep.subr.mxu0 0.0
      %5808 = vmatpush1.msra.mxu0 0.0
      %5809 = vmatprep.subr.mxu0 0.0
      %5810 = vmatpush1.msra.mxu0 0.0
      %5811 = vmatprep.subr.mxu0 0.0
      %5812 = vmatpush1.msra.mxu0 0.0
      %5813 = vmatprep.subr.mxu0 0.0
      %5814 = vmatpush1.msra.mxu0 0.0
      %5815 = vmatprep.subr.mxu0 0.0
      %5816 = vmatpush1.msra.mxu0 0.0
      %5817 = vmatprep.subr.mxu0 0.0
      %5818 = vmatpush1.msra.mxu0 0.0
      %5819 = vmatprep.subr.mxu0 0.0
      %5820 = vmatpush1.msra.mxu0 0.0
      %5821 = vmatprep.subr.mxu0 0.0
      %5822 = vmatpush1.msra.mxu0 %v1297
      %5823 = vmatprep.subr.mxu0 0.0
      %5824 = vmatpush1.msra.mxu0 %v1002
      %5825 = vmatprep.subr.mxu0 0.0
      %5826 = vmatpush1.msra.mxu0 %v1001
      %5827 = vmatprep.subr.mxu0 0.0
      %5828 = vmatpush1.msra.mxu0 %v1000
      %5829 = vmatprep.subr.mxu0 0.0
      %5830 = vmatpush1.msra.mxu0 %v999
      %5831 = vmatprep.subr.mxu0 0.0
      %5832 = vmatpush1.msra.mxu0 %v998
      %5833 = vmatprep.subr.mxu0 0.0
      %5834 = vmatpush1.msra.mxu0 %v997
      %5835 = vmatprep.subr.mxu0 0.0
      %5836 = vmatpush1.msra.mxu0 %v996
      %5837 = vmatprep.subr.mxu0 0.0
      %5838 = vmatpush2.msra.mxu0 0.0
      %5839 = vmatprep.subr.mxu0 0.0
      %5840 = vmatpush2.msra.mxu0 0.0
      %5841 = vmatprep.subr.mxu0 0.0
      %5842 = vmatpush2.msra.mxu0 0.0
      %5843 = vmatprep.subr.mxu0 0.0
      %5844 = vmatpush2.msra.mxu0 0.0
      %5845 = vmatprep.subr.mxu0 0.0
      %5846 = vmatpush2.msra.mxu0 0.0
      %5847 = vmatprep.subr.mxu0 0.0
      %5848 = vmatpush2.msra.mxu0 0.0
      %5849 = vmatprep.subr.mxu0 0.0
      %5850 = vmatpush2.msra.mxu0 0.0
      %5851 = vmatprep.subr.mxu0 0.0
      %5852 = vmatpush2.msra.mxu0 0.0
      %5853 = vmatprep.subr.mxu0 0.0
      %5854 = vmatpush2.msra.mxu0 0.0
      %5855 = vmatprep.subr.mxu0 0.0
      %5856 = vmatpush2.msra.mxu0 0.0
      %5857 = vmatprep.subr.mxu0 0.0
      %5858 = vmatpush2.msra.mxu0 0.0
      %5859 = vmatprep.subr.mxu0 0.0
      %5860 = vmatpush2.msra.mxu0 0.0
      %5861 = vmatprep.subr.mxu0 0.0
      %5862 = vmatpush2.msra.mxu0 0.0
      %5863 = vmatprep.subr.mxu0 0.0
      %5864 = vmatpush2.msra.mxu0 0.0
      %5865 = vmatprep.subr.mxu0 0.0
      %5866 = vmatpush2.msra.mxu0 0.0
      %5867 = vmatprep.subr.mxu0 0.0
      %5868 = vmatpush2.msra.mxu0 0.0
      %5869 = vmatprep.mubr.f32.mxu0 0.0
      %5870 = vmatmul.mubr.f32.gmra.mxu0 %v5677
      %v5871 = vpop.f32.mrf.mxu0
      %v5872 = vadd.f32 0.0, %v5871
      %v5873 = vpop.f32.mrf.mxu0
      %5874 = vmatprep.mubr.f32.mxu0 0.0
      %5875 = vmatmul.mubr.f32.gmra.mxu0 %v5680
      %v5876 = vpop.f32.mrf.mxu0
      %v5877 = vadd.f32 0.0, %v5876
      %v5878 = vpop.f32.mrf.mxu0
      %5879 = vmatprep.mubr.f32.mxu0 0.0
      %5880 = vmatmul.mubr.f32.gmra.mxu0 %v5683
      %v5881 = vpop.f32.mrf.mxu0
      %v5882 = vadd.f32 0.0, %v5881
      %v5883 = vpop.f32.mrf.mxu0
      %5884 = vmatprep.mubr.f32.mxu0 0.0
      %5885 = vmatmul.mubr.f32.gmra.mxu0 %v5686
      %v5886 = vpop.f32.mrf.mxu0
      %v5887 = vadd.f32 0.0, %v5886
      %v5888 = vpop.f32.mrf.mxu0
      %5889 = vmatprep.mubr.f32.mxu0 0.0
      %5890 = vmatmul.mubr.f32.gmra.mxu0 %v5689
      %v5891 = vpop.f32.mrf.mxu0
      %v5892 = vadd.f32 0.0, %v5891
      %v5893 = vpop.f32.mrf.mxu0
      %5894 = vmatprep.mubr.f32.mxu0 0.0
      %5895 = vmatmul.mubr.f32.gmra.mxu0 %v5692
      %v5896 = vpop.f32.mrf.mxu0
      %v5897 = vadd.f32 0.0, %v5896
      %v5898 = vpop.f32.mrf.mxu0
      %5899 = vmatprep.mubr.f32.mxu0 0.0
      %5900 = vmatmul.mubr.f32.gmra.mxu0 %v5695
      %v5901 = vpop.f32.mrf.mxu0
      %v5902 = vadd.f32 0.0, %v5901
      %v5903 = vpop.f32.mrf.mxu0
      %5904 = vmatprep.mubr.f32.mxu0 0.0
      %5905 = vmatmul.mubr.f32.gmra.mxu0 %v5698
      %v5906 = vpop.f32.mrf.mxu0
      %v5907 = vadd.f32 0.0, %v5906
      %v5908 = vpop.f32.mrf.mxu0
      %5909 = vdwg.mxu0
      %v5910 = vld [vmem:[%s43] sm:$0xff]
      %v5911 = vld [vmem:[%s43 + $0x8] sm:$0xff]
      %v5912 = vld [vmem:[%s43 + $0x10] sm:$0xff]
      %v5913 = vld [vmem:[%s43 + $0x18] sm:$0xff]
      %v5914 = vld [vmem:[%s43 + $0x20] sm:$0xff]
      %v5915 = vld [vmem:[%s43 + $0x28] sm:$0xff]
      %v5916 = vld [vmem:[%s43 + $0x30] sm:$0xff]
      %v5917 = vld [vmem:[%s43 + $0x38] sm:$0xff]
      %v5918 = vld [vmem:[%s43 + $0x40] sm:$0xff]
      %v5919 = vld [vmem:[%s43 + $0x48] sm:$0xff]
      %v5920 = vld [vmem:[%s43 + $0x50] sm:$0xff]
      %v5921 = vld [vmem:[%s43 + $0x58] sm:$0xff]
      %v5922 = vld [vmem:[%s43 + $0x60] sm:$0xff]
      %v5923 = vld [vmem:[%s43 + $0x68] sm:$0xff]
      %v5924 = vld [vmem:[%s43 + $0x70] sm:$0xff]
      %v5925 = vld [vmem:[%s43 + $0x78] sm:$0xff]
      %v5926 = vld [vmem:[%s43 + $0x80] sm:$0xff]
      %v5927 = vld [vmem:[%s43 + $0x88] sm:$0xff]
      %v5928 = vld [vmem:[%s43 + $0x90] sm:$0xff]
      %v5929 = vld [vmem:[%s43 + $0x98] sm:$0xff]
      %v5930 = vld [vmem:[%s43 + $0xa0] sm:$0xff]
      %v5931 = vld [vmem:[%s43 + $0xa8] sm:$0xff]
      %v5932 = vld [vmem:[%s43 + $0xb0] sm:$0xff]
      %v5933 = vld [vmem:[%s43 + $0xb8] sm:$0xff]
      %v5934 = vld [vmem:[%s43 + $0xc0] sm:$0xff]
      %v5935 = vld [vmem:[%s43 + $0xc8] sm:$0xff]
      %v5936 = vld [vmem:[%s43 + $0xd0] sm:$0xff]
      %v5937 = vld [vmem:[%s43 + $0xd8] sm:$0xff]
      %v5938 = vld [vmem:[%s43 + $0xe0] sm:$0xff]
      %v5939 = vld [vmem:[%s43 + $0xe8] sm:$0xff]
      %v5940 = vld [vmem:[%s43 + $0xf0] sm:$0xff]
      %v5941 = vld [vmem:[%s43 + $0xf8] sm:$0xff]
      %v5942 = vld [vmem:[%s43 + $0x100] sm:$0xff]
      %v5943 = vld [vmem:[%s43 + $0x108] sm:$0xff]
      %v5944 = vld [vmem:[%s43 + $0x110] sm:$0xff]
      %v5945 = vld [vmem:[%s43 + $0x118] sm:$0xff]
      %v5946 = vld [vmem:[%s43 + $0x120] sm:$0xff]
      %v5947 = vld [vmem:[%s43 + $0x128] sm:$0xff]
      %v5948 = vld [vmem:[%s43 + $0x130] sm:$0xff]
      %v5949 = vld [vmem:[%s43 + $0x138] sm:$0xff]
      %v5950 = vld [vmem:[%s43 + $0x140] sm:$0xff]
      %v5951 = vld [vmem:[%s43 + $0x148] sm:$0xff]
      %v5952 = vld [vmem:[%s43 + $0x150] sm:$0xff]
      %v5953 = vld [vmem:[%s43 + $0x158] sm:$0xff]
      %v5954 = vld [vmem:[%s43 + $0x160] sm:$0xff]
      %v5955 = vld [vmem:[%s43 + $0x168] sm:$0xff]
      %v5956 = vld [vmem:[%s43 + $0x170] sm:$0xff]
      %v5957 = vld [vmem:[%s43 + $0x178] sm:$0xff]
      %v5958 = vld [vmem:[%s43 + $0x180] sm:$0xff]
      %v5959 = vld [vmem:[%s43 + $0x188] sm:$0xff]
      %v5960 = vld [vmem:[%s43 + $0x190] sm:$0xff]
      %v5961 = vld [vmem:[%s43 + $0x198] sm:$0xff]
      %v5962 = vld [vmem:[%s43 + $0x1a0] sm:$0xff]
      %v5963 = vld [vmem:[%s43 + $0x1a8] sm:$0xff]
      %v5964 = vld [vmem:[%s43 + $0x1b0] sm:$0xff]
      %v5965 = vld [vmem:[%s43 + $0x1b8] sm:$0xff]
      %v5966 = vld [vmem:[%s43 + $0x1c0] sm:$0xff]
      %v5967 = vld [vmem:[%s43 + $0x1c8] sm:$0xff]
      %v5968 = vld [vmem:[%s43 + $0x1d0] sm:$0xff]
      %v5969 = vld [vmem:[%s43 + $0x1d8] sm:$0xff]
      %v5970 = vld [vmem:[%s43 + $0x1e0] sm:$0xff]
      %v5971 = vld [vmem:[%s43 + $0x1e8] sm:$0xff]
      %v5972 = vld [vmem:[%s43 + $0x1f0] sm:$0xff]
      %v5973 = vld [vmem:[%s43 + $0x1f8] sm:$0xff]
      %v5974 = vld [vmem:[%s43 + $0x200] sm:$0xff]
      %v5975 = vld [vmem:[%s43 + $0x208] sm:$0xff]
      %v5976 = vld [vmem:[%s43 + $0x210] sm:$0xff]
      %v5977 = vld [vmem:[%s43 + $0x218] sm:$0xff]
      %v5978 = vld [vmem:[%s43 + $0x220] sm:$0xff]
      %v5979 = vld [vmem:[%s43 + $0x228] sm:$0xff]
      %v5980 = vld [vmem:[%s43 + $0x230] sm:$0xff]
      %v5981 = vld [vmem:[%s43 + $0x238] sm:$0xff]
      %v5982 = vld [vmem:[%s43 + $0x240] sm:$0xff]
      %v5983 = vld [vmem:[%s43 + $0x248] sm:$0xff]
      %v5984 = vld [vmem:[%s43 + $0x250] sm:$0xff]
      %v5985 = vld [vmem:[%s43 + $0x258] sm:$0xff]
      %v5986 = vld [vmem:[%s43 + $0x260] sm:$0xff]
      %v5987 = vld [vmem:[%s43 + $0x268] sm:$0xff]
      %v5988 = vld [vmem:[%s43 + $0x270] sm:$0xff]
      %v5989 = vld [vmem:[%s43 + $0x278] sm:$0xff]
      %v5990 = vld [vmem:[%s45] sm:$0xff]
      %v5991 = vld [vmem:[%s45 + $0x8] sm:$0xff]
      %v5992 = vld [vmem:[%s45 + $0x10] sm:$0xff]
      %v5993 = vld [vmem:[%s45 + $0x18] sm:$0xff]
      %v5994 = vld [vmem:[%s45 + $0x20] sm:$0xff]
      %v5995 = vld [vmem:[%s45 + $0x28] sm:$0xff]
      %v5996 = vld [vmem:[%s45 + $0x30] sm:$0xff]
      %v5997 = vld [vmem:[%s45 + $0x38] sm:$0xff]
      %v5998 = vld [vmem:[%s45 + $0x40] sm:$0xff]
      %v5999 = vld [vmem:[%s45 + $0x48] sm:$0xff]
      %v6000 = vld [vmem:[%s45 + $0x50] sm:$0xff]
      %v6001 = vld [vmem:[%s45 + $0x58] sm:$0xff]
      %v6002 = vld [vmem:[%s45 + $0x60] sm:$0xff]
      %v6003 = vld [vmem:[%s45 + $0x68] sm:$0xff]
      %v6004 = vld [vmem:[%s45 + $0x70] sm:$0xff]
      %v6005 = vld [vmem:[%s45 + $0x78] sm:$0xff]
      %6007 = vset.pattern.permute.xlu0 0
      %6008 = vperm.xlu0 %6007, %v5990
      %v6009 = vpop.permute.xlu0 %6008
      %6012 = vset.pattern.permute.xlu0 0
      %6013 = vperm.xlu0 %6012, %v5991
      %v6014 = vpop.permute.xlu0 %6013
      %6017 = vset.pattern.permute.xlu0 0
      %6018 = vperm.xlu0 %6017, %v5992
      %v6019 = vpop.permute.xlu0 %6018
      %6022 = vset.pattern.permute.xlu0 0
      %6023 = vperm.xlu0 %6022, %v5993
      %v6024 = vpop.permute.xlu0 %6023
      %6027 = vset.pattern.permute.xlu0 0
      %6028 = vperm.xlu0 %6027, %v5994
      %v6029 = vpop.permute.xlu0 %6028
      %6032 = vset.pattern.permute.xlu0 0
      %6033 = vperm.xlu0 %6032, %v5995
      %v6034 = vpop.permute.xlu0 %6033
      %6037 = vset.pattern.permute.xlu0 0
      %6038 = vperm.xlu0 %6037, %v5996
      %v6039 = vpop.permute.xlu0 %6038
      %6042 = vset.pattern.permute.xlu0 0
      %6043 = vperm.xlu0 %6042, %v5997
      %v6044 = vpop.permute.xlu0 %6043
      %6047 = vset.pattern.permute.xlu0 0
      %6048 = vperm.xlu0 %6047, %v5998
      %v6049 = vpop.permute.xlu0 %6048
      %6052 = vset.pattern.permute.xlu0 0
      %6053 = vperm.xlu0 %6052, %v5999
      %v6054 = vpop.permute.xlu0 %6053
      %6057 = vset.pattern.permute.xlu0 0
      %6058 = vperm.xlu0 %6057, %v6000
      %v6059 = vpop.permute.xlu0 %6058
      %6062 = vset.pattern.permute.xlu0 0
      %6063 = vperm.xlu0 %6062, %v6001
      %v6064 = vpop.permute.xlu0 %6063
      %6067 = vset.pattern.permute.xlu0 0
      %6068 = vperm.xlu0 %6067, %v6002
      %v6069 = vpop.permute.xlu0 %6068
      %6072 = vset.pattern.permute.xlu0 0
      %6073 = vperm.xlu0 %6072, %v6003
      %v6074 = vpop.permute.xlu0 %6073
      %6077 = vset.pattern.permute.xlu0 0
      %6078 = vperm.xlu0 %6077, %v6004
      %v6079 = vpop.permute.xlu0 %6078
      %6082 = vset.pattern.permute.xlu0 0
      %6083 = vperm.xlu0 %6082, %v6005
      %v6084 = vpop.permute.xlu0 %6083
      %v6087 = vsel %vm1836, %v5914, 0
      %v6090 = vsel %vm1836, %v5919, 0
      %v6093 = vsel %vm1836, %v5924, 0
      %v6096 = vsel %vm1836, %v5929, 0
      %v6099 = vsel %vm1836, %v5934, 0
      %v6102 = vsel %vm1836, %v5939, 0
      %v6105 = vsel %vm1836, %v5944, 0
      %v6108 = vsel %vm1836, %v5949, 0
      %v6111 = vsel %vm1836, %v5954, 0
      %v6114 = vsel %vm1836, %v5959, 0
      %v6117 = vsel %vm1836, %v5964, 0
      %v6120 = vsel %vm1836, %v5969, 0
      %v6123 = vsel %vm1836, %v5974, 0
      %v6126 = vsel %vm1836, %v5979, 0
      %v6129 = vsel %vm1836, %v5984, 0
      %v6132 = vsel %vm1836, %v5989, 0
      %6134 = vmatprep.subr.mxu0 0.0
      %6135 = vmatpush1.msra.mxu0 %v4997
      %6136 = vmatprep.subr.mxu0 0.0
      %6137 = vmatpush1.msra.mxu0 %v4996
      %6138 = vmatprep.subr.mxu0 0.0
      %6139 = vmatpush1.msra.mxu0 %v4995
      %6140 = vmatprep.subr.mxu0 0.0
      %6141 = vmatpush1.msra.mxu0 %v4994
      %6142 = vmatprep.subr.mxu0 0.0
      %6143 = vmatpush1.msra.mxu0 %v4993
      %6144 = vmatprep.subr.mxu0 0.0
      %6145 = vmatpush1.msra.mxu0 %v4992
      %6146 = vmatprep.subr.mxu0 0.0
      %6147 = vmatpush1.msra.mxu0 %v4991
      %6148 = vmatprep.subr.mxu0 0.0
      %6149 = vmatpush1.msra.mxu0 %v4990
      %6150 = vmatprep.subr.mxu0 0.0
      %6151 = vmatpush1.msra.mxu0 %v5124
      %6152 = vmatprep.subr.mxu0 0.0
      %6153 = vmatpush1.msra.mxu0 %v5119
      %6154 = vmatprep.subr.mxu0 0.0
      %6155 = vmatpush1.msra.mxu0 %v5114
      %6156 = vmatprep.subr.mxu0 0.0
      %6157 = vmatpush1.msra.mxu0 %v5109
      %6158 = vmatprep.subr.mxu0 0.0
      %6159 = vmatpush1.msra.mxu0 %v5104
      %6160 = vmatprep.subr.mxu0 0.0
      %6161 = vmatpush1.msra.mxu0 %v5099
      %6162 = vmatprep.subr.mxu0 0.0
      %6163 = vmatpush1.msra.mxu0 %v5094
      %6164 = vmatprep.subr.mxu0 0.0
      %6165 = vmatpush1.msra.mxu0 %v5089
      %6166 = vmatprep.subr.mxu0 0.0
      %6167 = vmatpush2.msra.mxu0 %v5463
      %6168 = vmatprep.subr.mxu0 0.0
      %6169 = vmatpush2.msra.mxu0 %v5458
      %6170 = vmatprep.subr.mxu0 0.0
      %6171 = vmatpush2.msra.mxu0 %v5453
      %6172 = vmatprep.subr.mxu0 0.0
      %6173 = vmatpush2.msra.mxu0 %v5448
      %6174 = vmatprep.subr.mxu0 0.0
      %6175 = vmatpush2.msra.mxu0 %v5443
      %6176 = vmatprep.subr.mxu0 0.0
      %6177 = vmatpush2.msra.mxu0 %v5438
      %6178 = vmatprep.subr.mxu0 0.0
      %6179 = vmatpush2.msra.mxu0 %v5433
      %6180 = vmatprep.subr.mxu0 0.0
      %6181 = vmatpush2.msra.mxu0 %v5428
      %6182 = vmatprep.subr.mxu0 0.0
      %6183 = vmatpush2.msra.mxu0 %v5229
      %6184 = vmatprep.subr.mxu0 0.0
      %6185 = vmatpush2.msra.mxu0 %v5224
      %6186 = vmatprep.subr.mxu0 0.0
      %6187 = vmatpush2.msra.mxu0 %v5219
      %6188 = vmatprep.subr.mxu0 0.0
      %6189 = vmatpush2.msra.mxu0 %v5214
      %6190 = vmatprep.subr.mxu0 0.0
      %6191 = vmatpush2.msra.mxu0 %v5209
      %6192 = vmatprep.subr.mxu0 0.0
      %6193 = vmatpush2.msra.mxu0 %v5204
      %6194 = vmatprep.subr.mxu0 0.0
      %6195 = vmatpush2.msra.mxu0 %v5199
      %6196 = vmatprep.subr.mxu0 0.0
      %6197 = vmatpush2.msra.mxu0 %v5194
      %6198 = vmatprep.mubr.f32.mxu0 %v5911
      %6199 = vmatmul.mubr.f32.gmra.mxu0 %v5910
      %v6200 = vpop.f32.mrf.mxu0
      %v6201 = vadd.f32 %v6009, %v6200
      %v6202 = vpop.f32.mrf.mxu0
      %6203 = vmatprep.mubr.f32.mxu0 %v5916
      %6204 = vmatmul.mubr.f32.gmra.mxu0 %v5915
      %v6205 = vpop.f32.mrf.mxu0
      %v6206 = vadd.f32 %v6014, %v6205
      %v6207 = vpop.f32.mrf.mxu0
      %6208 = vmatprep.mubr.f32.mxu0 %v5921
      %6209 = vmatmul.mubr.f32.gmra.mxu0 %v5920
      %v6210 = vpop.f32.mrf.mxu0
      %v6211 = vadd.f32 %v6019, %v6210
      %v6212 = vpop.f32.mrf.mxu0
      %6213 = vmatprep.mubr.f32.mxu0 %v5926
      %6214 = vmatmul.mubr.f32.gmra.mxu0 %v5925
      %v6215 = vpop.f32.mrf.mxu0
      %v6216 = vadd.f32 %v6024, %v6215
      %v6217 = vpop.f32.mrf.mxu0
      %6218 = vmatprep.mubr.f32.mxu0 %v5931
      %6219 = vmatmul.mubr.f32.gmra.mxu0 %v5930
      %v6220 = vpop.f32.mrf.mxu0
      %v6221 = vadd.f32 %v6029, %v6220
      %v6222 = vpop.f32.mrf.mxu0
      %6223 = vmatprep.mubr.f32.mxu0 %v5936
      %6224 = vmatmul.mubr.f32.gmra.mxu0 %v5935
      %v6225 = vpop.f32.mrf.mxu0
      %v6226 = vadd.f32 %v6034, %v6225
      %v6227 = vpop.f32.mrf.mxu0
      %6228 = vmatprep.mubr.f32.mxu0 %v5941
      %6229 = vmatmul.mubr.f32.gmra.mxu0 %v5940
      %v6230 = vpop.f32.mrf.mxu0
      %v6231 = vadd.f32 %v6039, %v6230
      %v6232 = vpop.f32.mrf.mxu0
      %6233 = vmatprep.mubr.f32.mxu0 %v5946
      %6234 = vmatmul.mubr.f32.gmra.mxu0 %v5945
      %v6235 = vpop.f32.mrf.mxu0
      %v6236 = vadd.f32 %v6044, %v6235
      %v6237 = vpop.f32.mrf.mxu0
      %6238 = vmatprep.mubr.f32.mxu0 %v5951
      %6239 = vmatmul.mubr.f32.gmra.mxu0 %v5950
      %v6240 = vpop.f32.mrf.mxu0
      %v6241 = vadd.f32 %v6049, %v6240
      %v6242 = vpop.f32.mrf.mxu0
      %6243 = vmatprep.mubr.f32.mxu0 %v5956
      %6244 = vmatmul.mubr.f32.gmra.mxu0 %v5955
      %v6245 = vpop.f32.mrf.mxu0
      %v6246 = vadd.f32 %v6054, %v6245
      %v6247 = vpop.f32.mrf.mxu0
      %6248 = vmatprep.mubr.f32.mxu0 %v5961
      %6249 = vmatmul.mubr.f32.gmra.mxu0 %v5960
      %v6250 = vpop.f32.mrf.mxu0
      %v6251 = vadd.f32 %v6059, %v6250
      %v6252 = vpop.f32.mrf.mxu0
      %6253 = vmatprep.mubr.f32.mxu0 %v5966
      %6254 = vmatmul.mubr.f32.gmra.mxu0 %v5965
      %v6255 = vpop.f32.mrf.mxu0
      %v6256 = vadd.f32 %v6064, %v6255
      %v6257 = vpop.f32.mrf.mxu0
      %6258 = vmatprep.mubr.f32.mxu0 %v5971
      %6259 = vmatmul.mubr.f32.gmra.mxu0 %v5970
      %v6260 = vpop.f32.mrf.mxu0
      %v6261 = vadd.f32 %v6069, %v6260
      %v6262 = vpop.f32.mrf.mxu0
      %6263 = vmatprep.mubr.f32.mxu0 %v5976
      %6264 = vmatmul.mubr.f32.gmra.mxu0 %v5975
      %v6265 = vpop.f32.mrf.mxu0
      %v6266 = vadd.f32 %v6074, %v6265
      %v6267 = vpop.f32.mrf.mxu0
      %6268 = vmatprep.mubr.f32.mxu0 %v5981
      %6269 = vmatmul.mubr.f32.gmra.mxu0 %v5980
      %v6270 = vpop.f32.mrf.mxu0
      %v6271 = vadd.f32 %v6079, %v6270
      %v6272 = vpop.f32.mrf.mxu0
      %6273 = vmatprep.mubr.f32.mxu0 %v5986
      %6274 = vmatmul.mubr.f32.gmra.mxu0 %v5985
      %v6275 = vpop.f32.mrf.mxu0
      %v6276 = vadd.f32 %v6084, %v6275
      %v6277 = vpop.f32.mrf.mxu0
      %6278 = vdwg.mxu0
      %6279 = vmatprep.subr.mxu0 0.0
      %6280 = vmatpush1.msra.mxu0 %v5568
      %6281 = vmatprep.subr.mxu0 0.0
      %6282 = vmatpush1.msra.mxu0 %v5563
      %6283 = vmatprep.subr.mxu0 0.0
      %6284 = vmatpush1.msra.mxu0 %v5558
      %6285 = vmatprep.subr.mxu0 0.0
      %6286 = vmatpush1.msra.mxu0 %v5553
      %6287 = vmatprep.subr.mxu0 0.0
      %6288 = vmatpush1.msra.mxu0 %v5548
      %6289 = vmatprep.subr.mxu0 0.0
      %6290 = vmatpush1.msra.mxu0 %v5543
      %6291 = vmatprep.subr.mxu0 0.0
      %6292 = vmatpush1.msra.mxu0 %v5538
      %6293 = vmatprep.subr.mxu0 0.0
      %6294 = vmatpush1.msra.mxu0 %v5533
      %6295 = vmatprep.subr.mxu0 0.0
      %6296 = vmatpush1.msra.mxu0 %v5334
      %6297 = vmatprep.subr.mxu0 0.0
      %6298 = vmatpush1.msra.mxu0 %v5329
      %6299 = vmatprep.subr.mxu0 0.0
      %6300 = vmatpush1.msra.mxu0 %v5324
      %6301 = vmatprep.subr.mxu0 0.0
      %6302 = vmatpush1.msra.mxu0 %v5319
      %6303 = vmatprep.subr.mxu0 0.0
      %6304 = vmatpush1.msra.mxu0 %v5314
      %6305 = vmatprep.subr.mxu0 0.0
      %6306 = vmatpush1.msra.mxu0 %v5309
      %6307 = vmatprep.subr.mxu0 0.0
      %6308 = vmatpush1.msra.mxu0 %v5304
      %6309 = vmatprep.subr.mxu0 0.0
      %6310 = vmatpush1.msra.mxu0 %v5299
      %6311 = vmatprep.subr.mxu0 0.0
      %6312 = vmatpush2.msra.mxu0 %v5673
      %6313 = vmatprep.subr.mxu0 0.0
      %6314 = vmatpush2.msra.mxu0 %v5668
      %6315 = vmatprep.subr.mxu0 0.0
      %6316 = vmatpush2.msra.mxu0 %v5663
      %6317 = vmatprep.subr.mxu0 0.0
      %6318 = vmatpush2.msra.mxu0 %v5658
      %6319 = vmatprep.subr.mxu0 0.0
      %6320 = vmatpush2.msra.mxu0 %v5653
      %6321 = vmatprep.subr.mxu0 0.0
      %6322 = vmatpush2.msra.mxu0 %v5648
      %6323 = vmatprep.subr.mxu0 0.0
      %6324 = vmatpush2.msra.mxu0 %v5643
      %6325 = vmatprep.subr.mxu0 0.0
      %6326 = vmatpush2.msra.mxu0 %v5638
      %6327 = vmatprep.subr.mxu0 0.0
      %6328 = vmatpush2.msra.mxu0 %v5802
      %6329 = vmatprep.subr.mxu0 0.0
      %6330 = vmatpush2.msra.mxu0 %v5797
      %6331 = vmatprep.subr.mxu0 0.0
      %6332 = vmatpush2.msra.mxu0 %v5792
      %6333 = vmatprep.subr.mxu0 0.0
      %6334 = vmatpush2.msra.mxu0 %v5787
      %6335 = vmatprep.subr.mxu0 0.0
      %6336 = vmatpush2.msra.mxu0 %v5782
      %6337 = vmatprep.subr.mxu0 0.0
      %6338 = vmatpush2.msra.mxu0 %v5777
      %6339 = vmatprep.subr.mxu0 0.0
      %6340 = vmatpush2.msra.mxu0 %v5772
      %6341 = vmatprep.subr.mxu0 0.0
      %6342 = vmatpush2.msra.mxu0 %v5767
      %6343 = vmatprep.mubr.f32.mxu0 %v5913
      %6344 = vmatmul.mubr.f32.gmra.mxu0 %v5912
      %v6345 = vpop.f32.mrf.mxu0
      %v6346 = vadd.f32 %v6201, %v6345
      %v6347 = vpop.f32.mrf.mxu0
      %6348 = vmatprep.mubr.f32.mxu0 %v5918
      %6349 = vmatmul.mubr.f32.gmra.mxu0 %v5917
      %v6350 = vpop.f32.mrf.mxu0
      %v6351 = vadd.f32 %v6206, %v6350
      %v6352 = vpop.f32.mrf.mxu0
      %6353 = vmatprep.mubr.f32.mxu0 %v5923
      %6354 = vmatmul.mubr.f32.gmra.mxu0 %v5922
      %v6355 = vpop.f32.mrf.mxu0
      %v6356 = vadd.f32 %v6211, %v6355
      %v6357 = vpop.f32.mrf.mxu0
      %6358 = vmatprep.mubr.f32.mxu0 %v5928
      %6359 = vmatmul.mubr.f32.gmra.mxu0 %v5927
      %v6360 = vpop.f32.mrf.mxu0
      %v6361 = vadd.f32 %v6216, %v6360
      %v6362 = vpop.f32.mrf.mxu0
      %6363 = vmatprep.mubr.f32.mxu0 %v5933
      %6364 = vmatmul.mubr.f32.gmra.mxu0 %v5932
      %v6365 = vpop.f32.mrf.mxu0
      %v6366 = vadd.f32 %v6221, %v6365
      %v6367 = vpop.f32.mrf.mxu0
      %6368 = vmatprep.mubr.f32.mxu0 %v5938
      %6369 = vmatmul.mubr.f32.gmra.mxu0 %v5937
      %v6370 = vpop.f32.mrf.mxu0
      %v6371 = vadd.f32 %v6226, %v6370
      %v6372 = vpop.f32.mrf.mxu0
      %6373 = vmatprep.mubr.f32.mxu0 %v5943
      %6374 = vmatmul.mubr.f32.gmra.mxu0 %v5942
      %v6375 = vpop.f32.mrf.mxu0
      %v6376 = vadd.f32 %v6231, %v6375
      %v6377 = vpop.f32.mrf.mxu0
      %6378 = vmatprep.mubr.f32.mxu0 %v5948
      %6379 = vmatmul.mubr.f32.gmra.mxu0 %v5947
      %v6380 = vpop.f32.mrf.mxu0
      %v6381 = vadd.f32 %v6236, %v6380
      %v6382 = vpop.f32.mrf.mxu0
      %6383 = vmatprep.mubr.f32.mxu0 %v5953
      %6384 = vmatmul.mubr.f32.gmra.mxu0 %v5952
      %v6385 = vpop.f32.mrf.mxu0
      %v6386 = vadd.f32 %v6241, %v6385
      %v6387 = vpop.f32.mrf.mxu0
      %6388 = vmatprep.mubr.f32.mxu0 %v5958
      %6389 = vmatmul.mubr.f32.gmra.mxu0 %v5957
      %v6390 = vpop.f32.mrf.mxu0
      %v6391 = vadd.f32 %v6246, %v6390
      %v6392 = vpop.f32.mrf.mxu0
      %6393 = vmatprep.mubr.f32.mxu0 %v5963
      %6394 = vmatmul.mubr.f32.gmra.mxu0 %v5962
      %v6395 = vpop.f32.mrf.mxu0
      %v6396 = vadd.f32 %v6251, %v6395
      %v6397 = vpop.f32.mrf.mxu0
      %6398 = vmatprep.mubr.f32.mxu0 %v5968
      %6399 = vmatmul.mubr.f32.gmra.mxu0 %v5967
      %v6400 = vpop.f32.mrf.mxu0
      %v6401 = vadd.f32 %v6256, %v6400
      %v6402 = vpop.f32.mrf.mxu0
      %6403 = vmatprep.mubr.f32.mxu0 %v5973
      %6404 = vmatmul.mubr.f32.gmra.mxu0 %v5972
      %v6405 = vpop.f32.mrf.mxu0
      %v6406 = vadd.f32 %v6261, %v6405
      %v6407 = vpop.f32.mrf.mxu0
      %6408 = vmatprep.mubr.f32.mxu0 %v5978
      %6409 = vmatmul.mubr.f32.gmra.mxu0 %v5977
      %v6410 = vpop.f32.mrf.mxu0
      %v6411 = vadd.f32 %v6266, %v6410
      %v6412 = vpop.f32.mrf.mxu0
      %6413 = vmatprep.mubr.f32.mxu0 %v5983
      %6414 = vmatmul.mubr.f32.gmra.mxu0 %v5982
      %v6415 = vpop.f32.mrf.mxu0
      %v6416 = vadd.f32 %v6271, %v6415
      %v6417 = vpop.f32.mrf.mxu0
      %6418 = vmatprep.mubr.f32.mxu0 %v5988
      %6419 = vmatmul.mubr.f32.gmra.mxu0 %v5987
      %v6420 = vpop.f32.mrf.mxu0
      %v6421 = vadd.f32 %v6276, %v6420
      %v6422 = vpop.f32.mrf.mxu0
      %6423 = vdwg.mxu0
      %6424 = vmatprep.subr.mxu0 0.0
      %6425 = vmatpush1.msra.mxu0 0.0
      %6426 = vmatprep.subr.mxu0 0.0
      %6427 = vmatpush1.msra.mxu0 0.0
      %6428 = vmatprep.subr.mxu0 0.0
      %6429 = vmatpush1.msra.mxu0 0.0
      %6430 = vmatprep.subr.mxu0 0.0
      %6431 = vmatpush1.msra.mxu0 0.0
      %6432 = vmatprep.subr.mxu0 0.0
      %6433 = vmatpush1.msra.mxu0 0.0
      %6434 = vmatprep.subr.mxu0 0.0
      %6435 = vmatpush1.msra.mxu0 0.0
      %6436 = vmatprep.subr.mxu0 0.0
      %6437 = vmatpush1.msra.mxu0 0.0
      %6438 = vmatprep.subr.mxu0 0.0
      %6439 = vmatpush1.msra.mxu0 0.0
      %6440 = vmatprep.subr.mxu0 0.0
      %6441 = vmatpush1.msra.mxu0 %v5907
      %6442 = vmatprep.subr.mxu0 0.0
      %6443 = vmatpush1.msra.mxu0 %v5902
      %6444 = vmatprep.subr.mxu0 0.0
      %6445 = vmatpush1.msra.mxu0 %v5897
      %6446 = vmatprep.subr.mxu0 0.0
      %6447 = vmatpush1.msra.mxu0 %v5892
      %6448 = vmatprep.subr.mxu0 0.0
      %6449 = vmatpush1.msra.mxu0 %v5887
      %6450 = vmatprep.subr.mxu0 0.0
      %6451 = vmatpush1.msra.mxu0 %v5882
      %6452 = vmatprep.subr.mxu0 0.0
      %6453 = vmatpush1.msra.mxu0 %v5877
      %6454 = vmatprep.subr.mxu0 0.0
      %6455 = vmatpush1.msra.mxu0 %v5872
      %6456 = vmatprep.subr.mxu0 0.0
      %6457 = vmatpush2.msra.mxu0 0.0
      %6458 = vmatprep.subr.mxu0 0.0
      %6459 = vmatpush2.msra.mxu0 0.0
      %6460 = vmatprep.subr.mxu0 0.0
      %6461 = vmatpush2.msra.mxu0 0.0
      %6462 = vmatprep.subr.mxu0 0.0
      %6463 = vmatpush2.msra.mxu0 0.0
      %6464 = vmatprep.subr.mxu0 0.0
      %6465 = vmatpush2.msra.mxu0 0.0
      %6466 = vmatprep.subr.mxu0 0.0
      %6467 = vmatpush2.msra.mxu0 0.0
      %6468 = vmatprep.subr.mxu0 0.0
      %6469 = vmatpush2.msra.mxu0 0.0
      %6470 = vmatprep.subr.mxu0 0.0
      %6471 = vmatpush2.msra.mxu0 0.0
      %6472 = vmatprep.subr.mxu0 0.0
      %6473 = vmatpush2.msra.mxu0 0.0
      %6474 = vmatprep.subr.mxu0 0.0
      %6475 = vmatpush2.msra.mxu0 0.0
      %6476 = vmatprep.subr.mxu0 0.0
      %6477 = vmatpush2.msra.mxu0 0.0
      %6478 = vmatprep.subr.mxu0 0.0
      %6479 = vmatpush2.msra.mxu0 0.0
      %6480 = vmatprep.subr.mxu0 0.0
      %6481 = vmatpush2.msra.mxu0 0.0
      %6482 = vmatprep.subr.mxu0 0.0
      %6483 = vmatpush2.msra.mxu0 0.0
      %6484 = vmatprep.subr.mxu0 0.0
      %6485 = vmatpush2.msra.mxu0 0.0
      %6486 = vmatprep.subr.mxu0 0.0
      %6487 = vmatpush2.msra.mxu0 0.0
      %6488 = vmatprep.mubr.f32.mxu0 0.0
      %6489 = vmatmul.mubr.f32.gmra.mxu0 %v6087
      %v6490 = vpop.f32.mrf.mxu0
      %v6491 = vadd.f32 %v6346, %v6490
      %v6492 = vpop.f32.mrf.mxu0
      %6493 = vmatprep.mubr.f32.mxu0 0.0
      %6494 = vmatmul.mubr.f32.gmra.mxu0 %v6090
      %v6495 = vpop.f32.mrf.mxu0
      %v6496 = vadd.f32 %v6351, %v6495
      %v6497 = vpop.f32.mrf.mxu0
      %6498 = vmatprep.mubr.f32.mxu0 0.0
      %6499 = vmatmul.mubr.f32.gmra.mxu0 %v6093
      %v6500 = vpop.f32.mrf.mxu0
      %v6501 = vadd.f32 %v6356, %v6500
      %v6502 = vpop.f32.mrf.mxu0
      %6503 = vmatprep.mubr.f32.mxu0 0.0
      %6504 = vmatmul.mubr.f32.gmra.mxu0 %v6096
      %v6505 = vpop.f32.mrf.mxu0
      %v6506 = vadd.f32 %v6361, %v6505
      %v6507 = vpop.f32.mrf.mxu0
      %6508 = vmatprep.mubr.f32.mxu0 0.0
      %6509 = vmatmul.mubr.f32.gmra.mxu0 %v6099
      %v6510 = vpop.f32.mrf.mxu0
      %v6511 = vadd.f32 %v6366, %v6510
      %v6512 = vpop.f32.mrf.mxu0
      %6513 = vmatprep.mubr.f32.mxu0 0.0
      %6514 = vmatmul.mubr.f32.gmra.mxu0 %v6102
      %v6515 = vpop.f32.mrf.mxu0
      %v6516 = vadd.f32 %v6371, %v6515
      %v6517 = vpop.f32.mrf.mxu0
      %6518 = vmatprep.mubr.f32.mxu0 0.0
      %6519 = vmatmul.mubr.f32.gmra.mxu0 %v6105
      %v6520 = vpop.f32.mrf.mxu0
      %v6521 = vadd.f32 %v6376, %v6520
      %v6522 = vpop.f32.mrf.mxu0
      %6523 = vmatprep.mubr.f32.mxu0 0.0
      %6524 = vmatmul.mubr.f32.gmra.mxu0 %v6108
      %v6525 = vpop.f32.mrf.mxu0
      %v6526 = vadd.f32 %v6381, %v6525
      %v6527 = vpop.f32.mrf.mxu0
      %6528 = vmatprep.mubr.f32.mxu0 0.0
      %6529 = vmatmul.mubr.f32.gmra.mxu0 %v6111
      %v6530 = vpop.f32.mrf.mxu0
      %v6531 = vadd.f32 %v6386, %v6530
      %v6532 = vpop.f32.mrf.mxu0
      %6533 = vmatprep.mubr.f32.mxu0 0.0
      %6534 = vmatmul.mubr.f32.gmra.mxu0 %v6114
      %v6535 = vpop.f32.mrf.mxu0
      %v6536 = vadd.f32 %v6391, %v6535
      %v6537 = vpop.f32.mrf.mxu0
      %6538 = vmatprep.mubr.f32.mxu0 0.0
      %6539 = vmatmul.mubr.f32.gmra.mxu0 %v6117
      %v6540 = vpop.f32.mrf.mxu0
      %v6541 = vadd.f32 %v6396, %v6540
      %v6542 = vpop.f32.mrf.mxu0
      %6543 = vmatprep.mubr.f32.mxu0 0.0
      %6544 = vmatmul.mubr.f32.gmra.mxu0 %v6120
      %v6545 = vpop.f32.mrf.mxu0
      %v6546 = vadd.f32 %v6401, %v6545
      %v6547 = vpop.f32.mrf.mxu0
      %6548 = vmatprep.mubr.f32.mxu0 0.0
      %6549 = vmatmul.mubr.f32.gmra.mxu0 %v6123
      %v6550 = vpop.f32.mrf.mxu0
      %v6551 = vadd.f32 %v6406, %v6550
      %v6552 = vpop.f32.mrf.mxu0
      %6553 = vmatprep.mubr.f32.mxu0 0.0
      %6554 = vmatmul.mubr.f32.gmra.mxu0 %v6126
      %v6555 = vpop.f32.mrf.mxu0
      %v6556 = vadd.f32 %v6411, %v6555
      %v6557 = vpop.f32.mrf.mxu0
      %6558 = vmatprep.mubr.f32.mxu0 0.0
      %6559 = vmatmul.mubr.f32.gmra.mxu0 %v6129
      %v6560 = vpop.f32.mrf.mxu0
      %v6561 = vadd.f32 %v6416, %v6560
      %v6562 = vpop.f32.mrf.mxu0
      %6563 = vmatprep.mubr.f32.mxu0 0.0
      %6564 = vmatmul.mubr.f32.gmra.mxu0 %v6132
      %v6565 = vpop.f32.mrf.mxu0
      %v6566 = vadd.f32 %v6421, %v6565
      %v6567 = vpop.f32.mrf.mxu0
      %6568 = vdwg.mxu0
      %v6569 = vxor.u32 %v6531, 2147483648
      %v6570 = vxor.u32 %v6536, 2147483648
      %v6571 = vxor.u32 %v6541, 2147483648
      %v6572 = vxor.u32 %v6546, 2147483648
      %v6573 = vxor.u32 %v6551, 2147483648
      %v6574 = vxor.u32 %v6556, 2147483648
      %v6575 = vxor.u32 %v6561, 2147483648
      %v6576 = vxor.u32 %v6566, 2147483648
      %v6577 = vmul.f32 %v6569, 1.442695
      %v6578 = vpow.pop %v6577
      %v6579 = vmul.f32 %v6570, 1.442695
      %v6580 = vpow.pop %v6579
      %v6581 = vmul.f32 %v6571, 1.442695
      %v6582 = vpow.pop %v6581
      %v6583 = vmul.f32 %v6572, 1.442695
      %v6584 = vpow.pop %v6583
      %v6585 = vmul.f32 %v6573, 1.442695
      %v6586 = vpow.pop %v6585
      %v6587 = vmul.f32 %v6574, 1.442695
      %v6588 = vpow.pop %v6587
      %v6589 = vmul.f32 %v6575, 1.442695
      %v6590 = vpow.pop %v6589
      %v6591 = vmul.f32 %v6576, 1.442695
      %v6592 = vpow.pop %v6591
      %v6593 = vadd.f32 %v6578, 1.0
      %v6594 = vadd.f32 %v6580, 1.0
      %v6595 = vadd.f32 %v6582, 1.0
      %v6596 = vadd.f32 %v6584, 1.0
      %v6597 = vadd.f32 %v6586, 1.0
      %v6598 = vadd.f32 %v6588, 1.0
      %v6599 = vadd.f32 %v6590, 1.0
      %v6600 = vadd.f32 %v6592, 1.0
      %v6601 = vrcp.pop %v6593
      %v6602 = vmul.f32 1.0, %v6601
      %v6603 = vrcp.pop %v6594
      %v6604 = vmul.f32 1.0, %v6603
      %v6605 = vrcp.pop %v6595
      %v6606 = vmul.f32 1.0, %v6605
      %v6607 = vrcp.pop %v6596
      %v6608 = vmul.f32 1.0, %v6607
      %v6609 = vrcp.pop %v6597
      %v6610 = vmul.f32 1.0, %v6609
      %v6611 = vrcp.pop %v6598
      %v6612 = vmul.f32 1.0, %v6611
      %v6613 = vrcp.pop %v6599
      %v6614 = vmul.f32 1.0, %v6613
      %v6615 = vrcp.pop %v6600
      %v6616 = vmul.f32 1.0, %v6615
      %vm6617 = vcmp.ge.f32.partialorder %v6491, 0.0
      %vm6618 = vcmp.ge.f32.partialorder %v6496, 0.0
      %vm6619 = vcmp.ge.f32.partialorder %v6501, 0.0
      %vm6620 = vcmp.ge.f32.partialorder %v6506, 0.0
      %vm6621 = vcmp.ge.f32.partialorder %v6511, 0.0
      %vm6622 = vcmp.ge.f32.partialorder %v6516, 0.0
      %vm6623 = vcmp.ge.f32.partialorder %v6521, 0.0
      %vm6624 = vcmp.ge.f32.partialorder %v6526, 0.0
      %v6625 = vmul.f32 %v6491, 0.01
      %v6626 = vmul.f32 %v6496, 0.01
      %v6627 = vmul.f32 %v6501, 0.01
      %v6628 = vmul.f32 %v6506, 0.01
      %v6629 = vmul.f32 %v6511, 0.01
      %v6630 = vmul.f32 %v6516, 0.01
      %v6631 = vmul.f32 %v6521, 0.01
      %v6632 = vmul.f32 %v6526, 0.01
      %v6633 = vsel %vm6617, %v6491, %v6625
      %v6634 = vsel %vm6618, %v6496, %v6626
      %v6635 = vsel %vm6619, %v6501, %v6627
      %v6636 = vsel %vm6620, %v6506, %v6628
      %v6637 = vsel %vm6621, %v6511, %v6629
      %v6638 = vsel %vm6622, %v6516, %v6630
      %v6639 = vsel %vm6623, %v6521, %v6631
      %v6640 = vsel %vm6624, %v6526, %v6632
      %v6641 = vmul.f32 %v6602, %v6633
      %v6642 = vmul.f32 %v6604, %v6634
      %v6643 = vmul.f32 %v6606, %v6635
      %v6644 = vmul.f32 %v6608, %v6636
      %v6645 = vmul.f32 %v6610, %v6637
      %v6646 = vmul.f32 %v6612, %v6638
      %v6647 = vmul.f32 %v6614, %v6639
      %v6648 = vmul.f32 %v6616, %v6640
      %v6649 = vadd.f32 %v6641, %v4509
      %v6650 = vadd.f32 %v6642, %v4514
      %v6651 = vadd.f32 %v6643, %v4519
      %v6652 = vadd.f32 %v6644, %v4524
      %v6653 = vadd.f32 %v6645, %v4529
      %v6654 = vadd.f32 %v6646, %v4534
      %v6655 = vadd.f32 %v6647, %v4539
      %v6656 = vadd.f32 %v6648, %v4544
      %v6657 = vld [vmem:[%s47] sm:$0xff]
      %v6658 = vld [vmem:[%s47 + $0x8] sm:$0xff]
      %v6660 = vsel %vm1836, %v6657, 0
      %v6663 = vsel %vm1836, %v6658, 0
      %6665 = vmatprep.subr.mxu0 0.0
      %6666 = vmatpush1.msra.mxu0 0.0
      %6667 = vmatprep.subr.mxu0 0.0
      %6668 = vmatpush1.msra.mxu0 0.0
      %6669 = vmatprep.subr.mxu0 0.0
      %6670 = vmatpush1.msra.mxu0 0.0
      %6671 = vmatprep.subr.mxu0 0.0
      %6672 = vmatpush1.msra.mxu0 0.0
      %6673 = vmatprep.subr.mxu0 0.0
      %6674 = vmatpush1.msra.mxu0 0.0
      %6675 = vmatprep.subr.mxu0 0.0
      %6676 = vmatpush1.msra.mxu0 0.0
      %6677 = vmatprep.subr.mxu0 0.0
      %6678 = vmatpush1.msra.mxu0 0.0
      %6679 = vmatprep.subr.mxu0 0.0
      %6680 = vmatpush1.msra.mxu0 0.0
      %6681 = vmatprep.subr.mxu0 0.0
      %6682 = vmatpush1.msra.mxu0 %v6656
      %6683 = vmatprep.subr.mxu0 0.0
      %6684 = vmatpush1.msra.mxu0 %v6655
      %6685 = vmatprep.subr.mxu0 0.0
      %6686 = vmatpush1.msra.mxu0 %v6654
      %6687 = vmatprep.subr.mxu0 0.0
      %6688 = vmatpush1.msra.mxu0 %v6653
      %6689 = vmatprep.subr.mxu0 0.0
      %6690 = vmatpush1.msra.mxu0 %v6652
      %6691 = vmatprep.subr.mxu0 0.0
      %6692 = vmatpush1.msra.mxu0 %v6651
      %6693 = vmatprep.subr.mxu0 0.0
      %6694 = vmatpush1.msra.mxu0 %v6650
      %6695 = vmatprep.subr.mxu0 0.0
      %6696 = vmatpush1.msra.mxu0 %v6649
      %6697 = vmatprep.subr.mxu0 0.0
      %6698 = vmatpush2.msra.mxu0 0.0
      %6699 = vmatprep.subr.mxu0 0.0
      %6700 = vmatpush2.msra.mxu0 0.0
      %6701 = vmatprep.subr.mxu0 0.0
      %6702 = vmatpush2.msra.mxu0 0.0
      %6703 = vmatprep.subr.mxu0 0.0
      %6704 = vmatpush2.msra.mxu0 0.0
      %6705 = vmatprep.subr.mxu0 0.0
      %6706 = vmatpush2.msra.mxu0 0.0
      %6707 = vmatprep.subr.mxu0 0.0
      %6708 = vmatpush2.msra.mxu0 0.0
      %6709 = vmatprep.subr.mxu0 0.0
      %6710 = vmatpush2.msra.mxu0 0.0
      %6711 = vmatprep.subr.mxu0 0.0
      %6712 = vmatpush2.msra.mxu0 0.0
      %6713 = vmatprep.subr.mxu0 0.0
      %6714 = vmatpush2.msra.mxu0 0.0
      %6715 = vmatprep.subr.mxu0 0.0
      %6716 = vmatpush2.msra.mxu0 0.0
      %6717 = vmatprep.subr.mxu0 0.0
      %6718 = vmatpush2.msra.mxu0 0.0
      %6719 = vmatprep.subr.mxu0 0.0
      %6720 = vmatpush2.msra.mxu0 0.0
      %6721 = vmatprep.subr.mxu0 0.0
      %6722 = vmatpush2.msra.mxu0 0.0
      %6723 = vmatprep.subr.mxu0 0.0
      %6724 = vmatpush2.msra.mxu0 0.0
      %6725 = vmatprep.subr.mxu0 0.0
      %6726 = vmatpush2.msra.mxu0 0.0
      %6727 = vmatprep.subr.mxu0 0.0
      %6728 = vmatpush2.msra.mxu0 0.0
      %6729 = vmatprep.mubr.f32.mxu0 0.0
      %6730 = vmatmul.mubr.f32.gmra.mxu0 %v6660
      %v6731 = vpop.f32.mrf.mxu0
      %v6732 = vadd.f32 0.0, %v6731
      %v6733 = vpop.f32.mrf.mxu0
      %6734 = vmatprep.mubr.f32.mxu0 0.0
      %6735 = vmatmul.mubr.f32.gmra.mxu0 %v6663
      %v6736 = vpop.f32.mrf.mxu0
      %v6737 = vadd.f32 0.0, %v6736
      %v6738 = vpop.f32.mrf.mxu0
      %6739 = vdwg.mxu0
      %6740 = vxpose.xlu0.b32.start [1/16] %v6732, 128
      %6741 = vxpose.xlu0.b32.cont [2/16] %v6737, 128
      %6742 = vxpose.xlu0.b32.cont [3/16] 0.0, 128
      %6743 = vxpose.xlu0.b32.cont [4/16] 0.0, 128
      %6744 = vxpose.xlu0.b32.cont [5/16] 0.0, 128
      %6745 = vxpose.xlu0.b32.cont [6/16] 0.0, 128
      %6746 = vxpose.xlu0.b32.cont [7/16] 0.0, 128
      %6747 = vxpose.xlu0.b32.cont [8/16] 0.0, 128
      %6748 = vxpose.xlu0.b32.cont [9/16] 0.0, 128
      %6749 = vxpose.xlu0.b32.cont [10/16] 0.0, 128
      %6750 = vxpose.xlu0.b32.cont [11/16] 0.0, 128
      %6751 = vxpose.xlu0.b32.cont [12/16] 0.0, 128
      %6752 = vxpose.xlu0.b32.cont [13/16] 0.0, 128
      %6753 = vxpose.xlu0.b32.cont [14/16] 0.0, 128
      %6754 = vxpose.xlu0.b32.cont [15/16] 0.0, 128
      %6755 = vxpose.xlu0.b32.end [16/16] 0.0, 128
      %v6756 = vpop.trf.xlu0
      %v6757 = vpop.trf.xlu0
      %v6758 = vpop.trf.xlu0
      %v6759 = vpop.trf.xlu0
      %v6760 = vpop.trf.xlu0
      %v6761 = vpop.trf.xlu0
      %v6762 = vpop.trf.xlu0
      %v6763 = vpop.trf.xlu0
      %v6764 = vpop.trf.xlu0
      %v6765 = vpop.trf.xlu0
      %v6766 = vpop.trf.xlu0
      %v6767 = vpop.trf.xlu0
      %v6768 = vpop.trf.xlu0
      %v6769 = vpop.trf.xlu0
      %v6770 = vpop.trf.xlu0
      %v6771 = vpop.trf.xlu0
      %v6772 = vld [vmem:[%s49] sm:$0xf]
      %v6774 = vsel %vm1836, %v6772, 0
      %6776 = vmatprep.subr.mxu0 0.0
      %6777 = vmatpush1.msra.mxu0 0.0
      %6778 = vmatprep.subr.mxu0 0.0
      %6779 = vmatpush1.msra.mxu0 0.0
      %6780 = vmatprep.subr.mxu0 0.0
      %6781 = vmatpush1.msra.mxu0 0.0
      %6782 = vmatprep.subr.mxu0 0.0
      %6783 = vmatpush1.msra.mxu0 0.0
      %6784 = vmatprep.subr.mxu0 0.0
      %6785 = vmatpush1.msra.mxu0 0.0
      %6786 = vmatprep.subr.mxu0 0.0
      %6787 = vmatpush1.msra.mxu0 0.0
      %6788 = vmatprep.subr.mxu0 0.0
      %6789 = vmatpush1.msra.mxu0 0.0
      %6790 = vmatprep.subr.mxu0 0.0
      %6791 = vmatpush1.msra.mxu0 0.0
      %6792 = vmatprep.subr.mxu0 0.0
      %6793 = vmatpush1.msra.mxu0 %v6656
      %6794 = vmatprep.subr.mxu0 0.0
      %6795 = vmatpush1.msra.mxu0 %v6655
      %6796 = vmatprep.subr.mxu0 0.0
      %6797 = vmatpush1.msra.mxu0 %v6654
      %6798 = vmatprep.subr.mxu0 0.0
      %6799 = vmatpush1.msra.mxu0 %v6653
      %6800 = vmatprep.subr.mxu0 0.0
      %6801 = vmatpush1.msra.mxu0 %v6652
      %6802 = vmatprep.subr.mxu0 0.0
      %6803 = vmatpush1.msra.mxu0 %v6651
      %6804 = vmatprep.subr.mxu0 0.0
      %6805 = vmatpush1.msra.mxu0 %v6650
      %6806 = vmatprep.subr.mxu0 0.0
      %6807 = vmatpush1.msra.mxu0 %v6649
      %6808 = vmatprep.subr.mxu0 0.0
      %6809 = vmatpush2.msra.mxu0 0.0
      %6810 = vmatprep.subr.mxu0 0.0
      %6811 = vmatpush2.msra.mxu0 0.0
      %6812 = vmatprep.subr.mxu0 0.0
      %6813 = vmatpush2.msra.mxu0 0.0
      %6814 = vmatprep.subr.mxu0 0.0
      %6815 = vmatpush2.msra.mxu0 0.0
      %6816 = vmatprep.subr.mxu0 0.0
      %6817 = vmatpush2.msra.mxu0 0.0
      %6818 = vmatprep.subr.mxu0 0.0
      %6819 = vmatpush2.msra.mxu0 0.0
      %6820 = vmatprep.subr.mxu0 0.0
      %6821 = vmatpush2.msra.mxu0 0.0
      %6822 = vmatprep.subr.mxu0 0.0
      %6823 = vmatpush2.msra.mxu0 0.0
      %6824 = vmatprep.subr.mxu0 0.0
      %6825 = vmatpush2.msra.mxu0 0.0
      %6826 = vmatprep.subr.mxu0 0.0
      %6827 = vmatpush2.msra.mxu0 0.0
      %6828 = vmatprep.subr.mxu0 0.0
      %6829 = vmatpush2.msra.mxu0 0.0
      %6830 = vmatprep.subr.mxu0 0.0
      %6831 = vmatpush2.msra.mxu0 0.0
      %6832 = vmatprep.subr.mxu0 0.0
      %6833 = vmatpush2.msra.mxu0 0.0
      %6834 = vmatprep.subr.mxu0 0.0
      %6835 = vmatpush2.msra.mxu0 0.0
      %6836 = vmatprep.subr.mxu0 0.0
      %6837 = vmatpush2.msra.mxu0 0.0
      %6838 = vmatprep.subr.mxu0 0.0
      %6839 = vmatpush2.msra.mxu0 0.0
      %6840 = vmatprep.mubr.f32.mxu0 0.0
      %6841 = vmatmul.mubr.f32.gmra.mxu0 %v6774
      %v6842 = vpop.f32.mrf.mxu0
      %v6843 = vadd.f32 0.0, %v6842
      %v6844 = vpop.f32.mrf.mxu0
      %6845 = vdwg.mxu0
      %v6846 = vld [vmem:[%s51] sm:$0xff]
      %v6847 = vld [vmem:[%s51 + $0x8] sm:$0xff]
      %v6849 = vsel %vm3510, %v6756, 0
      %v6852 = vsel %vm3510, %v6757, 0
      %v6855 = vsel %vm3510, %v6758, 0
      %v6858 = vsel %vm3510, %v6759, 0
      %v6861 = vsel %vm3510, %v6760, 0
      %v6864 = vsel %vm3510, %v6761, 0
      %v6867 = vsel %vm3510, %v6762, 0
      %v6870 = vsel %vm3510, %v6763, 0
      %6872 = vmatprep.subr.mxu0 0.0
      %6873 = vmatpush1.msra.mxu0 0.0
      %6874 = vmatprep.subr.mxu0 0.0
      %6875 = vmatpush1.msra.mxu0 0.0
      %6876 = vmatprep.subr.mxu0 0.0
      %6877 = vmatpush1.msra.mxu0 0.0
      %6878 = vmatprep.subr.mxu0 0.0
      %6879 = vmatpush1.msra.mxu0 0.0
      %6880 = vmatprep.subr.mxu0 0.0
      %6881 = vmatpush1.msra.mxu0 0.0
      %6882 = vmatprep.subr.mxu0 0.0
      %6883 = vmatpush1.msra.mxu0 0.0
      %6884 = vmatprep.subr.mxu0 0.0
      %6885 = vmatpush1.msra.mxu0 0.0
      %6886 = vmatprep.subr.mxu0 0.0
      %6887 = vmatpush1.msra.mxu0 0.0
      %6888 = vmatprep.subr.mxu0 0.0
      %6889 = vmatpush1.msra.mxu0 0.0
      %6890 = vmatprep.subr.mxu0 0.0
      %6891 = vmatpush1.msra.mxu0 0.0
      %6892 = vmatprep.subr.mxu0 0.0
      %6893 = vmatpush1.msra.mxu0 0.0
      %6894 = vmatprep.subr.mxu0 0.0
      %6895 = vmatpush1.msra.mxu0 0.0
      %6896 = vmatprep.subr.mxu0 0.0
      %6897 = vmatpush1.msra.mxu0 0.0
      %6898 = vmatprep.subr.mxu0 0.0
      %6899 = vmatpush1.msra.mxu0 0.0
      %6900 = vmatprep.subr.mxu0 0.0
      %6901 = vmatpush1.msra.mxu0 %v6847
      %6902 = vmatprep.subr.mxu0 0.0
      %6903 = vmatpush1.msra.mxu0 %v6846
      %6904 = vmatprep.subr.mxu0 0.0
      %6905 = vmatpush2.msra.mxu0 0.0
      %6906 = vmatprep.subr.mxu0 0.0
      %6907 = vmatpush2.msra.mxu0 0.0
      %6908 = vmatprep.subr.mxu0 0.0
      %6909 = vmatpush2.msra.mxu0 0.0
      %6910 = vmatprep.subr.mxu0 0.0
      %6911 = vmatpush2.msra.mxu0 0.0
      %6912 = vmatprep.subr.mxu0 0.0
      %6913 = vmatpush2.msra.mxu0 0.0
      %6914 = vmatprep.subr.mxu0 0.0
      %6915 = vmatpush2.msra.mxu0 0.0
      %6916 = vmatprep.subr.mxu0 0.0
      %6917 = vmatpush2.msra.mxu0 0.0
      %6918 = vmatprep.subr.mxu0 0.0
      %6919 = vmatpush2.msra.mxu0 0.0
      %6920 = vmatprep.subr.mxu0 0.0
      %6921 = vmatpush2.msra.mxu0 0.0
      %6922 = vmatprep.subr.mxu0 0.0
      %6923 = vmatpush2.msra.mxu0 0.0
      %6924 = vmatprep.subr.mxu0 0.0
      %6925 = vmatpush2.msra.mxu0 0.0
      %6926 = vmatprep.subr.mxu0 0.0
      %6927 = vmatpush2.msra.mxu0 0.0
      %6928 = vmatprep.subr.mxu0 0.0
      %6929 = vmatpush2.msra.mxu0 0.0
      %6930 = vmatprep.subr.mxu0 0.0
      %6931 = vmatpush2.msra.mxu0 0.0
      %6932 = vmatprep.subr.mxu0 0.0
      %6933 = vmatpush2.msra.mxu0 0.0
      %6934 = vmatprep.subr.mxu0 0.0
      %6935 = vmatpush2.msra.mxu0 0.0
      %6936 = vmatprep.mubr.f32.mxu0 0.0
      %6937 = vmatmul.mubr.f32.gmra.mxu0 %v6849
      %v6938 = vpop.f32.mrf.mxu0
      %v6939 = vadd.f32 0.0, %v6938
      %v6940 = vpop.f32.mrf.mxu0
      %6941 = vmatprep.mubr.f32.mxu0 0.0
      %6942 = vmatmul.mubr.f32.gmra.mxu0 %v6852
      %v6943 = vpop.f32.mrf.mxu0
      %v6944 = vadd.f32 0.0, %v6943
      %v6945 = vpop.f32.mrf.mxu0
      %6946 = vmatprep.mubr.f32.mxu0 0.0
      %6947 = vmatmul.mubr.f32.gmra.mxu0 %v6855
      %v6948 = vpop.f32.mrf.mxu0
      %v6949 = vadd.f32 0.0, %v6948
      %v6950 = vpop.f32.mrf.mxu0
      %6951 = vmatprep.mubr.f32.mxu0 0.0
      %6952 = vmatmul.mubr.f32.gmra.mxu0 %v6858
      %v6953 = vpop.f32.mrf.mxu0
      %v6954 = vadd.f32 0.0, %v6953
      %v6955 = vpop.f32.mrf.mxu0
      %6956 = vmatprep.mubr.f32.mxu0 0.0
      %6957 = vmatmul.mubr.f32.gmra.mxu0 %v6861
      %v6958 = vpop.f32.mrf.mxu0
      %v6959 = vadd.f32 0.0, %v6958
      %v6960 = vpop.f32.mrf.mxu0
      %6961 = vmatprep.mubr.f32.mxu0 0.0
      %6962 = vmatmul.mubr.f32.gmra.mxu0 %v6864
      %v6963 = vpop.f32.mrf.mxu0
      %v6964 = vadd.f32 0.0, %v6963
      %v6965 = vpop.f32.mrf.mxu0
      %6966 = vmatprep.mubr.f32.mxu0 0.0
      %6967 = vmatmul.mubr.f32.gmra.mxu0 %v6867
      %v6968 = vpop.f32.mrf.mxu0
      %v6969 = vadd.f32 0.0, %v6968
      %v6970 = vpop.f32.mrf.mxu0
      %6971 = vmatprep.mubr.f32.mxu0 0.0
      %6972 = vmatmul.mubr.f32.gmra.mxu0 %v6870
      %v6973 = vpop.f32.mrf.mxu0
      %v6974 = vadd.f32 0.0, %v6973
      %v6975 = vpop.f32.mrf.mxu0
      %6976 = vdwg.mxu0
      %v6977 = vld [vmem:[%s53] sm:$0xff]
      %v6978 = vld [vmem:[%s53 + $0x8] sm:$0xff]
      %v6979 = vld [vmem:[%s53 + $0x10] sm:$0xff]
      %v6980 = vld [vmem:[%s53 + $0x18] sm:$0xff]
      %v6981 = vld [vmem:[%s53 + $0x20] sm:$0xff]
      %v6982 = vld [vmem:[%s53 + $0x28] sm:$0xff]
      %v6983 = vld [vmem:[%s53 + $0x30] sm:$0xff]
      %v6984 = vld [vmem:[%s53 + $0x38] sm:$0xf]
      %v6986 = vsel %vm3648, %v6939, 0
      %v6989 = vsel %vm3648, %v6944, 0
      %v6992 = vsel %vm3648, %v6949, 0
      %v6995 = vsel %vm3648, %v6954, 0
      %v6998 = vsel %vm3648, %v6959, 0
      %v7001 = vsel %vm3648, %v6964, 0
      %v7004 = vsel %vm3648, %v6969, 0
      %v7007 = vsel %vm3648, %v6974, 0
      %v7010 = vsel %vm1207, %v6843, 0
      %7012 = vmatprep.subr.mxu0 0.0
      %7013 = vmatpush1.msra.mxu0 0.0
      %7014 = vmatprep.subr.mxu0 0.0
      %7015 = vmatpush1.msra.mxu0 0.0
      %7016 = vmatprep.subr.mxu0 0.0
      %7017 = vmatpush1.msra.mxu0 0.0
      %7018 = vmatprep.subr.mxu0 0.0
      %7019 = vmatpush1.msra.mxu0 0.0
      %7020 = vmatprep.subr.mxu0 0.0
      %7021 = vmatpush1.msra.mxu0 0.0
      %7022 = vmatprep.subr.mxu0 0.0
      %7023 = vmatpush1.msra.mxu0 0.0
      %7024 = vmatprep.subr.mxu0 0.0
      %7025 = vmatpush1.msra.mxu0 0.0
      %7026 = vmatprep.subr.mxu0 0.0
      %7027 = vmatpush1.msra.mxu0 0.0
      %7028 = vmatprep.subr.mxu0 0.0
      %7029 = vmatpush1.msra.mxu0 0.0
      %7030 = vmatprep.subr.mxu0 0.0
      %7031 = vmatpush1.msra.mxu0 0.0
      %7032 = vmatprep.subr.mxu0 0.0
      %7033 = vmatpush1.msra.mxu0 0.0
      %7034 = vmatprep.subr.mxu0 0.0
      %7035 = vmatpush1.msra.mxu0 0.0
      %7036 = vmatprep.subr.mxu0 0.0
      %7037 = vmatpush1.msra.mxu0 0.0
      %7038 = vmatprep.subr.mxu0 0.0
      %7039 = vmatpush1.msra.mxu0 0.0
      %7040 = vmatprep.subr.mxu0 0.0
      %7041 = vmatpush1.msra.mxu0 0.0
      %7042 = vmatprep.subr.mxu0 0.0
      %7043 = vmatpush1.msra.mxu0 %v7010
      %7044 = vmatprep.subr.mxu0 0.0
      %7045 = vmatpush2.msra.mxu0 0.0
      %7046 = vmatprep.subr.mxu0 0.0
      %7047 = vmatpush2.msra.mxu0 0.0
      %7048 = vmatprep.subr.mxu0 0.0
      %7049 = vmatpush2.msra.mxu0 0.0
      %7050 = vmatprep.subr.mxu0 0.0
      %7051 = vmatpush2.msra.mxu0 0.0
      %7052 = vmatprep.subr.mxu0 0.0
      %7053 = vmatpush2.msra.mxu0 0.0
      %7054 = vmatprep.subr.mxu0 0.0
      %7055 = vmatpush2.msra.mxu0 0.0
      %7056 = vmatprep.subr.mxu0 0.0
      %7057 = vmatpush2.msra.mxu0 0.0
      %7058 = vmatprep.subr.mxu0 0.0
      %7059 = vmatpush2.msra.mxu0 0.0
      %7060 = vmatprep.subr.mxu0 0.0
      %7061 = vmatpush2.msra.mxu0 0.0
      %7062 = vmatprep.subr.mxu0 0.0
      %7063 = vmatpush2.msra.mxu0 0.0
      %7064 = vmatprep.subr.mxu0 0.0
      %7065 = vmatpush2.msra.mxu0 0.0
      %7066 = vmatprep.subr.mxu0 0.0
      %7067 = vmatpush2.msra.mxu0 0.0
      %7068 = vmatprep.subr.mxu0 0.0
      %7069 = vmatpush2.msra.mxu0 0.0
      %7070 = vmatprep.subr.mxu0 0.0
      %7071 = vmatpush2.msra.mxu0 0.0
      %7072 = vmatprep.subr.mxu0 0.0
      %7073 = vmatpush2.msra.mxu0 0.0
      %7074 = vmatprep.subr.mxu0 0.0
      %7075 = vmatpush2.msra.mxu0 0.0
      %7076 = vmatprep.mubr.f32.mxu0 0.0
      %7077 = vmatmul.mubr.f32.gmra.mxu0 %v6986
      %v7078 = vpop.f32.mrf.mxu0
      %v7079 = vadd.f32 %v6977, %v7078
      %v7080 = vpop.f32.mrf.mxu0
      %7081 = vmatprep.mubr.f32.mxu0 0.0
      %7082 = vmatmul.mubr.f32.gmra.mxu0 %v6989
      %v7083 = vpop.f32.mrf.mxu0
      %v7084 = vadd.f32 %v6978, %v7083
      %v7085 = vpop.f32.mrf.mxu0
      %7086 = vmatprep.mubr.f32.mxu0 0.0
      %7087 = vmatmul.mubr.f32.gmra.mxu0 %v6992
      %v7088 = vpop.f32.mrf.mxu0
      %v7089 = vadd.f32 %v6979, %v7088
      %v7090 = vpop.f32.mrf.mxu0
      %7091 = vmatprep.mubr.f32.mxu0 0.0
      %7092 = vmatmul.mubr.f32.gmra.mxu0 %v6995
      %v7093 = vpop.f32.mrf.mxu0
      %v7094 = vadd.f32 %v6980, %v7093
      %v7095 = vpop.f32.mrf.mxu0
      %7096 = vmatprep.mubr.f32.mxu0 0.0
      %7097 = vmatmul.mubr.f32.gmra.mxu0 %v6998
      %v7098 = vpop.f32.mrf.mxu0
      %v7099 = vadd.f32 %v6981, %v7098
      %v7100 = vpop.f32.mrf.mxu0
      %7101 = vmatprep.mubr.f32.mxu0 0.0
      %7102 = vmatmul.mubr.f32.gmra.mxu0 %v7001
      %v7103 = vpop.f32.mrf.mxu0
      %v7104 = vadd.f32 %v6982, %v7103
      %v7105 = vpop.f32.mrf.mxu0
      %7106 = vmatprep.mubr.f32.mxu0 0.0
      %7107 = vmatmul.mubr.f32.gmra.mxu0 %v7004
      %v7108 = vpop.f32.mrf.mxu0
      %v7109 = vadd.f32 %v6983, %v7108
      %v7110 = vpop.f32.mrf.mxu0
      %7111 = vmatprep.mubr.f32.mxu0 0.0
      %7112 = vmatmul.mubr.f32.gmra.mxu0 %v7007
      %v7113 = vpop.f32.mrf.mxu0
      %v7114 = vadd.f32 %v6984, %v7113
      %v7115 = vpop.f32.mrf.mxu0
      %7116 = vdwg.mxu0
      %v7117 = vxor.u32 %v7079, 2147483648
      %v7118 = vxor.u32 %v7084, 2147483648
      %v7119 = vxor.u32 %v7089, 2147483648
      %v7120 = vxor.u32 %v7094, 2147483648
      %v7121 = vxor.u32 %v7099, 2147483648
      %v7122 = vxor.u32 %v7104, 2147483648
      %v7123 = vxor.u32 %v7109, 2147483648
      %v7124 = vxor.u32 %v7114, 2147483648
      %v7125 = vmul.f32 %v7117, 1.442695
      %v7126 = vpow.pop %v7125
      %v7127 = vmul.f32 %v7118, 1.442695
      %v7128 = vpow.pop %v7127
      %v7129 = vmul.f32 %v7119, 1.442695
      %v7130 = vpow.pop %v7129
      %v7131 = vmul.f32 %v7120, 1.442695
      %v7132 = vpow.pop %v7131
      %v7133 = vmul.f32 %v7121, 1.442695
      %v7134 = vpow.pop %v7133
      %v7135 = vmul.f32 %v7122, 1.442695
      %v7136 = vpow.pop %v7135
      %v7137 = vmul.f32 %v7123, 1.442695
      %v7138 = vpow.pop %v7137
      %v7139 = vmul.f32 %v7124, 1.442695
      %v7140 = vpow.pop %v7139
      %v7141 = vadd.f32 %v7126, 1.0
      %v7142 = vadd.f32 %v7128, 1.0
      %v7143 = vadd.f32 %v7130, 1.0
      %v7144 = vadd.f32 %v7132, 1.0
      %v7145 = vadd.f32 %v7134, 1.0
      %v7146 = vadd.f32 %v7136, 1.0
      %v7147 = vadd.f32 %v7138, 1.0
      %v7148 = vadd.f32 %v7140, 1.0
      %v7149 = vrcp.pop %v7141
      %v7150 = vmul.f32 1.0, %v7149
      %v7151 = vrcp.pop %v7142
      %v7152 = vmul.f32 1.0, %v7151
      %v7153 = vrcp.pop %v7143
      %v7154 = vmul.f32 1.0, %v7153
      %v7155 = vrcp.pop %v7144
      %v7156 = vmul.f32 1.0, %v7155
      %v7157 = vrcp.pop %v7145
      %v7158 = vmul.f32 1.0, %v7157
      %v7159 = vrcp.pop %v7146
      %v7160 = vmul.f32 1.0, %v7159
      %v7161 = vrcp.pop %v7147
      %v7162 = vmul.f32 1.0, %v7161
      %v7163 = vrcp.pop %v7148
      %v7164 = vmul.f32 1.0, %v7163
      %v7165 = vld [vmem:[%s55] sm:$0xff]
      %v7166 = vld [vmem:[%s55 + $0x8] sm:$0xff]
      %v7167 = vld [vmem:[%s55 + $0x10] sm:$0xff]
      %v7168 = vld [vmem:[%s55 + $0x18] sm:$0xff]
      %v7169 = vld [vmem:[%s55 + $0x20] sm:$0xff]
      %v7170 = vld [vmem:[%s55 + $0x28] sm:$0xff]
      %v7171 = vld [vmem:[%s55 + $0x30] sm:$0xff]
      %v7172 = vld [vmem:[%s55 + $0x38] sm:$0xf]
      %v7174 = vsel %vm1194, %v7165, 0
      %v7177 = vsel %vm1194, %v7166, 0
      %v7180 = vsel %vm1194, %v7167, 0
      %v7183 = vsel %vm1194, %v7168, 0
      %v7186 = vsel %vm1194, %v7169, 0
      %v7189 = vsel %vm1194, %v7170, 0
      %v7192 = vsel %vm1194, %v7171, 0
      %v7195 = vsel %vm1194, %v7172, 0
      %v7198 = vsel %vm1207, %v7164, 0
      %7200 = vmatprep.subr.mxu0 0.0
      %7201 = vmatpush1.msra.mxu0 0.0
      %7202 = vmatprep.subr.mxu0 0.0
      %7203 = vmatpush1.msra.mxu0 0.0
      %7204 = vmatprep.subr.mxu0 0.0
      %7205 = vmatpush1.msra.mxu0 0.0
      %7206 = vmatprep.subr.mxu0 0.0
      %7207 = vmatpush1.msra.mxu0 0.0
      %7208 = vmatprep.subr.mxu0 0.0
      %7209 = vmatpush1.msra.mxu0 0.0
      %7210 = vmatprep.subr.mxu0 0.0
      %7211 = vmatpush1.msra.mxu0 0.0
      %7212 = vmatprep.subr.mxu0 0.0
      %7213 = vmatpush1.msra.mxu0 0.0
      %7214 = vmatprep.subr.mxu0 0.0
      %7215 = vmatpush1.msra.mxu0 0.0
      %7216 = vmatprep.subr.mxu0 0.0
      %7217 = vmatpush1.msra.mxu0 %v7198
      %7218 = vmatprep.subr.mxu0 0.0
      %7219 = vmatpush1.msra.mxu0 %v7162
      %7220 = vmatprep.subr.mxu0 0.0
      %7221 = vmatpush1.msra.mxu0 %v7160
      %7222 = vmatprep.subr.mxu0 0.0
      %7223 = vmatpush1.msra.mxu0 %v7158
      %7224 = vmatprep.subr.mxu0 0.0
      %7225 = vmatpush1.msra.mxu0 %v7156
      %7226 = vmatprep.subr.mxu0 0.0
      %7227 = vmatpush1.msra.mxu0 %v7154
      %7228 = vmatprep.subr.mxu0 0.0
      %7229 = vmatpush1.msra.mxu0 %v7152
      %7230 = vmatprep.subr.mxu0 0.0
      %7231 = vmatpush1.msra.mxu0 %v7150
      %7232 = vmatprep.subr.mxu0 0.0
      %7233 = vmatpush2.msra.mxu0 0.0
      %7234 = vmatprep.subr.mxu0 0.0
      %7235 = vmatpush2.msra.mxu0 0.0
      %7236 = vmatprep.subr.mxu0 0.0
      %7237 = vmatpush2.msra.mxu0 0.0
      %7238 = vmatprep.subr.mxu0 0.0
      %7239 = vmatpush2.msra.mxu0 0.0
      %7240 = vmatprep.subr.mxu0 0.0
      %7241 = vmatpush2.msra.mxu0 0.0
      %7242 = vmatprep.subr.mxu0 0.0
      %7243 = vmatpush2.msra.mxu0 0.0
      %7244 = vmatprep.subr.mxu0 0.0
      %7245 = vmatpush2.msra.mxu0 0.0
      %7246 = vmatprep.subr.mxu0 0.0
      %7247 = vmatpush2.msra.mxu0 0.0
      %7248 = vmatprep.subr.mxu0 0.0
      %7249 = vmatpush2.msra.mxu0 0.0
      %7250 = vmatprep.subr.mxu0 0.0
      %7251 = vmatpush2.msra.mxu0 0.0
      %7252 = vmatprep.subr.mxu0 0.0
      %7253 = vmatpush2.msra.mxu0 0.0
      %7254 = vmatprep.subr.mxu0 0.0
      %7255 = vmatpush2.msra.mxu0 0.0
      %7256 = vmatprep.subr.mxu0 0.0
      %7257 = vmatpush2.msra.mxu0 0.0
      %7258 = vmatprep.subr.mxu0 0.0
      %7259 = vmatpush2.msra.mxu0 0.0
      %7260 = vmatprep.subr.mxu0 0.0
      %7261 = vmatpush2.msra.mxu0 0.0
      %7262 = vmatprep.subr.mxu0 0.0
      %7263 = vmatpush2.msra.mxu0 0.0
      %7264 = vmatprep.mubr.f32.mxu0 0.0
      %7265 = vmatmul.mubr.f32.gmra.mxu0 %v7174
      %v7266 = vpop.f32.mrf.mxu0
      %v7267 = vadd.f32 0.0, %v7266
      %v7268 = vpop.f32.mrf.mxu0
      %7269 = vmatprep.mubr.f32.mxu0 0.0
      %7270 = vmatmul.mubr.f32.gmra.mxu0 %v7177
      %v7271 = vpop.f32.mrf.mxu0
      %v7272 = vadd.f32 0.0, %v7271
      %v7273 = vpop.f32.mrf.mxu0
      %7274 = vmatprep.mubr.f32.mxu0 0.0
      %7275 = vmatmul.mubr.f32.gmra.mxu0 %v7180
      %v7276 = vpop.f32.mrf.mxu0
      %v7277 = vadd.f32 0.0, %v7276
      %v7278 = vpop.f32.mrf.mxu0
      %7279 = vmatprep.mubr.f32.mxu0 0.0
      %7280 = vmatmul.mubr.f32.gmra.mxu0 %v7183
      %v7281 = vpop.f32.mrf.mxu0
      %v7282 = vadd.f32 0.0, %v7281
      %v7283 = vpop.f32.mrf.mxu0
      %7284 = vmatprep.mubr.f32.mxu0 0.0
      %7285 = vmatmul.mubr.f32.gmra.mxu0 %v7186
      %v7286 = vpop.f32.mrf.mxu0
      %v7287 = vadd.f32 0.0, %v7286
      %v7288 = vpop.f32.mrf.mxu0
      %7289 = vmatprep.mubr.f32.mxu0 0.0
      %7290 = vmatmul.mubr.f32.gmra.mxu0 %v7189
      %v7291 = vpop.f32.mrf.mxu0
      %v7292 = vadd.f32 0.0, %v7291
      %v7293 = vpop.f32.mrf.mxu0
      %7294 = vmatprep.mubr.f32.mxu0 0.0
      %7295 = vmatmul.mubr.f32.gmra.mxu0 %v7192
      %v7296 = vpop.f32.mrf.mxu0
      %v7297 = vadd.f32 0.0, %v7296
      %v7298 = vpop.f32.mrf.mxu0
      %7299 = vmatprep.mubr.f32.mxu0 0.0
      %7300 = vmatmul.mubr.f32.gmra.mxu0 %v7195
      %v7301 = vpop.f32.mrf.mxu0
      %v7302 = vadd.f32 0.0, %v7301
      %v7303 = vpop.f32.mrf.mxu0
      %7304 = vdwg.mxu0
      %v7305 = vmul.f32 %v7267, 0.999995
      %v7306 = vmul.f32 %v7272, 0.999995
      %v7307 = vmul.f32 %v7277, 0.999995
      %v7308 = vmul.f32 %v7282, 0.999995
      %v7309 = vmul.f32 %v7287, 0.999995
      %v7310 = vmul.f32 %v7292, 0.999995
      %v7311 = vmul.f32 %v7297, 0.999995
      %v7312 = vmul.f32 %v7302, 0.999995
      %v7313 = vsel %vm1194, %v7305, -inf
      %7314 = vmax.xlane.f32.xlu0 %v7313
      %v7315 = vpop.xlane.xlu0 %7314
      %v7316 = vsel %vm1194, %v7306, -inf
      %7317 = vmax.xlane.f32.xlu0 %v7316
      %v7318 = vpop.xlane.xlu0 %7317
      %v7319 = vsel %vm1194, %v7307, -inf
      %7320 = vmax.xlane.f32.xlu0 %v7319
      %v7321 = vpop.xlane.xlu0 %7320
      %v7322 = vsel %vm1194, %v7308, -inf
      %7323 = vmax.xlane.f32.xlu0 %v7322
      %v7324 = vpop.xlane.xlu0 %7323
      %v7325 = vsel %vm1194, %v7309, -inf
      %7326 = vmax.xlane.f32.xlu0 %v7325
      %v7327 = vpop.xlane.xlu0 %7326
      %v7328 = vsel %vm1194, %v7310, -inf
      %7329 = vmax.xlane.f32.xlu0 %v7328
      %v7330 = vpop.xlane.xlu0 %7329
      %v7331 = vsel %vm1194, %v7311, -inf
      %7332 = vmax.xlane.f32.xlu0 %v7331
      %v7333 = vpop.xlane.xlu0 %7332
      %v7334 = vsel %vm3998, %v7312, -inf
      %7335 = vmax.xlane.f32.xlu0 %v7334
      %v7336 = vpop.xlane.xlu0 %7335
      %v7337 = vsub.f32 %v7305, %v7315
      %v7338 = vsub.f32 %v7306, %v7318
      %v7339 = vsub.f32 %v7307, %v7321
      %v7340 = vsub.f32 %v7308, %v7324
      %v7341 = vsub.f32 %v7309, %v7327
      %v7342 = vsub.f32 %v7310, %v7330
      %v7343 = vsub.f32 %v7311, %v7333
      %v7344 = vsub.f32 %v7312, %v7336
      %v7345 = vmul.f32 %v7337, 1.442695
      %v7346 = vpow.pop %v7345
      %v7347 = vmul.f32 %v7338, 1.442695
      %v7348 = vpow.pop %v7347
      %v7349 = vmul.f32 %v7339, 1.442695
      %v7350 = vpow.pop %v7349
      %v7351 = vmul.f32 %v7340, 1.442695
      %v7352 = vpow.pop %v7351
      %v7353 = vmul.f32 %v7341, 1.442695
      %v7354 = vpow.pop %v7353
      %v7355 = vmul.f32 %v7342, 1.442695
      %v7356 = vpow.pop %v7355
      %v7357 = vmul.f32 %v7343, 1.442695
      %v7358 = vpow.pop %v7357
      %v7359 = vmul.f32 %v7344, 1.442695
      %v7360 = vpow.pop %v7359
      %v7361 = vsel %vm1194, %v7346, 0.0
      %7362 = vadd.xlane.f32.xlu0 %v7361
      %v7363 = vpop.xlane.xlu0 %7362
      %v7364 = vsel %vm1194, %v7348, 0.0
      %7365 = vadd.xlane.f32.xlu0 %v7364
      %v7366 = vpop.xlane.xlu0 %7365
      %v7367 = vsel %vm1194, %v7350, 0.0
      %7368 = vadd.xlane.f32.xlu0 %v7367
      %v7369 = vpop.xlane.xlu0 %7368
      %v7370 = vsel %vm1194, %v7352, 0.0
      %7371 = vadd.xlane.f32.xlu0 %v7370
      %v7372 = vpop.xlane.xlu0 %7371
      %v7373 = vsel %vm1194, %v7354, 0.0
      %7374 = vadd.xlane.f32.xlu0 %v7373
      %v7375 = vpop.xlane.xlu0 %7374
      %v7376 = vsel %vm1194, %v7356, 0.0
      %7377 = vadd.xlane.f32.xlu0 %v7376
      %v7378 = vpop.xlane.xlu0 %7377
      %v7379 = vsel %vm1194, %v7358, 0.0
      %7380 = vadd.xlane.f32.xlu0 %v7379
      %v7381 = vpop.xlane.xlu0 %7380
      %v7382 = vsel %vm3998, %v7360, 0.0
      %7383 = vadd.xlane.f32.xlu0 %v7382
      %v7384 = vpop.xlane.xlu0 %7383
      %v7385 = vrcp.pop %v7363
      %v7386 = vmul.f32 %v7346, %v7385
      %v7387 = vrcp.pop %v7366
      %v7388 = vmul.f32 %v7348, %v7387
      %v7389 = vrcp.pop %v7369
      %v7390 = vmul.f32 %v7350, %v7389
      %v7391 = vrcp.pop %v7372
      %v7392 = vmul.f32 %v7352, %v7391
      %v7393 = vrcp.pop %v7375
      %v7394 = vmul.f32 %v7354, %v7393
      %v7395 = vrcp.pop %v7378
      %v7396 = vmul.f32 %v7356, %v7395
      %v7397 = vrcp.pop %v7381
      %v7398 = vmul.f32 %v7358, %v7397
      %v7399 = vrcp.pop %v7384
      %v7400 = vmul.f32 %v7360, %v7399
      %v7402 = vsel %vm1194, %v6649, 0
      %v7405 = vsel %vm1194, %v6650, 0
      %v7408 = vsel %vm1194, %v6651, 0
      %v7411 = vsel %vm1194, %v6652, 0
      %v7414 = vsel %vm1194, %v6653, 0
      %v7417 = vsel %vm1194, %v6654, 0
      %v7420 = vsel %vm1194, %v6655, 0
      %v7423 = vsel %vm1194, %v6656, 0
      %v7426 = vsel %vm1194, %v7386, 0
      %v7429 = vsel %vm1194, %v7388, 0
      %v7432 = vsel %vm1194, %v7390, 0
      %v7435 = vsel %vm1194, %v7392, 0
      %v7438 = vsel %vm1194, %v7394, 0
      %v7441 = vsel %vm1194, %v7396, 0
      %v7444 = vsel %vm1194, %v7398, 0
      %v7447 = vsel %vm1194, %v7400, 0
      %7449 = vmatprep.subr.mxu0 0.0
      %7450 = vmatpush1.xpose.msra.mxu0 0.0
      %7451 = vmatprep.subr.mxu0 0.0
      %7452 = vmatpush1.xpose.msra.mxu0 0.0
      %7453 = vmatprep.subr.mxu0 0.0
      %7454 = vmatpush1.xpose.msra.mxu0 0.0
      %7455 = vmatprep.subr.mxu0 0.0
      %7456 = vmatpush1.xpose.msra.mxu0 0.0
      %7457 = vmatprep.subr.mxu0 0.0
      %7458 = vmatpush1.xpose.msra.mxu0 0.0
      %7459 = vmatprep.subr.mxu0 0.0
      %7460 = vmatpush1.xpose.msra.mxu0 0.0
      %7461 = vmatprep.subr.mxu0 0.0
      %7462 = vmatpush1.xpose.msra.mxu0 0.0
      %7463 = vmatprep.subr.mxu0 0.0
      %7464 = vmatpush1.xpose.msra.mxu0 0.0
      %7465 = vmatprep.subr.mxu0 0.0
      %7466 = vmatpush1.xpose.msra.mxu0 %v7447
      %7467 = vmatprep.subr.mxu0 0.0
      %7468 = vmatpush1.xpose.msra.mxu0 %v7444
      %7469 = vmatprep.subr.mxu0 0.0
      %7470 = vmatpush1.xpose.msra.mxu0 %v7441
      %7471 = vmatprep.subr.mxu0 0.0
      %7472 = vmatpush1.xpose.msra.mxu0 %v7438
      %7473 = vmatprep.subr.mxu0 0.0
      %7474 = vmatpush1.xpose.msra.mxu0 %v7435
      %7475 = vmatprep.subr.mxu0 0.0
      %7476 = vmatpush1.xpose.msra.mxu0 %v7432
      %7477 = vmatprep.subr.mxu0 0.0
      %7478 = vmatpush1.xpose.msra.mxu0 %v7429
      %7479 = vmatprep.subr.mxu0 0.0
      %7480 = vmatpush1.xpose.msra.mxu0 %v7426
      %7481 = vmatprep.subr.mxu0 0.0
      %7482 = vmatpush2.xpose.msra.mxu0 0.0
      %7483 = vmatprep.subr.mxu0 0.0
      %7484 = vmatpush2.xpose.msra.mxu0 0.0
      %7485 = vmatprep.subr.mxu0 0.0
      %7486 = vmatpush2.xpose.msra.mxu0 0.0
      %7487 = vmatprep.subr.mxu0 0.0
      %7488 = vmatpush2.xpose.msra.mxu0 0.0
      %7489 = vmatprep.subr.mxu0 0.0
      %7490 = vmatpush2.xpose.msra.mxu0 0.0
      %7491 = vmatprep.subr.mxu0 0.0
      %7492 = vmatpush2.xpose.msra.mxu0 0.0
      %7493 = vmatprep.subr.mxu0 0.0
      %7494 = vmatpush2.xpose.msra.mxu0 0.0
      %7495 = vmatprep.subr.mxu0 0.0
      %7496 = vmatpush2.xpose.msra.mxu0 0.0
      %7497 = vmatprep.subr.mxu0 0.0
      %7498 = vmatpush2.xpose.msra.mxu0 0.0
      %7499 = vmatprep.subr.mxu0 0.0
      %7500 = vmatpush2.xpose.msra.mxu0 0.0
      %7501 = vmatprep.subr.mxu0 0.0
      %7502 = vmatpush2.xpose.msra.mxu0 0.0
      %7503 = vmatprep.subr.mxu0 0.0
      %7504 = vmatpush2.xpose.msra.mxu0 0.0
      %7505 = vmatprep.subr.mxu0 0.0
      %7506 = vmatpush2.xpose.msra.mxu0 0.0
      %7507 = vmatprep.subr.mxu0 0.0
      %7508 = vmatpush2.xpose.msra.mxu0 0.0
      %7509 = vmatprep.subr.mxu0 0.0
      %7510 = vmatpush2.xpose.msra.mxu0 0.0
      %7511 = vmatprep.subr.mxu0 0.0
      %7512 = vmatpush2.xpose.msra.mxu0 0.0
      %7513 = vmatprep.mubr.f32.mxu0 0.0
      %7514 = vmatmul.mubr.f32.gmra.mxu0 %v7402
      %v7515 = vpop.f32.mrf.mxu0
      %v7516 = vadd.f32 0.0, %v7515
      %v7517 = vpop.f32.mrf.mxu0
      %7518 = vmatprep.mubr.f32.mxu0 0.0
      %7519 = vmatmul.mubr.f32.gmra.mxu0 %v7405
      %v7520 = vpop.f32.mrf.mxu0
      %v7521 = vadd.f32 0.0, %v7520
      %v7522 = vpop.f32.mrf.mxu0
      %7523 = vmatprep.mubr.f32.mxu0 0.0
      %7524 = vmatmul.mubr.f32.gmra.mxu0 %v7408
      %v7525 = vpop.f32.mrf.mxu0
      %v7526 = vadd.f32 0.0, %v7525
      %v7527 = vpop.f32.mrf.mxu0
      %7528 = vmatprep.mubr.f32.mxu0 0.0
      %7529 = vmatmul.mubr.f32.gmra.mxu0 %v7411
      %v7530 = vpop.f32.mrf.mxu0
      %v7531 = vadd.f32 0.0, %v7530
      %v7532 = vpop.f32.mrf.mxu0
      %7533 = vmatprep.mubr.f32.mxu0 0.0
      %7534 = vmatmul.mubr.f32.gmra.mxu0 %v7414
      %v7535 = vpop.f32.mrf.mxu0
      %v7536 = vadd.f32 0.0, %v7535
      %v7537 = vpop.f32.mrf.mxu0
      %7538 = vmatprep.mubr.f32.mxu0 0.0
      %7539 = vmatmul.mubr.f32.gmra.mxu0 %v7417
      %v7540 = vpop.f32.mrf.mxu0
      %v7541 = vadd.f32 0.0, %v7540
      %v7542 = vpop.f32.mrf.mxu0
      %7543 = vmatprep.mubr.f32.mxu0 0.0
      %7544 = vmatmul.mubr.f32.gmra.mxu0 %v7420
      %v7545 = vpop.f32.mrf.mxu0
      %v7546 = vadd.f32 0.0, %v7545
      %v7547 = vpop.f32.mrf.mxu0
      %7548 = vmatprep.mubr.f32.mxu0 0.0
      %7549 = vmatmul.mubr.f32.gmra.mxu0 %v7423
      %v7550 = vpop.f32.mrf.mxu0
      %v7551 = vadd.f32 0.0, %v7550
      %v7552 = vpop.f32.mrf.mxu0
      %7553 = vdwg.mxu0
      %vm7554 = vcmp.ge.f32.partialorder %v7516, 0.0
      %vm7555 = vcmp.ge.f32.partialorder %v7521, 0.0
      %vm7556 = vcmp.ge.f32.partialorder %v7526, 0.0
      %vm7557 = vcmp.ge.f32.partialorder %v7531, 0.0
      %vm7558 = vcmp.ge.f32.partialorder %v7536, 0.0
      %vm7559 = vcmp.ge.f32.partialorder %v7541, 0.0
      %vm7560 = vcmp.ge.f32.partialorder %v7546, 0.0
      %vm7561 = vcmp.ge.f32.partialorder %v7551, 0.0
      %v7562 = vmul.f32 %v7516, 0.01
      %v7563 = vmul.f32 %v7521, 0.01
      %v7564 = vmul.f32 %v7526, 0.01
      %v7565 = vmul.f32 %v7531, 0.01
      %v7566 = vmul.f32 %v7536, 0.01
      %v7567 = vmul.f32 %v7541, 0.01
      %v7568 = vmul.f32 %v7546, 0.01
      %v7569 = vmul.f32 %v7551, 0.01
      %v7570 = vsel %vm7554, %v7516, %v7562
      %v7571 = vsel %vm7555, %v7521, %v7563
      %v7572 = vsel %vm7556, %v7526, %v7564
      %v7573 = vsel %vm7557, %v7531, %v7565
      %v7574 = vsel %vm7558, %v7536, %v7566
      %v7575 = vsel %vm7559, %v7541, %v7567
      %v7576 = vsel %vm7560, %v7546, %v7568
      %v7577 = vsel %vm7561, %v7551, %v7569
      %v7578 = vadd.f32 %v7570, %v4509
      %v7579 = vadd.f32 %v7571, %v4514
      %v7580 = vadd.f32 %v7572, %v4519
      %v7581 = vadd.f32 %v7573, %v4524
      %v7582 = vadd.f32 %v7574, %v4529
      %v7583 = vadd.f32 %v7575, %v4534
      %v7584 = vadd.f32 %v7576, %v4539
      %v7585 = vadd.f32 %v7577, %v4544
      %v7586 = vsel %vm1194, %v7578, 0.0
      %v7587 = vsel %vm1194, %v7579, 0.0
      %v7588 = vadd.f32 %v7586, %v7587
      %v7589 = vsel %vm1194, %v7580, 0.0
      %v7590 = vadd.f32 %v7588, %v7589
      %v7591 = vsel %vm1194, %v7581, 0.0
      %v7592 = vadd.f32 %v7590, %v7591
      %v7593 = vsel %vm1194, %v7582, 0.0
      %v7594 = vadd.f32 %v7592, %v7593
      %v7595 = vsel %vm1194, %v7583, 0.0
      %v7596 = vadd.f32 %v7594, %v7595
      %v7597 = vsel %vm1194, %v7584, 0.0
      %v7598 = vadd.f32 %v7596, %v7597
      %v7599 = vsel %vm1194, %v7585, 0.0
      %v7600 = vadd.f32 %v7598, %v7599
      %7601 = vadd.xlane.f32.xlu0 %v7600
      %v7602 = vpop.xlane.xlu0 %7601
      %v7603 = vrot.slane %v7602, 4
      %v7604 = vadd.f32 %v7602, %v7603
      %v7605 = vrot.slane %v7604, 2
      %v7606 = vadd.f32 %v7604, %v7605
      %v7607 = vrot.slane %v7606, 1
      %v7608 = vadd.f32 %v7606, %v7607
      %s7609 = vtos %v7608
      %v7610 = vstv %s7609
      %v7611 = vmul.f32 %v7610, %v4276
      %v7612 = vsub.f32 %v7578, %v7611
      %v7613 = vsub.f32 %v7579, %v7611
      %v7614 = vsub.f32 %v7580, %v7611
      %v7615 = vsub.f32 %v7581, %v7611
      %v7616 = vsub.f32 %v7582, %v7611
      %v7617 = vsub.f32 %v7583, %v7611
      %v7618 = vsub.f32 %v7584, %v7611
      %v7619 = vsub.f32 %v7585, %v7611
      %v7620 = vmul.f32 %v7612, %v7612
      %v7621 = vmul.f32 %v7613, %v7613
      %v7622 = vmul.f32 %v7614, %v7614
      %v7623 = vmul.f32 %v7615, %v7615
      %v7624 = vmul.f32 %v7616, %v7616
      %v7625 = vmul.f32 %v7617, %v7617
      %v7626 = vmul.f32 %v7618, %v7618
      %v7627 = vmul.f32 %v7619, %v7619
      %v7628 = vsel %vm1194, %v7620, 0.0
      %v7629 = vsel %vm1194, %v7621, 0.0
      %v7630 = vadd.f32 %v7628, %v7629
      %v7631 = vsel %vm1194, %v7622, 0.0
      %v7632 = vadd.f32 %v7630, %v7631
      %v7633 = vsel %vm1194, %v7623, 0.0
      %v7634 = vadd.f32 %v7632, %v7633
      %v7635 = vsel %vm1194, %v7624, 0.0
      %v7636 = vadd.f32 %v7634, %v7635
      %v7637 = vsel %vm1194, %v7625, 0.0
      %v7638 = vadd.f32 %v7636, %v7637
      %v7639 = vsel %vm1194, %v7626, 0.0
      %v7640 = vadd.f32 %v7638, %v7639
      %v7641 = vsel %vm1194, %v7627, 0.0
      %v7642 = vadd.f32 %v7640, %v7641
      %7643 = vadd.xlane.f32.xlu0 %v7642
      %v7644 = vpop.xlane.xlu0 %7643
      %v7645 = vrot.slane %v7644, 4
      %v7646 = vadd.f32 %v7644, %v7645
      %v7647 = vrot.slane %v7646, 2
      %v7648 = vadd.f32 %v7646, %v7647
      %v7649 = vrot.slane %v7648, 1
      %v7650 = vadd.f32 %v7648, %v7649
      %s7651 = vtos %v7650
      %v7652 = vstv %s7651
      %v7653 = vmul.f32 %v7652, %v4276
      %v7654 = vadd.f32 %v7653, 1e-05
      %v7655 = vrsqrt.pop %v7654
      %v7656 = vmul.f32 %v7612, %v7655
      %v7657 = vmul.f32 %v7613, %v7655
      %v7658 = vmul.f32 %v7614, %v7655
      %v7659 = vmul.f32 %v7615, %v7655
      %v7660 = vmul.f32 %v7616, %v7655
      %v7661 = vmul.f32 %v7617, %v7655
      %v7662 = vmul.f32 %v7618, %v7655
      %v7663 = vmul.f32 %v7619, %v7655
      %v7664 = vld [vmem:[%s57] sm:$0xff]
      %v7665 = vld [vmem:[%s57 + $0x8] sm:$0xff]
      %v7666 = vld [vmem:[%s57 + $0x10] sm:$0xff]
      %v7667 = vld [vmem:[%s57 + $0x18] sm:$0xff]
      %v7668 = vld [vmem:[%s57 + $0x20] sm:$0xff]
      %v7669 = vld [vmem:[%s57 + $0x28] sm:$0xff]
      %v7670 = vld [vmem:[%s57 + $0x30] sm:$0xff]
      %v7671 = vld [vmem:[%s57 + $0x38] sm:$0xff]
      %v7672 = vmul.f32 %v7656, %v7664
      %v7673 = vmul.f32 %v7657, %v7665
      %v7674 = vmul.f32 %v7658, %v7666
      %v7675 = vmul.f32 %v7659, %v7667
      %v7676 = vmul.f32 %v7660, %v7668
      %v7677 = vmul.f32 %v7661, %v7669
      %v7678 = vmul.f32 %v7662, %v7670
      %v7679 = vmul.f32 %v7663, %v7671
      %v7680 = vld [vmem:[%s59] sm:$0xff]
      %v7681 = vld [vmem:[%s59 + $0x8] sm:$0xff]
      %v7682 = vld [vmem:[%s59 + $0x10] sm:$0xff]
      %v7683 = vld [vmem:[%s59 + $0x18] sm:$0xff]
      %v7684 = vld [vmem:[%s59 + $0x20] sm:$0xff]
      %v7685 = vld [vmem:[%s59 + $0x28] sm:$0xff]
      %v7686 = vld [vmem:[%s59 + $0x30] sm:$0xff]
      %v7687 = vld [vmem:[%s59 + $0x38] sm:$0xff]
      %v7688 = vadd.f32 %v7672, %v7680
      %v7689 = vadd.f32 %v7673, %v7681
      %v7690 = vadd.f32 %v7674, %v7682
      %v7691 = vadd.f32 %v7675, %v7683
      %v7692 = vadd.f32 %v7676, %v7684
      %v7693 = vadd.f32 %v7677, %v7685
      %v7694 = vadd.f32 %v7678, %v7686
      %v7695 = vadd.f32 %v7679, %v7687
      %s7696 = sld [smem:[#allocation2]]
      %v7697 = vstv %s7696
      %v7698 = vadd.f32 %v7697, 0.0
      %v7699 = vld [vmem:[%s61] sm:$0xff]
      %v7700 = vld [vmem:[%s61 + $0x8] sm:$0xff]
      %v7701 = vld [vmem:[%s61 + $0x10] sm:$0xff]
      %v7702 = vld [vmem:[%s61 + $0x18] sm:$0xff]
      %v7703 = vld [vmem:[%s61 + $0x20] sm:$0xff]
      %v7704 = vld [vmem:[%s61 + $0x28] sm:$0xff]
      %v7705 = vld [vmem:[%s61 + $0x30] sm:$0xff]
      %v7706 = vld [vmem:[%s61 + $0x38] sm:$0xf]
      %v7708 = vsel %vm1194, %v7688, 0
      %v7711 = vsel %vm1194, %v7689, 0
      %v7714 = vsel %vm1207, %v7706, 0
      %7716 = vmatprep.subr.mxu0 0.0
      %7717 = vmatpush1.msra.mxu0 0.0
      %7718 = vmatprep.subr.mxu0 0.0
      %7719 = vmatpush1.msra.mxu0 0.0
      %7720 = vmatprep.subr.mxu0 0.0
      %7721 = vmatpush1.msra.mxu0 0.0
      %7722 = vmatprep.subr.mxu0 0.0
      %7723 = vmatpush1.msra.mxu0 0.0
      %7724 = vmatprep.subr.mxu0 0.0
      %7725 = vmatpush1.msra.mxu0 0.0
      %7726 = vmatprep.subr.mxu0 0.0
      %7727 = vmatpush1.msra.mxu0 0.0
      %7728 = vmatprep.subr.mxu0 0.0
      %7729 = vmatpush1.msra.mxu0 0.0
      %7730 = vmatprep.subr.mxu0 0.0
      %7731 = vmatpush1.msra.mxu0 0.0
      %7732 = vmatprep.subr.mxu0 0.0
      %7733 = vmatpush1.msra.mxu0 %v7714
      %7734 = vmatprep.subr.mxu0 0.0
      %7735 = vmatpush1.msra.mxu0 %v7705
      %7736 = vmatprep.subr.mxu0 0.0
      %7737 = vmatpush1.msra.mxu0 %v7704
      %7738 = vmatprep.subr.mxu0 0.0
      %7739 = vmatpush1.msra.mxu0 %v7703
      %7740 = vmatprep.subr.mxu0 0.0
      %7741 = vmatpush1.msra.mxu0 %v7702
      %7742 = vmatprep.subr.mxu0 0.0
      %7743 = vmatpush1.msra.mxu0 %v7701
      %7744 = vmatprep.subr.mxu0 0.0
      %7745 = vmatpush1.msra.mxu0 %v7700
      %7746 = vmatprep.subr.mxu0 0.0
      %7747 = vmatpush1.msra.mxu0 %v7699
      %7748 = vmatprep.subr.mxu0 0.0
      %7749 = vmatpush2.msra.mxu0 0.0
      %7750 = vmatprep.subr.mxu0 0.0
      %7751 = vmatpush2.msra.mxu0 0.0
      %7752 = vmatprep.subr.mxu0 0.0
      %7753 = vmatpush2.msra.mxu0 0.0
      %7754 = vmatprep.subr.mxu0 0.0
      %7755 = vmatpush2.msra.mxu0 0.0
      %7756 = vmatprep.subr.mxu0 0.0
      %7757 = vmatpush2.msra.mxu0 0.0
      %7758 = vmatprep.subr.mxu0 0.0
      %7759 = vmatpush2.msra.mxu0 0.0
      %7760 = vmatprep.subr.mxu0 0.0
      %7761 = vmatpush2.msra.mxu0 0.0
      %7762 = vmatprep.subr.mxu0 0.0
      %7763 = vmatpush2.msra.mxu0 0.0
      %7764 = vmatprep.subr.mxu0 0.0
      %7765 = vmatpush2.msra.mxu0 0.0
      %7766 = vmatprep.subr.mxu0 0.0
      %7767 = vmatpush2.msra.mxu0 0.0
      %7768 = vmatprep.subr.mxu0 0.0
      %7769 = vmatpush2.msra.mxu0 0.0
      %7770 = vmatprep.subr.mxu0 0.0
      %7771 = vmatpush2.msra.mxu0 0.0
      %7772 = vmatprep.subr.mxu0 0.0
      %7773 = vmatpush2.msra.mxu0 0.0
      %7774 = vmatprep.subr.mxu0 0.0
      %7775 = vmatpush2.msra.mxu0 0.0
      %7776 = vmatprep.subr.mxu0 0.0
      %7777 = vmatpush2.msra.mxu0 0.0
      %7778 = vmatprep.subr.mxu0 0.0
      %7779 = vmatpush2.msra.mxu0 0.0
      %7780 = vmatprep.mubr.f32.mxu0 0.0
      %7781 = vmatmul.mubr.f32.gmra.mxu0 %v7708
      %v7782 = vpop.f32.mrf.mxu0
      %v7783 = vadd.f32 0.0, %v7782
      %v7784 = vpop.f32.mrf.mxu0
      %7785 = vmatprep.mubr.f32.mxu0 0.0
      %7786 = vmatmul.mubr.f32.gmra.mxu0 %v7711
      %v7787 = vpop.f32.mrf.mxu0
      %v7788 = vadd.f32 0.0, %v7787
      %v7789 = vpop.f32.mrf.mxu0
      %7790 = vdwg.mxu0
      %v7791 = vadd.f32 %v7698, %v7783
      %v7792 = vadd.f32 %v7698, %v7788
      %s7793 = scalar_lea.vmem %s61, 64
      %v7794 = vld [vmem:[%s7793] sm:$0xff]
      %v7795 = vld [vmem:[%s7793 + $0x8] sm:$0xff]
      %v7796 = vld [vmem:[%s7793 + $0x10] sm:$0xff]
      %v7797 = vld [vmem:[%s7793 + $0x18] sm:$0xff]
      %v7798 = vld [vmem:[%s7793 + $0x20] sm:$0xff]
      %v7799 = vld [vmem:[%s7793 + $0x28] sm:$0xff]
      %v7800 = vld [vmem:[%s7793 + $0x30] sm:$0xff]
      %v7801 = vld [vmem:[%s7793 + $0x38] sm:$0xf]
      %v7803 = vsel %vm1194, %v7690, 0
      %v7806 = vsel %vm1194, %v7691, 0
      %v7809 = vsel %vm1207, %v7801, 0
      %7811 = vmatprep.subr.mxu0 0.0
      %7812 = vmatpush1.msra.mxu0 0.0
      %7813 = vmatprep.subr.mxu0 0.0
      %7814 = vmatpush1.msra.mxu0 0.0
      %7815 = vmatprep.subr.mxu0 0.0
      %7816 = vmatpush1.msra.mxu0 0.0
      %7817 = vmatprep.subr.mxu0 0.0
      %7818 = vmatpush1.msra.mxu0 0.0
      %7819 = vmatprep.subr.mxu0 0.0
      %7820 = vmatpush1.msra.mxu0 0.0
      %7821 = vmatprep.subr.mxu0 0.0
      %7822 = vmatpush1.msra.mxu0 0.0
      %7823 = vmatprep.subr.mxu0 0.0
      %7824 = vmatpush1.msra.mxu0 0.0
      %7825 = vmatprep.subr.mxu0 0.0
      %7826 = vmatpush1.msra.mxu0 0.0
      %7827 = vmatprep.subr.mxu0 0.0
      %7828 = vmatpush1.msra.mxu0 %v7809
      %7829 = vmatprep.subr.mxu0 0.0
      %7830 = vmatpush1.msra.mxu0 %v7800
      %7831 = vmatprep.subr.mxu0 0.0
      %7832 = vmatpush1.msra.mxu0 %v7799
      %7833 = vmatprep.subr.mxu0 0.0
      %7834 = vmatpush1.msra.mxu0 %v7798
      %7835 = vmatprep.subr.mxu0 0.0
      %7836 = vmatpush1.msra.mxu0 %v7797
      %7837 = vmatprep.subr.mxu0 0.0
      %7838 = vmatpush1.msra.mxu0 %v7796
      %7839 = vmatprep.subr.mxu0 0.0
      %7840 = vmatpush1.msra.mxu0 %v7795
      %7841 = vmatprep.subr.mxu0 0.0
      %7842 = vmatpush1.msra.mxu0 %v7794
      %7843 = vmatprep.subr.mxu0 0.0
      %7844 = vmatpush2.msra.mxu0 0.0
      %7845 = vmatprep.subr.mxu0 0.0
      %7846 = vmatpush2.msra.mxu0 0.0
      %7847 = vmatprep.subr.mxu0 0.0
      %7848 = vmatpush2.msra.mxu0 0.0
      %7849 = vmatprep.subr.mxu0 0.0
      %7850 = vmatpush2.msra.mxu0 0.0
      %7851 = vmatprep.subr.mxu0 0.0
      %7852 = vmatpush2.msra.mxu0 0.0
      %7853 = vmatprep.subr.mxu0 0.0
      %7854 = vmatpush2.msra.mxu0 0.0
      %7855 = vmatprep.subr.mxu0 0.0
      %7856 = vmatpush2.msra.mxu0 0.0
      %7857 = vmatprep.subr.mxu0 0.0
      %7858 = vmatpush2.msra.mxu0 0.0
      %7859 = vmatprep.subr.mxu0 0.0
      %7860 = vmatpush2.msra.mxu0 0.0
      %7861 = vmatprep.subr.mxu0 0.0
      %7862 = vmatpush2.msra.mxu0 0.0
      %7863 = vmatprep.subr.mxu0 0.0
      %7864 = vmatpush2.msra.mxu0 0.0
      %7865 = vmatprep.subr.mxu0 0.0
      %7866 = vmatpush2.msra.mxu0 0.0
      %7867 = vmatprep.subr.mxu0 0.0
      %7868 = vmatpush2.msra.mxu0 0.0
      %7869 = vmatprep.subr.mxu0 0.0
      %7870 = vmatpush2.msra.mxu0 0.0
      %7871 = vmatprep.subr.mxu0 0.0
      %7872 = vmatpush2.msra.mxu0 0.0
      %7873 = vmatprep.subr.mxu0 0.0
      %7874 = vmatpush2.msra.mxu0 0.0
      %7875 = vmatprep.mubr.f32.mxu0 0.0
      %7876 = vmatmul.mubr.f32.gmra.mxu0 %v7803
      %v7877 = vpop.f32.mrf.mxu0
      %v7878 = vadd.f32 0.0, %v7877
      %v7879 = vpop.f32.mrf.mxu0
      %7880 = vmatprep.mubr.f32.mxu0 0.0
      %7881 = vmatmul.mubr.f32.gmra.mxu0 %v7806
      %v7882 = vpop.f32.mrf.mxu0
      %v7883 = vadd.f32 0.0, %v7882
      %v7884 = vpop.f32.mrf.mxu0
      %7885 = vdwg.mxu0
      %v7886 = vadd.f32 %v7791, %v7878
      %v7887 = vadd.f32 %v7792, %v7883
      %s7888 = scalar_lea.vmem %s61, 128
      %v7889 = vld [vmem:[%s7888] sm:$0xff]
      %v7890 = vld [vmem:[%s7888 + $0x8] sm:$0xff]
      %v7891 = vld [vmem:[%s7888 + $0x10] sm:$0xff]
      %v7892 = vld [vmem:[%s7888 + $0x18] sm:$0xff]
      %v7893 = vld [vmem:[%s7888 + $0x20] sm:$0xff]
      %v7894 = vld [vmem:[%s7888 + $0x28] sm:$0xff]
      %v7895 = vld [vmem:[%s7888 + $0x30] sm:$0xff]
      %v7896 = vld [vmem:[%s7888 + $0x38] sm:$0xf]
      %v7898 = vsel %vm1194, %v7692, 0
      %v7901 = vsel %vm1194, %v7693, 0
      %v7904 = vsel %vm1207, %v7896, 0
      %7906 = vmatprep.subr.mxu0 0.0
      %7907 = vmatpush1.msra.mxu0 0.0
      %7908 = vmatprep.subr.mxu0 0.0
      %7909 = vmatpush1.msra.mxu0 0.0
      %7910 = vmatprep.subr.mxu0 0.0
      %7911 = vmatpush1.msra.mxu0 0.0
      %7912 = vmatprep.subr.mxu0 0.0
      %7913 = vmatpush1.msra.mxu0 0.0
      %7914 = vmatprep.subr.mxu0 0.0
      %7915 = vmatpush1.msra.mxu0 0.0
      %7916 = vmatprep.subr.mxu0 0.0
      %7917 = vmatpush1.msra.mxu0 0.0
      %7918 = vmatprep.subr.mxu0 0.0
      %7919 = vmatpush1.msra.mxu0 0.0
      %7920 = vmatprep.subr.mxu0 0.0
      %7921 = vmatpush1.msra.mxu0 0.0
      %7922 = vmatprep.subr.mxu0 0.0
      %7923 = vmatpush1.msra.mxu0 %v7904
      %7924 = vmatprep.subr.mxu0 0.0
      %7925 = vmatpush1.msra.mxu0 %v7895
      %7926 = vmatprep.subr.mxu0 0.0
      %7927 = vmatpush1.msra.mxu0 %v7894
      %7928 = vmatprep.subr.mxu0 0.0
      %7929 = vmatpush1.msra.mxu0 %v7893
      %7930 = vmatprep.subr.mxu0 0.0
      %7931 = vmatpush1.msra.mxu0 %v7892
      %7932 = vmatprep.subr.mxu0 0.0
      %7933 = vmatpush1.msra.mxu0 %v7891
      %7934 = vmatprep.subr.mxu0 0.0
      %7935 = vmatpush1.msra.mxu0 %v7890
      %7936 = vmatprep.subr.mxu0 0.0
      %7937 = vmatpush1.msra.mxu0 %v7889
      %7938 = vmatprep.subr.mxu0 0.0
      %7939 = vmatpush2.msra.mxu0 0.0
      %7940 = vmatprep.subr.mxu0 0.0
      %7941 = vmatpush2.msra.mxu0 0.0
      %7942 = vmatprep.subr.mxu0 0.0
      %7943 = vmatpush2.msra.mxu0 0.0
      %7944 = vmatprep.subr.mxu0 0.0
      %7945 = vmatpush2.msra.mxu0 0.0
      %7946 = vmatprep.subr.mxu0 0.0
      %7947 = vmatpush2.msra.mxu0 0.0
      %7948 = vmatprep.subr.mxu0 0.0
      %7949 = vmatpush2.msra.mxu0 0.0
      %7950 = vmatprep.subr.mxu0 0.0
      %7951 = vmatpush2.msra.mxu0 0.0
      %7952 = vmatprep.subr.mxu0 0.0
      %7953 = vmatpush2.msra.mxu0 0.0
      %7954 = vmatprep.subr.mxu0 0.0
      %7955 = vmatpush2.msra.mxu0 0.0
      %7956 = vmatprep.subr.mxu0 0.0
      %7957 = vmatpush2.msra.mxu0 0.0
      %7958 = vmatprep.subr.mxu0 0.0
      %7959 = vmatpush2.msra.mxu0 0.0
      %7960 = vmatprep.subr.mxu0 0.0
      %7961 = vmatpush2.msra.mxu0 0.0
      %7962 = vmatprep.subr.mxu0 0.0
      %7963 = vmatpush2.msra.mxu0 0.0
      %7964 = vmatprep.subr.mxu0 0.0
      %7965 = vmatpush2.msra.mxu0 0.0
      %7966 = vmatprep.subr.mxu0 0.0
      %7967 = vmatpush2.msra.mxu0 0.0
      %7968 = vmatprep.subr.mxu0 0.0
      %7969 = vmatpush2.msra.mxu0 0.0
      %7970 = vmatprep.mubr.f32.mxu0 0.0
      %7971 = vmatmul.mubr.f32.gmra.mxu0 %v7898
      %v7972 = vpop.f32.mrf.mxu0
      %v7973 = vadd.f32 0.0, %v7972
      %v7974 = vpop.f32.mrf.mxu0
      %7975 = vmatprep.mubr.f32.mxu0 0.0
      %7976 = vmatmul.mubr.f32.gmra.mxu0 %v7901
      %v7977 = vpop.f32.mrf.mxu0
      %v7978 = vadd.f32 0.0, %v7977
      %v7979 = vpop.f32.mrf.mxu0
      %7980 = vdwg.mxu0
      %v7981 = vadd.f32 %v7886, %v7973
      %v7982 = vadd.f32 %v7887, %v7978
      %s7983 = scalar_lea.vmem %s61, 192
      %v7984 = vld [vmem:[%s7983] sm:$0xff]
      %v7985 = vld [vmem:[%s7983 + $0x8] sm:$0xff]
      %v7986 = vld [vmem:[%s7983 + $0x10] sm:$0xff]
      %v7987 = vld [vmem:[%s7983 + $0x18] sm:$0xff]
      %v7988 = vld [vmem:[%s7983 + $0x20] sm:$0xff]
      %v7989 = vld [vmem:[%s7983 + $0x28] sm:$0xff]
      %v7990 = vld [vmem:[%s7983 + $0x30] sm:$0xff]
      %v7991 = vld [vmem:[%s7983 + $0x38] sm:$0xf]
      %v7993 = vsel %vm1194, %v7694, 0
      %v7996 = vsel %vm1194, %v7695, 0
      %v7999 = vsel %vm1207, %v7991, 0
      %8001 = vmatprep.subr.mxu0 0.0
      %8002 = vmatpush1.msra.mxu0 0.0
      %8003 = vmatprep.subr.mxu0 0.0
      %8004 = vmatpush1.msra.mxu0 0.0
      %8005 = vmatprep.subr.mxu0 0.0
      %8006 = vmatpush1.msra.mxu0 0.0
      %8007 = vmatprep.subr.mxu0 0.0
      %8008 = vmatpush1.msra.mxu0 0.0
      %8009 = vmatprep.subr.mxu0 0.0
      %8010 = vmatpush1.msra.mxu0 0.0
      %8011 = vmatprep.subr.mxu0 0.0
      %8012 = vmatpush1.msra.mxu0 0.0
      %8013 = vmatprep.subr.mxu0 0.0
      %8014 = vmatpush1.msra.mxu0 0.0
      %8015 = vmatprep.subr.mxu0 0.0
      %8016 = vmatpush1.msra.mxu0 0.0
      %8017 = vmatprep.subr.mxu0 0.0
      %8018 = vmatpush1.msra.mxu0 %v7999
      %8019 = vmatprep.subr.mxu0 0.0
      %8020 = vmatpush1.msra.mxu0 %v7990
      %8021 = vmatprep.subr.mxu0 0.0
      %8022 = vmatpush1.msra.mxu0 %v7989
      %8023 = vmatprep.subr.mxu0 0.0
      %8024 = vmatpush1.msra.mxu0 %v7988
      %8025 = vmatprep.subr.mxu0 0.0
      %8026 = vmatpush1.msra.mxu0 %v7987
      %8027 = vmatprep.subr.mxu0 0.0
      %8028 = vmatpush1.msra.mxu0 %v7986
      %8029 = vmatprep.subr.mxu0 0.0
      %8030 = vmatpush1.msra.mxu0 %v7985
      %8031 = vmatprep.subr.mxu0 0.0
      %8032 = vmatpush1.msra.mxu0 %v7984
      %8033 = vmatprep.subr.mxu0 0.0
      %8034 = vmatpush2.msra.mxu0 0.0
      %8035 = vmatprep.subr.mxu0 0.0
      %8036 = vmatpush2.msra.mxu0 0.0
      %8037 = vmatprep.subr.mxu0 0.0
      %8038 = vmatpush2.msra.mxu0 0.0
      %8039 = vmatprep.subr.mxu0 0.0
      %8040 = vmatpush2.msra.mxu0 0.0
      %8041 = vmatprep.subr.mxu0 0.0
      %8042 = vmatpush2.msra.mxu0 0.0
      %8043 = vmatprep.subr.mxu0 0.0
      %8044 = vmatpush2.msra.mxu0 0.0
      %8045 = vmatprep.subr.mxu0 0.0
      %8046 = vmatpush2.msra.mxu0 0.0
      %8047 = vmatprep.subr.mxu0 0.0
      %8048 = vmatpush2.msra.mxu0 0.0
      %8049 = vmatprep.subr.mxu0 0.0
      %8050 = vmatpush2.msra.mxu0 0.0
      %8051 = vmatprep.subr.mxu0 0.0
      %8052 = vmatpush2.msra.mxu0 0.0
      %8053 = vmatprep.subr.mxu0 0.0
      %8054 = vmatpush2.msra.mxu0 0.0
      %8055 = vmatprep.subr.mxu0 0.0
      %8056 = vmatpush2.msra.mxu0 0.0
      %8057 = vmatprep.subr.mxu0 0.0
      %8058 = vmatpush2.msra.mxu0 0.0
      %8059 = vmatprep.subr.mxu0 0.0
      %8060 = vmatpush2.msra.mxu0 0.0
      %8061 = vmatprep.subr.mxu0 0.0
      %8062 = vmatpush2.msra.mxu0 0.0
      %8063 = vmatprep.subr.mxu0 0.0
      %8064 = vmatpush2.msra.mxu0 0.0
      %8065 = vmatprep.mubr.f32.mxu0 0.0
      %8066 = vmatmul.mubr.f32.gmra.mxu0 %v7993
      %v8067 = vpop.f32.mrf.mxu0
      %v8068 = vadd.f32 0.0, %v8067
      %v8069 = vpop.f32.mrf.mxu0
      %8070 = vmatprep.mubr.f32.mxu0 0.0
      %8071 = vmatmul.mubr.f32.gmra.mxu0 %v7996
      %v8072 = vpop.f32.mrf.mxu0
      %v8073 = vadd.f32 0.0, %v8072
      %v8074 = vpop.f32.mrf.mxu0
      %8075 = vdwg.mxu0
      %v8076 = vadd.f32 %v7981, %v8068
      %v8077 = vadd.f32 %v7982, %v8073
      %vm8078 = vcmask 97280
      %8079 = vst.msk [vmem:[%s987] sm:$0xff] %vm8078, %v8076
      %8080 = vst.msk [vmem:[%s987 + $0x8] sm:$0xff] %vm8078, %v8077
      %p8081 = scmp.lt.s32.totalorder %s77, 1
      %s8082 = scalar_select %p8081, %s77, 1
      %s8083 = smul.addr %s8082, 2
      %s8084 = smul.addr %s8083, 8
      %s8085 = scalar_lea.vmem %s65, %s8084
      // Predicated region
      $region149: #{dgcn_forward.1} parent=147 // pred_check
        %p8086 = pneg %p772
      $region150: #{dgcn_forward.1} parent=147 // pred_check_branch
        %8088 = sbr.rel (%p8086) target = $region152
      $region151: #{dgcn_forward.1} parent=147 // pred_region
        _
      $region152: #{dgcn_forward.1} parent=147 // pred_fallthru
        _
    $region148: #{dgcn_forward.1} parent=5 // pred_fallthru
      _
    %p8089 = scmp.le.s32.totalorder 2, %s72
    // Predicated region
    $region153: #{dgcn_forward.1} parent=5 // pred_check
      %p8090 = pneg %p8089
    $region154: #{dgcn_forward.1} parent=5 // pred_check_branch
      %8092 = sbr.rel (%p8090) target = $region156
    $region155: #{dgcn_forward.1} parent=5 // pred_region
      %s8093 = ssub.s32 %s72, 2
      // Predicated region
      $region157: #{dgcn_forward.1} parent=155 // pred_check
        %p8094 = pneg %p778
      $region158: #{dgcn_forward.1} parent=155 // pred_check_branch
        %8096 = sbr.rel (%p8094) target = $region160
      $region159: #{dgcn_forward.1} parent=155 // pred_region
        %p8097 = scmp.lt.s32.totalorder %s78, 1
        %s8098 = scalar_select %p8097, %s78, 1
        %s8099 = smul.addr %s8098, 2
        %s8100 = smul.addr %s8099, 8
        %s8101 = scalar_lea.vmem %s65, %s8100
      $region160: #{dgcn_forward.1} parent=155 // pred_fallthru
        _
    $region156: #{dgcn_forward.1} parent=5 // pred_fallthru
      _
  $region6: #{dgcn_forward.1} parent=0 // loop_footer
    %s76 = sadd.s32 1, %s72
  $region7: #{dgcn_forward.1} parent=0 // loop_footer_branch
    %71 = sbr.rel target = $region3
  $region8: #{dgcn_forward.1} parent=0 // loop_exit
    _

</llo_original>
